<compile_context>
chip_gen: v5e
topology: v5e:2x2
jax: 0.10.0
libtpu: 0.0.40
codegen_flags: <defaults>
</compile_context>

<pallas_src>
import math

import jax
import jax.numpy as jnp
from jax.experimental import pallas as pl
from jax.experimental.pallas import tpu as pltpu  # noqa: F401  (reserved for scale-up path)

NEG_INF = -1e9
OUT_PAD = 128  # lane-dense padded output width


# ----------------------------------------------------------------------------
# The single fused kernel
# ----------------------------------------------------------------------------

def make_flownet_kernel(B, S, D, H, mlp_counts, block_has_a, n_final_rest, eps=1e-6):
    """One kernel for the whole FlowNet forward pass."""
    nt, nf, ng, ntm = mlp_counts          # number of (w,b) pairs per init MLP
    hd = D // H
    BS = B * S
    P_CA = 13                             # stacked weight arrays per CALayer set

    def run_mlp(h, wb):
        """Linear -> SiLU -> ... -> Linear (no final act). wb = [w0,b0,w1,b1,...] refs."""
        n = len(wb) // 2
        for i in range(n):
            w = wb[2 * i][...]            # bf16
            b = wb[2 * i + 1][...]        # f32
            h = jnp.dot(h.astype(jnp.bfloat16), w, preferred_element_type=jnp.float32) + b
            if i < n - 1:
                h = jax.nn.silu(h)
        return h

    def rms_norm(v, w):                   # v (N, D) f32, w (1, D) f32
        ms = jnp.mean(v * v, axis=-1, keepdims=True)
        return v * jax.lax.rsqrt(ms + eps) * w

    def kernel(*refs):
        it = iter(refs)
        nxt = lambda: next(it)            # noqa: E731

        # -------- data inputs --------
        truth_tok = nxt(); fs_tok = nxt()                 # (BS, in_dim)
        tmask_col = nxt(); fmask_col = nxt()              # (BS, 1)
        tmask_row = nxt(); fmask_row = nxt()              # (B, S)
        pool = nxt()                                      # (B, BS) masked-mean matrix
        tfeat = nxt(); glob = nxt()                       # (B, 256), (B, glob_in)
        # -------- init / context MLP weights --------
        tw = [nxt() for _ in range(2 * nt)]
        fw = [nxt() for _ in range(2 * nf)]
        gw = [nxt() for _ in range(2 * ng)]
        timew = [nxt() for _ in range(2 * ntm)]
        # -------- CA-layer weights, each stacked over layers (leading dim = n_layers) ---
        ca = [nxt() for _ in range(P_CA)]
        # -------- final DenseNetwork (first-layer weight split fs / ctxt) --------
        w1f = nxt(); w1c = nxt(); b1 = nxt()
        fin = [nxt() for _ in range(2 * n_final_rest)]
        out_ref = nxt()

        # ================= context =================
        te = run_mlp(truth_tok[...], tw) * tmask_col[...]      # (BS, D) masked truth_embd
        fe = run_mlp(fs_tok[...], fw) * fmask_col[...]         # (BS, D) masked fs_embd

        # masked mean-pool as one matmul with the precomputed block-diagonal
        # pooling matrix (mask and 1/max(count,1) folded in).
        truth_ctxt = jnp.dot(pool[...], te, preferred_element_type=jnp.float32)  # (B, D)

        time_e = run_mlp(tfeat[...], timew)                    # (B, D)
        glob_e = run_mlp(glob[...], gw)                        # (B, D)
        ctxt = jnp.concatenate([truth_ctxt, glob_e, time_e], axis=-1)  # (B, 3D)
        silu_ctxt = jax.nn.silu(ctxt).astype(jnp.bfloat16)     # shared by all adaLN branches

        # additive key-padding biases built from the (B, S) masks (sublane broadcast)
        bias_tr = ((1.0 - tmask_row[...]) * NEG_INF)[:, None, :]   # (B, 1, S)
        bias_fs = ((1.0 - fmask_row[...]) * NEG_INF)[:, None, :]

        # ================= CALayer =================
        def ca_layer(x, kv, bias, li):
            n1 = ca[0][li]; nk = ca[1][li]; n2 = ca[2][li]       # (1, D)
            ada_w = ca[3][li]; ada_b = ca[4][li]                  # (3D, 6D) bf16, (1, 6D)
            wq = ca[5][li]; bq = ca[6][li]                        # (D, D) bf16, (1, D)
            wkv = ca[7][li]; bkv = ca[8][li]                      # (D, 2D) bf16, (1, 2D)
            wo = ca[9][li]; bo = ca[10][li]                       # (D, D) bf16, (1, D)
            win = ca[11][li]; wout = ca[12][li]                   # (D, 2*mh), (mh, D) bf16

            # fused adaLN: one (B,3D)@(3D,6D) matmul, width-D lane slices
            mod = jnp.dot(silu_ctxt, ada_w, preferred_element_type=jnp.float32) + ada_b
            shift_msa = mod[:, 0 * D:1 * D]; scale_msa = mod[:, 1 * D:2 * D]
            gate_msa = mod[:, 2 * D:3 * D]; shift_mlp = mod[:, 3 * D:4 * D]
            scale_mlp = mod[:, 4 * D:5 * D]; gate_mlp = mod[:, 5 * D:6 * D]

            # ---- attention branch ----
            h = rms_norm(x.reshape(BS, D), n1).reshape(B, S, D)
            h = h * (1.0 + scale_msa[:, None, :]) + shift_msa[:, None, :]   # modulate()
            h2 = h.reshape(BS, D).astype(jnp.bfloat16)
            k2 = rms_norm(kv.reshape(BS, D), nk).astype(jnp.bfloat16)

            q = (jnp.dot(h2, wq, preferred_element_type=jnp.float32) + bq)       # scale folded in
            kvp = jnp.dot(k2, wkv, preferred_element_type=jnp.float32) + bkv     # (BS, 2D)
            qb = q.reshape(B, S, D).astype(jnp.bfloat16)
            kb = kvp[:, :D].reshape(B, S, D).astype(jnp.bfloat16)
            vb = kvp[:, D:].reshape(B, S, D).astype(jnp.bfloat16)

            heads = []
            for hi in range(H):                       # static width-hd lane slices only
                sl = slice(hi * hd, (hi + 1) * hd)
                logits = jnp.einsum('bqd,bkd->bqk', qb[:, :, sl], kb[:, :, sl],
                                    preferred_element_type=jnp.float32) + bias   # (B, S, S)
                m = jnp.max(logits, axis=-1, keepdims=True)
                p = jnp.exp(logits - m)
                p = p / jnp.sum(p, axis=-1, keepdims=True)
                heads.append(jnp.einsum('bqk,bkd->bqd', p.astype(jnp.bfloat16), vb[:, :, sl],
                                        preferred_element_type=jnp.float32))
            o = jnp.concatenate(heads, axis=-1).reshape(BS, D).astype(jnp.bfloat16)
            attn = (jnp.dot(o, wo, preferred_element_type=jnp.float32) + bo).reshape(B, S, D)
            x = x + gate_msa[:, None, :] * attn                   # gated residual

            # ---- gated GLU MLP branch ----
            g = rms_norm(x.reshape(BS, D), n2).reshape(B, S, D)
            g = g * (1.0 + scale_mlp[:, None, :]) + shift_mlp[:, None, :]
            g2 = g.reshape(BS, D).astype(jnp.bfloat16)
            u = jnp.dot(g2, win, preferred_element_type=jnp.float32)   # (BS, 2*mh)
            mh = u.shape[-1] // 2
            gg = (jax.nn.silu(u[:, :mh]) * u[:, mh:]).astype(jnp.bfloat16)
            mlp_out = jnp.dot(gg, wout, preferred_element_type=jnp.float32).reshape(B, S, D)
            return x + gate_mlp[:, None, :] * mlp_out             # gated residual

        seq_a = te.reshape(B, S, D)   # truth_embd
        seq_b = fe.reshape(B, S, D)   # fs_embd
        li = 0
        for has_a in block_has_a:
            seq_b = ca_layer(seq_b, seq_a, bias_tr, li); li += 1
            if has_a:
                seq_a = ca_layer(seq_a, seq_b, bias_fs, li); li += 1

        # ================= final DenseNetwork (ctxt concat folded into split weight) ====
        fsf = seq_b.reshape(BS, D).astype(jnp.bfloat16)
        ctxt_b = ctxt.astype(jnp.bfloat16)
        h_tok = jnp.dot(fsf, w1f[...], preferred_element_type=jnp.float32) + b1[...]
        h_ctx = jnp.dot(ctxt_b, w1c[...], preferred_element_type=jnp.float32)   # once per event
        dh = h_tok.shape[-1]
        hcur = jax.nn.silu(h_tok.reshape(B, S, dh) + h_ctx[:, None, :]).reshape(BS, dh)
        for i in range(n_final_rest):
            w = fin[2 * i][...]
            b = fin[2 * i + 1][...]
            hcur = jnp.dot(hcur.astype(jnp.bfloat16), w, preferred_element_type=jnp.float32) + b
            if i < n_final_rest - 1:
                hcur = jax.nn.silu(hcur)
        out_ref[...] = hcur        # (BS, OUT_PAD) lane-dense store

    return kernel


# ----------------------------------------------------------------------------
# FlowNet forward: tiny JAX glue + one pallas_call
# ----------------------------------------------------------------------------

def timestep_sinusoid(t, dim, max_period=10000.0, time_factor=1.0):
    t = t.astype(jnp.float32) * time_factor
    half = dim // 2
    freqs = jnp.exp(-math.log(max_period) * jnp.arange(half, dtype=jnp.float32) / half)
    args = t[:, None] * freqs[None, :]
    return jnp.concatenate([jnp.cos(args), jnp.sin(args)], axis=-1)


def flownet_forward(params, fs_data, truth_data, mask, timestep, global_data):
    B, S, _ = fs_data.shape
    D = params['hidden_dim']
    H = params['num_heads']
    tm = mask[..., 0].astype(jnp.float32)                       # (B, S)
    fm = mask[..., 1].astype(jnp.float32)

    # block-diagonal masked-mean pooling matrix; count clamped >= 1 (no div-by-zero)
    cnt = jnp.maximum(jnp.sum(tm, axis=1, keepdims=True), 1.0)
    pool_mat = (jnp.eye(B, dtype=jnp.float32)[:, :, None] * (tm / cnt)[None, :, :]).reshape(B, B * S)

    t_feat = timestep_sinusoid(timestep, params['time_freq_dim'],
                               time_factor=params['time_factor'])

    mlp_counts = (len(params['truth_init']), len(params['fs_init']),
                  len(params['global']), len(params['time_mlp']))
    n_final_rest = len(params['final'][3])

    kernel = make_flownet_kernel(B, S, D, H, mlp_counts, params['block_has_a'], n_final_rest)

    args = [truth_data.reshape(B * S, -1), fs_data.reshape(B * S, -1),
            tm.reshape(B * S, 1), fm.reshape(B * S, 1),
            tm, fm, pool_mat, t_feat, global_data]
    for layers in (params['truth_init'], params['fs_init'], params['global'], params['time_mlp']):
        for w, b in layers:
            args.extend([w, b])
    args.extend(params['ca_stack'])
    w1f, w1c, b1, rest = params['final']
    args.extend([w1f, w1c, b1])
    for w, b in rest:
        args.extend([w, b])

    out = pl.pallas_call(
        kernel,
        out_shape=jax.ShapeDtypeStruct((B * S, OUT_PAD), jnp.float32),
        # TODO(synk): at production B/S add grid=(B,) + dimension_semantics=("parallel",)
        #             so both v7x TensorCores are used; gridless is optimal for 1-TC chips.
    )(*args)

    out_dim = params['fs_out_dim']
    return out[:, :out_dim].reshape(B, S, out_dim)


# ----------------------------------------------------------------------------
# Deterministic synthetic parameters packed for the kernel
# ----------------------------------------------------------------------------

class KeyGen:
    def __init__(self, key):
        self.key = key

    def __call__(self):
        self.key, k = jax.random.split(self.key)
        return k


def init_linear(kg, din, dout, bias=True):
    w = jax.random.normal(kg(), (din, dout), jnp.float32) / math.sqrt(din)
    if not bias:
        return w
    b = jax.random.normal(kg(), (1, dout), jnp.float32) * 0.02
    return w, b


def init_dense_network(kg, din, hidden, dout):
    dims = [din] + list(hidden) + [dout]
    return [init_linear(kg, dims[i], dims[i + 1]) for i in range(len(dims) - 1)]


def pack_dense(layers):
    return [(w.astype(jnp.bfloat16), b) for (w, b) in layers]


def init_ca_layer(kg, D, num_heads, mlp_hidden):
    hd = D // num_heads
    scale = 1.0 / math.sqrt(hd)          # folded into the Q projection

    def norm_w():
        return jnp.ones((1, D), jnp.float32) + 0.05 * jax.random.normal(kg(), (1, D), jnp.float32)

    wq, bq = init_linear(kg, D, D)
    wk, bk = init_linear(kg, D, D)
    wv, bv = init_linear(kg, D, D)
    wo, bo = init_linear(kg, D, D)
    w_in = init_linear(kg, D, 2 * mlp_hidden, bias=False)   # GLU(gated, bias=False)
    w_out = init_linear(kg, mlp_hidden, D, bias=False)
    # NOTE: the reference zero-inits adaLN in reset_parameters() (blocks start as
    # identity); small random values are used so the attention/GLU paths are exercised.
    ada_w = 0.02 * jax.random.normal(kg(), (3 * D, 6 * D), jnp.float32)
    ada_b = 0.02 * jax.random.normal(kg(), (1, 6 * D), jnp.float32)

    return (norm_w(), norm_w(), norm_w(),                    # norm1, norm_k, norm2
            ada_w.astype(jnp.bfloat16), ada_b,               # fused adaLN (3D,6D)
            (wq * scale).astype(jnp.bfloat16), bq * scale,   # Q (scale folded)
            jnp.concatenate([wk, wv], axis=1).astype(jnp.bfloat16),   # fused KV (D,2D)
            jnp.concatenate([bk, bv], axis=1),
            wo.astype(jnp.bfloat16), bo,                     # output projection
            w_in.astype(jnp.bfloat16), w_out.astype(jnp.bfloat16))    # GLU


def build_params(config, kg):
    D = config['hidden_dim']
    NH = config['num_heads']
    n_layers = config['num_dit_layers']
    mlp_hidden = int(D * config['mlp_ratio'])
    truth_in = len(config['truth_variables']) + 5
    fs_in = len(config['pflow_variables']) + 5
    glob_in = config['global_dim']
    freq_dim = 256

    # CA layers in EXECUTION order: blk0.layer_b, blk0.layer_a, ..., last.layer_b
    layers_exec = []
    block_has_a = []
    for i in range(n_layers):
        is_last = (i == n_layers - 1)
        block_has_a.append(not is_last)
        layers_exec.append(init_ca_layer(kg, D, NH, mlp_hidden))       # layer_b
        if not is_last:
            layers_exec.append(init_ca_layer(kg, D, NH, mlp_hidden))   # layer_a
    n_fields = len(layers_exec[0])
    ca_stack = tuple(jnp.stack([lay[j] for lay in layers_exec], axis=0)
                     for j in range(n_fields))

    # final DenseNetwork on concat([fs_embd, ctxt]) -> split first-layer weight
    final_layers = init_dense_network(kg, 4 * D, [D, D, D], fs_in)
    w1, b1 = final_layers[0]
    rest = final_layers[1:]
    wl, bl = rest[-1]
    wl_p = jnp.zeros((wl.shape[0], OUT_PAD), jnp.float32).at[:, :fs_in].set(wl)
    bl_p = jnp.zeros((1, OUT_PAD), jnp.float32).at[:, :fs_in].set(bl)
    rest = rest[:-1] + [(wl_p, bl_p)]

    # FlowNet's top-level self.adaLN_modulation is unused in forward() -> omitted.
    return {
        'hidden_dim': D,
        'num_heads': NH,
        'fs_out_dim': fs_in,
        'time_freq_dim': freq_dim,
        'time_factor': float(config['time_factor']),
        'truth_init': pack_dense(init_dense_network(kg, truth_in, [D, D], D)),
        'fs_init': pack_dense(init_dense_network(kg, fs_in, [D, D], D)),
        'global': pack_dense(init_dense_network(kg, glob_in, [D, D], D)),
        'time_mlp': pack_dense([init_linear(kg, freq_dim, D), init_linear(kg, D, D)]),
        'block_has_a': tuple(block_has_a),
        'ca_stack': ca_stack,
        'final': (w1[:D, :].astype(jnp.bfloat16), w1[D:, :].astype(jnp.bfloat16), b1,
                  pack_dense(rest)),
    }


# ----------------------------------------------------------------------------
# Main
# ----------------------------------------------------------------------------

if __name__ == "__main__":
    config = {
        'hidden_dim': 32,
        'num_heads': 4,
        'num_dit_layers': 2,
        'mlp_ratio': 4.0,
        'act': 'SiLU',
        'truth_variables': ['pt', 'eta', 'phi'],     # truth_in_dim = 3 + 5 = 8
        'pflow_variables': ['pt', 'eta', 'phi'],     # fs_in_dim    = 3 + 5 = 8
        'global_dim': 6,
        'time_factor': 1.0,
        'mha_config': {'attn_type': 'torch-meff'},
    }

    B, S = 2, 8
    truth_in = len(config['truth_variables']) + 5
    fs_in = len(config['pflow_variables']) + 5

    params = build_params(config, KeyGen(jax.random.PRNGKey(1)))

    kd = KeyGen(jax.random.PRNGKey(0))
    fs_data = jax.random.normal(kd(), (B, S, fs_in), jnp.float32)
    truth_data = jax.random.normal(kd(), (B, S, truth_in), jnp.float32)
    timestep = jax.random.uniform(kd(), (B,), jnp.float32)
    global_data = jax.random.normal(kd(), (B, config['global_dim']), jnp.float32)

    # padding masks: truth valid lengths (8, 5); fs valid lengths (6, 8)
    idx = jnp.arange(S)
    truth_mask = jnp.stack([idx < 8, idx < 5], axis=0)
    fs_mask = jnp.stack([idx < 6, idx < 8], axis=0)
    mask = jnp.stack([truth_mask, fs_mask], axis=-1)             # [B, S, 2] bool

    fwd = jax.jit(lambda fs, tr, mk, ts, gl: flownet_forward(params, fs, tr, mk, ts, gl))
    out = fwd(fs_data, truth_data, mask, timestep, global_data)
    jax.block_until_ready(out)
    assert out.shape == (B, S, fs_in), out.shape
    assert bool(jnp.all(jnp.isfinite(out)))
    print("KERNEL_OK")
</pallas_src>

<mosaic_0001>
module attributes {stable_mosaic.version = 11 : i64} {
  func.func @kernel(%arg0: memref<16x8xf32, #tpu.memory_space<vmem>>, %arg1: memref<16x8xf32, #tpu.memory_space<vmem>>, %arg2: memref<16x1xf32, #tpu.memory_space<vmem>>, %arg3: memref<16x1xf32, #tpu.memory_space<vmem>>, %arg4: memref<2x8xf32, #tpu.memory_space<vmem>>, %arg5: memref<2x8xf32, #tpu.memory_space<vmem>>, %arg6: memref<2x16xf32, #tpu.memory_space<vmem>>, %arg7: memref<2x256xf32, #tpu.memory_space<vmem>>, %arg8: memref<2x6xf32, #tpu.memory_space<vmem>>, %arg9: memref<8x32xbf16, #tpu.memory_space<vmem>>, %arg10: memref<1x32xf32, #tpu.memory_space<vmem>>, %arg11: memref<32x32xbf16, #tpu.memory_space<vmem>>, %arg12: memref<1x32xf32, #tpu.memory_space<vmem>>, %arg13: memref<32x32xbf16, #tpu.memory_space<vmem>>, %arg14: memref<1x32xf32, #tpu.memory_space<vmem>>, %arg15: memref<8x32xbf16, #tpu.memory_space<vmem>>, %arg16: memref<1x32xf32, #tpu.memory_space<vmem>>, %arg17: memref<32x32xbf16, #tpu.memory_space<vmem>>, %arg18: memref<1x32xf32, #tpu.memory_space<vmem>>, %arg19: memref<32x32xbf16, #tpu.memory_space<vmem>>, %arg20: memref<1x32xf32, #tpu.memory_space<vmem>>, %arg21: memref<6x32xbf16, #tpu.memory_space<vmem>>, %arg22: memref<1x32xf32, #tpu.memory_space<vmem>>, %arg23: memref<32x32xbf16, #tpu.memory_space<vmem>>, %arg24: memref<1x32xf32, #tpu.memory_space<vmem>>, %arg25: memref<32x32xbf16, #tpu.memory_space<vmem>>, %arg26: memref<1x32xf32, #tpu.memory_space<vmem>>, %arg27: memref<256x32xbf16, #tpu.memory_space<vmem>>, %arg28: memref<1x32xf32, #tpu.memory_space<vmem>>, %arg29: memref<32x32xbf16, #tpu.memory_space<vmem>>, %arg30: memref<1x32xf32, #tpu.memory_space<vmem>>, %arg31: memref<3x1x32xf32, #tpu.memory_space<vmem>>, %arg32: memref<3x1x32xf32, #tpu.memory_space<vmem>>, %arg33: memref<3x1x32xf32, #tpu.memory_space<vmem>>, %arg34: memref<3x96x192xbf16, #tpu.memory_space<vmem>>, %arg35: memref<3x1x192xf32, #tpu.memory_space<vmem>>, %arg36: memref<3x32x32xbf16, #tpu.memory_space<vmem>>, %arg37: memref<3x1x32xf32, #tpu.memory_space<vmem>>, %arg38: memref<3x32x64xbf16, #tpu.memory_space<vmem>>, %arg39: memref<3x1x64xf32, #tpu.memory_space<vmem>>, %arg40: memref<3x32x32xbf16, #tpu.memory_space<vmem>>, %arg41: memref<3x1x32xf32, #tpu.memory_space<vmem>>, %arg42: memref<3x32x256xbf16, #tpu.memory_space<vmem>>, %arg43: memref<3x128x32xbf16, #tpu.memory_space<vmem>>, %arg44: memref<32x32xbf16, #tpu.memory_space<vmem>>, %arg45: memref<96x32xbf16, #tpu.memory_space<vmem>>, %arg46: memref<1x32xf32, #tpu.memory_space<vmem>>, %arg47: memref<32x32xbf16, #tpu.memory_space<vmem>>, %arg48: memref<1x32xf32, #tpu.memory_space<vmem>>, %arg49: memref<32x32xbf16, #tpu.memory_space<vmem>>, %arg50: memref<1x32xf32, #tpu.memory_space<vmem>>, %arg51: memref<32x128xbf16, #tpu.memory_space<vmem>>, %arg52: memref<1x128xf32, #tpu.memory_space<vmem>>, %arg53: memref<16x128xf32, #tpu.memory_space<vmem>>) attributes {dimension_semantics = [], scalar_prefetch = 0 : i64, scratch_operands = 0 : i64, tpu.core_type = #tpu.core_type<tc>} {
    %c0 = arith.constant 0 : index
    %c0_0 = arith.constant 0 : index
    %0 = vector.load %arg0[%c0, %c0_0] : memref<16x8xf32, #tpu.memory_space<vmem>>, vector<16x8xf32>
    %c0_1 = arith.constant 0 : index
    %c0_2 = arith.constant 0 : index
    %1 = vector.load %arg9[%c0_1, %c0_2] : memref<8x32xbf16, #tpu.memory_space<vmem>>, vector<8x32xbf16>
    %c0_3 = arith.constant 0 : index
    %c0_4 = arith.constant 0 : index
    %2 = vector.load %arg10[%c0_3, %c0_4] : memref<1x32xf32, #tpu.memory_space<vmem>>, vector<1x32xf32>
    %3 = arith.truncf %0 : vector<16x8xf32> to vector<16x8xbf16>
    %cst = arith.constant dense<0.000000e+00> : vector<16x32xf32>
    %4 = tpu.matmul %3, %1, %cst {dimension_numbers = #tpu.dot_dimension_numbers<[1], [0], [0], [1], [0, 0, 1, 1], [], []>} : vector<16x8xbf16>, vector<8x32xbf16>, vector<16x32xf32> -> vector<16x32xf32>
    %5 = vector.broadcast %2 : vector<1x32xf32> to vector<16x32xf32>
    %6 = arith.addf %4, %5 : vector<16x32xf32>
    %7 = arith.negf %6 : vector<16x32xf32>
    %8 = math.exp %7 : vector<16x32xf32>
    %cst_5 = arith.constant 1.000000e+00 : f32
    %9 = vector.broadcast %cst_5 : f32 to vector<16x32xf32>
    %10 = arith.addf %9, %8 : vector<16x32xf32>
    %11 = arith.divf %9, %10 : vector<16x32xf32>
    %12 = arith.mulf %6, %11 : vector<16x32xf32>
    %c0_6 = arith.constant 0 : index
    %c0_7 = arith.constant 0 : index
    %13 = vector.load %arg11[%c0_6, %c0_7] : memref<32x32xbf16, #tpu.memory_space<vmem>>, vector<32x32xbf16>
    %c0_8 = arith.constant 0 : index
    %c0_9 = arith.constant 0 : index
    %14 = vector.load %arg12[%c0_8, %c0_9] : memref<1x32xf32, #tpu.memory_space<vmem>>, vector<1x32xf32>
    %15 = arith.truncf %12 : vector<16x32xf32> to vector<16x32xbf16>
    %cst_10 = arith.constant dense<0.000000e+00> : vector<16x32xf32>
    %16 = tpu.matmul %15, %13, %cst_10 {dimension_numbers = #tpu.dot_dimension_numbers<[1], [0], [0], [1], [0, 0, 1, 1], [], []>} : vector<16x32xbf16>, vector<32x32xbf16>, vector<16x32xf32> -> vector<16x32xf32>
    %17 = vector.broadcast %14 : vector<1x32xf32> to vector<16x32xf32>
    %18 = arith.addf %16, %17 : vector<16x32xf32>
    %19 = arith.negf %18 : vector<16x32xf32>
    %20 = math.exp %19 : vector<16x32xf32>
    %cst_11 = arith.constant 1.000000e+00 : f32
    %21 = vector.broadcast %cst_11 : f32 to vector<16x32xf32>
    %22 = arith.addf %21, %20 : vector<16x32xf32>
    %23 = arith.divf %21, %22 : vector<16x32xf32>
    %24 = arith.mulf %18, %23 : vector<16x32xf32>
    %c0_12 = arith.constant 0 : index
    %c0_13 = arith.constant 0 : index
    %25 = vector.load %arg13[%c0_12, %c0_13] : memref<32x32xbf16, #tpu.memory_space<vmem>>, vector<32x32xbf16>
    %c0_14 = arith.constant 0 : index
    %c0_15 = arith.constant 0 : index
    %26 = vector.load %arg14[%c0_14, %c0_15] : memref<1x32xf32, #tpu.memory_space<vmem>>, vector<1x32xf32>
    %27 = arith.truncf %24 : vector<16x32xf32> to vector<16x32xbf16>
    %cst_16 = arith.constant dense<0.000000e+00> : vector<16x32xf32>
    %28 = tpu.matmul %27, %25, %cst_16 {dimension_numbers = #tpu.dot_dimension_numbers<[1], [0], [0], [1], [0, 0, 1, 1], [], []>} : vector<16x32xbf16>, vector<32x32xbf16>, vector<16x32xf32> -> vector<16x32xf32>
    %29 = vector.broadcast %26 : vector<1x32xf32> to vector<16x32xf32>
    %30 = arith.addf %28, %29 : vector<16x32xf32>
    %c0_17 = arith.constant 0 : index
    %c0_18 = arith.constant 0 : index
    %31 = vector.load %arg2[%c0_17, %c0_18] : memref<16x1xf32, #tpu.memory_space<vmem>>, vector<16x1xf32>
    %32 = vector.broadcast %31 : vector<16x1xf32> to vector<16x32xf32>
    %33 = arith.mulf %30, %32 : vector<16x32xf32>
    %c0_19 = arith.constant 0 : index
    %c0_20 = arith.constant 0 : index
    %34 = vector.load %arg1[%c0_19, %c0_20] : memref<16x8xf32, #tpu.memory_space<vmem>>, vector<16x8xf32>
    %c0_21 = arith.constant 0 : index
    %c0_22 = arith.constant 0 : index
    %35 = vector.load %arg15[%c0_21, %c0_22] : memref<8x32xbf16, #tpu.memory_space<vmem>>, vector<8x32xbf16>
    %c0_23 = arith.constant 0 : index
    %c0_24 = arith.constant 0 : index
    %36 = vector.load %arg16[%c0_23, %c0_24] : memref<1x32xf32, #tpu.memory_space<vmem>>, vector<1x32xf32>
    %37 = arith.truncf %34 : vector<16x8xf32> to vector<16x8xbf16>
    %cst_25 = arith.constant dense<0.000000e+00> : vector<16x32xf32>
    %38 = tpu.matmul %37, %35, %cst_25 {dimension_numbers = #tpu.dot_dimension_numbers<[1], [0], [0], [1], [0, 0, 1, 1], [], []>} : vector<16x8xbf16>, vector<8x32xbf16>, vector<16x32xf32> -> vector<16x32xf32>
    %39 = vector.broadcast %36 : vector<1x32xf32> to vector<16x32xf32>
    %40 = arith.addf %38, %39 : vector<16x32xf32>
    %41 = arith.negf %40 : vector<16x32xf32>
    %42 = math.exp %41 : vector<16x32xf32>
    %cst_26 = arith.constant 1.000000e+00 : f32
    %43 = vector.broadcast %cst_26 : f32 to vector<16x32xf32>
    %44 = arith.addf %43, %42 : vector<16x32xf32>
    %45 = arith.divf %43, %44 : vector<16x32xf32>
    %46 = arith.mulf %40, %45 : vector<16x32xf32>
    %c0_27 = arith.constant 0 : index
    %c0_28 = arith.constant 0 : index
    %47 = vector.load %arg17[%c0_27, %c0_28] : memref<32x32xbf16, #tpu.memory_space<vmem>>, vector<32x32xbf16>
    %c0_29 = arith.constant 0 : index
    %c0_30 = arith.constant 0 : index
    %48 = vector.load %arg18[%c0_29, %c0_30] : memref<1x32xf32, #tpu.memory_space<vmem>>, vector<1x32xf32>
    %49 = arith.truncf %46 : vector<16x32xf32> to vector<16x32xbf16>
    %cst_31 = arith.constant dense<0.000000e+00> : vector<16x32xf32>
    %50 = tpu.matmul %49, %47, %cst_31 {dimension_numbers = #tpu.dot_dimension_numbers<[1], [0], [0], [1], [0, 0, 1, 1], [], []>} : vector<16x32xbf16>, vector<32x32xbf16>, vector<16x32xf32> -> vector<16x32xf32>
    %51 = vector.broadcast %48 : vector<1x32xf32> to vector<16x32xf32>
    %52 = arith.addf %50, %51 : vector<16x32xf32>
    %53 = arith.negf %52 : vector<16x32xf32>
    %54 = math.exp %53 : vector<16x32xf32>
    %cst_32 = arith.constant 1.000000e+00 : f32
    %55 = vector.broadcast %cst_32 : f32 to vector<16x32xf32>
    %56 = arith.addf %55, %54 : vector<16x32xf32>
    %57 = arith.divf %55, %56 : vector<16x32xf32>
    %58 = arith.mulf %52, %57 : vector<16x32xf32>
    %c0_33 = arith.constant 0 : index
    %c0_34 = arith.constant 0 : index
    %59 = vector.load %arg19[%c0_33, %c0_34] : memref<32x32xbf16, #tpu.memory_space<vmem>>, vector<32x32xbf16>
    %c0_35 = arith.constant 0 : index
    %c0_36 = arith.constant 0 : index
    %60 = vector.load %arg20[%c0_35, %c0_36] : memref<1x32xf32, #tpu.memory_space<vmem>>, vector<1x32xf32>
    %61 = arith.truncf %58 : vector<16x32xf32> to vector<16x32xbf16>
    %cst_37 = arith.constant dense<0.000000e+00> : vector<16x32xf32>
    %62 = tpu.matmul %61, %59, %cst_37 {dimension_numbers = #tpu.dot_dimension_numbers<[1], [0], [0], [1], [0, 0, 1, 1], [], []>} : vector<16x32xbf16>, vector<32x32xbf16>, vector<16x32xf32> -> vector<16x32xf32>
    %63 = vector.broadcast %60 : vector<1x32xf32> to vector<16x32xf32>
    %64 = arith.addf %62, %63 : vector<16x32xf32>
    %c0_38 = arith.constant 0 : index
    %c0_39 = arith.constant 0 : index
    %65 = vector.load %arg3[%c0_38, %c0_39] : memref<16x1xf32, #tpu.memory_space<vmem>>, vector<16x1xf32>
    %66 = vector.broadcast %65 : vector<16x1xf32> to vector<16x32xf32>
    %67 = arith.mulf %64, %66 : vector<16x32xf32>
    %c0_40 = arith.constant 0 : index
    %c0_41 = arith.constant 0 : index
    %68 = vector.load %arg6[%c0_40, %c0_41] : memref<2x16xf32, #tpu.memory_space<vmem>>, vector<2x16xf32>
    %cst_42 = arith.constant dense<0.000000e+00> : vector<2x32xf32>
    %69 = tpu.matmul %68, %33, %cst_42 {dimension_numbers = #tpu.dot_dimension_numbers<[1], [0], [0], [1], [0, 0, 1, 1], [], []>} : vector<2x16xf32>, vector<16x32xf32>, vector<2x32xf32> -> vector<2x32xf32>
    %c0_43 = arith.constant 0 : index
    %c0_44 = arith.constant 0 : index
    %70 = vector.load %arg7[%c0_43, %c0_44] : memref<2x256xf32, #tpu.memory_space<vmem>>, vector<2x256xf32>
    %c0_45 = arith.constant 0 : index
    %c0_46 = arith.constant 0 : index
    %71 = vector.load %arg27[%c0_45, %c0_46] : memref<256x32xbf16, #tpu.memory_space<vmem>>, vector<256x32xbf16>
    %c0_47 = arith.constant 0 : index
    %c0_48 = arith.constant 0 : index
    %72 = vector.load %arg28[%c0_47, %c0_48] : memref<1x32xf32, #tpu.memory_space<vmem>>, vector<1x32xf32>
    %73 = arith.truncf %70 : vector<2x256xf32> to vector<2x256xbf16>
    %cst_49 = arith.constant dense<0.000000e+00> : vector<2x32xf32>
    %74 = tpu.matmul %73, %71, %cst_49 {dimension_numbers = #tpu.dot_dimension_numbers<[1], [0], [0], [1], [0, 0, 1, 1], [], []>} : vector<2x256xbf16>, vector<256x32xbf16>, vector<2x32xf32> -> vector<2x32xf32>
    %75 = vector.broadcast %72 : vector<1x32xf32> to vector<2x32xf32>
    %76 = arith.addf %74, %75 : vector<2x32xf32>
    %77 = arith.negf %76 : vector<2x32xf32>
    %78 = math.exp %77 : vector<2x32xf32>
    %cst_50 = arith.constant 1.000000e+00 : f32
    %79 = vector.broadcast %cst_50 : f32 to vector<2x32xf32>
    %80 = arith.addf %79, %78 : vector<2x32xf32>
    %81 = arith.divf %79, %80 : vector<2x32xf32>
    %82 = arith.mulf %76, %81 : vector<2x32xf32>
    %c0_51 = arith.constant 0 : index
    %c0_52 = arith.constant 0 : index
    %83 = vector.load %arg29[%c0_51, %c0_52] : memref<32x32xbf16, #tpu.memory_space<vmem>>, vector<32x32xbf16>
    %c0_53 = arith.constant 0 : index
    %c0_54 = arith.constant 0 : index
    %84 = vector.load %arg30[%c0_53, %c0_54] : memref<1x32xf32, #tpu.memory_space<vmem>>, vector<1x32xf32>
    %85 = arith.truncf %82 : vector<2x32xf32> to vector<2x32xbf16>
    %cst_55 = arith.constant dense<0.000000e+00> : vector<2x32xf32>
    %86 = tpu.matmul %85, %83, %cst_55 {dimension_numbers = #tpu.dot_dimension_numbers<[1], [0], [0], [1], [0, 0, 1, 1], [], []>} : vector<2x32xbf16>, vector<32x32xbf16>, vector<2x32xf32> -> vector<2x32xf32>
    %87 = vector.broadcast %84 : vector<1x32xf32> to vector<2x32xf32>
    %88 = arith.addf %86, %87 : vector<2x32xf32>
    %c0_56 = arith.constant 0 : index
    %c0_57 = arith.constant 0 : index
    %89 = vector.load %arg8[%c0_56, %c0_57] : memref<2x6xf32, #tpu.memory_space<vmem>>, vector<2x6xf32>
    %c0_58 = arith.constant 0 : index
    %c0_59 = arith.constant 0 : index
    %90 = vector.load %arg21[%c0_58, %c0_59] : memref<6x32xbf16, #tpu.memory_space<vmem>>, vector<6x32xbf16>
    %c0_60 = arith.constant 0 : index
    %c0_61 = arith.constant 0 : index
    %91 = vector.load %arg22[%c0_60, %c0_61] : memref<1x32xf32, #tpu.memory_space<vmem>>, vector<1x32xf32>
    %92 = arith.truncf %89 : vector<2x6xf32> to vector<2x6xbf16>
    %cst_62 = arith.constant dense<0.000000e+00> : vector<2x32xf32>
    %93 = tpu.matmul %92, %90, %cst_62 {dimension_numbers = #tpu.dot_dimension_numbers<[1], [0], [0], [1], [0, 0, 1, 1], [], []>} : vector<2x6xbf16>, vector<6x32xbf16>, vector<2x32xf32> -> vector<2x32xf32>
    %94 = vector.broadcast %91 : vector<1x32xf32> to vector<2x32xf32>
    %95 = arith.addf %93, %94 : vector<2x32xf32>
    %96 = arith.negf %95 : vector<2x32xf32>
    %97 = math.exp %96 : vector<2x32xf32>
    %cst_63 = arith.constant 1.000000e+00 : f32
    %98 = vector.broadcast %cst_63 : f32 to vector<2x32xf32>
    %99 = arith.addf %98, %97 : vector<2x32xf32>
    %100 = arith.divf %98, %99 : vector<2x32xf32>
    %101 = arith.mulf %95, %100 : vector<2x32xf32>
    %c0_64 = arith.constant 0 : index
    %c0_65 = arith.constant 0 : index
    %102 = vector.load %arg23[%c0_64, %c0_65] : memref<32x32xbf16, #tpu.memory_space<vmem>>, vector<32x32xbf16>
    %c0_66 = arith.constant 0 : index
    %c0_67 = arith.constant 0 : index
    %103 = vector.load %arg24[%c0_66, %c0_67] : memref<1x32xf32, #tpu.memory_space<vmem>>, vector<1x32xf32>
    %104 = arith.truncf %101 : vector<2x32xf32> to vector<2x32xbf16>
    %cst_68 = arith.constant dense<0.000000e+00> : vector<2x32xf32>
    %105 = tpu.matmul %104, %102, %cst_68 {dimension_numbers = #tpu.dot_dimension_numbers<[1], [0], [0], [1], [0, 0, 1, 1], [], []>} : vector<2x32xbf16>, vector<32x32xbf16>, vector<2x32xf32> -> vector<2x32xf32>
    %106 = vector.broadcast %103 : vector<1x32xf32> to vector<2x32xf32>
    %107 = arith.addf %105, %106 : vector<2x32xf32>
    %108 = arith.negf %107 : vector<2x32xf32>
    %109 = math.exp %108 : vector<2x32xf32>
    %cst_69 = arith.constant 1.000000e+00 : f32
    %110 = vector.broadcast %cst_69 : f32 to vector<2x32xf32>
    %111 = arith.addf %110, %109 : vector<2x32xf32>
    %112 = arith.divf %110, %111 : vector<2x32xf32>
    %113 = arith.mulf %107, %112 : vector<2x32xf32>
    %c0_70 = arith.constant 0 : index
    %c0_71 = arith.constant 0 : index
    %114 = vector.load %arg25[%c0_70, %c0_71] : memref<32x32xbf16, #tpu.memory_space<vmem>>, vector<32x32xbf16>
    %c0_72 = arith.constant 0 : index
    %c0_73 = arith.constant 0 : index
    %115 = vector.load %arg26[%c0_72, %c0_73] : memref<1x32xf32, #tpu.memory_space<vmem>>, vector<1x32xf32>
    %116 = arith.truncf %113 : vector<2x32xf32> to vector<2x32xbf16>
    %cst_74 = arith.constant dense<0.000000e+00> : vector<2x32xf32>
    %117 = tpu.matmul %116, %114, %cst_74 {dimension_numbers = #tpu.dot_dimension_numbers<[1], [0], [0], [1], [0, 0, 1, 1], [], []>} : vector<2x32xbf16>, vector<32x32xbf16>, vector<2x32xf32> -> vector<2x32xf32>
    %118 = vector.broadcast %115 : vector<1x32xf32> to vector<2x32xf32>
    %119 = arith.addf %117, %118 : vector<2x32xf32>
    %120 = tpu.concatenate %69, %119, %88 in 1 : vector<2x32xf32>, vector<2x32xf32>, vector<2x32xf32> -> vector<2x96xf32>
    %121 = arith.negf %120 : vector<2x96xf32>
    %122 = math.exp %121 : vector<2x96xf32>
    %cst_75 = arith.constant 1.000000e+00 : f32
    %123 = vector.broadcast %cst_75 : f32 to vector<2x96xf32>
    %124 = arith.addf %123, %122 : vector<2x96xf32>
    %125 = arith.divf %123, %124 : vector<2x96xf32>
    %126 = arith.mulf %120, %125 : vector<2x96xf32>
    %127 = arith.truncf %126 : vector<2x96xf32> to vector<2x96xbf16>
    %c0_76 = arith.constant 0 : index
    %c0_77 = arith.constant 0 : index
    %128 = vector.load %arg4[%c0_76, %c0_77] : memref<2x8xf32, #tpu.memory_space<vmem>>, vector<2x8xf32>
    %cst_78 = arith.constant 1.000000e+00 : f32
    %129 = vector.broadcast %cst_78 : f32 to vector<2x8xf32>
    %130 = arith.subf %129, %128 : vector<2x8xf32>
    %cst_79 = arith.constant -1.000000e+09 : f32
    %131 = vector.broadcast %cst_79 : f32 to vector<2x8xf32>
    %132 = arith.mulf %130, %131 : vector<2x8xf32>
    %133 = vector.shape_cast %132 : vector<2x8xf32> to vector<2x1x8xf32>
    %c0_80 = arith.constant 0 : index
    %c0_81 = arith.constant 0 : index
    %134 = vector.load %arg5[%c0_80, %c0_81] : memref<2x8xf32, #tpu.memory_space<vmem>>, vector<2x8xf32>
    %cst_82 = arith.constant 1.000000e+00 : f32
    %135 = vector.broadcast %cst_82 : f32 to vector<2x8xf32>
    %136 = arith.subf %135, %134 : vector<2x8xf32>
    %cst_83 = arith.constant -1.000000e+09 : f32
    %137 = vector.broadcast %cst_83 : f32 to vector<2x8xf32>
    %138 = arith.mulf %136, %137 : vector<2x8xf32>
    %139 = vector.shape_cast %138 : vector<2x8xf32> to vector<2x1x8xf32>
    %140 = vector.shape_cast %33 : vector<16x32xf32> to vector<2x8x32xf32>
    %141 = vector.shape_cast %67 : vector<16x32xf32> to vector<2x8x32xf32>
    %c0_84 = arith.constant 0 : index
    %c0_85 = arith.constant 0 : index
    %c0_86 = arith.constant 0 : index
    %142 = vector.load %arg31[%c0_84, %c0_85, %c0_86] : memref<3x1x32xf32, #tpu.memory_space<vmem>>, vector<1x1x32xf32>
    %143 = vector.shape_cast %142 : vector<1x1x32xf32> to vector<1x32xf32>
    %c0_87 = arith.constant 0 : index
    %c0_88 = arith.constant 0 : index
    %c0_89 = arith.constant 0 : index
    %144 = vector.load %arg32[%c0_87, %c0_88, %c0_89] : memref<3x1x32xf32, #tpu.memory_space<vmem>>, vector<1x1x32xf32>
    %145 = vector.shape_cast %144 : vector<1x1x32xf32> to vector<1x32xf32>
    %c0_90 = arith.constant 0 : index
    %c0_91 = arith.constant 0 : index
    %c0_92 = arith.constant 0 : index
    %146 = vector.load %arg33[%c0_90, %c0_91, %c0_92] : memref<3x1x32xf32, #tpu.memory_space<vmem>>, vector<1x1x32xf32>
    %147 = vector.shape_cast %146 : vector<1x1x32xf32> to vector<1x32xf32>
    %c0_93 = arith.constant 0 : index
    %c0_94 = arith.constant 0 : index
    %c0_95 = arith.constant 0 : index
    %148 = vector.load %arg34[%c0_93, %c0_94, %c0_95] : memref<3x96x192xbf16, #tpu.memory_space<vmem>>, vector<1x96x192xbf16>
    %149 = vector.shape_cast %148 : vector<1x96x192xbf16> to vector<96x192xbf16>
    %c0_96 = arith.constant 0 : index
    %c0_97 = arith.constant 0 : index
    %c0_98 = arith.constant 0 : index
    %150 = vector.load %arg35[%c0_96, %c0_97, %c0_98] : memref<3x1x192xf32, #tpu.memory_space<vmem>>, vector<1x1x192xf32>
    %151 = vector.shape_cast %150 : vector<1x1x192xf32> to vector<1x192xf32>
    %c0_99 = arith.constant 0 : index
    %c0_100 = arith.constant 0 : index
    %c0_101 = arith.constant 0 : index
    %152 = vector.load %arg36[%c0_99, %c0_100, %c0_101] : memref<3x32x32xbf16, #tpu.memory_space<vmem>>, vector<1x32x32xbf16>
    %153 = vector.shape_cast %152 : vector<1x32x32xbf16> to vector<32x32xbf16>
    %c0_102 = arith.constant 0 : index
    %c0_103 = arith.constant 0 : index
    %c0_104 = arith.constant 0 : index
    %154 = vector.load %arg37[%c0_102, %c0_103, %c0_104] : memref<3x1x32xf32, #tpu.memory_space<vmem>>, vector<1x1x32xf32>
    %155 = vector.shape_cast %154 : vector<1x1x32xf32> to vector<1x32xf32>
    %c0_105 = arith.constant 0 : index
    %c0_106 = arith.constant 0 : index
    %c0_107 = arith.constant 0 : index
    %156 = vector.load %arg38[%c0_105, %c0_106, %c0_107] : memref<3x32x64xbf16, #tpu.memory_space<vmem>>, vector<1x32x64xbf16>
    %157 = vector.shape_cast %156 : vector<1x32x64xbf16> to vector<32x64xbf16>
    %c0_108 = arith.constant 0 : index
    %c0_109 = arith.constant 0 : index
    %c0_110 = arith.constant 0 : index
    %158 = vector.load %arg39[%c0_108, %c0_109, %c0_110] : memref<3x1x64xf32, #tpu.memory_space<vmem>>, vector<1x1x64xf32>
    %159 = vector.shape_cast %158 : vector<1x1x64xf32> to vector<1x64xf32>
    %c0_111 = arith.constant 0 : index
    %c0_112 = arith.constant 0 : index
    %c0_113 = arith.constant 0 : index
    %160 = vector.load %arg40[%c0_111, %c0_112, %c0_113] : memref<3x32x32xbf16, #tpu.memory_space<vmem>>, vector<1x32x32xbf16>
    %161 = vector.shape_cast %160 : vector<1x32x32xbf16> to vector<32x32xbf16>
    %c0_114 = arith.constant 0 : index
    %c0_115 = arith.constant 0 : index
    %c0_116 = arith.constant 0 : index
    %162 = vector.load %arg41[%c0_114, %c0_115, %c0_116] : memref<3x1x32xf32, #tpu.memory_space<vmem>>, vector<1x1x32xf32>
    %163 = vector.shape_cast %162 : vector<1x1x32xf32> to vector<1x32xf32>
    %c0_117 = arith.constant 0 : index
    %c0_118 = arith.constant 0 : index
    %c0_119 = arith.constant 0 : index
    %164 = vector.load %arg42[%c0_117, %c0_118, %c0_119] : memref<3x32x256xbf16, #tpu.memory_space<vmem>>, vector<1x32x256xbf16>
    %165 = vector.shape_cast %164 : vector<1x32x256xbf16> to vector<32x256xbf16>
    %c0_120 = arith.constant 0 : index
    %c0_121 = arith.constant 0 : index
    %c0_122 = arith.constant 0 : index
    %166 = vector.load %arg43[%c0_120, %c0_121, %c0_122] : memref<3x128x32xbf16, #tpu.memory_space<vmem>>, vector<1x128x32xbf16>
    %167 = vector.shape_cast %166 : vector<1x128x32xbf16> to vector<128x32xbf16>
    %cst_123 = arith.constant dense<0.000000e+00> : vector<2x192xf32>
    %168 = tpu.matmul %127, %149, %cst_123 {dimension_numbers = #tpu.dot_dimension_numbers<[1], [0], [0], [1], [0, 0, 1, 1], [], []>} : vector<2x96xbf16>, vector<96x192xbf16>, vector<2x192xf32> -> vector<2x192xf32>
    %169 = vector.broadcast %151 : vector<1x192xf32> to vector<2x192xf32>
    %170 = arith.addf %168, %169 : vector<2x192xf32>
    %171 = vector.extract_strided_slice %170 {offsets = [0, 0], sizes = [2, 32], strides = [1, 1]} : vector<2x192xf32> to vector<2x32xf32>
    %172 = vector.extract_strided_slice %170 {offsets = [0, 32], sizes = [2, 32], strides = [1, 1]} : vector<2x192xf32> to vector<2x32xf32>
    %173 = vector.extract_strided_slice %170 {offsets = [0, 64], sizes = [2, 32], strides = [1, 1]} : vector<2x192xf32> to vector<2x32xf32>
    %174 = vector.extract_strided_slice %170 {offsets = [0, 96], sizes = [2, 32], strides = [1, 1]} : vector<2x192xf32> to vector<2x32xf32>
    %175 = vector.extract_strided_slice %170 {offsets = [0, 128], sizes = [2, 32], strides = [1, 1]} : vector<2x192xf32> to vector<2x32xf32>
    %176 = vector.extract_strided_slice %170 {offsets = [0, 160], sizes = [2, 32], strides = [1, 1]} : vector<2x192xf32> to vector<2x32xf32>
    %177 = vector.shape_cast %141 : vector<2x8x32xf32> to vector<16x32xf32>
    %178 = arith.mulf %177, %177 : vector<16x32xf32>
    %cst_124 = arith.constant dense<0.000000e+00> : vector<16xf32>
    %179 = vector.multi_reduction <add>, %178, %cst_124 [1] : vector<16x32xf32> to vector<16xf32>
    %180 = vector.shape_cast %179 : vector<16xf32> to vector<16x1xf32>
    %cst_125 = arith.constant 3.200000e+01 : f32
    %181 = vector.broadcast %cst_125 : f32 to vector<16x1xf32>
    %182 = arith.divf %180, %181 : vector<16x1xf32>
    %cst_126 = arith.constant 9.99999997E-7 : f32
    %183 = vector.broadcast %cst_126 : f32 to vector<16x1xf32>
    %184 = arith.addf %182, %183 : vector<16x1xf32>
    %185 = math.rsqrt %184 : vector<16x1xf32>
    %186 = vector.broadcast %185 : vector<16x1xf32> to vector<16x32xf32>
    %187 = arith.mulf %177, %186 : vector<16x32xf32>
    %188 = vector.broadcast %143 : vector<1x32xf32> to vector<16x32xf32>
    %189 = arith.mulf %187, %188 : vector<16x32xf32>
    %190 = vector.shape_cast %189 : vector<16x32xf32> to vector<2x8x32xf32>
    %191 = vector.shape_cast %172 : vector<2x32xf32> to vector<2x1x32xf32>
    %cst_127 = arith.constant 1.000000e+00 : f32
    %192 = vector.broadcast %cst_127 : f32 to vector<2x1x32xf32>
    %193 = arith.addf %192, %191 : vector<2x1x32xf32>
    %194 = vector.broadcast %193 : vector<2x1x32xf32> to vector<2x8x32xf32>
    %195 = arith.mulf %190, %194 : vector<2x8x32xf32>
    %196 = vector.shape_cast %171 : vector<2x32xf32> to vector<2x1x32xf32>
    %197 = vector.broadcast %196 : vector<2x1x32xf32> to vector<2x8x32xf32>
    %198 = arith.addf %195, %197 : vector<2x8x32xf32>
    %199 = vector.shape_cast %198 : vector<2x8x32xf32> to vector<16x32xf32>
    %200 = arith.truncf %199 : vector<16x32xf32> to vector<16x32xbf16>
    %201 = vector.shape_cast %140 : vector<2x8x32xf32> to vector<16x32xf32>
    %202 = arith.mulf %201, %201 : vector<16x32xf32>
    %cst_128 = arith.constant dense<0.000000e+00> : vector<16xf32>
    %203 = vector.multi_reduction <add>, %202, %cst_128 [1] : vector<16x32xf32> to vector<16xf32>
    %204 = vector.shape_cast %203 : vector<16xf32> to vector<16x1xf32>
    %cst_129 = arith.constant 3.200000e+01 : f32
    %205 = vector.broadcast %cst_129 : f32 to vector<16x1xf32>
    %206 = arith.divf %204, %205 : vector<16x1xf32>
    %cst_130 = arith.constant 9.99999997E-7 : f32
    %207 = vector.broadcast %cst_130 : f32 to vector<16x1xf32>
    %208 = arith.addf %206, %207 : vector<16x1xf32>
    %209 = math.rsqrt %208 : vector<16x1xf32>
    %210 = vector.broadcast %209 : vector<16x1xf32> to vector<16x32xf32>
    %211 = arith.mulf %201, %210 : vector<16x32xf32>
    %212 = vector.broadcast %145 : vector<1x32xf32> to vector<16x32xf32>
    %213 = arith.mulf %211, %212 : vector<16x32xf32>
    %214 = arith.truncf %213 : vector<16x32xf32> to vector<16x32xbf16>
    %cst_131 = arith.constant dense<0.000000e+00> : vector<16x32xf32>
    %215 = tpu.matmul %200, %153, %cst_131 {dimension_numbers = #tpu.dot_dimension_numbers<[1], [0], [0], [1], [0, 0, 1, 1], [], []>} : vector<16x32xbf16>, vector<32x32xbf16>, vector<16x32xf32> -> vector<16x32xf32>
    %216 = vector.broadcast %155 : vector<1x32xf32> to vector<16x32xf32>
    %217 = arith.addf %215, %216 : vector<16x32xf32>
    %cst_132 = arith.constant dense<0.000000e+00> : vector<16x64xf32>
    %218 = tpu.matmul %214, %157, %cst_132 {dimension_numbers = #tpu.dot_dimension_numbers<[1], [0], [0], [1], [0, 0, 1, 1], [], []>} : vector<16x32xbf16>, vector<32x64xbf16>, vector<16x64xf32> -> vector<16x64xf32>
    %219 = vector.broadcast %159 : vector<1x64xf32> to vector<16x64xf32>
    %220 = arith.addf %218, %219 : vector<16x64xf32>
    %221 = vector.shape_cast %217 : vector<16x32xf32> to vector<2x8x32xf32>
    %222 = arith.truncf %221 : vector<2x8x32xf32> to vector<2x8x32xbf16>
    %223 = vector.extract_strided_slice %220 {offsets = [0, 0], sizes = [16, 32], strides = [1, 1]} : vector<16x64xf32> to vector<16x32xf32>
    %224 = vector.shape_cast %223 : vector<16x32xf32> to vector<2x8x32xf32>
    %225 = arith.truncf %224 : vector<2x8x32xf32> to vector<2x8x32xbf16>
    %226 = vector.extract_strided_slice %220 {offsets = [0, 32], sizes = [16, 32], strides = [1, 1]} : vector<16x64xf32> to vector<16x32xf32>
    %227 = vector.shape_cast %226 : vector<16x32xf32> to vector<2x8x32xf32>
    %228 = arith.truncf %227 : vector<2x8x32xf32> to vector<2x8x32xbf16>
    %229 = vector.extract_strided_slice %222 {offsets = [0, 0, 0], sizes = [2, 8, 8], strides = [1, 1, 1]} : vector<2x8x32xbf16> to vector<2x8x8xbf16>
    %230 = vector.extract_strided_slice %225 {offsets = [0, 0, 0], sizes = [2, 8, 8], strides = [1, 1, 1]} : vector<2x8x32xbf16> to vector<2x8x8xbf16>
    "tpu.trace_start"() <{level = 10 : i32, message = "bqd,bkd->bqk"}> : () -> ()
    %cst_133 = arith.constant dense<0.000000e+00> : vector<2x8x8xf32>
    %231 = tpu.matmul %229, %230, %cst_133 {dimension_numbers = #tpu.dot_dimension_numbers<[2], [2], [1], [1], [0, 0, 0, 1, 1, 1], [0], [0]>} : vector<2x8x8xbf16>, vector<2x8x8xbf16>, vector<2x8x8xf32> -> vector<2x8x8xf32>
    "tpu.trace_stop"() : () -> ()
    %232 = vector.broadcast %133 : vector<2x1x8xf32> to vector<2x8x8xf32>
    %233 = arith.addf %231, %232 : vector<2x8x8xf32>
    %cst_134 = arith.constant dense<0xFF800000> : vector<2x8xf32>
    %234 = vector.multi_reduction <maximumf>, %233, %cst_134 [2] : vector<2x8x8xf32> to vector<2x8xf32>
    %235 = vector.shape_cast %234 : vector<2x8xf32> to vector<2x8x1xf32>
    %236 = vector.broadcast %235 : vector<2x8x1xf32> to vector<2x8x8xf32>
    %237 = arith.subf %233, %236 : vector<2x8x8xf32>
    %238 = math.exp %237 : vector<2x8x8xf32>
    %cst_135 = arith.constant dense<0.000000e+00> : vector<2x8xf32>
    %239 = vector.multi_reduction <add>, %238, %cst_135 [2] : vector<2x8x8xf32> to vector<2x8xf32>
    %240 = vector.shape_cast %239 : vector<2x8xf32> to vector<2x8x1xf32>
    %241 = vector.broadcast %240 : vector<2x8x1xf32> to vector<2x8x8xf32>
    %242 = arith.divf %238, %241 : vector<2x8x8xf32>
    %243 = arith.truncf %242 : vector<2x8x8xf32> to vector<2x8x8xbf16>
    %244 = vector.extract_strided_slice %228 {offsets = [0, 0, 0], sizes = [2, 8, 8], strides = [1, 1, 1]} : vector<2x8x32xbf16> to vector<2x8x8xbf16>
    "tpu.trace_start"() <{level = 10 : i32, message = "bqk,bkd->bqd"}> : () -> ()
    %cst_136 = arith.constant dense<0.000000e+00> : vector<2x8x8xf32>
    %245 = tpu.matmul %243, %244, %cst_136 {dimension_numbers = #tpu.dot_dimension_numbers<[2], [1], [1], [2], [0, 0, 0, 1, 1, 2], [0], [0]>} : vector<2x8x8xbf16>, vector<2x8x8xbf16>, vector<2x8x8xf32> -> vector<2x8x8xf32>
    "tpu.trace_stop"() : () -> ()
    %246 = vector.extract_strided_slice %222 {offsets = [0, 0, 8], sizes = [2, 8, 8], strides = [1, 1, 1]} : vector<2x8x32xbf16> to vector<2x8x8xbf16>
    %247 = vector.extract_strided_slice %225 {offsets = [0, 0, 8], sizes = [2, 8, 8], strides = [1, 1, 1]} : vector<2x8x32xbf16> to vector<2x8x8xbf16>
    "tpu.trace_start"() <{level = 10 : i32, message = "bqd,bkd->bqk"}> : () -> ()
    %cst_137 = arith.constant dense<0.000000e+00> : vector<2x8x8xf32>
    %248 = tpu.matmul %246, %247, %cst_137 {dimension_numbers = #tpu.dot_dimension_numbers<[2], [2], [1], [1], [0, 0, 0, 1, 1, 1], [0], [0]>} : vector<2x8x8xbf16>, vector<2x8x8xbf16>, vector<2x8x8xf32> -> vector<2x8x8xf32>
    "tpu.trace_stop"() : () -> ()
    %249 = vector.broadcast %133 : vector<2x1x8xf32> to vector<2x8x8xf32>
    %250 = arith.addf %248, %249 : vector<2x8x8xf32>
    %cst_138 = arith.constant dense<0xFF800000> : vector<2x8xf32>
    %251 = vector.multi_reduction <maximumf>, %250, %cst_138 [2] : vector<2x8x8xf32> to vector<2x8xf32>
    %252 = vector.shape_cast %251 : vector<2x8xf32> to vector<2x8x1xf32>
    %253 = vector.broadcast %252 : vector<2x8x1xf32> to vector<2x8x8xf32>
    %254 = arith.subf %250, %253 : vector<2x8x8xf32>
    %255 = math.exp %254 : vector<2x8x8xf32>
    %cst_139 = arith.constant dense<0.000000e+00> : vector<2x8xf32>
    %256 = vector.multi_reduction <add>, %255, %cst_139 [2] : vector<2x8x8xf32> to vector<2x8xf32>
    %257 = vector.shape_cast %256 : vector<2x8xf32> to vector<2x8x1xf32>
    %258 = vector.broadcast %257 : vector<2x8x1xf32> to vector<2x8x8xf32>
    %259 = arith.divf %255, %258 : vector<2x8x8xf32>
    %260 = arith.truncf %259 : vector<2x8x8xf32> to vector<2x8x8xbf16>
    %261 = vector.extract_strided_slice %228 {offsets = [0, 0, 8], sizes = [2, 8, 8], strides = [1, 1, 1]} : vector<2x8x32xbf16> to vector<2x8x8xbf16>
    "tpu.trace_start"() <{level = 10 : i32, message = "bqk,bkd->bqd"}> : () -> ()
    %cst_140 = arith.constant dense<0.000000e+00> : vector<2x8x8xf32>
    %262 = tpu.matmul %260, %261, %cst_140 {dimension_numbers = #tpu.dot_dimension_numbers<[2], [1], [1], [2], [0, 0, 0, 1, 1, 2], [0], [0]>} : vector<2x8x8xbf16>, vector<2x8x8xbf16>, vector<2x8x8xf32> -> vector<2x8x8xf32>
    "tpu.trace_stop"() : () -> ()
    %263 = vector.extract_strided_slice %222 {offsets = [0, 0, 16], sizes = [2, 8, 8], strides = [1, 1, 1]} : vector<2x8x32xbf16> to vector<2x8x8xbf16>
    %264 = vector.extract_strided_slice %225 {offsets = [0, 0, 16], sizes = [2, 8, 8], strides = [1, 1, 1]} : vector<2x8x32xbf16> to vector<2x8x8xbf16>
    "tpu.trace_start"() <{level = 10 : i32, message = "bqd,bkd->bqk"}> : () -> ()
    %cst_141 = arith.constant dense<0.000000e+00> : vector<2x8x8xf32>
    %265 = tpu.matmul %263, %264, %cst_141 {dimension_numbers = #tpu.dot_dimension_numbers<[2], [2], [1], [1], [0, 0, 0, 1, 1, 1], [0], [0]>} : vector<2x8x8xbf16>, vector<2x8x8xbf16>, vector<2x8x8xf32> -> vector<2x8x8xf32>
    "tpu.trace_stop"() : () -> ()
    %266 = vector.broadcast %133 : vector<2x1x8xf32> to vector<2x8x8xf32>
    %267 = arith.addf %265, %266 : vector<2x8x8xf32>
    %cst_142 = arith.constant dense<0xFF800000> : vector<2x8xf32>
    %268 = vector.multi_reduction <maximumf>, %267, %cst_142 [2] : vector<2x8x8xf32> to vector<2x8xf32>
    %269 = vector.shape_cast %268 : vector<2x8xf32> to vector<2x8x1xf32>
    %270 = vector.broadcast %269 : vector<2x8x1xf32> to vector<2x8x8xf32>
    %271 = arith.subf %267, %270 : vector<2x8x8xf32>
    %272 = math.exp %271 : vector<2x8x8xf32>
    %cst_143 = arith.constant dense<0.000000e+00> : vector<2x8xf32>
    %273 = vector.multi_reduction <add>, %272, %cst_143 [2] : vector<2x8x8xf32> to vector<2x8xf32>
    %274 = vector.shape_cast %273 : vector<2x8xf32> to vector<2x8x1xf32>
    %275 = vector.broadcast %274 : vector<2x8x1xf32> to vector<2x8x8xf32>
    %276 = arith.divf %272, %275 : vector<2x8x8xf32>
    %277 = arith.truncf %276 : vector<2x8x8xf32> to vector<2x8x8xbf16>
    %278 = vector.extract_strided_slice %228 {offsets = [0, 0, 16], sizes = [2, 8, 8], strides = [1, 1, 1]} : vector<2x8x32xbf16> to vector<2x8x8xbf16>
    "tpu.trace_start"() <{level = 10 : i32, message = "bqk,bkd->bqd"}> : () -> ()
    %cst_144 = arith.constant dense<0.000000e+00> : vector<2x8x8xf32>
    %279 = tpu.matmul %277, %278, %cst_144 {dimension_numbers = #tpu.dot_dimension_numbers<[2], [1], [1], [2], [0, 0, 0, 1, 1, 2], [0], [0]>} : vector<2x8x8xbf16>, vector<2x8x8xbf16>, vector<2x8x8xf32> -> vector<2x8x8xf32>
    "tpu.trace_stop"() : () -> ()
    %280 = vector.extract_strided_slice %222 {offsets = [0, 0, 24], sizes = [2, 8, 8], strides = [1, 1, 1]} : vector<2x8x32xbf16> to vector<2x8x8xbf16>
    %281 = vector.extract_strided_slice %225 {offsets = [0, 0, 24], sizes = [2, 8, 8], strides = [1, 1, 1]} : vector<2x8x32xbf16> to vector<2x8x8xbf16>
    "tpu.trace_start"() <{level = 10 : i32, message = "bqd,bkd->bqk"}> : () -> ()
    %cst_145 = arith.constant dense<0.000000e+00> : vector<2x8x8xf32>
    %282 = tpu.matmul %280, %281, %cst_145 {dimension_numbers = #tpu.dot_dimension_numbers<[2], [2], [1], [1], [0, 0, 0, 1, 1, 1], [0], [0]>} : vector<2x8x8xbf16>, vector<2x8x8xbf16>, vector<2x8x8xf32> -> vector<2x8x8xf32>
    "tpu.trace_stop"() : () -> ()
    %283 = vector.broadcast %133 : vector<2x1x8xf32> to vector<2x8x8xf32>
    %284 = arith.addf %282, %283 : vector<2x8x8xf32>
    %cst_146 = arith.constant dense<0xFF800000> : vector<2x8xf32>
    %285 = vector.multi_reduction <maximumf>, %284, %cst_146 [2] : vector<2x8x8xf32> to vector<2x8xf32>
    %286 = vector.shape_cast %285 : vector<2x8xf32> to vector<2x8x1xf32>
    %287 = vector.broadcast %286 : vector<2x8x1xf32> to vector<2x8x8xf32>
    %288 = arith.subf %284, %287 : vector<2x8x8xf32>
    %289 = math.exp %288 : vector<2x8x8xf32>
    %cst_147 = arith.constant dense<0.000000e+00> : vector<2x8xf32>
    %290 = vector.multi_reduction <add>, %289, %cst_147 [2] : vector<2x8x8xf32> to vector<2x8xf32>
    %291 = vector.shape_cast %290 : vector<2x8xf32> to vector<2x8x1xf32>
    %292 = vector.broadcast %291 : vector<2x8x1xf32> to vector<2x8x8xf32>
    %293 = arith.divf %289, %292 : vector<2x8x8xf32>
    %294 = arith.truncf %293 : vector<2x8x8xf32> to vector<2x8x8xbf16>
    %295 = vector.extract_strided_slice %228 {offsets = [0, 0, 24], sizes = [2, 8, 8], strides = [1, 1, 1]} : vector<2x8x32xbf16> to vector<2x8x8xbf16>
    "tpu.trace_start"() <{level = 10 : i32, message = "bqk,bkd->bqd"}> : () -> ()
    %cst_148 = arith.constant dense<0.000000e+00> : vector<2x8x8xf32>
    %296 = tpu.matmul %294, %295, %cst_148 {dimension_numbers = #tpu.dot_dimension_numbers<[2], [1], [1], [2], [0, 0, 0, 1, 1, 2], [0], [0]>} : vector<2x8x8xbf16>, vector<2x8x8xbf16>, vector<2x8x8xf32> -> vector<2x8x8xf32>
    "tpu.trace_stop"() : () -> ()
    %297 = tpu.concatenate %245, %262, %279, %296 in 2 : vector<2x8x8xf32>, vector<2x8x8xf32>, vector<2x8x8xf32>, vector<2x8x8xf32> -> vector<2x8x32xf32>
    %298 = vector.shape_cast %297 : vector<2x8x32xf32> to vector<16x32xf32>
    %299 = arith.truncf %298 : vector<16x32xf32> to vector<16x32xbf16>
    %cst_149 = arith.constant dense<0.000000e+00> : vector<16x32xf32>
    %300 = tpu.matmul %299, %161, %cst_149 {dimension_numbers = #tpu.dot_dimension_numbers<[1], [0], [0], [1], [0, 0, 1, 1], [], []>} : vector<16x32xbf16>, vector<32x32xbf16>, vector<16x32xf32> -> vector<16x32xf32>
    %301 = vector.broadcast %163 : vector<1x32xf32> to vector<16x32xf32>
    %302 = arith.addf %300, %301 : vector<16x32xf32>
    %303 = vector.shape_cast %302 : vector<16x32xf32> to vector<2x8x32xf32>
    %304 = vector.shape_cast %173 : vector<2x32xf32> to vector<2x1x32xf32>
    %305 = vector.broadcast %304 : vector<2x1x32xf32> to vector<2x8x32xf32>
    %306 = arith.mulf %305, %303 : vector<2x8x32xf32>
    %307 = arith.addf %141, %306 : vector<2x8x32xf32>
    %308 = vector.shape_cast %307 : vector<2x8x32xf32> to vector<16x32xf32>
    %309 = arith.mulf %308, %308 : vector<16x32xf32>
    %cst_150 = arith.constant dense<0.000000e+00> : vector<16xf32>
    %310 = vector.multi_reduction <add>, %309, %cst_150 [1] : vector<16x32xf32> to vector<16xf32>
    %311 = vector.shape_cast %310 : vector<16xf32> to vector<16x1xf32>
    %cst_151 = arith.constant 3.200000e+01 : f32
    %312 = vector.broadcast %cst_151 : f32 to vector<16x1xf32>
    %313 = arith.divf %311, %312 : vector<16x1xf32>
    %cst_152 = arith.constant 9.99999997E-7 : f32
    %314 = vector.broadcast %cst_152 : f32 to vector<16x1xf32>
    %315 = arith.addf %313, %314 : vector<16x1xf32>
    %316 = math.rsqrt %315 : vector<16x1xf32>
    %317 = vector.broadcast %316 : vector<16x1xf32> to vector<16x32xf32>
    %318 = arith.mulf %308, %317 : vector<16x32xf32>
    %319 = vector.broadcast %147 : vector<1x32xf32> to vector<16x32xf32>
    %320 = arith.mulf %318, %319 : vector<16x32xf32>
    %321 = vector.shape_cast %320 : vector<16x32xf32> to vector<2x8x32xf32>
    %322 = vector.shape_cast %175 : vector<2x32xf32> to vector<2x1x32xf32>
    %cst_153 = arith.constant 1.000000e+00 : f32
    %323 = vector.broadcast %cst_153 : f32 to vector<2x1x32xf32>
    %324 = arith.addf %323, %322 : vector<2x1x32xf32>
    %325 = vector.broadcast %324 : vector<2x1x32xf32> to vector<2x8x32xf32>
    %326 = arith.mulf %321, %325 : vector<2x8x32xf32>
    %327 = vector.shape_cast %174 : vector<2x32xf32> to vector<2x1x32xf32>
    %328 = vector.broadcast %327 : vector<2x1x32xf32> to vector<2x8x32xf32>
    %329 = arith.addf %326, %328 : vector<2x8x32xf32>
    %330 = vector.shape_cast %329 : vector<2x8x32xf32> to vector<16x32xf32>
    %331 = arith.truncf %330 : vector<16x32xf32> to vector<16x32xbf16>
    %cst_154 = arith.constant dense<0.000000e+00> : vector<16x256xf32>
    %332 = tpu.matmul %331, %165, %cst_154 {dimension_numbers = #tpu.dot_dimension_numbers<[1], [0], [0], [1], [0, 0, 1, 1], [], []>} : vector<16x32xbf16>, vector<32x256xbf16>, vector<16x256xf32> -> vector<16x256xf32>
    %333 = vector.extract_strided_slice %332 {offsets = [0, 0], sizes = [16, 128], strides = [1, 1]} : vector<16x256xf32> to vector<16x128xf32>
    %334 = arith.negf %333 : vector<16x128xf32>
    %335 = math.exp %334 : vector<16x128xf32>
    %cst_155 = arith.constant 1.000000e+00 : f32
    %336 = vector.broadcast %cst_155 : f32 to vector<16x128xf32>
    %337 = arith.addf %336, %335 : vector<16x128xf32>
    %338 = arith.divf %336, %337 : vector<16x128xf32>
    %339 = arith.mulf %333, %338 : vector<16x128xf32>
    %340 = vector.extract_strided_slice %332 {offsets = [0, 128], sizes = [16, 128], strides = [1, 1]} : vector<16x256xf32> to vector<16x128xf32>
    %341 = arith.mulf %339, %340 : vector<16x128xf32>
    %342 = arith.truncf %341 : vector<16x128xf32> to vector<16x128xbf16>
    %cst_156 = arith.constant dense<0.000000e+00> : vector<16x32xf32>
    %343 = tpu.matmul %342, %167, %cst_156 {dimension_numbers = #tpu.dot_dimension_numbers<[1], [0], [0], [1], [0, 0, 1, 1], [], []>} : vector<16x128xbf16>, vector<128x32xbf16>, vector<16x32xf32> -> vector<16x32xf32>
    %344 = vector.shape_cast %343 : vector<16x32xf32> to vector<2x8x32xf32>
    %345 = vector.shape_cast %176 : vector<2x32xf32> to vector<2x1x32xf32>
    %346 = vector.broadcast %345 : vector<2x1x32xf32> to vector<2x8x32xf32>
    %347 = arith.mulf %346, %344 : vector<2x8x32xf32>
    %348 = arith.addf %307, %347 : vector<2x8x32xf32>
    %c1 = arith.constant 1 : index
    %c0_157 = arith.constant 0 : index
    %c0_158 = arith.constant 0 : index
    %349 = vector.load %arg31[%c1, %c0_157, %c0_158] : memref<3x1x32xf32, #tpu.memory_space<vmem>>, vector<1x1x32xf32>
    %350 = vector.shape_cast %349 : vector<1x1x32xf32> to vector<1x32xf32>
    %c1_159 = arith.constant 1 : index
    %c0_160 = arith.constant 0 : index
    %c0_161 = arith.constant 0 : index
    %351 = vector.load %arg32[%c1_159, %c0_160, %c0_161] : memref<3x1x32xf32, #tpu.memory_space<vmem>>, vector<1x1x32xf32>
    %352 = vector.shape_cast %351 : vector<1x1x32xf32> to vector<1x32xf32>
    %c1_162 = arith.constant 1 : index
    %c0_163 = arith.constant 0 : index
    %c0_164 = arith.constant 0 : index
    %353 = vector.load %arg33[%c1_162, %c0_163, %c0_164] : memref<3x1x32xf32, #tpu.memory_space<vmem>>, vector<1x1x32xf32>
    %354 = vector.shape_cast %353 : vector<1x1x32xf32> to vector<1x32xf32>
    %c1_165 = arith.constant 1 : index
    %c0_166 = arith.constant 0 : index
    %c0_167 = arith.constant 0 : index
    %355 = vector.load %arg34[%c1_165, %c0_166, %c0_167] : memref<3x96x192xbf16, #tpu.memory_space<vmem>>, vector<1x96x192xbf16>
    %356 = vector.shape_cast %355 : vector<1x96x192xbf16> to vector<96x192xbf16>
    %c1_168 = arith.constant 1 : index
    %c0_169 = arith.constant 0 : index
    %c0_170 = arith.constant 0 : index
    %357 = vector.load %arg35[%c1_168, %c0_169, %c0_170] : memref<3x1x192xf32, #tpu.memory_space<vmem>>, vector<1x1x192xf32>
    %358 = vector.shape_cast %357 : vector<1x1x192xf32> to vector<1x192xf32>
    %c1_171 = arith.constant 1 : index
    %c0_172 = arith.constant 0 : index
    %c0_173 = arith.constant 0 : index
    %359 = vector.load %arg36[%c1_171, %c0_172, %c0_173] : memref<3x32x32xbf16, #tpu.memory_space<vmem>>, vector<1x32x32xbf16>
    %360 = vector.shape_cast %359 : vector<1x32x32xbf16> to vector<32x32xbf16>
    %c1_174 = arith.constant 1 : index
    %c0_175 = arith.constant 0 : index
    %c0_176 = arith.constant 0 : index
    %361 = vector.load %arg37[%c1_174, %c0_175, %c0_176] : memref<3x1x32xf32, #tpu.memory_space<vmem>>, vector<1x1x32xf32>
    %362 = vector.shape_cast %361 : vector<1x1x32xf32> to vector<1x32xf32>
    %c1_177 = arith.constant 1 : index
    %c0_178 = arith.constant 0 : index
    %c0_179 = arith.constant 0 : index
    %363 = vector.load %arg38[%c1_177, %c0_178, %c0_179] : memref<3x32x64xbf16, #tpu.memory_space<vmem>>, vector<1x32x64xbf16>
    %364 = vector.shape_cast %363 : vector<1x32x64xbf16> to vector<32x64xbf16>
    %c1_180 = arith.constant 1 : index
    %c0_181 = arith.constant 0 : index
    %c0_182 = arith.constant 0 : index
    %365 = vector.load %arg39[%c1_180, %c0_181, %c0_182] : memref<3x1x64xf32, #tpu.memory_space<vmem>>, vector<1x1x64xf32>
    %366 = vector.shape_cast %365 : vector<1x1x64xf32> to vector<1x64xf32>
    %c1_183 = arith.constant 1 : index
    %c0_184 = arith.constant 0 : index
    %c0_185 = arith.constant 0 : index
    %367 = vector.load %arg40[%c1_183, %c0_184, %c0_185] : memref<3x32x32xbf16, #tpu.memory_space<vmem>>, vector<1x32x32xbf16>
    %368 = vector.shape_cast %367 : vector<1x32x32xbf16> to vector<32x32xbf16>
    %c1_186 = arith.constant 1 : index
    %c0_187 = arith.constant 0 : index
    %c0_188 = arith.constant 0 : index
    %369 = vector.load %arg41[%c1_186, %c0_187, %c0_188] : memref<3x1x32xf32, #tpu.memory_space<vmem>>, vector<1x1x32xf32>
    %370 = vector.shape_cast %369 : vector<1x1x32xf32> to vector<1x32xf32>
    %c1_189 = arith.constant 1 : index
    %c0_190 = arith.constant 0 : index
    %c0_191 = arith.constant 0 : index
    %371 = vector.load %arg42[%c1_189, %c0_190, %c0_191] : memref<3x32x256xbf16, #tpu.memory_space<vmem>>, vector<1x32x256xbf16>
    %372 = vector.shape_cast %371 : vector<1x32x256xbf16> to vector<32x256xbf16>
    %c1_192 = arith.constant 1 : index
    %c0_193 = arith.constant 0 : index
    %c0_194 = arith.constant 0 : index
    %373 = vector.load %arg43[%c1_192, %c0_193, %c0_194] : memref<3x128x32xbf16, #tpu.memory_space<vmem>>, vector<1x128x32xbf16>
    %374 = vector.shape_cast %373 : vector<1x128x32xbf16> to vector<128x32xbf16>
    %cst_195 = arith.constant dense<0.000000e+00> : vector<2x192xf32>
    %375 = tpu.matmul %127, %356, %cst_195 {dimension_numbers = #tpu.dot_dimension_numbers<[1], [0], [0], [1], [0, 0, 1, 1], [], []>} : vector<2x96xbf16>, vector<96x192xbf16>, vector<2x192xf32> -> vector<2x192xf32>
    %376 = vector.broadcast %358 : vector<1x192xf32> to vector<2x192xf32>
    %377 = arith.addf %375, %376 : vector<2x192xf32>
    %378 = vector.extract_strided_slice %377 {offsets = [0, 0], sizes = [2, 32], strides = [1, 1]} : vector<2x192xf32> to vector<2x32xf32>
    %379 = vector.extract_strided_slice %377 {offsets = [0, 32], sizes = [2, 32], strides = [1, 1]} : vector<2x192xf32> to vector<2x32xf32>
    %380 = vector.extract_strided_slice %377 {offsets = [0, 64], sizes = [2, 32], strides = [1, 1]} : vector<2x192xf32> to vector<2x32xf32>
    %381 = vector.extract_strided_slice %377 {offsets = [0, 96], sizes = [2, 32], strides = [1, 1]} : vector<2x192xf32> to vector<2x32xf32>
    %382 = vector.extract_strided_slice %377 {offsets = [0, 128], sizes = [2, 32], strides = [1, 1]} : vector<2x192xf32> to vector<2x32xf32>
    %383 = vector.extract_strided_slice %377 {offsets = [0, 160], sizes = [2, 32], strides = [1, 1]} : vector<2x192xf32> to vector<2x32xf32>
    %384 = vector.shape_cast %140 : vector<2x8x32xf32> to vector<16x32xf32>
    %385 = arith.mulf %384, %384 : vector<16x32xf32>
    %cst_196 = arith.constant dense<0.000000e+00> : vector<16xf32>
    %386 = vector.multi_reduction <add>, %385, %cst_196 [1] : vector<16x32xf32> to vector<16xf32>
    %387 = vector.shape_cast %386 : vector<16xf32> to vector<16x1xf32>
    %cst_197 = arith.constant 3.200000e+01 : f32
    %388 = vector.broadcast %cst_197 : f32 to vector<16x1xf32>
    %389 = arith.divf %387, %388 : vector<16x1xf32>
    %cst_198 = arith.constant 9.99999997E-7 : f32
    %390 = vector.broadcast %cst_198 : f32 to vector<16x1xf32>
    %391 = arith.addf %389, %390 : vector<16x1xf32>
    %392 = math.rsqrt %391 : vector<16x1xf32>
    %393 = vector.broadcast %392 : vector<16x1xf32> to vector<16x32xf32>
    %394 = arith.mulf %384, %393 : vector<16x32xf32>
    %395 = vector.broadcast %350 : vector<1x32xf32> to vector<16x32xf32>
    %396 = arith.mulf %394, %395 : vector<16x32xf32>
    %397 = vector.shape_cast %396 : vector<16x32xf32> to vector<2x8x32xf32>
    %398 = vector.shape_cast %379 : vector<2x32xf32> to vector<2x1x32xf32>
    %cst_199 = arith.constant 1.000000e+00 : f32
    %399 = vector.broadcast %cst_199 : f32 to vector<2x1x32xf32>
    %400 = arith.addf %399, %398 : vector<2x1x32xf32>
    %401 = vector.broadcast %400 : vector<2x1x32xf32> to vector<2x8x32xf32>
    %402 = arith.mulf %397, %401 : vector<2x8x32xf32>
    %403 = vector.shape_cast %378 : vector<2x32xf32> to vector<2x1x32xf32>
    %404 = vector.broadcast %403 : vector<2x1x32xf32> to vector<2x8x32xf32>
    %405 = arith.addf %402, %404 : vector<2x8x32xf32>
    %406 = vector.shape_cast %405 : vector<2x8x32xf32> to vector<16x32xf32>
    %407 = arith.truncf %406 : vector<16x32xf32> to vector<16x32xbf16>
    %408 = vector.shape_cast %348 : vector<2x8x32xf32> to vector<16x32xf32>
    %409 = arith.mulf %408, %408 : vector<16x32xf32>
    %cst_200 = arith.constant dense<0.000000e+00> : vector<16xf32>
    %410 = vector.multi_reduction <add>, %409, %cst_200 [1] : vector<16x32xf32> to vector<16xf32>
    %411 = vector.shape_cast %410 : vector<16xf32> to vector<16x1xf32>
    %cst_201 = arith.constant 3.200000e+01 : f32
    %412 = vector.broadcast %cst_201 : f32 to vector<16x1xf32>
    %413 = arith.divf %411, %412 : vector<16x1xf32>
    %cst_202 = arith.constant 9.99999997E-7 : f32
    %414 = vector.broadcast %cst_202 : f32 to vector<16x1xf32>
    %415 = arith.addf %413, %414 : vector<16x1xf32>
    %416 = math.rsqrt %415 : vector<16x1xf32>
    %417 = vector.broadcast %416 : vector<16x1xf32> to vector<16x32xf32>
    %418 = arith.mulf %408, %417 : vector<16x32xf32>
    %419 = vector.broadcast %352 : vector<1x32xf32> to vector<16x32xf32>
    %420 = arith.mulf %418, %419 : vector<16x32xf32>
    %421 = arith.truncf %420 : vector<16x32xf32> to vector<16x32xbf16>
    %cst_203 = arith.constant dense<0.000000e+00> : vector<16x32xf32>
    %422 = tpu.matmul %407, %360, %cst_203 {dimension_numbers = #tpu.dot_dimension_numbers<[1], [0], [0], [1], [0, 0, 1, 1], [], []>} : vector<16x32xbf16>, vector<32x32xbf16>, vector<16x32xf32> -> vector<16x32xf32>
    %423 = vector.broadcast %362 : vector<1x32xf32> to vector<16x32xf32>
    %424 = arith.addf %422, %423 : vector<16x32xf32>
    %cst_204 = arith.constant dense<0.000000e+00> : vector<16x64xf32>
    %425 = tpu.matmul %421, %364, %cst_204 {dimension_numbers = #tpu.dot_dimension_numbers<[1], [0], [0], [1], [0, 0, 1, 1], [], []>} : vector<16x32xbf16>, vector<32x64xbf16>, vector<16x64xf32> -> vector<16x64xf32>
    %426 = vector.broadcast %366 : vector<1x64xf32> to vector<16x64xf32>
    %427 = arith.addf %425, %426 : vector<16x64xf32>
    %428 = vector.shape_cast %424 : vector<16x32xf32> to vector<2x8x32xf32>
    %429 = arith.truncf %428 : vector<2x8x32xf32> to vector<2x8x32xbf16>
    %430 = vector.extract_strided_slice %427 {offsets = [0, 0], sizes = [16, 32], strides = [1, 1]} : vector<16x64xf32> to vector<16x32xf32>
    %431 = vector.shape_cast %430 : vector<16x32xf32> to vector<2x8x32xf32>
    %432 = arith.truncf %431 : vector<2x8x32xf32> to vector<2x8x32xbf16>
    %433 = vector.extract_strided_slice %427 {offsets = [0, 32], sizes = [16, 32], strides = [1, 1]} : vector<16x64xf32> to vector<16x32xf32>
    %434 = vector.shape_cast %433 : vector<16x32xf32> to vector<2x8x32xf32>
    %435 = arith.truncf %434 : vector<2x8x32xf32> to vector<2x8x32xbf16>
    %436 = vector.extract_strided_slice %429 {offsets = [0, 0, 0], sizes = [2, 8, 8], strides = [1, 1, 1]} : vector<2x8x32xbf16> to vector<2x8x8xbf16>
    %437 = vector.extract_strided_slice %432 {offsets = [0, 0, 0], sizes = [2, 8, 8], strides = [1, 1, 1]} : vector<2x8x32xbf16> to vector<2x8x8xbf16>
    "tpu.trace_start"() <{level = 10 : i32, message = "bqd,bkd->bqk"}> : () -> ()
    %cst_205 = arith.constant dense<0.000000e+00> : vector<2x8x8xf32>
    %438 = tpu.matmul %436, %437, %cst_205 {dimension_numbers = #tpu.dot_dimension_numbers<[2], [2], [1], [1], [0, 0, 0, 1, 1, 1], [0], [0]>} : vector<2x8x8xbf16>, vector<2x8x8xbf16>, vector<2x8x8xf32> -> vector<2x8x8xf32>
    "tpu.trace_stop"() : () -> ()
    %439 = vector.broadcast %139 : vector<2x1x8xf32> to vector<2x8x8xf32>
    %440 = arith.addf %438, %439 : vector<2x8x8xf32>
    %cst_206 = arith.constant dense<0xFF800000> : vector<2x8xf32>
    %441 = vector.multi_reduction <maximumf>, %440, %cst_206 [2] : vector<2x8x8xf32> to vector<2x8xf32>
    %442 = vector.shape_cast %441 : vector<2x8xf32> to vector<2x8x1xf32>
    %443 = vector.broadcast %442 : vector<2x8x1xf32> to vector<2x8x8xf32>
    %444 = arith.subf %440, %443 : vector<2x8x8xf32>
    %445 = math.exp %444 : vector<2x8x8xf32>
    %cst_207 = arith.constant dense<0.000000e+00> : vector<2x8xf32>
    %446 = vector.multi_reduction <add>, %445, %cst_207 [2] : vector<2x8x8xf32> to vector<2x8xf32>
    %447 = vector.shape_cast %446 : vector<2x8xf32> to vector<2x8x1xf32>
    %448 = vector.broadcast %447 : vector<2x8x1xf32> to vector<2x8x8xf32>
    %449 = arith.divf %445, %448 : vector<2x8x8xf32>
    %450 = arith.truncf %449 : vector<2x8x8xf32> to vector<2x8x8xbf16>
    %451 = vector.extract_strided_slice %435 {offsets = [0, 0, 0], sizes = [2, 8, 8], strides = [1, 1, 1]} : vector<2x8x32xbf16> to vector<2x8x8xbf16>
    "tpu.trace_start"() <{level = 10 : i32, message = "bqk,bkd->bqd"}> : () -> ()
    %cst_208 = arith.constant dense<0.000000e+00> : vector<2x8x8xf32>
    %452 = tpu.matmul %450, %451, %cst_208 {dimension_numbers = #tpu.dot_dimension_numbers<[2], [1], [1], [2], [0, 0, 0, 1, 1, 2], [0], [0]>} : vector<2x8x8xbf16>, vector<2x8x8xbf16>, vector<2x8x8xf32> -> vector<2x8x8xf32>
    "tpu.trace_stop"() : () -> ()
    %453 = vector.extract_strided_slice %429 {offsets = [0, 0, 8], sizes = [2, 8, 8], strides = [1, 1, 1]} : vector<2x8x32xbf16> to vector<2x8x8xbf16>
    %454 = vector.extract_strided_slice %432 {offsets = [0, 0, 8], sizes = [2, 8, 8], strides = [1, 1, 1]} : vector<2x8x32xbf16> to vector<2x8x8xbf16>
    "tpu.trace_start"() <{level = 10 : i32, message = "bqd,bkd->bqk"}> : () -> ()
    %cst_209 = arith.constant dense<0.000000e+00> : vector<2x8x8xf32>
    %455 = tpu.matmul %453, %454, %cst_209 {dimension_numbers = #tpu.dot_dimension_numbers<[2], [2], [1], [1], [0, 0, 0, 1, 1, 1], [0], [0]>} : vector<2x8x8xbf16>, vector<2x8x8xbf16>, vector<2x8x8xf32> -> vector<2x8x8xf32>
    "tpu.trace_stop"() : () -> ()
    %456 = vector.broadcast %139 : vector<2x1x8xf32> to vector<2x8x8xf32>
    %457 = arith.addf %455, %456 : vector<2x8x8xf32>
    %cst_210 = arith.constant dense<0xFF800000> : vector<2x8xf32>
    %458 = vector.multi_reduction <maximumf>, %457, %cst_210 [2] : vector<2x8x8xf32> to vector<2x8xf32>
    %459 = vector.shape_cast %458 : vector<2x8xf32> to vector<2x8x1xf32>
    %460 = vector.broadcast %459 : vector<2x8x1xf32> to vector<2x8x8xf32>
    %461 = arith.subf %457, %460 : vector<2x8x8xf32>
    %462 = math.exp %461 : vector<2x8x8xf32>
    %cst_211 = arith.constant dense<0.000000e+00> : vector<2x8xf32>
    %463 = vector.multi_reduction <add>, %462, %cst_211 [2] : vector<2x8x8xf32> to vector<2x8xf32>
    %464 = vector.shape_cast %463 : vector<2x8xf32> to vector<2x8x1xf32>
    %465 = vector.broadcast %464 : vector<2x8x1xf32> to vector<2x8x8xf32>
    %466 = arith.divf %462, %465 : vector<2x8x8xf32>
    %467 = arith.truncf %466 : vector<2x8x8xf32> to vector<2x8x8xbf16>
    %468 = vector.extract_strided_slice %435 {offsets = [0, 0, 8], sizes = [2, 8, 8], strides = [1, 1, 1]} : vector<2x8x32xbf16> to vector<2x8x8xbf16>
    "tpu.trace_start"() <{level = 10 : i32, message = "bqk,bkd->bqd"}> : () -> ()
    %cst_212 = arith.constant dense<0.000000e+00> : vector<2x8x8xf32>
    %469 = tpu.matmul %467, %468, %cst_212 {dimension_numbers = #tpu.dot_dimension_numbers<[2], [1], [1], [2], [0, 0, 0, 1, 1, 2], [0], [0]>} : vector<2x8x8xbf16>, vector<2x8x8xbf16>, vector<2x8x8xf32> -> vector<2x8x8xf32>
    "tpu.trace_stop"() : () -> ()
    %470 = vector.extract_strided_slice %429 {offsets = [0, 0, 16], sizes = [2, 8, 8], strides = [1, 1, 1]} : vector<2x8x32xbf16> to vector<2x8x8xbf16>
    %471 = vector.extract_strided_slice %432 {offsets = [0, 0, 16], sizes = [2, 8, 8], strides = [1, 1, 1]} : vector<2x8x32xbf16> to vector<2x8x8xbf16>
    "tpu.trace_start"() <{level = 10 : i32, message = "bqd,bkd->bqk"}> : () -> ()
    %cst_213 = arith.constant dense<0.000000e+00> : vector<2x8x8xf32>
    %472 = tpu.matmul %470, %471, %cst_213 {dimension_numbers = #tpu.dot_dimension_numbers<[2], [2], [1], [1], [0, 0, 0, 1, 1, 1], [0], [0]>} : vector<2x8x8xbf16>, vector<2x8x8xbf16>, vector<2x8x8xf32> -> vector<2x8x8xf32>
    "tpu.trace_stop"() : () -> ()
    %473 = vector.broadcast %139 : vector<2x1x8xf32> to vector<2x8x8xf32>
    %474 = arith.addf %472, %473 : vector<2x8x8xf32>
    %cst_214 = arith.constant dense<0xFF800000> : vector<2x8xf32>
    %475 = vector.multi_reduction <maximumf>, %474, %cst_214 [2] : vector<2x8x8xf32> to vector<2x8xf32>
    %476 = vector.shape_cast %475 : vector<2x8xf32> to vector<2x8x1xf32>
    %477 = vector.broadcast %476 : vector<2x8x1xf32> to vector<2x8x8xf32>
    %478 = arith.subf %474, %477 : vector<2x8x8xf32>
    %479 = math.exp %478 : vector<2x8x8xf32>
    %cst_215 = arith.constant dense<0.000000e+00> : vector<2x8xf32>
    %480 = vector.multi_reduction <add>, %479, %cst_215 [2] : vector<2x8x8xf32> to vector<2x8xf32>
    %481 = vector.shape_cast %480 : vector<2x8xf32> to vector<2x8x1xf32>
    %482 = vector.broadcast %481 : vector<2x8x1xf32> to vector<2x8x8xf32>
    %483 = arith.divf %479, %482 : vector<2x8x8xf32>
    %484 = arith.truncf %483 : vector<2x8x8xf32> to vector<2x8x8xbf16>
    %485 = vector.extract_strided_slice %435 {offsets = [0, 0, 16], sizes = [2, 8, 8], strides = [1, 1, 1]} : vector<2x8x32xbf16> to vector<2x8x8xbf16>
    "tpu.trace_start"() <{level = 10 : i32, message = "bqk,bkd->bqd"}> : () -> ()
    %cst_216 = arith.constant dense<0.000000e+00> : vector<2x8x8xf32>
    %486 = tpu.matmul %484, %485, %cst_216 {dimension_numbers = #tpu.dot_dimension_numbers<[2], [1], [1], [2], [0, 0, 0, 1, 1, 2], [0], [0]>} : vector<2x8x8xbf16>, vector<2x8x8xbf16>, vector<2x8x8xf32> -> vector<2x8x8xf32>
    "tpu.trace_stop"() : () -> ()
    %487 = vector.extract_strided_slice %429 {offsets = [0, 0, 24], sizes = [2, 8, 8], strides = [1, 1, 1]} : vector<2x8x32xbf16> to vector<2x8x8xbf16>
    %488 = vector.extract_strided_slice %432 {offsets = [0, 0, 24], sizes = [2, 8, 8], strides = [1, 1, 1]} : vector<2x8x32xbf16> to vector<2x8x8xbf16>
    "tpu.trace_start"() <{level = 10 : i32, message = "bqd,bkd->bqk"}> : () -> ()
    %cst_217 = arith.constant dense<0.000000e+00> : vector<2x8x8xf32>
    %489 = tpu.matmul %487, %488, %cst_217 {dimension_numbers = #tpu.dot_dimension_numbers<[2], [2], [1], [1], [0, 0, 0, 1, 1, 1], [0], [0]>} : vector<2x8x8xbf16>, vector<2x8x8xbf16>, vector<2x8x8xf32> -> vector<2x8x8xf32>
    "tpu.trace_stop"() : () -> ()
    %490 = vector.broadcast %139 : vector<2x1x8xf32> to vector<2x8x8xf32>
    %491 = arith.addf %489, %490 : vector<2x8x8xf32>
    %cst_218 = arith.constant dense<0xFF800000> : vector<2x8xf32>
    %492 = vector.multi_reduction <maximumf>, %491, %cst_218 [2] : vector<2x8x8xf32> to vector<2x8xf32>
    %493 = vector.shape_cast %492 : vector<2x8xf32> to vector<2x8x1xf32>
    %494 = vector.broadcast %493 : vector<2x8x1xf32> to vector<2x8x8xf32>
    %495 = arith.subf %491, %494 : vector<2x8x8xf32>
    %496 = math.exp %495 : vector<2x8x8xf32>
    %cst_219 = arith.constant dense<0.000000e+00> : vector<2x8xf32>
    %497 = vector.multi_reduction <add>, %496, %cst_219 [2] : vector<2x8x8xf32> to vector<2x8xf32>
    %498 = vector.shape_cast %497 : vector<2x8xf32> to vector<2x8x1xf32>
    %499 = vector.broadcast %498 : vector<2x8x1xf32> to vector<2x8x8xf32>
    %500 = arith.divf %496, %499 : vector<2x8x8xf32>
    %501 = arith.truncf %500 : vector<2x8x8xf32> to vector<2x8x8xbf16>
    %502 = vector.extract_strided_slice %435 {offsets = [0, 0, 24], sizes = [2, 8, 8], strides = [1, 1, 1]} : vector<2x8x32xbf16> to vector<2x8x8xbf16>
    "tpu.trace_start"() <{level = 10 : i32, message = "bqk,bkd->bqd"}> : () -> ()
    %cst_220 = arith.constant dense<0.000000e+00> : vector<2x8x8xf32>
    %503 = tpu.matmul %501, %502, %cst_220 {dimension_numbers = #tpu.dot_dimension_numbers<[2], [1], [1], [2], [0, 0, 0, 1, 1, 2], [0], [0]>} : vector<2x8x8xbf16>, vector<2x8x8xbf16>, vector<2x8x8xf32> -> vector<2x8x8xf32>
    "tpu.trace_stop"() : () -> ()
    %504 = tpu.concatenate %452, %469, %486, %503 in 2 : vector<2x8x8xf32>, vector<2x8x8xf32>, vector<2x8x8xf32>, vector<2x8x8xf32> -> vector<2x8x32xf32>
    %505 = vector.shape_cast %504 : vector<2x8x32xf32> to vector<16x32xf32>
    %506 = arith.truncf %505 : vector<16x32xf32> to vector<16x32xbf16>
    %cst_221 = arith.constant dense<0.000000e+00> : vector<16x32xf32>
    %507 = tpu.matmul %506, %368, %cst_221 {dimension_numbers = #tpu.dot_dimension_numbers<[1], [0], [0], [1], [0, 0, 1, 1], [], []>} : vector<16x32xbf16>, vector<32x32xbf16>, vector<16x32xf32> -> vector<16x32xf32>
    %508 = vector.broadcast %370 : vector<1x32xf32> to vector<16x32xf32>
    %509 = arith.addf %507, %508 : vector<16x32xf32>
    %510 = vector.shape_cast %509 : vector<16x32xf32> to vector<2x8x32xf32>
    %511 = vector.shape_cast %380 : vector<2x32xf32> to vector<2x1x32xf32>
    %512 = vector.broadcast %511 : vector<2x1x32xf32> to vector<2x8x32xf32>
    %513 = arith.mulf %512, %510 : vector<2x8x32xf32>
    %514 = arith.addf %140, %513 : vector<2x8x32xf32>
    %515 = vector.shape_cast %514 : vector<2x8x32xf32> to vector<16x32xf32>
    %516 = arith.mulf %515, %515 : vector<16x32xf32>
    %cst_222 = arith.constant dense<0.000000e+00> : vector<16xf32>
    %517 = vector.multi_reduction <add>, %516, %cst_222 [1] : vector<16x32xf32> to vector<16xf32>
    %518 = vector.shape_cast %517 : vector<16xf32> to vector<16x1xf32>
    %cst_223 = arith.constant 3.200000e+01 : f32
    %519 = vector.broadcast %cst_223 : f32 to vector<16x1xf32>
    %520 = arith.divf %518, %519 : vector<16x1xf32>
    %cst_224 = arith.constant 9.99999997E-7 : f32
    %521 = vector.broadcast %cst_224 : f32 to vector<16x1xf32>
    %522 = arith.addf %520, %521 : vector<16x1xf32>
    %523 = math.rsqrt %522 : vector<16x1xf32>
    %524 = vector.broadcast %523 : vector<16x1xf32> to vector<16x32xf32>
    %525 = arith.mulf %515, %524 : vector<16x32xf32>
    %526 = vector.broadcast %354 : vector<1x32xf32> to vector<16x32xf32>
    %527 = arith.mulf %525, %526 : vector<16x32xf32>
    %528 = vector.shape_cast %527 : vector<16x32xf32> to vector<2x8x32xf32>
    %529 = vector.shape_cast %382 : vector<2x32xf32> to vector<2x1x32xf32>
    %cst_225 = arith.constant 1.000000e+00 : f32
    %530 = vector.broadcast %cst_225 : f32 to vector<2x1x32xf32>
    %531 = arith.addf %530, %529 : vector<2x1x32xf32>
    %532 = vector.broadcast %531 : vector<2x1x32xf32> to vector<2x8x32xf32>
    %533 = arith.mulf %528, %532 : vector<2x8x32xf32>
    %534 = vector.shape_cast %381 : vector<2x32xf32> to vector<2x1x32xf32>
    %535 = vector.broadcast %534 : vector<2x1x32xf32> to vector<2x8x32xf32>
    %536 = arith.addf %533, %535 : vector<2x8x32xf32>
    %537 = vector.shape_cast %536 : vector<2x8x32xf32> to vector<16x32xf32>
    %538 = arith.truncf %537 : vector<16x32xf32> to vector<16x32xbf16>
    %cst_226 = arith.constant dense<0.000000e+00> : vector<16x256xf32>
    %539 = tpu.matmul %538, %372, %cst_226 {dimension_numbers = #tpu.dot_dimension_numbers<[1], [0], [0], [1], [0, 0, 1, 1], [], []>} : vector<16x32xbf16>, vector<32x256xbf16>, vector<16x256xf32> -> vector<16x256xf32>
    %540 = vector.extract_strided_slice %539 {offsets = [0, 0], sizes = [16, 128], strides = [1, 1]} : vector<16x256xf32> to vector<16x128xf32>
    %541 = arith.negf %540 : vector<16x128xf32>
    %542 = math.exp %541 : vector<16x128xf32>
    %cst_227 = arith.constant 1.000000e+00 : f32
    %543 = vector.broadcast %cst_227 : f32 to vector<16x128xf32>
    %544 = arith.addf %543, %542 : vector<16x128xf32>
    %545 = arith.divf %543, %544 : vector<16x128xf32>
    %546 = arith.mulf %540, %545 : vector<16x128xf32>
    %547 = vector.extract_strided_slice %539 {offsets = [0, 128], sizes = [16, 128], strides = [1, 1]} : vector<16x256xf32> to vector<16x128xf32>
    %548 = arith.mulf %546, %547 : vector<16x128xf32>
    %549 = arith.truncf %548 : vector<16x128xf32> to vector<16x128xbf16>
    %cst_228 = arith.constant dense<0.000000e+00> : vector<16x32xf32>
    %550 = tpu.matmul %549, %374, %cst_228 {dimension_numbers = #tpu.dot_dimension_numbers<[1], [0], [0], [1], [0, 0, 1, 1], [], []>} : vector<16x128xbf16>, vector<128x32xbf16>, vector<16x32xf32> -> vector<16x32xf32>
    %551 = vector.shape_cast %550 : vector<16x32xf32> to vector<2x8x32xf32>
    %552 = vector.shape_cast %383 : vector<2x32xf32> to vector<2x1x32xf32>
    %553 = vector.broadcast %552 : vector<2x1x32xf32> to vector<2x8x32xf32>
    %554 = arith.mulf %553, %551 : vector<2x8x32xf32>
    %555 = arith.addf %514, %554 : vector<2x8x32xf32>
    %c2 = arith.constant 2 : index
    %c0_229 = arith.constant 0 : index
    %c0_230 = arith.constant 0 : index
    %556 = vector.load %arg31[%c2, %c0_229, %c0_230] : memref<3x1x32xf32, #tpu.memory_space<vmem>>, vector<1x1x32xf32>
    %557 = vector.shape_cast %556 : vector<1x1x32xf32> to vector<1x32xf32>
    %c2_231 = arith.constant 2 : index
    %c0_232 = arith.constant 0 : index
    %c0_233 = arith.constant 0 : index
    %558 = vector.load %arg32[%c2_231, %c0_232, %c0_233] : memref<3x1x32xf32, #tpu.memory_space<vmem>>, vector<1x1x32xf32>
    %559 = vector.shape_cast %558 : vector<1x1x32xf32> to vector<1x32xf32>
    %c2_234 = arith.constant 2 : index
    %c0_235 = arith.constant 0 : index
    %c0_236 = arith.constant 0 : index
    %560 = vector.load %arg33[%c2_234, %c0_235, %c0_236] : memref<3x1x32xf32, #tpu.memory_space<vmem>>, vector<1x1x32xf32>
    %561 = vector.shape_cast %560 : vector<1x1x32xf32> to vector<1x32xf32>
    %c2_237 = arith.constant 2 : index
    %c0_238 = arith.constant 0 : index
    %c0_239 = arith.constant 0 : index
    %562 = vector.load %arg34[%c2_237, %c0_238, %c0_239] : memref<3x96x192xbf16, #tpu.memory_space<vmem>>, vector<1x96x192xbf16>
    %563 = vector.shape_cast %562 : vector<1x96x192xbf16> to vector<96x192xbf16>
    %c2_240 = arith.constant 2 : index
    %c0_241 = arith.constant 0 : index
    %c0_242 = arith.constant 0 : index
    %564 = vector.load %arg35[%c2_240, %c0_241, %c0_242] : memref<3x1x192xf32, #tpu.memory_space<vmem>>, vector<1x1x192xf32>
    %565 = vector.shape_cast %564 : vector<1x1x192xf32> to vector<1x192xf32>
    %c2_243 = arith.constant 2 : index
    %c0_244 = arith.constant 0 : index
    %c0_245 = arith.constant 0 : index
    %566 = vector.load %arg36[%c2_243, %c0_244, %c0_245] : memref<3x32x32xbf16, #tpu.memory_space<vmem>>, vector<1x32x32xbf16>
    %567 = vector.shape_cast %566 : vector<1x32x32xbf16> to vector<32x32xbf16>
    %c2_246 = arith.constant 2 : index
    %c0_247 = arith.constant 0 : index
    %c0_248 = arith.constant 0 : index
    %568 = vector.load %arg37[%c2_246, %c0_247, %c0_248] : memref<3x1x32xf32, #tpu.memory_space<vmem>>, vector<1x1x32xf32>
    %569 = vector.shape_cast %568 : vector<1x1x32xf32> to vector<1x32xf32>
    %c2_249 = arith.constant 2 : index
    %c0_250 = arith.constant 0 : index
    %c0_251 = arith.constant 0 : index
    %570 = vector.load %arg38[%c2_249, %c0_250, %c0_251] : memref<3x32x64xbf16, #tpu.memory_space<vmem>>, vector<1x32x64xbf16>
    %571 = vector.shape_cast %570 : vector<1x32x64xbf16> to vector<32x64xbf16>
    %c2_252 = arith.constant 2 : index
    %c0_253 = arith.constant 0 : index
    %c0_254 = arith.constant 0 : index
    %572 = vector.load %arg39[%c2_252, %c0_253, %c0_254] : memref<3x1x64xf32, #tpu.memory_space<vmem>>, vector<1x1x64xf32>
    %573 = vector.shape_cast %572 : vector<1x1x64xf32> to vector<1x64xf32>
    %c2_255 = arith.constant 2 : index
    %c0_256 = arith.constant 0 : index
    %c0_257 = arith.constant 0 : index
    %574 = vector.load %arg40[%c2_255, %c0_256, %c0_257] : memref<3x32x32xbf16, #tpu.memory_space<vmem>>, vector<1x32x32xbf16>
    %575 = vector.shape_cast %574 : vector<1x32x32xbf16> to vector<32x32xbf16>
    %c2_258 = arith.constant 2 : index
    %c0_259 = arith.constant 0 : index
    %c0_260 = arith.constant 0 : index
    %576 = vector.load %arg41[%c2_258, %c0_259, %c0_260] : memref<3x1x32xf32, #tpu.memory_space<vmem>>, vector<1x1x32xf32>
    %577 = vector.shape_cast %576 : vector<1x1x32xf32> to vector<1x32xf32>
    %c2_261 = arith.constant 2 : index
    %c0_262 = arith.constant 0 : index
    %c0_263 = arith.constant 0 : index
    %578 = vector.load %arg42[%c2_261, %c0_262, %c0_263] : memref<3x32x256xbf16, #tpu.memory_space<vmem>>, vector<1x32x256xbf16>
    %579 = vector.shape_cast %578 : vector<1x32x256xbf16> to vector<32x256xbf16>
    %c2_264 = arith.constant 2 : index
    %c0_265 = arith.constant 0 : index
    %c0_266 = arith.constant 0 : index
    %580 = vector.load %arg43[%c2_264, %c0_265, %c0_266] : memref<3x128x32xbf16, #tpu.memory_space<vmem>>, vector<1x128x32xbf16>
    %581 = vector.shape_cast %580 : vector<1x128x32xbf16> to vector<128x32xbf16>
    %cst_267 = arith.constant dense<0.000000e+00> : vector<2x192xf32>
    %582 = tpu.matmul %127, %563, %cst_267 {dimension_numbers = #tpu.dot_dimension_numbers<[1], [0], [0], [1], [0, 0, 1, 1], [], []>} : vector<2x96xbf16>, vector<96x192xbf16>, vector<2x192xf32> -> vector<2x192xf32>
    %583 = vector.broadcast %565 : vector<1x192xf32> to vector<2x192xf32>
    %584 = arith.addf %582, %583 : vector<2x192xf32>
    %585 = vector.extract_strided_slice %584 {offsets = [0, 0], sizes = [2, 32], strides = [1, 1]} : vector<2x192xf32> to vector<2x32xf32>
    %586 = vector.extract_strided_slice %584 {offsets = [0, 32], sizes = [2, 32], strides = [1, 1]} : vector<2x192xf32> to vector<2x32xf32>
    %587 = vector.extract_strided_slice %584 {offsets = [0, 64], sizes = [2, 32], strides = [1, 1]} : vector<2x192xf32> to vector<2x32xf32>
    %588 = vector.extract_strided_slice %584 {offsets = [0, 96], sizes = [2, 32], strides = [1, 1]} : vector<2x192xf32> to vector<2x32xf32>
    %589 = vector.extract_strided_slice %584 {offsets = [0, 128], sizes = [2, 32], strides = [1, 1]} : vector<2x192xf32> to vector<2x32xf32>
    %590 = vector.extract_strided_slice %584 {offsets = [0, 160], sizes = [2, 32], strides = [1, 1]} : vector<2x192xf32> to vector<2x32xf32>
    %591 = vector.shape_cast %348 : vector<2x8x32xf32> to vector<16x32xf32>
    %592 = arith.mulf %591, %591 : vector<16x32xf32>
    %cst_268 = arith.constant dense<0.000000e+00> : vector<16xf32>
    %593 = vector.multi_reduction <add>, %592, %cst_268 [1] : vector<16x32xf32> to vector<16xf32>
    %594 = vector.shape_cast %593 : vector<16xf32> to vector<16x1xf32>
    %cst_269 = arith.constant 3.200000e+01 : f32
    %595 = vector.broadcast %cst_269 : f32 to vector<16x1xf32>
    %596 = arith.divf %594, %595 : vector<16x1xf32>
    %cst_270 = arith.constant 9.99999997E-7 : f32
    %597 = vector.broadcast %cst_270 : f32 to vector<16x1xf32>
    %598 = arith.addf %596, %597 : vector<16x1xf32>
    %599 = math.rsqrt %598 : vector<16x1xf32>
    %600 = vector.broadcast %599 : vector<16x1xf32> to vector<16x32xf32>
    %601 = arith.mulf %591, %600 : vector<16x32xf32>
    %602 = vector.broadcast %557 : vector<1x32xf32> to vector<16x32xf32>
    %603 = arith.mulf %601, %602 : vector<16x32xf32>
    %604 = vector.shape_cast %603 : vector<16x32xf32> to vector<2x8x32xf32>
    %605 = vector.shape_cast %586 : vector<2x32xf32> to vector<2x1x32xf32>
    %cst_271 = arith.constant 1.000000e+00 : f32
    %606 = vector.broadcast %cst_271 : f32 to vector<2x1x32xf32>
    %607 = arith.addf %606, %605 : vector<2x1x32xf32>
    %608 = vector.broadcast %607 : vector<2x1x32xf32> to vector<2x8x32xf32>
    %609 = arith.mulf %604, %608 : vector<2x8x32xf32>
    %610 = vector.shape_cast %585 : vector<2x32xf32> to vector<2x1x32xf32>
    %611 = vector.broadcast %610 : vector<2x1x32xf32> to vector<2x8x32xf32>
    %612 = arith.addf %609, %611 : vector<2x8x32xf32>
    %613 = vector.shape_cast %612 : vector<2x8x32xf32> to vector<16x32xf32>
    %614 = arith.truncf %613 : vector<16x32xf32> to vector<16x32xbf16>
    %615 = vector.shape_cast %555 : vector<2x8x32xf32> to vector<16x32xf32>
    %616 = arith.mulf %615, %615 : vector<16x32xf32>
    %cst_272 = arith.constant dense<0.000000e+00> : vector<16xf32>
    %617 = vector.multi_reduction <add>, %616, %cst_272 [1] : vector<16x32xf32> to vector<16xf32>
    %618 = vector.shape_cast %617 : vector<16xf32> to vector<16x1xf32>
    %cst_273 = arith.constant 3.200000e+01 : f32
    %619 = vector.broadcast %cst_273 : f32 to vector<16x1xf32>
    %620 = arith.divf %618, %619 : vector<16x1xf32>
    %cst_274 = arith.constant 9.99999997E-7 : f32
    %621 = vector.broadcast %cst_274 : f32 to vector<16x1xf32>
    %622 = arith.addf %620, %621 : vector<16x1xf32>
    %623 = math.rsqrt %622 : vector<16x1xf32>
    %624 = vector.broadcast %623 : vector<16x1xf32> to vector<16x32xf32>
    %625 = arith.mulf %615, %624 : vector<16x32xf32>
    %626 = vector.broadcast %559 : vector<1x32xf32> to vector<16x32xf32>
    %627 = arith.mulf %625, %626 : vector<16x32xf32>
    %628 = arith.truncf %627 : vector<16x32xf32> to vector<16x32xbf16>
    %cst_275 = arith.constant dense<0.000000e+00> : vector<16x32xf32>
    %629 = tpu.matmul %614, %567, %cst_275 {dimension_numbers = #tpu.dot_dimension_numbers<[1], [0], [0], [1], [0, 0, 1, 1], [], []>} : vector<16x32xbf16>, vector<32x32xbf16>, vector<16x32xf32> -> vector<16x32xf32>
    %630 = vector.broadcast %569 : vector<1x32xf32> to vector<16x32xf32>
    %631 = arith.addf %629, %630 : vector<16x32xf32>
    %cst_276 = arith.constant dense<0.000000e+00> : vector<16x64xf32>
    %632 = tpu.matmul %628, %571, %cst_276 {dimension_numbers = #tpu.dot_dimension_numbers<[1], [0], [0], [1], [0, 0, 1, 1], [], []>} : vector<16x32xbf16>, vector<32x64xbf16>, vector<16x64xf32> -> vector<16x64xf32>
    %633 = vector.broadcast %573 : vector<1x64xf32> to vector<16x64xf32>
    %634 = arith.addf %632, %633 : vector<16x64xf32>
    %635 = vector.shape_cast %631 : vector<16x32xf32> to vector<2x8x32xf32>
    %636 = arith.truncf %635 : vector<2x8x32xf32> to vector<2x8x32xbf16>
    %637 = vector.extract_strided_slice %634 {offsets = [0, 0], sizes = [16, 32], strides = [1, 1]} : vector<16x64xf32> to vector<16x32xf32>
    %638 = vector.shape_cast %637 : vector<16x32xf32> to vector<2x8x32xf32>
    %639 = arith.truncf %638 : vector<2x8x32xf32> to vector<2x8x32xbf16>
    %640 = vector.extract_strided_slice %634 {offsets = [0, 32], sizes = [16, 32], strides = [1, 1]} : vector<16x64xf32> to vector<16x32xf32>
    %641 = vector.shape_cast %640 : vector<16x32xf32> to vector<2x8x32xf32>
    %642 = arith.truncf %641 : vector<2x8x32xf32> to vector<2x8x32xbf16>
    %643 = vector.extract_strided_slice %636 {offsets = [0, 0, 0], sizes = [2, 8, 8], strides = [1, 1, 1]} : vector<2x8x32xbf16> to vector<2x8x8xbf16>
    %644 = vector.extract_strided_slice %639 {offsets = [0, 0, 0], sizes = [2, 8, 8], strides = [1, 1, 1]} : vector<2x8x32xbf16> to vector<2x8x8xbf16>
    "tpu.trace_start"() <{level = 10 : i32, message = "bqd,bkd->bqk"}> : () -> ()
    %cst_277 = arith.constant dense<0.000000e+00> : vector<2x8x8xf32>
    %645 = tpu.matmul %643, %644, %cst_277 {dimension_numbers = #tpu.dot_dimension_numbers<[2], [2], [1], [1], [0, 0, 0, 1, 1, 1], [0], [0]>} : vector<2x8x8xbf16>, vector<2x8x8xbf16>, vector<2x8x8xf32> -> vector<2x8x8xf32>
    "tpu.trace_stop"() : () -> ()
    %646 = vector.broadcast %133 : vector<2x1x8xf32> to vector<2x8x8xf32>
    %647 = arith.addf %645, %646 : vector<2x8x8xf32>
    %cst_278 = arith.constant dense<0xFF800000> : vector<2x8xf32>
    %648 = vector.multi_reduction <maximumf>, %647, %cst_278 [2] : vector<2x8x8xf32> to vector<2x8xf32>
    %649 = vector.shape_cast %648 : vector<2x8xf32> to vector<2x8x1xf32>
    %650 = vector.broadcast %649 : vector<2x8x1xf32> to vector<2x8x8xf32>
    %651 = arith.subf %647, %650 : vector<2x8x8xf32>
    %652 = math.exp %651 : vector<2x8x8xf32>
    %cst_279 = arith.constant dense<0.000000e+00> : vector<2x8xf32>
    %653 = vector.multi_reduction <add>, %652, %cst_279 [2] : vector<2x8x8xf32> to vector<2x8xf32>
    %654 = vector.shape_cast %653 : vector<2x8xf32> to vector<2x8x1xf32>
    %655 = vector.broadcast %654 : vector<2x8x1xf32> to vector<2x8x8xf32>
    %656 = arith.divf %652, %655 : vector<2x8x8xf32>
    %657 = arith.truncf %656 : vector<2x8x8xf32> to vector<2x8x8xbf16>
    %658 = vector.extract_strided_slice %642 {offsets = [0, 0, 0], sizes = [2, 8, 8], strides = [1, 1, 1]} : vector<2x8x32xbf16> to vector<2x8x8xbf16>
    "tpu.trace_start"() <{level = 10 : i32, message = "bqk,bkd->bqd"}> : () -> ()
    %cst_280 = arith.constant dense<0.000000e+00> : vector<2x8x8xf32>
    %659 = tpu.matmul %657, %658, %cst_280 {dimension_numbers = #tpu.dot_dimension_numbers<[2], [1], [1], [2], [0, 0, 0, 1, 1, 2], [0], [0]>} : vector<2x8x8xbf16>, vector<2x8x8xbf16>, vector<2x8x8xf32> -> vector<2x8x8xf32>
    "tpu.trace_stop"() : () -> ()
    %660 = vector.extract_strided_slice %636 {offsets = [0, 0, 8], sizes = [2, 8, 8], strides = [1, 1, 1]} : vector<2x8x32xbf16> to vector<2x8x8xbf16>
    %661 = vector.extract_strided_slice %639 {offsets = [0, 0, 8], sizes = [2, 8, 8], strides = [1, 1, 1]} : vector<2x8x32xbf16> to vector<2x8x8xbf16>
    "tpu.trace_start"() <{level = 10 : i32, message = "bqd,bkd->bqk"}> : () -> ()
    %cst_281 = arith.constant dense<0.000000e+00> : vector<2x8x8xf32>
    %662 = tpu.matmul %660, %661, %cst_281 {dimension_numbers = #tpu.dot_dimension_numbers<[2], [2], [1], [1], [0, 0, 0, 1, 1, 1], [0], [0]>} : vector<2x8x8xbf16>, vector<2x8x8xbf16>, vector<2x8x8xf32> -> vector<2x8x8xf32>
    "tpu.trace_stop"() : () -> ()
    %663 = vector.broadcast %133 : vector<2x1x8xf32> to vector<2x8x8xf32>
    %664 = arith.addf %662, %663 : vector<2x8x8xf32>
    %cst_282 = arith.constant dense<0xFF800000> : vector<2x8xf32>
    %665 = vector.multi_reduction <maximumf>, %664, %cst_282 [2] : vector<2x8x8xf32> to vector<2x8xf32>
    %666 = vector.shape_cast %665 : vector<2x8xf32> to vector<2x8x1xf32>
    %667 = vector.broadcast %666 : vector<2x8x1xf32> to vector<2x8x8xf32>
    %668 = arith.subf %664, %667 : vector<2x8x8xf32>
    %669 = math.exp %668 : vector<2x8x8xf32>
    %cst_283 = arith.constant dense<0.000000e+00> : vector<2x8xf32>
    %670 = vector.multi_reduction <add>, %669, %cst_283 [2] : vector<2x8x8xf32> to vector<2x8xf32>
    %671 = vector.shape_cast %670 : vector<2x8xf32> to vector<2x8x1xf32>
    %672 = vector.broadcast %671 : vector<2x8x1xf32> to vector<2x8x8xf32>
    %673 = arith.divf %669, %672 : vector<2x8x8xf32>
    %674 = arith.truncf %673 : vector<2x8x8xf32> to vector<2x8x8xbf16>
    %675 = vector.extract_strided_slice %642 {offsets = [0, 0, 8], sizes = [2, 8, 8], strides = [1, 1, 1]} : vector<2x8x32xbf16> to vector<2x8x8xbf16>
    "tpu.trace_start"() <{level = 10 : i32, message = "bqk,bkd->bqd"}> : () -> ()
    %cst_284 = arith.constant dense<0.000000e+00> : vector<2x8x8xf32>
    %676 = tpu.matmul %674, %675, %cst_284 {dimension_numbers = #tpu.dot_dimension_numbers<[2], [1], [1], [2], [0, 0, 0, 1, 1, 2], [0], [0]>} : vector<2x8x8xbf16>, vector<2x8x8xbf16>, vector<2x8x8xf32> -> vector<2x8x8xf32>
    "tpu.trace_stop"() : () -> ()
    %677 = vector.extract_strided_slice %636 {offsets = [0, 0, 16], sizes = [2, 8, 8], strides = [1, 1, 1]} : vector<2x8x32xbf16> to vector<2x8x8xbf16>
    %678 = vector.extract_strided_slice %639 {offsets = [0, 0, 16], sizes = [2, 8, 8], strides = [1, 1, 1]} : vector<2x8x32xbf16> to vector<2x8x8xbf16>
    "tpu.trace_start"() <{level = 10 : i32, message = "bqd,bkd->bqk"}> : () -> ()
    %cst_285 = arith.constant dense<0.000000e+00> : vector<2x8x8xf32>
    %679 = tpu.matmul %677, %678, %cst_285 {dimension_numbers = #tpu.dot_dimension_numbers<[2], [2], [1], [1], [0, 0, 0, 1, 1, 1], [0], [0]>} : vector<2x8x8xbf16>, vector<2x8x8xbf16>, vector<2x8x8xf32> -> vector<2x8x8xf32>
    "tpu.trace_stop"() : () -> ()
    %680 = vector.broadcast %133 : vector<2x1x8xf32> to vector<2x8x8xf32>
    %681 = arith.addf %679, %680 : vector<2x8x8xf32>
    %cst_286 = arith.constant dense<0xFF800000> : vector<2x8xf32>
    %682 = vector.multi_reduction <maximumf>, %681, %cst_286 [2] : vector<2x8x8xf32> to vector<2x8xf32>
    %683 = vector.shape_cast %682 : vector<2x8xf32> to vector<2x8x1xf32>
    %684 = vector.broadcast %683 : vector<2x8x1xf32> to vector<2x8x8xf32>
    %685 = arith.subf %681, %684 : vector<2x8x8xf32>
    %686 = math.exp %685 : vector<2x8x8xf32>
    %cst_287 = arith.constant dense<0.000000e+00> : vector<2x8xf32>
    %687 = vector.multi_reduction <add>, %686, %cst_287 [2] : vector<2x8x8xf32> to vector<2x8xf32>
    %688 = vector.shape_cast %687 : vector<2x8xf32> to vector<2x8x1xf32>
    %689 = vector.broadcast %688 : vector<2x8x1xf32> to vector<2x8x8xf32>
    %690 = arith.divf %686, %689 : vector<2x8x8xf32>
    %691 = arith.truncf %690 : vector<2x8x8xf32> to vector<2x8x8xbf16>
    %692 = vector.extract_strided_slice %642 {offsets = [0, 0, 16], sizes = [2, 8, 8], strides = [1, 1, 1]} : vector<2x8x32xbf16> to vector<2x8x8xbf16>
    "tpu.trace_start"() <{level = 10 : i32, message = "bqk,bkd->bqd"}> : () -> ()
    %cst_288 = arith.constant dense<0.000000e+00> : vector<2x8x8xf32>
    %693 = tpu.matmul %691, %692, %cst_288 {dimension_numbers = #tpu.dot_dimension_numbers<[2], [1], [1], [2], [0, 0, 0, 1, 1, 2], [0], [0]>} : vector<2x8x8xbf16>, vector<2x8x8xbf16>, vector<2x8x8xf32> -> vector<2x8x8xf32>
    "tpu.trace_stop"() : () -> ()
    %694 = vector.extract_strided_slice %636 {offsets = [0, 0, 24], sizes = [2, 8, 8], strides = [1, 1, 1]} : vector<2x8x32xbf16> to vector<2x8x8xbf16>
    %695 = vector.extract_strided_slice %639 {offsets = [0, 0, 24], sizes = [2, 8, 8], strides = [1, 1, 1]} : vector<2x8x32xbf16> to vector<2x8x8xbf16>
    "tpu.trace_start"() <{level = 10 : i32, message = "bqd,bkd->bqk"}> : () -> ()
    %cst_289 = arith.constant dense<0.000000e+00> : vector<2x8x8xf32>
    %696 = tpu.matmul %694, %695, %cst_289 {dimension_numbers = #tpu.dot_dimension_numbers<[2], [2], [1], [1], [0, 0, 0, 1, 1, 1], [0], [0]>} : vector<2x8x8xbf16>, vector<2x8x8xbf16>, vector<2x8x8xf32> -> vector<2x8x8xf32>
    "tpu.trace_stop"() : () -> ()
    %697 = vector.broadcast %133 : vector<2x1x8xf32> to vector<2x8x8xf32>
    %698 = arith.addf %696, %697 : vector<2x8x8xf32>
    %cst_290 = arith.constant dense<0xFF800000> : vector<2x8xf32>
    %699 = vector.multi_reduction <maximumf>, %698, %cst_290 [2] : vector<2x8x8xf32> to vector<2x8xf32>
    %700 = vector.shape_cast %699 : vector<2x8xf32> to vector<2x8x1xf32>
    %701 = vector.broadcast %700 : vector<2x8x1xf32> to vector<2x8x8xf32>
    %702 = arith.subf %698, %701 : vector<2x8x8xf32>
    %703 = math.exp %702 : vector<2x8x8xf32>
    %cst_291 = arith.constant dense<0.000000e+00> : vector<2x8xf32>
    %704 = vector.multi_reduction <add>, %703, %cst_291 [2] : vector<2x8x8xf32> to vector<2x8xf32>
    %705 = vector.shape_cast %704 : vector<2x8xf32> to vector<2x8x1xf32>
    %706 = vector.broadcast %705 : vector<2x8x1xf32> to vector<2x8x8xf32>
    %707 = arith.divf %703, %706 : vector<2x8x8xf32>
    %708 = arith.truncf %707 : vector<2x8x8xf32> to vector<2x8x8xbf16>
    %709 = vector.extract_strided_slice %642 {offsets = [0, 0, 24], sizes = [2, 8, 8], strides = [1, 1, 1]} : vector<2x8x32xbf16> to vector<2x8x8xbf16>
    "tpu.trace_start"() <{level = 10 : i32, message = "bqk,bkd->bqd"}> : () -> ()
    %cst_292 = arith.constant dense<0.000000e+00> : vector<2x8x8xf32>
    %710 = tpu.matmul %708, %709, %cst_292 {dimension_numbers = #tpu.dot_dimension_numbers<[2], [1], [1], [2], [0, 0, 0, 1, 1, 2], [0], [0]>} : vector<2x8x8xbf16>, vector<2x8x8xbf16>, vector<2x8x8xf32> -> vector<2x8x8xf32>
    "tpu.trace_stop"() : () -> ()
    %711 = tpu.concatenate %659, %676, %693, %710 in 2 : vector<2x8x8xf32>, vector<2x8x8xf32>, vector<2x8x8xf32>, vector<2x8x8xf32> -> vector<2x8x32xf32>
    %712 = vector.shape_cast %711 : vector<2x8x32xf32> to vector<16x32xf32>
    %713 = arith.truncf %712 : vector<16x32xf32> to vector<16x32xbf16>
    %cst_293 = arith.constant dense<0.000000e+00> : vector<16x32xf32>
    %714 = tpu.matmul %713, %575, %cst_293 {dimension_numbers = #tpu.dot_dimension_numbers<[1], [0], [0], [1], [0, 0, 1, 1], [], []>} : vector<16x32xbf16>, vector<32x32xbf16>, vector<16x32xf32> -> vector<16x32xf32>
    %715 = vector.broadcast %577 : vector<1x32xf32> to vector<16x32xf32>
    %716 = arith.addf %714, %715 : vector<16x32xf32>
    %717 = vector.shape_cast %716 : vector<16x32xf32> to vector<2x8x32xf32>
    %718 = vector.shape_cast %587 : vector<2x32xf32> to vector<2x1x32xf32>
    %719 = vector.broadcast %718 : vector<2x1x32xf32> to vector<2x8x32xf32>
    %720 = arith.mulf %719, %717 : vector<2x8x32xf32>
    %721 = arith.addf %348, %720 : vector<2x8x32xf32>
    %722 = vector.shape_cast %721 : vector<2x8x32xf32> to vector<16x32xf32>
    %723 = arith.mulf %722, %722 : vector<16x32xf32>
    %cst_294 = arith.constant dense<0.000000e+00> : vector<16xf32>
    %724 = vector.multi_reduction <add>, %723, %cst_294 [1] : vector<16x32xf32> to vector<16xf32>
    %725 = vector.shape_cast %724 : vector<16xf32> to vector<16x1xf32>
    %cst_295 = arith.constant 3.200000e+01 : f32
    %726 = vector.broadcast %cst_295 : f32 to vector<16x1xf32>
    %727 = arith.divf %725, %726 : vector<16x1xf32>
    %cst_296 = arith.constant 9.99999997E-7 : f32
    %728 = vector.broadcast %cst_296 : f32 to vector<16x1xf32>
    %729 = arith.addf %727, %728 : vector<16x1xf32>
    %730 = math.rsqrt %729 : vector<16x1xf32>
    %731 = vector.broadcast %730 : vector<16x1xf32> to vector<16x32xf32>
    %732 = arith.mulf %722, %731 : vector<16x32xf32>
    %733 = vector.broadcast %561 : vector<1x32xf32> to vector<16x32xf32>
    %734 = arith.mulf %732, %733 : vector<16x32xf32>
    %735 = vector.shape_cast %734 : vector<16x32xf32> to vector<2x8x32xf32>
    %736 = vector.shape_cast %589 : vector<2x32xf32> to vector<2x1x32xf32>
    %cst_297 = arith.constant 1.000000e+00 : f32
    %737 = vector.broadcast %cst_297 : f32 to vector<2x1x32xf32>
    %738 = arith.addf %737, %736 : vector<2x1x32xf32>
    %739 = vector.broadcast %738 : vector<2x1x32xf32> to vector<2x8x32xf32>
    %740 = arith.mulf %735, %739 : vector<2x8x32xf32>
    %741 = vector.shape_cast %588 : vector<2x32xf32> to vector<2x1x32xf32>
    %742 = vector.broadcast %741 : vector<2x1x32xf32> to vector<2x8x32xf32>
    %743 = arith.addf %740, %742 : vector<2x8x32xf32>
    %744 = vector.shape_cast %743 : vector<2x8x32xf32> to vector<16x32xf32>
    %745 = arith.truncf %744 : vector<16x32xf32> to vector<16x32xbf16>
    %cst_298 = arith.constant dense<0.000000e+00> : vector<16x256xf32>
    %746 = tpu.matmul %745, %579, %cst_298 {dimension_numbers = #tpu.dot_dimension_numbers<[1], [0], [0], [1], [0, 0, 1, 1], [], []>} : vector<16x32xbf16>, vector<32x256xbf16>, vector<16x256xf32> -> vector<16x256xf32>
    %747 = vector.extract_strided_slice %746 {offsets = [0, 0], sizes = [16, 128], strides = [1, 1]} : vector<16x256xf32> to vector<16x128xf32>
    %748 = arith.negf %747 : vector<16x128xf32>
    %749 = math.exp %748 : vector<16x128xf32>
    %cst_299 = arith.constant 1.000000e+00 : f32
    %750 = vector.broadcast %cst_299 : f32 to vector<16x128xf32>
    %751 = arith.addf %750, %749 : vector<16x128xf32>
    %752 = arith.divf %750, %751 : vector<16x128xf32>
    %753 = arith.mulf %747, %752 : vector<16x128xf32>
    %754 = vector.extract_strided_slice %746 {offsets = [0, 128], sizes = [16, 128], strides = [1, 1]} : vector<16x256xf32> to vector<16x128xf32>
    %755 = arith.mulf %753, %754 : vector<16x128xf32>
    %756 = arith.truncf %755 : vector<16x128xf32> to vector<16x128xbf16>
    %cst_300 = arith.constant dense<0.000000e+00> : vector<16x32xf32>
    %757 = tpu.matmul %756, %581, %cst_300 {dimension_numbers = #tpu.dot_dimension_numbers<[1], [0], [0], [1], [0, 0, 1, 1], [], []>} : vector<16x128xbf16>, vector<128x32xbf16>, vector<16x32xf32> -> vector<16x32xf32>
    %758 = vector.shape_cast %757 : vector<16x32xf32> to vector<2x8x32xf32>
    %759 = vector.shape_cast %590 : vector<2x32xf32> to vector<2x1x32xf32>
    %760 = vector.broadcast %759 : vector<2x1x32xf32> to vector<2x8x32xf32>
    %761 = arith.mulf %760, %758 : vector<2x8x32xf32>
    %762 = arith.addf %721, %761 : vector<2x8x32xf32>
    %763 = vector.shape_cast %762 : vector<2x8x32xf32> to vector<16x32xf32>
    %764 = arith.truncf %763 : vector<16x32xf32> to vector<16x32xbf16>
    %765 = arith.truncf %120 : vector<2x96xf32> to vector<2x96xbf16>
    %c0_301 = arith.constant 0 : index
    %c0_302 = arith.constant 0 : index
    %766 = vector.load %arg44[%c0_301, %c0_302] : memref<32x32xbf16, #tpu.memory_space<vmem>>, vector<32x32xbf16>
    %cst_303 = arith.constant dense<0.000000e+00> : vector<16x32xf32>
    %767 = tpu.matmul %764, %766, %cst_303 {dimension_numbers = #tpu.dot_dimension_numbers<[1], [0], [0], [1], [0, 0, 1, 1], [], []>} : vector<16x32xbf16>, vector<32x32xbf16>, vector<16x32xf32> -> vector<16x32xf32>
    %c0_304 = arith.constant 0 : index
    %c0_305 = arith.constant 0 : index
    %768 = vector.load %arg46[%c0_304, %c0_305] : memref<1x32xf32, #tpu.memory_space<vmem>>, vector<1x32xf32>
    %769 = vector.broadcast %768 : vector<1x32xf32> to vector<16x32xf32>
    %770 = arith.addf %767, %769 : vector<16x32xf32>
    %c0_306 = arith.constant 0 : index
    %c0_307 = arith.constant 0 : index
    %771 = vector.load %arg45[%c0_306, %c0_307] : memref<96x32xbf16, #tpu.memory_space<vmem>>, vector<96x32xbf16>
    %cst_308 = arith.constant dense<0.000000e+00> : vector<2x32xf32>
    %772 = tpu.matmul %765, %771, %cst_308 {dimension_numbers = #tpu.dot_dimension_numbers<[1], [0], [0], [1], [0, 0, 1, 1], [], []>} : vector<2x96xbf16>, vector<96x32xbf16>, vector<2x32xf32> -> vector<2x32xf32>
    %773 = vector.shape_cast %770 : vector<16x32xf32> to vector<2x8x32xf32>
    %774 = vector.shape_cast %772 : vector<2x32xf32> to vector<2x1x32xf32>
    %775 = vector.broadcast %774 : vector<2x1x32xf32> to vector<2x8x32xf32>
    %776 = arith.addf %773, %775 : vector<2x8x32xf32>
    %777 = arith.negf %776 : vector<2x8x32xf32>
    %778 = math.exp %777 : vector<2x8x32xf32>
    %cst_309 = arith.constant 1.000000e+00 : f32
    %779 = vector.broadcast %cst_309 : f32 to vector<2x8x32xf32>
    %780 = arith.addf %779, %778 : vector<2x8x32xf32>
    %781 = arith.divf %779, %780 : vector<2x8x32xf32>
    %782 = arith.mulf %776, %781 : vector<2x8x32xf32>
    %783 = vector.shape_cast %782 : vector<2x8x32xf32> to vector<16x32xf32>
    %c0_310 = arith.constant 0 : index
    %c0_311 = arith.constant 0 : index
    %784 = vector.load %arg47[%c0_310, %c0_311] : memref<32x32xbf16, #tpu.memory_space<vmem>>, vector<32x32xbf16>
    %c0_312 = arith.constant 0 : index
    %c0_313 = arith.constant 0 : index
    %785 = vector.load %arg48[%c0_312, %c0_313] : memref<1x32xf32, #tpu.memory_space<vmem>>, vector<1x32xf32>
    %786 = arith.truncf %783 : vector<16x32xf32> to vector<16x32xbf16>
    %cst_314 = arith.constant dense<0.000000e+00> : vector<16x32xf32>
    %787 = tpu.matmul %786, %784, %cst_314 {dimension_numbers = #tpu.dot_dimension_numbers<[1], [0], [0], [1], [0, 0, 1, 1], [], []>} : vector<16x32xbf16>, vector<32x32xbf16>, vector<16x32xf32> -> vector<16x32xf32>
    %788 = vector.broadcast %785 : vector<1x32xf32> to vector<16x32xf32>
    %789 = arith.addf %787, %788 : vector<16x32xf32>
    %790 = arith.negf %789 : vector<16x32xf32>
    %791 = math.exp %790 : vector<16x32xf32>
    %cst_315 = arith.constant 1.000000e+00 : f32
    %792 = vector.broadcast %cst_315 : f32 to vector<16x32xf32>
    %793 = arith.addf %792, %791 : vector<16x32xf32>
    %794 = arith.divf %792, %793 : vector<16x32xf32>
    %795 = arith.mulf %789, %794 : vector<16x32xf32>
    %c0_316 = arith.constant 0 : index
    %c0_317 = arith.constant 0 : index
    %796 = vector.load %arg49[%c0_316, %c0_317] : memref<32x32xbf16, #tpu.memory_space<vmem>>, vector<32x32xbf16>
    %c0_318 = arith.constant 0 : index
    %c0_319 = arith.constant 0 : index
    %797 = vector.load %arg50[%c0_318, %c0_319] : memref<1x32xf32, #tpu.memory_space<vmem>>, vector<1x32xf32>
    %798 = arith.truncf %795 : vector<16x32xf32> to vector<16x32xbf16>
    %cst_320 = arith.constant dense<0.000000e+00> : vector<16x32xf32>
    %799 = tpu.matmul %798, %796, %cst_320 {dimension_numbers = #tpu.dot_dimension_numbers<[1], [0], [0], [1], [0, 0, 1, 1], [], []>} : vector<16x32xbf16>, vector<32x32xbf16>, vector<16x32xf32> -> vector<16x32xf32>
    %800 = vector.broadcast %797 : vector<1x32xf32> to vector<16x32xf32>
    %801 = arith.addf %799, %800 : vector<16x32xf32>
    %802 = arith.negf %801 : vector<16x32xf32>
    %803 = math.exp %802 : vector<16x32xf32>
    %cst_321 = arith.constant 1.000000e+00 : f32
    %804 = vector.broadcast %cst_321 : f32 to vector<16x32xf32>
    %805 = arith.addf %804, %803 : vector<16x32xf32>
    %806 = arith.divf %804, %805 : vector<16x32xf32>
    %807 = arith.mulf %801, %806 : vector<16x32xf32>
    %c0_322 = arith.constant 0 : index
    %c0_323 = arith.constant 0 : index
    %808 = vector.load %arg51[%c0_322, %c0_323] : memref<32x128xbf16, #tpu.memory_space<vmem>>, vector<32x128xbf16>
    %c0_324 = arith.constant 0 : index
    %c0_325 = arith.constant 0 : index
    %809 = vector.load %arg52[%c0_324, %c0_325] : memref<1x128xf32, #tpu.memory_space<vmem>>, vector<1x128xf32>
    %810 = arith.truncf %807 : vector<16x32xf32> to vector<16x32xbf16>
    %cst_326 = arith.constant dense<0.000000e+00> : vector<16x128xf32>
    %811 = tpu.matmul %810, %808, %cst_326 {dimension_numbers = #tpu.dot_dimension_numbers<[1], [0], [0], [1], [0, 0, 1, 1], [], []>} : vector<16x32xbf16>, vector<32x128xbf16>, vector<16x128xf32> -> vector<16x128xf32>
    %812 = vector.broadcast %809 : vector<1x128xf32> to vector<16x128xf32>
    %813 = arith.addf %811, %812 : vector<16x128xf32>
    %c0_327 = arith.constant 0 : index
    %c0_328 = arith.constant 0 : index
    %814 = vector.load %arg53[%c0_327, %c0_328] : memref<16x128xf32, #tpu.memory_space<vmem>>, vector<16x128xf32>
    tpu.vector_store %arg53[%c0_327, %c0_328], %813 {strides = array<i32>} : memref<16x128xf32, #tpu.memory_space<vmem>>, vector<16x128xf32>,
    return
  }
}

</mosaic_0001>

<llo_original>
// kernel: div.1
$region0: #{div.1}
  #allocation0 [shape = 's32[1]{0}', space=sflag, size = 0x4, scoped, tag = 'scoped memory for div.1']
  %s0 = inlined_call_operand.vmem [shape: f32[16], index: 0, kind: input, shape index: {}]
  %s1 = inlined_call_operand.vmem [shape: f32[16], index: 1, kind: input, shape index: {}]
  %s2 = inlined_call_operand.vmem [shape: f32[16], index: 2, kind: output, shape index: {}]
  %v3 = vld [vmem:[%s0] sm:$0x1]
  %v4 = vld [vmem:[%s1] sm:$0x1]
  %5 = xla_tuple %v3, %v4
  %6 = xla_tuple %5
  %v7 = vrcp.pop %v4
  %v8 = vmul.f32 %v4, %v7
  %v9 = vsub.f32 1.0, %v8
  %v10 = vmul.f32 %v7, %v9
  %v11 = vadd.f32 %v7, %v10
  %vm12 = vweird.f32 %v4
  %vm13 = vweird.f32 %v7
  %vm14 = vmor %vm12, %vm13
  %v15 = vsel %vm14, %v7, %v11
  %v16 = vand.u32 2147483647, %v4
  %vm17 = vcmp.eq.f32.partialorder %v16, 8.507059e+37
  %v18 = vand.u32 %v4, 2147483648
  %v19 = vor.u32 1.1754944e-38, %v18
  %v20 = vsel %vm17, %v19, %v15
  %v21 = vmul.f32 %v3, %v20
  %22 = xla_tuple %v21
  %23 = vst [vmem:[%s2] sm:$0x1] %v21

// kernel: _lambda_.1
$region0: #{_lambda_.1}
  #allocation0 [shape = 'u32[]', space=smem, size = 0x4, offset = 0x4, fixed_abs, tag = 'smem constant byte address 0x4 - core index']
  #allocation1 [shape = 'u32[72,128]{1,0:T(1,128)}', space=vmem, size = 0x9000, scoped, tag = 'internal scratch']
  %s0 = inlined_call_operand.smem [shape: u32[54], index: -1, kind: input, shape index: {}]
  %s1 = sld [smem:[%s0]]
  %s2 = scalar_lea.smem %s0, 1
  %s3 = sld [smem:[%s2]]
  %s4 = scalar_lea.smem %s0, 2
  %s5 = sld [smem:[%s4]]
  %s6 = scalar_lea.smem %s0, 3
  %s7 = sld [smem:[%s6]]
  %s8 = scalar_lea.smem %s0, 4
  %s9 = sld [smem:[%s8]]
  %s10 = scalar_lea.smem %s0, 5
  %s11 = sld [smem:[%s10]]
  %s12 = scalar_lea.smem %s0, 6
  %s13 = sld [smem:[%s12]]
  %s14 = scalar_lea.smem %s0, 7
  %s15 = sld [smem:[%s14]]
  %s16 = scalar_lea.smem %s0, 8
  %s17 = sld [smem:[%s16]]
  %s18 = scalar_lea.smem %s0, 9
  %s19 = sld [smem:[%s18]]
  %s20 = scalar_lea.smem %s0, 10
  %s21 = sld [smem:[%s20]]
  %s22 = scalar_lea.smem %s0, 11
  %s23 = sld [smem:[%s22]]
  %s24 = scalar_lea.smem %s0, 12
  %s25 = sld [smem:[%s24]]
  %s26 = scalar_lea.smem %s0, 13
  %s27 = sld [smem:[%s26]]
  %s28 = scalar_lea.smem %s0, 14
  %s29 = sld [smem:[%s28]]
  %s30 = scalar_lea.smem %s0, 15
  %s31 = sld [smem:[%s30]]
  %s32 = scalar_lea.smem %s0, 16
  %s33 = sld [smem:[%s32]]
  %s34 = scalar_lea.smem %s0, 17
  %s35 = sld [smem:[%s34]]
  %s36 = scalar_lea.smem %s0, 18
  %s37 = sld [smem:[%s36]]
  %s38 = scalar_lea.smem %s0, 19
  %s39 = sld [smem:[%s38]]
  %s40 = scalar_lea.smem %s0, 20
  %s41 = sld [smem:[%s40]]
  %s42 = scalar_lea.smem %s0, 21
  %s43 = sld [smem:[%s42]]
  %s44 = scalar_lea.smem %s0, 22
  %s45 = sld [smem:[%s44]]
  %s46 = scalar_lea.smem %s0, 23
  %s47 = sld [smem:[%s46]]
  %s48 = scalar_lea.smem %s0, 24
  %s49 = sld [smem:[%s48]]
  %s50 = scalar_lea.smem %s0, 25
  %s51 = sld [smem:[%s50]]
  %s52 = scalar_lea.smem %s0, 26
  %s53 = sld [smem:[%s52]]
  %s54 = scalar_lea.smem %s0, 27
  %s55 = sld [smem:[%s54]]
  %s56 = scalar_lea.smem %s0, 28
  %s57 = sld [smem:[%s56]]
  %s58 = scalar_lea.smem %s0, 29
  %s59 = sld [smem:[%s58]]
  %s60 = scalar_lea.smem %s0, 30
  %s61 = sld [smem:[%s60]]
  %s62 = scalar_lea.smem %s0, 31
  %s63 = sld [smem:[%s62]]
  %s64 = scalar_lea.smem %s0, 32
  %s65 = sld [smem:[%s64]]
  %s66 = scalar_lea.smem %s0, 33
  %s67 = sld [smem:[%s66]]
  %s68 = scalar_lea.smem %s0, 34
  %s69 = sld [smem:[%s68]]
  %s70 = scalar_lea.smem %s0, 35
  %s71 = sld [smem:[%s70]]
  %s72 = scalar_lea.smem %s0, 36
  %s73 = sld [smem:[%s72]]
  %s74 = scalar_lea.smem %s0, 37
  %s75 = sld [smem:[%s74]]
  %s76 = scalar_lea.smem %s0, 38
  %s77 = sld [smem:[%s76]]
  %s78 = scalar_lea.smem %s0, 39
  %s79 = sld [smem:[%s78]]
  %s80 = scalar_lea.smem %s0, 40
  %s81 = sld [smem:[%s80]]
  %s82 = scalar_lea.smem %s0, 41
  %s83 = sld [smem:[%s82]]
  %s84 = scalar_lea.smem %s0, 42
  %s85 = sld [smem:[%s84]]
  %s86 = scalar_lea.smem %s0, 43
  %s87 = sld [smem:[%s86]]
  %s88 = scalar_lea.smem %s0, 44
  %s89 = sld [smem:[%s88]]
  %s90 = scalar_lea.smem %s0, 45
  %s91 = sld [smem:[%s90]]
  %s92 = scalar_lea.smem %s0, 46
  %s93 = sld [smem:[%s92]]
  %s94 = scalar_lea.smem %s0, 47
  %s95 = sld [smem:[%s94]]
  %s96 = scalar_lea.smem %s0, 48
  %s97 = sld [smem:[%s96]]
  %s98 = scalar_lea.smem %s0, 49
  %s99 = sld [smem:[%s98]]
  %s100 = scalar_lea.smem %s0, 50
  %s101 = sld [smem:[%s100]]
  %s102 = scalar_lea.smem %s0, 51
  %s103 = sld [smem:[%s102]]
  %s104 = scalar_lea.smem %s0, 52
  %s105 = sld [smem:[%s104]]
  %s106 = scalar_lea.smem %s0, 53
  %s107 = sld [smem:[%s106]]
  %s108 = sld [smem:[#allocation0]]
  $region366: #{_lambda_.1} parent=0
    _
  %s110 = ssub.s32 1, %s108
  %s111 = scalar_select 0, %s110, %s108
  $region1: #{_lambda_.1} parent=0
    #allocation2 [shape = 'u8[1024]{0}', space=vmem, size = 0x400, scoped, tag = 'input window, operand 8, single buffered']
    #allocation3 [shape = 's32[1]{0}', space=sflag, size = 0x4, scoped, tag = 'scoped memory for _lambda_.1']
    #allocation4 [shape = 'u8[2048]{0}', space=vmem, size = 0x800, scoped, tag = 'input window, operand 9, single buffered']
    #allocation5 [shape = 's32[1]{0}', space=sflag, size = 0x4, scoped, tag = 'scoped memory for _lambda_.1']
    #allocation6 [shape = 'u8[512]{0}', space=vmem, size = 0x400, scoped, tag = 'input window, operand 10, single buffered']
    #allocation7 [shape = 'u8[8192]{0}', space=vmem, size = 0x2000, scoped, tag = 'input window, operand 11, single buffered']
    #allocation8 [shape = 's32[1]{0}', space=sflag, size = 0x4, scoped, tag = 'scoped memory for _lambda_.1']
    #allocation9 [shape = 'u8[512]{0}', space=vmem, size = 0x400, scoped, tag = 'input window, operand 12, single buffered']
    #allocation10 [shape = 'u8[8192]{0}', space=vmem, size = 0x2000, scoped, tag = 'input window, operand 13, single buffered']
    #allocation11 [shape = 's32[1]{0}', space=sflag, size = 0x4, scoped, tag = 'scoped memory for _lambda_.1']
    #allocation12 [shape = 'u8[512]{0}', space=vmem, size = 0x400, scoped, tag = 'input window, operand 14, single buffered']
    #allocation13 [shape = 'u8[512]{0}', space=vmem, size = 0x400, scoped, tag = 'input window, operand 16, single buffered']
    #allocation14 [shape = 's32[1]{0}', space=sflag, size = 0x4, scoped, tag = 'scoped memory for _lambda_.1']
    #allocation15 [shape = 'u8[8192]{0}', space=vmem, size = 0x2000, scoped, tag = 'input window, operand 17, single buffered']
    #allocation16 [shape = 'u8[512]{0}', space=vmem, size = 0x400, scoped, tag = 'input window, operand 18, single buffered']
    #allocation17 [shape = 's32[1]{0}', space=sflag, size = 0x4, scoped, tag = 'scoped memory for _lambda_.1']
    #allocation18 [shape = 'u8[8192]{0}', space=vmem, size = 0x2000, scoped, tag = 'input window, operand 19, single buffered']
    #allocation19 [shape = 'u8[512]{0}', space=vmem, size = 0x400, scoped, tag = 'input window, operand 20, single buffered']
    #allocation20 [shape = 's32[1]{0}', space=sflag, size = 0x4, scoped, tag = 'scoped memory for _lambda_.1']
    #allocation21 [shape = 'u8[512]{0}', space=vmem, size = 0x400, scoped, tag = 'input window, operand 22, single buffered']
    #allocation22 [shape = 'u8[8192]{0}', space=vmem, size = 0x2000, scoped, tag = 'input window, operand 23, single buffered']
    #allocation23 [shape = 's32[1]{0}', space=sflag, size = 0x4, scoped, tag = 'scoped memory for _lambda_.1']
    #allocation24 [shape = 'u8[512]{0}', space=vmem, size = 0x400, scoped, tag = 'input window, operand 24, single buffered']
    #allocation25 [shape = 'u8[8192]{0}', space=vmem, size = 0x2000, scoped, tag = 'input window, operand 25, single buffered']
    #allocation26 [shape = 's32[1]{0}', space=sflag, size = 0x4, scoped, tag = 'scoped memory for _lambda_.1']
    #allocation27 [shape = 'u8[512]{0}', space=vmem, size = 0x400, scoped, tag = 'input window, operand 26, single buffered']
    #allocation28 [shape = 'u8[65536]{0}', space=vmem, size = 0x10000, scoped, tag = 'input window, operand 27, single buffered']
    #allocation29 [shape = 's32[1]{0}', space=sflag, size = 0x4, scoped, tag = 'scoped memory for _lambda_.1']
    #allocation30 [shape = 'u8[512]{0}', space=vmem, size = 0x400, scoped, tag = 'input window, operand 28, single buffered']
    #allocation31 [shape = 'u8[8192]{0}', space=vmem, size = 0x2000, scoped, tag = 'input window, operand 29, single buffered']
    #allocation32 [shape = 's32[1]{0}', space=sflag, size = 0x4, scoped, tag = 'scoped memory for _lambda_.1']
    #allocation33 [shape = 'u8[512]{0}', space=vmem, size = 0x400, scoped, tag = 'input window, operand 30, single buffered']
    #allocation34 [shape = 'u8[1536]{0}', space=vmem, size = 0x800, scoped, tag = 'input window, operand 31, single buffered']
    #allocation35 [shape = 's32[1]{0}', space=sflag, size = 0x4, scoped, tag = 'scoped memory for _lambda_.1']
    #allocation36 [shape = 'u8[1536]{0}', space=vmem, size = 0x800, scoped, tag = 'input window, operand 32, single buffered']
    #allocation37 [shape = 'u8[1536]{0}', space=vmem, size = 0x800, scoped, tag = 'input window, operand 33, single buffered']
    #allocation38 [shape = 's32[1]{0}', space=sflag, size = 0x4, scoped, tag = 'scoped memory for _lambda_.1']
    #allocation39 [shape = 'u8[147456]{0}', space=vmem, size = 0x24000, scoped, tag = 'input window, operand 34, single buffered']
    #allocation40 [shape = 'u8[24576]{0}', space=vmem, size = 0x6000, scoped, tag = 'input window, operand 36, single buffered']
    #allocation41 [shape = 's32[1]{0}', space=sflag, size = 0x4, scoped, tag = 'scoped memory for _lambda_.1']
    #allocation42 [shape = 'u8[1536]{0}', space=vmem, size = 0x800, scoped, tag = 'input window, operand 37, single buffered']
    #allocation43 [shape = 'u8[24576]{0}', space=vmem, size = 0x6000, scoped, tag = 'input window, operand 38, single buffered']
    #allocation44 [shape = 's32[1]{0}', space=sflag, size = 0x4, scoped, tag = 'scoped memory for _lambda_.1']
    #allocation45 [shape = 'u8[1536]{0}', space=vmem, size = 0x800, scoped, tag = 'input window, operand 39, single buffered']
    #allocation46 [shape = 'u8[1536]{0}', space=vmem, size = 0x800, scoped, tag = 'input window, operand 41, single buffered']
    #allocation47 [shape = 's32[1]{0}', space=sflag, size = 0x4, scoped, tag = 'scoped memory for _lambda_.1']
    #allocation48 [shape = 'u8[49152]{0}', space=vmem, size = 0xc000, scoped, tag = 'input window, operand 42, single buffered']
    #allocation49 [shape = 'u8[98304]{0}', space=vmem, size = 0x18000, scoped, tag = 'input window, operand 43, single buffered']
    #allocation50 [shape = 's32[1]{0}', space=sflag, size = 0x4, scoped, tag = 'scoped memory for _lambda_.1']
    #allocation51 [shape = 'u8[8192]{0}', space=vmem, size = 0x2000, scoped, tag = 'input window, operand 44, single buffered']
    #allocation52 [shape = 'u8[8192]{0}', space=vmem, size = 0x2000, scoped, tag = 'input window, operand 47, single buffered']
    #allocation53 [shape = 's32[1]{0}', space=sflag, size = 0x4, scoped, tag = 'scoped memory for _lambda_.1']
    #allocation54 [shape = 'u8[8192]{0}', space=vmem, size = 0x2000, scoped, tag = 'input window, operand 49, single buffered']
    #allocation55 [shape = 'u8[8192]{0}', space=vmem, size = 0x2000, scoped, tag = 'input window, operand 51, single buffered']
    #allocation56 [shape = 's32[1]{0}', space=sflag, size = 0x4, scoped, tag = 'scoped memory for _lambda_.1']
    %112 = vsyncpa [#allocation3], 0
    %113 = vsyncpa [#allocation5], 0
    %114 = vsyncpa [#allocation8], 0
    %115 = vsyncpa [#allocation11], 0
    %116 = vsyncpa [#allocation14], 0
    %117 = vsyncpa [#allocation17], 0
    %118 = vsyncpa [#allocation20], 0
    %119 = vsyncpa [#allocation23], 0
    %120 = vsyncpa [#allocation26], 0
    %121 = vsyncpa [#allocation29], 0
    %122 = vsyncpa [#allocation32], 0
    %123 = vsyncpa [#allocation35], 0
    %124 = vsyncpa [#allocation38], 0
    %125 = vsyncpa [#allocation41], 0
    %126 = vsyncpa [#allocation44], 0
    %127 = vsyncpa [#allocation47], 0
    %128 = vsyncpa [#allocation50], 0
    %129 = vsyncpa [#allocation53], 0
    %130 = vsyncpa [#allocation56], 0
    // Predicated region
    $region2: #{_lambda_.1} parent=1 // pred_check
      _
    $region3: #{_lambda_.1} parent=1 // pred_check_branch
      %132 = sbr.rel (0) target = $region5
    $region4: #{_lambda_.1} parent=1 // pred_region
      _
    $region5: #{_lambda_.1} parent=1 // pred_fallthru
      _
    // Predicated region
    $region6: #{_lambda_.1} parent=1 // pred_check
      _
    $region7: #{_lambda_.1} parent=1 // pred_check_branch
      %134 = sbr.rel (0) target = $region9
    $region8: #{_lambda_.1} parent=1 // pred_region
      _
    $region9: #{_lambda_.1} parent=1 // pred_fallthru
      _
    // Predicated region
    $region10: #{_lambda_.1} parent=1 // pred_check
      _
    $region11: #{_lambda_.1} parent=1 // pred_check_branch
      %136 = sbr.rel (0) target = $region13
    $region12: #{_lambda_.1} parent=1 // pred_region
      _
    $region13: #{_lambda_.1} parent=1 // pred_fallthru
      _
    // Predicated region
    $region14: #{_lambda_.1} parent=1 // pred_check
      _
    $region15: #{_lambda_.1} parent=1 // pred_check_branch
      %138 = sbr.rel (0) target = $region17
    $region16: #{_lambda_.1} parent=1 // pred_region
      _
    $region17: #{_lambda_.1} parent=1 // pred_fallthru
      _
    // Predicated region
    $region18: #{_lambda_.1} parent=1 // pred_check
      _
    $region19: #{_lambda_.1} parent=1 // pred_check_branch
      %140 = sbr.rel (0) target = $region21
    $region20: #{_lambda_.1} parent=1 // pred_region
      _
    $region21: #{_lambda_.1} parent=1 // pred_fallthru
      _
    // Predicated region
    $region22: #{_lambda_.1} parent=1 // pred_check
      _
    $region23: #{_lambda_.1} parent=1 // pred_check_branch
      %142 = sbr.rel (0) target = $region25
    $region24: #{_lambda_.1} parent=1 // pred_region
      _
    $region25: #{_lambda_.1} parent=1 // pred_fallthru
      _
    // Predicated region
    $region26: #{_lambda_.1} parent=1 // pred_check
      _
    $region27: #{_lambda_.1} parent=1 // pred_check_branch
      %144 = sbr.rel (0) target = $region29
    $region28: #{_lambda_.1} parent=1 // pred_region
      _
    $region29: #{_lambda_.1} parent=1 // pred_fallthru
      _
    // Predicated region
    $region30: #{_lambda_.1} parent=1 // pred_check
      _
    $region31: #{_lambda_.1} parent=1 // pred_check_branch
      %146 = sbr.rel (0) target = $region33
    $region32: #{_lambda_.1} parent=1 // pred_region
      _
    $region33: #{_lambda_.1} parent=1 // pred_fallthru
      _
    // Predicated region
    $region34: #{_lambda_.1} parent=1 // pred_check
      _
    $region35: #{_lambda_.1} parent=1 // pred_check_branch
      %148 = sbr.rel (0) target = $region37
    $region36: #{_lambda_.1} parent=1 // pred_region
      %150 = vsyncadd [#allocation3], 0
      %s152 = sshll.u32 %s17, 4
      %s153 = int_to_ptr.hbm [resolvable:$true] %s152
      %s154 = sshll.u32 [#allocation2], 4
      %s155 = int_to_ptr.vmem [resolvable:$true] %s154
      %157 = dma.hbm_to_vmem [thread:$0]  %s153, 32, %s155, [#allocation3]
    $region37: #{_lambda_.1} parent=1 // pred_fallthru
      _
    // Predicated region
    $region38: #{_lambda_.1} parent=1 // pred_check
      _
    $region39: #{_lambda_.1} parent=1 // pred_check_branch
      %159 = sbr.rel (0) target = $region41
    $region40: #{_lambda_.1} parent=1 // pred_region
      %161 = vsyncadd [#allocation5], 0
      %s163 = sshll.u32 %s19, 4
      %s164 = int_to_ptr.hbm [resolvable:$true] %s163
      %s165 = sshll.u32 [#allocation4], 4
      %s166 = int_to_ptr.vmem [resolvable:$true] %s165
      %168 = dma.hbm_to_vmem [thread:$0]  %s164, 64, %s166, [#allocation5]
    $region41: #{_lambda_.1} parent=1 // pred_fallthru
      _
    // Predicated region
    $region42: #{_lambda_.1} parent=1 // pred_check
      _
    $region43: #{_lambda_.1} parent=1 // pred_check_branch
      %170 = sbr.rel (0) target = $region45
    $region44: #{_lambda_.1} parent=1 // pred_region
      %172 = vsyncadd [#allocation5], 0
      %s174 = sshll.u32 %s21, 4
      %s175 = int_to_ptr.hbm [resolvable:$true] %s174
      %s176 = sshll.u32 [#allocation6], 4
      %s177 = int_to_ptr.vmem [resolvable:$true] %s176
      %179 = dma.hbm_to_vmem [thread:$0]  %s175, 16, %s177, [#allocation5]
    $region45: #{_lambda_.1} parent=1 // pred_fallthru
      _
    // Predicated region
    $region46: #{_lambda_.1} parent=1 // pred_check
      _
    $region47: #{_lambda_.1} parent=1 // pred_check_branch
      %181 = sbr.rel (0) target = $region49
    $region48: #{_lambda_.1} parent=1 // pred_region
      %183 = vsyncadd [#allocation8], 0
      %s184 = sshll.u32 %s23, 4
      %s185 = int_to_ptr.hbm [resolvable:$true] %s184
      %s186 = sshll.u32 [#allocation7], 4
      %s187 = int_to_ptr.vmem [resolvable:$true] %s186
      %192 = dma.hbm_to_vmem [thread:$0]  %s185, 256, %s187, [#allocation8], 64, 64, 4
    $region49: #{_lambda_.1} parent=1 // pred_fallthru
      _
    // Predicated region
    $region50: #{_lambda_.1} parent=1 // pred_check
      _
    $region51: #{_lambda_.1} parent=1 // pred_check_branch
      %194 = sbr.rel (0) target = $region53
    $region52: #{_lambda_.1} parent=1 // pred_region
      %196 = vsyncadd [#allocation8], 0
      %s198 = sshll.u32 %s25, 4
      %s199 = int_to_ptr.hbm [resolvable:$true] %s198
      %s200 = sshll.u32 [#allocation9], 4
      %s201 = int_to_ptr.vmem [resolvable:$true] %s200
      %203 = dma.hbm_to_vmem [thread:$0]  %s199, 16, %s201, [#allocation8]
    $region53: #{_lambda_.1} parent=1 // pred_fallthru
      _
    // Predicated region
    $region54: #{_lambda_.1} parent=1 // pred_check
      _
    $region55: #{_lambda_.1} parent=1 // pred_check_branch
      %205 = sbr.rel (0) target = $region57
    $region56: #{_lambda_.1} parent=1 // pred_region
      %207 = vsyncadd [#allocation11], 0
      %s208 = sshll.u32 %s27, 4
      %s209 = int_to_ptr.hbm [resolvable:$true] %s208
      %s210 = sshll.u32 [#allocation10], 4
      %s211 = int_to_ptr.vmem [resolvable:$true] %s210
      %216 = dma.hbm_to_vmem [thread:$0]  %s209, 256, %s211, [#allocation11], 64, 64, 4
    $region57: #{_lambda_.1} parent=1 // pred_fallthru
      _
    // Predicated region
    $region58: #{_lambda_.1} parent=1 // pred_check
      _
    $region59: #{_lambda_.1} parent=1 // pred_check_branch
      %218 = sbr.rel (0) target = $region61
    $region60: #{_lambda_.1} parent=1 // pred_region
      %220 = vsyncadd [#allocation11], 0
      %s222 = sshll.u32 %s29, 4
      %s223 = int_to_ptr.hbm [resolvable:$true] %s222
      %s224 = sshll.u32 [#allocation12], 4
      %s225 = int_to_ptr.vmem [resolvable:$true] %s224
      %227 = dma.hbm_to_vmem [thread:$0]  %s223, 16, %s225, [#allocation11]
    $region61: #{_lambda_.1} parent=1 // pred_fallthru
      _
    // Predicated region
    $region62: #{_lambda_.1} parent=1 // pred_check
      _
    $region63: #{_lambda_.1} parent=1 // pred_check_branch
      %229 = sbr.rel (0) target = $region65
    $region64: #{_lambda_.1} parent=1 // pred_region
      _
    $region65: #{_lambda_.1} parent=1 // pred_fallthru
      _
    // Predicated region
    $region66: #{_lambda_.1} parent=1 // pred_check
      _
    $region67: #{_lambda_.1} parent=1 // pred_check_branch
      %231 = sbr.rel (0) target = $region69
    $region68: #{_lambda_.1} parent=1 // pred_region
      %233 = vsyncadd [#allocation14], 0
      %s235 = sshll.u32 %s33, 4
      %s236 = int_to_ptr.hbm [resolvable:$true] %s235
      %s237 = sshll.u32 [#allocation13], 4
      %s238 = int_to_ptr.vmem [resolvable:$true] %s237
      %240 = dma.hbm_to_vmem [thread:$0]  %s236, 16, %s238, [#allocation14]
    $region69: #{_lambda_.1} parent=1 // pred_fallthru
      _
    // Predicated region
    $region70: #{_lambda_.1} parent=1 // pred_check
      _
    $region71: #{_lambda_.1} parent=1 // pred_check_branch
      %242 = sbr.rel (0) target = $region73
    $region72: #{_lambda_.1} parent=1 // pred_region
      %244 = vsyncadd [#allocation14], 0
      %s245 = sshll.u32 %s35, 4
      %s246 = int_to_ptr.hbm [resolvable:$true] %s245
      %s247 = sshll.u32 [#allocation15], 4
      %s248 = int_to_ptr.vmem [resolvable:$true] %s247
      %253 = dma.hbm_to_vmem [thread:$0]  %s246, 256, %s248, [#allocation14], 64, 64, 4
    $region73: #{_lambda_.1} parent=1 // pred_fallthru
      _
    // Predicated region
    $region74: #{_lambda_.1} parent=1 // pred_check
      _
    $region75: #{_lambda_.1} parent=1 // pred_check_branch
      %255 = sbr.rel (0) target = $region77
    $region76: #{_lambda_.1} parent=1 // pred_region
      %257 = vsyncadd [#allocation17], 0
      %s259 = sshll.u32 %s37, 4
      %s260 = int_to_ptr.hbm [resolvable:$true] %s259
      %s261 = sshll.u32 [#allocation16], 4
      %s262 = int_to_ptr.vmem [resolvable:$true] %s261
      %264 = dma.hbm_to_vmem [thread:$0]  %s260, 16, %s262, [#allocation17]
    $region77: #{_lambda_.1} parent=1 // pred_fallthru
      _
    // Predicated region
    $region78: #{_lambda_.1} parent=1 // pred_check
      _
    $region79: #{_lambda_.1} parent=1 // pred_check_branch
      %266 = sbr.rel (0) target = $region81
    $region80: #{_lambda_.1} parent=1 // pred_region
      %268 = vsyncadd [#allocation17], 0
      %s269 = sshll.u32 %s39, 4
      %s270 = int_to_ptr.hbm [resolvable:$true] %s269
      %s271 = sshll.u32 [#allocation18], 4
      %s272 = int_to_ptr.vmem [resolvable:$true] %s271
      %277 = dma.hbm_to_vmem [thread:$0]  %s270, 256, %s272, [#allocation17], 64, 64, 4
    $region81: #{_lambda_.1} parent=1 // pred_fallthru
      _
    // Predicated region
    $region82: #{_lambda_.1} parent=1 // pred_check
      _
    $region83: #{_lambda_.1} parent=1 // pred_check_branch
      %279 = sbr.rel (0) target = $region85
    $region84: #{_lambda_.1} parent=1 // pred_region
      %281 = vsyncadd [#allocation20], 0
      %s283 = sshll.u32 %s41, 4
      %s284 = int_to_ptr.hbm [resolvable:$true] %s283
      %s285 = sshll.u32 [#allocation19], 4
      %s286 = int_to_ptr.vmem [resolvable:$true] %s285
      %288 = dma.hbm_to_vmem [thread:$0]  %s284, 16, %s286, [#allocation20]
    $region85: #{_lambda_.1} parent=1 // pred_fallthru
      _
    // Predicated region
    $region86: #{_lambda_.1} parent=1 // pred_check
      _
    $region87: #{_lambda_.1} parent=1 // pred_check_branch
      %290 = sbr.rel (0) target = $region89
    $region88: #{_lambda_.1} parent=1 // pred_region
      _
    $region89: #{_lambda_.1} parent=1 // pred_fallthru
      _
    // Predicated region
    $region90: #{_lambda_.1} parent=1 // pred_check
      _
    $region91: #{_lambda_.1} parent=1 // pred_check_branch
      %292 = sbr.rel (0) target = $region93
    $region92: #{_lambda_.1} parent=1 // pred_region
      %294 = vsyncadd [#allocation20], 0
      %s296 = sshll.u32 %s45, 4
      %s297 = int_to_ptr.hbm [resolvable:$true] %s296
      %s298 = sshll.u32 [#allocation21], 4
      %s299 = int_to_ptr.vmem [resolvable:$true] %s298
      %301 = dma.hbm_to_vmem [thread:$0]  %s297, 16, %s299, [#allocation20]
    $region93: #{_lambda_.1} parent=1 // pred_fallthru
      _
    // Predicated region
    $region94: #{_lambda_.1} parent=1 // pred_check
      _
    $region95: #{_lambda_.1} parent=1 // pred_check_branch
      %303 = sbr.rel (0) target = $region97
    $region96: #{_lambda_.1} parent=1 // pred_region
      %305 = vsyncadd [#allocation23], 0
      %s306 = sshll.u32 %s47, 4
      %s307 = int_to_ptr.hbm [resolvable:$true] %s306
      %s308 = sshll.u32 [#allocation22], 4
      %s309 = int_to_ptr.vmem [resolvable:$true] %s308
      %314 = dma.hbm_to_vmem [thread:$0]  %s307, 256, %s309, [#allocation23], 64, 64, 4
    $region97: #{_lambda_.1} parent=1 // pred_fallthru
      _
    // Predicated region
    $region98: #{_lambda_.1} parent=1 // pred_check
      _
    $region99: #{_lambda_.1} parent=1 // pred_check_branch
      %316 = sbr.rel (0) target = $region101
    $region100: #{_lambda_.1} parent=1 // pred_region
      %318 = vsyncadd [#allocation23], 0
      %s320 = sshll.u32 %s49, 4
      %s321 = int_to_ptr.hbm [resolvable:$true] %s320
      %s322 = sshll.u32 [#allocation24], 4
      %s323 = int_to_ptr.vmem [resolvable:$true] %s322
      %325 = dma.hbm_to_vmem [thread:$0]  %s321, 16, %s323, [#allocation23]
    $region101: #{_lambda_.1} parent=1 // pred_fallthru
      _
    // Predicated region
    $region102: #{_lambda_.1} parent=1 // pred_check
      _
    $region103: #{_lambda_.1} parent=1 // pred_check_branch
      %327 = sbr.rel (0) target = $region105
    $region104: #{_lambda_.1} parent=1 // pred_region
      %329 = vsyncadd [#allocation26], 0
      %s330 = sshll.u32 %s51, 4
      %s331 = int_to_ptr.hbm [resolvable:$true] %s330
      %s332 = sshll.u32 [#allocation25], 4
      %s333 = int_to_ptr.vmem [resolvable:$true] %s332
      %338 = dma.hbm_to_vmem [thread:$0]  %s331, 256, %s333, [#allocation26], 64, 64, 4
    $region105: #{_lambda_.1} parent=1 // pred_fallthru
      _
    // Predicated region
    $region106: #{_lambda_.1} parent=1 // pred_check
      _
    $region107: #{_lambda_.1} parent=1 // pred_check_branch
      %340 = sbr.rel (0) target = $region109
    $region108: #{_lambda_.1} parent=1 // pred_region
      %342 = vsyncadd [#allocation26], 0
      %s344 = sshll.u32 %s53, 4
      %s345 = int_to_ptr.hbm [resolvable:$true] %s344
      %s346 = sshll.u32 [#allocation27], 4
      %s347 = int_to_ptr.vmem [resolvable:$true] %s346
      %349 = dma.hbm_to_vmem [thread:$0]  %s345, 16, %s347, [#allocation26]
    $region109: #{_lambda_.1} parent=1 // pred_fallthru
      _
    // Predicated region
    $region110: #{_lambda_.1} parent=1 // pred_check
      _
    $region111: #{_lambda_.1} parent=1 // pred_check_branch
      %351 = sbr.rel (0) target = $region113
    $region112: #{_lambda_.1} parent=1 // pred_region
      %353 = vsyncadd [#allocation29], 0
      %s354 = sshll.u32 %s55, 4
      %s355 = int_to_ptr.hbm [resolvable:$true] %s354
      %s356 = sshll.u32 [#allocation28], 4
      %s357 = int_to_ptr.vmem [resolvable:$true] %s356
      %362 = dma.hbm_to_vmem [thread:$0]  %s355, 2048, %s357, [#allocation29], 64, 64, 4
    $region113: #{_lambda_.1} parent=1 // pred_fallthru
      _
    // Predicated region
    $region114: #{_lambda_.1} parent=1 // pred_check
      _
    $region115: #{_lambda_.1} parent=1 // pred_check_branch
      %364 = sbr.rel (0) target = $region117
    $region116: #{_lambda_.1} parent=1 // pred_region
      %366 = vsyncadd [#allocation29], 0
      %s368 = sshll.u32 %s57, 4
      %s369 = int_to_ptr.hbm [resolvable:$true] %s368
      %s370 = sshll.u32 [#allocation30], 4
      %s371 = int_to_ptr.vmem [resolvable:$true] %s370
      %373 = dma.hbm_to_vmem [thread:$0]  %s369, 16, %s371, [#allocation29]
    $region117: #{_lambda_.1} parent=1 // pred_fallthru
      _
    // Predicated region
    $region118: #{_lambda_.1} parent=1 // pred_check
      _
    $region119: #{_lambda_.1} parent=1 // pred_check_branch
      %375 = sbr.rel (0) target = $region121
    $region120: #{_lambda_.1} parent=1 // pred_region
      %377 = vsyncadd [#allocation32], 0
      %s378 = sshll.u32 %s59, 4
      %s379 = int_to_ptr.hbm [resolvable:$true] %s378
      %s380 = sshll.u32 [#allocation31], 4
      %s381 = int_to_ptr.vmem [resolvable:$true] %s380
      %386 = dma.hbm_to_vmem [thread:$0]  %s379, 256, %s381, [#allocation32], 64, 64, 4
    $region121: #{_lambda_.1} parent=1 // pred_fallthru
      _
    // Predicated region
    $region122: #{_lambda_.1} parent=1 // pred_check
      _
    $region123: #{_lambda_.1} parent=1 // pred_check_branch
      %388 = sbr.rel (0) target = $region125
    $region124: #{_lambda_.1} parent=1 // pred_region
      %390 = vsyncadd [#allocation32], 0
      %s392 = sshll.u32 %s61, 4
      %s393 = int_to_ptr.hbm [resolvable:$true] %s392
      %s394 = sshll.u32 [#allocation33], 4
      %s395 = int_to_ptr.vmem [resolvable:$true] %s394
      %397 = dma.hbm_to_vmem [thread:$0]  %s393, 16, %s395, [#allocation32]
    $region125: #{_lambda_.1} parent=1 // pred_fallthru
      _
    // Predicated region
    $region126: #{_lambda_.1} parent=1 // pred_check
      _
    $region127: #{_lambda_.1} parent=1 // pred_check_branch
      %399 = sbr.rel (0) target = $region129
    $region128: #{_lambda_.1} parent=1 // pred_region
      %401 = vsyncadd [#allocation35], 0
      %s402 = sshll.u32 %s63, 4
      %s403 = int_to_ptr.hbm [resolvable:$true] %s402
      %s404 = sshll.u32 [#allocation34], 4
      %s405 = int_to_ptr.vmem [resolvable:$true] %s404
      %410 = dma.hbm_to_vmem [thread:$0]  %s403, 48, %s405, [#allocation35], 16, 16, 1
    $region129: #{_lambda_.1} parent=1 // pred_fallthru
      _
    // Predicated region
    $region130: #{_lambda_.1} parent=1 // pred_check
      _
    $region131: #{_lambda_.1} parent=1 // pred_check_branch
      %412 = sbr.rel (0) target = $region133
    $region132: #{_lambda_.1} parent=1 // pred_region
      %414 = vsyncadd [#allocation35], 0
      %s415 = sshll.u32 %s65, 4
      %s416 = int_to_ptr.hbm [resolvable:$true] %s415
      %s417 = sshll.u32 [#allocation36], 4
      %s418 = int_to_ptr.vmem [resolvable:$true] %s417
      %423 = dma.hbm_to_vmem [thread:$0]  %s416, 48, %s418, [#allocation35], 16, 16, 1
    $region133: #{_lambda_.1} parent=1 // pred_fallthru
      _
    // Predicated region
    $region134: #{_lambda_.1} parent=1 // pred_check
      _
    $region135: #{_lambda_.1} parent=1 // pred_check_branch
      %425 = sbr.rel (0) target = $region137
    $region136: #{_lambda_.1} parent=1 // pred_region
      %427 = vsyncadd [#allocation38], 0
      %s428 = sshll.u32 %s67, 4
      %s429 = int_to_ptr.hbm [resolvable:$true] %s428
      %s430 = sshll.u32 [#allocation37], 4
      %s431 = int_to_ptr.vmem [resolvable:$true] %s430
      %436 = dma.hbm_to_vmem [thread:$0]  %s429, 48, %s431, [#allocation38], 16, 16, 1
    $region137: #{_lambda_.1} parent=1 // pred_fallthru
      _
    // Predicated region
    $region138: #{_lambda_.1} parent=1 // pred_check
      _
    $region139: #{_lambda_.1} parent=1 // pred_check_branch
      %438 = sbr.rel (0) target = $region141
    $region140: #{_lambda_.1} parent=1 // pred_region
      %440 = vsyncadd [#allocation38], 0
      %s441 = sshll.u32 %s69, 4
      %s442 = int_to_ptr.hbm [resolvable:$true] %s441
      %s443 = sshll.u32 [#allocation39], 4
      %s444 = int_to_ptr.vmem [resolvable:$true] %s443
      %449 = dma.hbm_to_vmem [thread:$0]  %s442, 4608, %s444, [#allocation38], 128, 128, 8
    $region141: #{_lambda_.1} parent=1 // pred_fallthru
      _
    // Predicated region
    $region142: #{_lambda_.1} parent=1 // pred_check
      _
    $region143: #{_lambda_.1} parent=1 // pred_check_branch
      %451 = sbr.rel (0) target = $region145
    $region144: #{_lambda_.1} parent=1 // pred_region
      _
    $region145: #{_lambda_.1} parent=1 // pred_fallthru
      _
    // Predicated region
    $region146: #{_lambda_.1} parent=1 // pred_check
      _
    $region147: #{_lambda_.1} parent=1 // pred_check_branch
      %453 = sbr.rel (0) target = $region149
    $region148: #{_lambda_.1} parent=1 // pred_region
      %455 = vsyncadd [#allocation41], 0
      %s456 = sshll.u32 %s73, 4
      %s457 = int_to_ptr.hbm [resolvable:$true] %s456
      %s458 = sshll.u32 [#allocation40], 4
      %s459 = int_to_ptr.vmem [resolvable:$true] %s458
      %464 = dma.hbm_to_vmem [thread:$0]  %s457, 768, %s459, [#allocation41], 64, 64, 4
    $region149: #{_lambda_.1} parent=1 // pred_fallthru
      _
    // Predicated region
    $region150: #{_lambda_.1} parent=1 // pred_check
      _
    $region151: #{_lambda_.1} parent=1 // pred_check_branch
      %466 = sbr.rel (0) target = $region153
    $region152: #{_lambda_.1} parent=1 // pred_region
      %468 = vsyncadd [#allocation41], 0
      %s469 = sshll.u32 %s75, 4
      %s470 = int_to_ptr.hbm [resolvable:$true] %s469
      %s471 = sshll.u32 [#allocation42], 4
      %s472 = int_to_ptr.vmem [resolvable:$true] %s471
      %477 = dma.hbm_to_vmem [thread:$0]  %s470, 48, %s472, [#allocation41], 16, 16, 1
    $region153: #{_lambda_.1} parent=1 // pred_fallthru
      _
    // Predicated region
    $region154: #{_lambda_.1} parent=1 // pred_check
      _
    $region155: #{_lambda_.1} parent=1 // pred_check_branch
      %479 = sbr.rel (0) target = $region157
    $region156: #{_lambda_.1} parent=1 // pred_region
      %481 = vsyncadd [#allocation44], 0
      %s482 = sshll.u32 %s77, 4
      %s483 = int_to_ptr.hbm [resolvable:$true] %s482
      %s484 = sshll.u32 [#allocation43], 4
      %s485 = int_to_ptr.vmem [resolvable:$true] %s484
      %490 = dma.hbm_to_vmem [thread:$0]  %s483, 768, %s485, [#allocation44], 64, 64, 4
    $region157: #{_lambda_.1} parent=1 // pred_fallthru
      _
    // Predicated region
    $region158: #{_lambda_.1} parent=1 // pred_check
      _
    $region159: #{_lambda_.1} parent=1 // pred_check_branch
      %492 = sbr.rel (0) target = $region161
    $region160: #{_lambda_.1} parent=1 // pred_region
      %494 = vsyncadd [#allocation44], 0
      %s495 = sshll.u32 %s79, 4
      %s496 = int_to_ptr.hbm [resolvable:$true] %s495
      %s497 = sshll.u32 [#allocation45], 4
      %s498 = int_to_ptr.vmem [resolvable:$true] %s497
      %503 = dma.hbm_to_vmem [thread:$0]  %s496, 48, %s498, [#allocation44], 16, 16, 1
    $region161: #{_lambda_.1} parent=1 // pred_fallthru
      _
    // Predicated region
    $region162: #{_lambda_.1} parent=1 // pred_check
      _
    $region163: #{_lambda_.1} parent=1 // pred_check_branch
      %505 = sbr.rel (0) target = $region165
    $region164: #{_lambda_.1} parent=1 // pred_region
      _
    $region165: #{_lambda_.1} parent=1 // pred_fallthru
      _
    // Predicated region
    $region166: #{_lambda_.1} parent=1 // pred_check
      _
    $region167: #{_lambda_.1} parent=1 // pred_check_branch
      %507 = sbr.rel (0) target = $region169
    $region168: #{_lambda_.1} parent=1 // pred_region
      %509 = vsyncadd [#allocation47], 0
      %s510 = sshll.u32 %s83, 4
      %s511 = int_to_ptr.hbm [resolvable:$true] %s510
      %s512 = sshll.u32 [#allocation46], 4
      %s513 = int_to_ptr.vmem [resolvable:$true] %s512
      %518 = dma.hbm_to_vmem [thread:$0]  %s511, 48, %s513, [#allocation47], 16, 16, 1
    $region169: #{_lambda_.1} parent=1 // pred_fallthru
      _
    // Predicated region
    $region170: #{_lambda_.1} parent=1 // pred_check
      _
    $region171: #{_lambda_.1} parent=1 // pred_check_branch
      %520 = sbr.rel (0) target = $region173
    $region172: #{_lambda_.1} parent=1 // pred_region
      %522 = vsyncadd [#allocation47], 0
      %s523 = sshll.u32 %s85, 4
      %s524 = int_to_ptr.hbm [resolvable:$true] %s523
      %s525 = sshll.u32 [#allocation48], 4
      %s526 = int_to_ptr.vmem [resolvable:$true] %s525
      %531 = dma.hbm_to_vmem [thread:$0]  %s524, 1536, %s526, [#allocation47], 128, 128, 8
    $region173: #{_lambda_.1} parent=1 // pred_fallthru
      _
    // Predicated region
    $region174: #{_lambda_.1} parent=1 // pred_check
      _
    $region175: #{_lambda_.1} parent=1 // pred_check_branch
      %533 = sbr.rel (0) target = $region177
    $region176: #{_lambda_.1} parent=1 // pred_region
      %535 = vsyncadd [#allocation50], 0
      %s536 = sshll.u32 %s87, 4
      %s537 = int_to_ptr.hbm [resolvable:$true] %s536
      %s538 = sshll.u32 [#allocation49], 4
      %s539 = int_to_ptr.vmem [resolvable:$true] %s538
      %544 = dma.hbm_to_vmem [thread:$0]  %s537, 3072, %s539, [#allocation50], 64, 64, 4
    $region177: #{_lambda_.1} parent=1 // pred_fallthru
      _
    // Predicated region
    $region178: #{_lambda_.1} parent=1 // pred_check
      _
    $region179: #{_lambda_.1} parent=1 // pred_check_branch
      %546 = sbr.rel (0) target = $region181
    $region180: #{_lambda_.1} parent=1 // pred_region
      %548 = vsyncadd [#allocation50], 0
      %s549 = sshll.u32 %s89, 4
      %s550 = int_to_ptr.hbm [resolvable:$true] %s549
      %s551 = sshll.u32 [#allocation51], 4
      %s552 = int_to_ptr.vmem [resolvable:$true] %s551
      %557 = dma.hbm_to_vmem [thread:$0]  %s550, 256, %s552, [#allocation50], 64, 64, 4
    $region181: #{_lambda_.1} parent=1 // pred_fallthru
      _
    // Predicated region
    $region182: #{_lambda_.1} parent=1 // pred_check
      _
    $region183: #{_lambda_.1} parent=1 // pred_check_branch
      %559 = sbr.rel (0) target = $region185
    $region184: #{_lambda_.1} parent=1 // pred_region
      _
    $region185: #{_lambda_.1} parent=1 // pred_fallthru
      _
    // Predicated region
    $region186: #{_lambda_.1} parent=1 // pred_check
      _
    $region187: #{_lambda_.1} parent=1 // pred_check_branch
      %561 = sbr.rel (0) target = $region189
    $region188: #{_lambda_.1} parent=1 // pred_region
      _
    $region189: #{_lambda_.1} parent=1 // pred_fallthru
      _
    // Predicated region
    $region190: #{_lambda_.1} parent=1 // pred_check
      _
    $region191: #{_lambda_.1} parent=1 // pred_check_branch
      %563 = sbr.rel (0) target = $region193
    $region192: #{_lambda_.1} parent=1 // pred_region
      %565 = vsyncadd [#allocation53], 0
      %s566 = sshll.u32 %s95, 4
      %s567 = int_to_ptr.hbm [resolvable:$true] %s566
      %s568 = sshll.u32 [#allocation52], 4
      %s569 = int_to_ptr.vmem [resolvable:$true] %s568
      %574 = dma.hbm_to_vmem [thread:$0]  %s567, 256, %s569, [#allocation53], 64, 64, 4
    $region193: #{_lambda_.1} parent=1 // pred_fallthru
      _
    // Predicated region
    $region194: #{_lambda_.1} parent=1 // pred_check
      _
    $region195: #{_lambda_.1} parent=1 // pred_check_branch
      %576 = sbr.rel (0) target = $region197
    $region196: #{_lambda_.1} parent=1 // pred_region
      _
    $region197: #{_lambda_.1} parent=1 // pred_fallthru
      _
    // Predicated region
    $region198: #{_lambda_.1} parent=1 // pred_check
      _
    $region199: #{_lambda_.1} parent=1 // pred_check_branch
      %578 = sbr.rel (0) target = $region201
    $region200: #{_lambda_.1} parent=1 // pred_region
      %580 = vsyncadd [#allocation53], 0
      %s581 = sshll.u32 %s99, 4
      %s582 = int_to_ptr.hbm [resolvable:$true] %s581
      %s583 = sshll.u32 [#allocation54], 4
      %s584 = int_to_ptr.vmem [resolvable:$true] %s583
      %589 = dma.hbm_to_vmem [thread:$0]  %s582, 256, %s584, [#allocation53], 64, 64, 4
    $region201: #{_lambda_.1} parent=1 // pred_fallthru
      _
    // Predicated region
    $region202: #{_lambda_.1} parent=1 // pred_check
      _
    $region203: #{_lambda_.1} parent=1 // pred_check_branch
      %591 = sbr.rel (0) target = $region205
    $region204: #{_lambda_.1} parent=1 // pred_region
      _
    $region205: #{_lambda_.1} parent=1 // pred_fallthru
      _
    // Predicated region
    $region206: #{_lambda_.1} parent=1 // pred_check
      _
    $region207: #{_lambda_.1} parent=1 // pred_check_branch
      %593 = sbr.rel (0) target = $region209
    $region208: #{_lambda_.1} parent=1 // pred_region
      %595 = vsyncadd [#allocation56], 0
      %s596 = sshll.u32 %s103, 4
      %s597 = int_to_ptr.hbm [resolvable:$true] %s596
      %s598 = sshll.u32 [#allocation55], 4
      %s599 = int_to_ptr.vmem [resolvable:$true] %s598
      %604 = dma.hbm_to_vmem [thread:$0]  %s597, 256, %s599, [#allocation56], 64, 64, 4
    $region209: #{_lambda_.1} parent=1 // pred_fallthru
      _
    // Predicated region
    $region210: #{_lambda_.1} parent=1 // pred_check
      _
    $region211: #{_lambda_.1} parent=1 // pred_check_branch
      %606 = sbr.rel (0) target = $region213
    $region212: #{_lambda_.1} parent=1 // pred_region
      _
    $region213: #{_lambda_.1} parent=1 // pred_fallthru
      _
    // Predicated region
    $region214: #{_lambda_.1} parent=1 // pred_check
      _
    $region215: #{_lambda_.1} parent=1 // pred_check_branch
      %608 = sbr.rel (0) target = $region217
    $region216: #{_lambda_.1} parent=1 // pred_region
      %610 = dma.done [#allocation3], 32
    $region217: #{_lambda_.1} parent=1 // pred_fallthru
      _
    // Predicated region
    $region218: #{_lambda_.1} parent=1 // pred_check
      _
    $region219: #{_lambda_.1} parent=1 // pred_check_branch
      %612 = sbr.rel (0) target = $region221
    $region220: #{_lambda_.1} parent=1 // pred_region
      %614 = dma.done [#allocation5], 64
    $region221: #{_lambda_.1} parent=1 // pred_fallthru
      _
    // Predicated region
    $region222: #{_lambda_.1} parent=1 // pred_check
      _
    $region223: #{_lambda_.1} parent=1 // pred_check_branch
      %616 = sbr.rel (0) target = $region225
    $region224: #{_lambda_.1} parent=1 // pred_region
      %618 = dma.done [#allocation5], 16
    $region225: #{_lambda_.1} parent=1 // pred_fallthru
      _
    // Predicated region
    $region226: #{_lambda_.1} parent=1 // pred_check
      _
    $region227: #{_lambda_.1} parent=1 // pred_check_branch
      %620 = sbr.rel (0) target = $region229
    $region228: #{_lambda_.1} parent=1 // pred_region
      %622 = dma.done [#allocation8], 256
    $region229: #{_lambda_.1} parent=1 // pred_fallthru
      _
    // Predicated region
    $region230: #{_lambda_.1} parent=1 // pred_check
      _
    $region231: #{_lambda_.1} parent=1 // pred_check_branch
      %624 = sbr.rel (0) target = $region233
    $region232: #{_lambda_.1} parent=1 // pred_region
      %626 = dma.done [#allocation8], 16
    $region233: #{_lambda_.1} parent=1 // pred_fallthru
      _
    // Predicated region
    $region234: #{_lambda_.1} parent=1 // pred_check
      _
    $region235: #{_lambda_.1} parent=1 // pred_check_branch
      %628 = sbr.rel (0) target = $region237
    $region236: #{_lambda_.1} parent=1 // pred_region
      %630 = dma.done [#allocation11], 256
    $region237: #{_lambda_.1} parent=1 // pred_fallthru
      _
    // Predicated region
    $region238: #{_lambda_.1} parent=1 // pred_check
      _
    $region239: #{_lambda_.1} parent=1 // pred_check_branch
      %632 = sbr.rel (0) target = $region241
    $region240: #{_lambda_.1} parent=1 // pred_region
      %634 = dma.done [#allocation11], 16
    $region241: #{_lambda_.1} parent=1 // pred_fallthru
      _
    // Predicated region
    $region242: #{_lambda_.1} parent=1 // pred_check
      _
    $region243: #{_lambda_.1} parent=1 // pred_check_branch
      %636 = sbr.rel (0) target = $region245
    $region244: #{_lambda_.1} parent=1 // pred_region
      %638 = dma.done [#allocation14], 16
    $region245: #{_lambda_.1} parent=1 // pred_fallthru
      _
    // Predicated region
    $region246: #{_lambda_.1} parent=1 // pred_check
      _
    $region247: #{_lambda_.1} parent=1 // pred_check_branch
      %640 = sbr.rel (0) target = $region249
    $region248: #{_lambda_.1} parent=1 // pred_region
      %642 = dma.done [#allocation14], 256
    $region249: #{_lambda_.1} parent=1 // pred_fallthru
      _
    // Predicated region
    $region250: #{_lambda_.1} parent=1 // pred_check
      _
    $region251: #{_lambda_.1} parent=1 // pred_check_branch
      %644 = sbr.rel (0) target = $region253
    $region252: #{_lambda_.1} parent=1 // pred_region
      %646 = dma.done [#allocation17], 16
    $region253: #{_lambda_.1} parent=1 // pred_fallthru
      _
    // Predicated region
    $region254: #{_lambda_.1} parent=1 // pred_check
      _
    $region255: #{_lambda_.1} parent=1 // pred_check_branch
      %648 = sbr.rel (0) target = $region257
    $region256: #{_lambda_.1} parent=1 // pred_region
      %650 = dma.done [#allocation17], 256
    $region257: #{_lambda_.1} parent=1 // pred_fallthru
      _
    // Predicated region
    $region258: #{_lambda_.1} parent=1 // pred_check
      _
    $region259: #{_lambda_.1} parent=1 // pred_check_branch
      %652 = sbr.rel (0) target = $region261
    $region260: #{_lambda_.1} parent=1 // pred_region
      %654 = dma.done [#allocation20], 16
    $region261: #{_lambda_.1} parent=1 // pred_fallthru
      _
    // Predicated region
    $region262: #{_lambda_.1} parent=1 // pred_check
      _
    $region263: #{_lambda_.1} parent=1 // pred_check_branch
      %656 = sbr.rel (0) target = $region265
    $region264: #{_lambda_.1} parent=1 // pred_region
      %658 = dma.done [#allocation20], 16
    $region265: #{_lambda_.1} parent=1 // pred_fallthru
      _
    // Predicated region
    $region266: #{_lambda_.1} parent=1 // pred_check
      _
    $region267: #{_lambda_.1} parent=1 // pred_check_branch
      %660 = sbr.rel (0) target = $region269
    $region268: #{_lambda_.1} parent=1 // pred_region
      %662 = dma.done [#allocation23], 256
    $region269: #{_lambda_.1} parent=1 // pred_fallthru
      _
    // Predicated region
    $region270: #{_lambda_.1} parent=1 // pred_check
      _
    $region271: #{_lambda_.1} parent=1 // pred_check_branch
      %664 = sbr.rel (0) target = $region273
    $region272: #{_lambda_.1} parent=1 // pred_region
      %666 = dma.done [#allocation23], 16
    $region273: #{_lambda_.1} parent=1 // pred_fallthru
      _
    // Predicated region
    $region274: #{_lambda_.1} parent=1 // pred_check
      _
    $region275: #{_lambda_.1} parent=1 // pred_check_branch
      %668 = sbr.rel (0) target = $region277
    $region276: #{_lambda_.1} parent=1 // pred_region
      %670 = dma.done [#allocation26], 256
    $region277: #{_lambda_.1} parent=1 // pred_fallthru
      _
    // Predicated region
    $region278: #{_lambda_.1} parent=1 // pred_check
      _
    $region279: #{_lambda_.1} parent=1 // pred_check_branch
      %672 = sbr.rel (0) target = $region281
    $region280: #{_lambda_.1} parent=1 // pred_region
      %674 = dma.done [#allocation26], 16
    $region281: #{_lambda_.1} parent=1 // pred_fallthru
      _
    // Predicated region
    $region282: #{_lambda_.1} parent=1 // pred_check
      _
    $region283: #{_lambda_.1} parent=1 // pred_check_branch
      %676 = sbr.rel (0) target = $region285
    $region284: #{_lambda_.1} parent=1 // pred_region
      %678 = dma.done [#allocation29], 2048
    $region285: #{_lambda_.1} parent=1 // pred_fallthru
      _
    // Predicated region
    $region286: #{_lambda_.1} parent=1 // pred_check
      _
    $region287: #{_lambda_.1} parent=1 // pred_check_branch
      %680 = sbr.rel (0) target = $region289
    $region288: #{_lambda_.1} parent=1 // pred_region
      %682 = dma.done [#allocation29], 16
    $region289: #{_lambda_.1} parent=1 // pred_fallthru
      _
    // Predicated region
    $region290: #{_lambda_.1} parent=1 // pred_check
      _
    $region291: #{_lambda_.1} parent=1 // pred_check_branch
      %684 = sbr.rel (0) target = $region293
    $region292: #{_lambda_.1} parent=1 // pred_region
      %686 = dma.done [#allocation32], 256
    $region293: #{_lambda_.1} parent=1 // pred_fallthru
      _
    // Predicated region
    $region294: #{_lambda_.1} parent=1 // pred_check
      _
    $region295: #{_lambda_.1} parent=1 // pred_check_branch
      %688 = sbr.rel (0) target = $region297
    $region296: #{_lambda_.1} parent=1 // pred_region
      %690 = dma.done [#allocation32], 16
    $region297: #{_lambda_.1} parent=1 // pred_fallthru
      _
    // Predicated region
    $region298: #{_lambda_.1} parent=1 // pred_check
      _
    $region299: #{_lambda_.1} parent=1 // pred_check_branch
      %692 = sbr.rel (0) target = $region301
    $region300: #{_lambda_.1} parent=1 // pred_region
      %694 = dma.done [#allocation35], 48
    $region301: #{_lambda_.1} parent=1 // pred_fallthru
      _
    // Predicated region
    $region302: #{_lambda_.1} parent=1 // pred_check
      _
    $region303: #{_lambda_.1} parent=1 // pred_check_branch
      %696 = sbr.rel (0) target = $region305
    $region304: #{_lambda_.1} parent=1 // pred_region
      %698 = dma.done [#allocation35], 48
    $region305: #{_lambda_.1} parent=1 // pred_fallthru
      _
    // Predicated region
    $region306: #{_lambda_.1} parent=1 // pred_check
      _
    $region307: #{_lambda_.1} parent=1 // pred_check_branch
      %700 = sbr.rel (0) target = $region309
    $region308: #{_lambda_.1} parent=1 // pred_region
      %702 = dma.done [#allocation38], 48
    $region309: #{_lambda_.1} parent=1 // pred_fallthru
      _
    // Predicated region
    $region310: #{_lambda_.1} parent=1 // pred_check
      _
    $region311: #{_lambda_.1} parent=1 // pred_check_branch
      %704 = sbr.rel (0) target = $region313
    $region312: #{_lambda_.1} parent=1 // pred_region
      %706 = dma.done [#allocation38], 4608
    $region313: #{_lambda_.1} parent=1 // pred_fallthru
      _
    // Predicated region
    $region314: #{_lambda_.1} parent=1 // pred_check
      _
    $region315: #{_lambda_.1} parent=1 // pred_check_branch
      %708 = sbr.rel (0) target = $region317
    $region316: #{_lambda_.1} parent=1 // pred_region
      %710 = dma.done [#allocation41], 768
    $region317: #{_lambda_.1} parent=1 // pred_fallthru
      _
    // Predicated region
    $region318: #{_lambda_.1} parent=1 // pred_check
      _
    $region319: #{_lambda_.1} parent=1 // pred_check_branch
      %712 = sbr.rel (0) target = $region321
    $region320: #{_lambda_.1} parent=1 // pred_region
      %714 = dma.done [#allocation41], 48
    $region321: #{_lambda_.1} parent=1 // pred_fallthru
      _
    // Predicated region
    $region322: #{_lambda_.1} parent=1 // pred_check
      _
    $region323: #{_lambda_.1} parent=1 // pred_check_branch
      %716 = sbr.rel (0) target = $region325
    $region324: #{_lambda_.1} parent=1 // pred_region
      %718 = dma.done [#allocation44], 768
    $region325: #{_lambda_.1} parent=1 // pred_fallthru
      _
    // Predicated region
    $region326: #{_lambda_.1} parent=1 // pred_check
      _
    $region327: #{_lambda_.1} parent=1 // pred_check_branch
      %720 = sbr.rel (0) target = $region329
    $region328: #{_lambda_.1} parent=1 // pred_region
      %722 = dma.done [#allocation44], 48
    $region329: #{_lambda_.1} parent=1 // pred_fallthru
      _
    // Predicated region
    $region330: #{_lambda_.1} parent=1 // pred_check
      _
    $region331: #{_lambda_.1} parent=1 // pred_check_branch
      %724 = sbr.rel (0) target = $region333
    $region332: #{_lambda_.1} parent=1 // pred_region
      %726 = dma.done [#allocation47], 48
    $region333: #{_lambda_.1} parent=1 // pred_fallthru
      _
    // Predicated region
    $region334: #{_lambda_.1} parent=1 // pred_check
      _
    $region335: #{_lambda_.1} parent=1 // pred_check_branch
      %728 = sbr.rel (0) target = $region337
    $region336: #{_lambda_.1} parent=1 // pred_region
      %730 = dma.done [#allocation47], 1536
    $region337: #{_lambda_.1} parent=1 // pred_fallthru
      _
    // Predicated region
    $region338: #{_lambda_.1} parent=1 // pred_check
      _
    $region339: #{_lambda_.1} parent=1 // pred_check_branch
      %732 = sbr.rel (0) target = $region341
    $region340: #{_lambda_.1} parent=1 // pred_region
      %734 = dma.done [#allocation50], 3072
    $region341: #{_lambda_.1} parent=1 // pred_fallthru
      _
    // Predicated region
    $region342: #{_lambda_.1} parent=1 // pred_check
      _
    $region343: #{_lambda_.1} parent=1 // pred_check_branch
      %736 = sbr.rel (0) target = $region345
    $region344: #{_lambda_.1} parent=1 // pred_region
      %738 = dma.done [#allocation50], 256
    $region345: #{_lambda_.1} parent=1 // pred_fallthru
      _
    // Predicated region
    $region346: #{_lambda_.1} parent=1 // pred_check
      _
    $region347: #{_lambda_.1} parent=1 // pred_check_branch
      %740 = sbr.rel (0) target = $region349
    $region348: #{_lambda_.1} parent=1 // pred_region
      %742 = dma.done [#allocation53], 256
    $region349: #{_lambda_.1} parent=1 // pred_fallthru
      _
    // Predicated region
    $region350: #{_lambda_.1} parent=1 // pred_check
      _
    $region351: #{_lambda_.1} parent=1 // pred_check_branch
      %744 = sbr.rel (0) target = $region353
    $region352: #{_lambda_.1} parent=1 // pred_region
      %746 = dma.done [#allocation53], 256
    $region353: #{_lambda_.1} parent=1 // pred_fallthru
      _
    // Predicated region
    $region354: #{_lambda_.1} parent=1 // pred_check
      _
    $region355: #{_lambda_.1} parent=1 // pred_check_branch
      %748 = sbr.rel (0) target = $region357
    $region356: #{_lambda_.1} parent=1 // pred_region
      %750 = dma.done [#allocation56], 256
    $region357: #{_lambda_.1} parent=1 // pred_fallthru
      _
    %v752 = vld [vmem:[%s1] sm:$0xff]
    %v753 = vld [vmem:[%s1 + $0x8] sm:$0xff]
    %v754 = vld [vmem:[#allocation4] sm:$0xf]
    %v755 = vld [vmem:[#allocation6] sm:$0x1]
    %v756 = vpack.c.bf16 %v753, %v752
    %v758 = vperm.slane %v755, 0
    %vm760 = vcmask 64512
    %v762 = vsel %vm760, %v756, 0
    %vm764 = vcmask 1043456
    %v766 = vsel %vm764, %v754, 0
    %768 = vmatpush.bf16.msra.mxu0 0
    %769 = vmatpush.bf16.msra.mxu0 0
    %770 = vmatpush.bf16.msra.mxu0 0
    %771 = vmatpush.bf16.msra.mxu0 0
    %772 = vmatpush.bf16.msra.mxu0 0
    %773 = vmatpush.bf16.msra.mxu0 0
    %774 = vmatpush.bf16.msra.mxu0 0
    %775 = vmatpush.bf16.msra.mxu0 %v766
    %776 = vmatmul.bf16.gmra.mxu0 %v762
    %v777 = vpop.f32.mrf.mxu0
    %v778 = vadd.f32 %v758, %v777
    %v779 = vpop.f32.mrf.mxu0
    %v780 = vadd.f32 %v758, %v779
    %781 = vdwg.mxu0
    %v782 = vxor.u32 %v778, 2147483648
    %v783 = vxor.u32 %v780, 2147483648
    %v784 = vmul.f32 %v782, 1.442695
    %v785 = vpow.pop %v784
    %v786 = vmul.f32 %v783, 1.442695
    %v787 = vpow.pop %v786
    %v788 = vadd.f32 %v785, 1.0
    %v789 = vadd.f32 %v787, 1.0
    %v790 = vrcp.pop %v788
    %v791 = vmul.f32 %v788, %v790
    %v792 = vsub.f32 1.0, %v791
    %v793 = vmul.f32 %v790, %v792
    %v794 = vadd.f32 %v790, %v793
    %vm795 = vweird.f32 %v788
    %vm796 = vweird.f32 %v790
    %vm797 = vmor %vm795, %vm796
    %v798 = vsel %vm797, %v790, %v794
    %v799 = vand.u32 2147483647, %v788
    %vm800 = vcmp.eq.f32.partialorder %v799, 8.507059e+37
    %v801 = vand.u32 %v788, 2147483648
    %v802 = vor.u32 1.1754944e-38, %v801
    %v803 = vsel %vm800, %v802, %v798
    %v804 = vmul.f32 1.0, %v803
    %v805 = vrcp.pop %v789
    %v806 = vmul.f32 %v789, %v805
    %v807 = vsub.f32 1.0, %v806
    %v808 = vmul.f32 %v805, %v807
    %v809 = vadd.f32 %v805, %v808
    %vm810 = vweird.f32 %v789
    %vm811 = vweird.f32 %v805
    %vm812 = vmor %vm810, %vm811
    %v813 = vsel %vm812, %v805, %v809
    %v814 = vand.u32 2147483647, %v789
    %vm815 = vcmp.eq.f32.partialorder %v814, 8.507059e+37
    %v816 = vand.u32 %v789, 2147483648
    %v817 = vor.u32 1.1754944e-38, %v816
    %v818 = vsel %vm815, %v817, %v813
    %v819 = vmul.f32 1.0, %v818
    %v820 = vmul.f32 %v778, %v804
    %v821 = vmul.f32 %v780, %v819
    %v822 = vld [vmem:[#allocation7] sm:$0xf]
    %v823 = vld [vmem:[#allocation7 + $0x4] sm:$0xf]
    %v824 = vld [vmem:[#allocation7 + $0x8] sm:$0xf]
    %v825 = vld [vmem:[#allocation7 + $0xc] sm:$0xf]
    %v826 = vld [vmem:[#allocation9] sm:$0x1]
    %v827 = vpack.c.bf16 %v821, %v820
    %v829 = vperm.slane %v826, 0
    %v835 = vunpack.c.l.b16 %v822
    %v836 = vunpack.c.l.b16 %v823
    %v837 = vunpack.c.l.b16 %v824
    %v838 = vunpack.c.l.b16 %v825
    %v839 = vpack.c.b16 %v836, %v835
    %v840 = vpack.c.b16 %v838, %v837
    %vm843 = vcmask 261120
    %v845 = vsel %vm843, %v827, 0
    %847 = vmatpush.bf16.msra.mxu0 0
    %848 = vmatpush.bf16.msra.mxu0 0
    %849 = vmatpush.bf16.msra.mxu0 0
    %850 = vmatpush.bf16.msra.mxu0 0
    %851 = vmatpush.bf16.msra.mxu0 0
    %852 = vmatpush.bf16.msra.mxu0 0
    %853 = vmatpush.bf16.msra.mxu0 %v840
    %854 = vmatpush.bf16.msra.mxu0 %v839
    %855 = vmatmul.bf16.gmra.mxu0 %v845
    %v856 = vpop.f32.mrf.mxu0
    %v857 = vadd.f32 %v829, %v856
    %v858 = vpop.f32.mrf.mxu0
    %v859 = vadd.f32 %v829, %v858
    %860 = vdwg.mxu0
    %v861 = vxor.u32 %v857, 2147483648
    %v862 = vxor.u32 %v859, 2147483648
    %v863 = vmul.f32 %v861, 1.442695
    %v864 = vpow.pop %v863
    %v865 = vmul.f32 %v862, 1.442695
    %v866 = vpow.pop %v865
    %v867 = vadd.f32 %v864, 1.0
    %v868 = vadd.f32 %v866, 1.0
    %v869 = vrcp.pop %v867
    %v870 = vmul.f32 %v867, %v869
    %v871 = vsub.f32 1.0, %v870
    %v872 = vmul.f32 %v869, %v871
    %v873 = vadd.f32 %v869, %v872
    %vm874 = vweird.f32 %v867
    %vm875 = vweird.f32 %v869
    %vm876 = vmor %vm874, %vm875
    %v877 = vsel %vm876, %v869, %v873
    %v878 = vand.u32 2147483647, %v867
    %vm879 = vcmp.eq.f32.partialorder %v878, 8.507059e+37
    %v880 = vand.u32 %v867, 2147483648
    %v881 = vor.u32 1.1754944e-38, %v880
    %v882 = vsel %vm879, %v881, %v877
    %v883 = vmul.f32 1.0, %v882
    %v884 = vrcp.pop %v868
    %v885 = vmul.f32 %v868, %v884
    %v886 = vsub.f32 1.0, %v885
    %v887 = vmul.f32 %v884, %v886
    %v888 = vadd.f32 %v884, %v887
    %vm889 = vweird.f32 %v868
    %vm890 = vweird.f32 %v884
    %vm891 = vmor %vm889, %vm890
    %v892 = vsel %vm891, %v884, %v888
    %v893 = vand.u32 2147483647, %v868
    %vm894 = vcmp.eq.f32.partialorder %v893, 8.507059e+37
    %v895 = vand.u32 %v868, 2147483648
    %v896 = vor.u32 1.1754944e-38, %v895
    %v897 = vsel %vm894, %v896, %v892
    %v898 = vmul.f32 1.0, %v897
    %v899 = vmul.f32 %v857, %v883
    %v900 = vmul.f32 %v859, %v898
    %v901 = vld [vmem:[#allocation10] sm:$0xf]
    %v902 = vld [vmem:[#allocation10 + $0x4] sm:$0xf]
    %v903 = vld [vmem:[#allocation10 + $0x8] sm:$0xf]
    %v904 = vld [vmem:[#allocation10 + $0xc] sm:$0xf]
    %v905 = vld [vmem:[#allocation12] sm:$0x1]
    %v906 = vpack.c.bf16 %v900, %v899
    %v908 = vperm.slane %v905, 0
    %v914 = vunpack.c.l.b16 %v901
    %v915 = vunpack.c.l.b16 %v902
    %v916 = vunpack.c.l.b16 %v903
    %v917 = vunpack.c.l.b16 %v904
    %v918 = vpack.c.b16 %v915, %v914
    %v919 = vpack.c.b16 %v917, %v916
    %v923 = vsel %vm843, %v906, 0
    %925 = vmatpush.bf16.msra.mxu0 0
    %926 = vmatpush.bf16.msra.mxu0 0
    %927 = vmatpush.bf16.msra.mxu0 0
    %928 = vmatpush.bf16.msra.mxu0 0
    %929 = vmatpush.bf16.msra.mxu0 0
    %930 = vmatpush.bf16.msra.mxu0 0
    %931 = vmatpush.bf16.msra.mxu0 %v919
    %932 = vmatpush.bf16.msra.mxu0 %v918
    %933 = vmatmul.bf16.gmra.mxu0 %v923
    %v934 = vpop.f32.mrf.mxu0
    %v935 = vadd.f32 %v908, %v934
    %v936 = vpop.f32.mrf.mxu0
    %v937 = vadd.f32 %v908, %v936
    %938 = vdwg.mxu0
    %v939 = vld [vmem:[%s5] sm:$0xff]
    %v940 = vld [vmem:[%s5 + $0x8] sm:$0xff]
    %942 = vset.pattern.permute.xlu0 0
    %943 = vperm.xlu0 %942, %v939
    %v944 = vpop.permute.xlu0 %943
    %947 = vset.pattern.permute.xlu0 0
    %948 = vperm.xlu0 %947, %v940
    %v949 = vpop.permute.xlu0 %948
    %v951 = vmul.f32 %v935, %v944
    %v952 = vmul.f32 %v937, %v949
    %v953 = vld [vmem:[%s3] sm:$0xff]
    %v954 = vld [vmem:[%s3 + $0x8] sm:$0xff]
    %v955 = vld [vmem:[%s31] sm:$0xf]
    %v956 = vld [vmem:[#allocation13] sm:$0x1]
    %v957 = vpack.c.bf16 %v954, %v953
    %v959 = vperm.slane %v956, 0
    %v962 = vsel %vm760, %v957, 0
    %v965 = vsel %vm764, %v955, 0
    %967 = vmatpush.bf16.msra.mxu0 0
    %968 = vmatpush.bf16.msra.mxu0 0
    %969 = vmatpush.bf16.msra.mxu0 0
    %970 = vmatpush.bf16.msra.mxu0 0
    %971 = vmatpush.bf16.msra.mxu0 0
    %972 = vmatpush.bf16.msra.mxu0 0
    %973 = vmatpush.bf16.msra.mxu0 0
    %974 = vmatpush.bf16.msra.mxu0 %v965
    %975 = vmatmul.bf16.gmra.mxu0 %v962
    %v976 = vpop.f32.mrf.mxu0
    %v977 = vadd.f32 %v959, %v976
    %v978 = vpop.f32.mrf.mxu0
    %v979 = vadd.f32 %v959, %v978
    %980 = vdwg.mxu0
    %v981 = vxor.u32 %v977, 2147483648
    %v982 = vxor.u32 %v979, 2147483648
    %v983 = vmul.f32 %v981, 1.442695
    %v984 = vpow.pop %v983
    %v985 = vmul.f32 %v982, 1.442695
    %v986 = vpow.pop %v985
    %v987 = vadd.f32 %v984, 1.0
    %v988 = vadd.f32 %v986, 1.0
    %v989 = vrcp.pop %v987
    %v990 = vmul.f32 %v987, %v989
    %v991 = vsub.f32 1.0, %v990
    %v992 = vmul.f32 %v989, %v991
    %v993 = vadd.f32 %v989, %v992
    %vm994 = vweird.f32 %v987
    %vm995 = vweird.f32 %v989
    %vm996 = vmor %vm994, %vm995
    %v997 = vsel %vm996, %v989, %v993
    %v998 = vand.u32 2147483647, %v987
    %vm999 = vcmp.eq.f32.partialorder %v998, 8.507059e+37
    %v1000 = vand.u32 %v987, 2147483648
    %v1001 = vor.u32 1.1754944e-38, %v1000
    %v1002 = vsel %vm999, %v1001, %v997
    %v1003 = vmul.f32 1.0, %v1002
    %v1004 = vrcp.pop %v988
    %v1005 = vmul.f32 %v988, %v1004
    %v1006 = vsub.f32 1.0, %v1005
    %v1007 = vmul.f32 %v1004, %v1006
    %v1008 = vadd.f32 %v1004, %v1007
    %vm1009 = vweird.f32 %v988
    %vm1010 = vweird.f32 %v1004
    %vm1011 = vmor %vm1009, %vm1010
    %v1012 = vsel %vm1011, %v1004, %v1008
    %v1013 = vand.u32 2147483647, %v988
    %vm1014 = vcmp.eq.f32.partialorder %v1013, 8.507059e+37
    %v1015 = vand.u32 %v988, 2147483648
    %v1016 = vor.u32 1.1754944e-38, %v1015
    %v1017 = vsel %vm1014, %v1016, %v1012
    %v1018 = vmul.f32 1.0, %v1017
    %v1019 = vmul.f32 %v977, %v1003
    %v1020 = vmul.f32 %v979, %v1018
    %v1021 = vld [vmem:[#allocation15] sm:$0xf]
    %v1022 = vld [vmem:[#allocation15 + $0x4] sm:$0xf]
    %v1023 = vld [vmem:[#allocation15 + $0x8] sm:$0xf]
    %v1024 = vld [vmem:[#allocation15 + $0xc] sm:$0xf]
    %v1025 = vld [vmem:[#allocation16] sm:$0x1]
    %v1026 = vpack.c.bf16 %v1020, %v1019
    %v1028 = vperm.slane %v1025, 0
    %v1034 = vunpack.c.l.b16 %v1021
    %v1035 = vunpack.c.l.b16 %v1022
    %v1036 = vunpack.c.l.b16 %v1023
    %v1037 = vunpack.c.l.b16 %v1024
    %v1038 = vpack.c.b16 %v1035, %v1034
    %v1039 = vpack.c.b16 %v1037, %v1036
    %v1043 = vsel %vm843, %v1026, 0
    %1045 = vmatpush.bf16.msra.mxu0 0
    %1046 = vmatpush.bf16.msra.mxu0 0
    %1047 = vmatpush.bf16.msra.mxu0 0
    %1048 = vmatpush.bf16.msra.mxu0 0
    %1049 = vmatpush.bf16.msra.mxu0 0
    %1050 = vmatpush.bf16.msra.mxu0 0
    %1051 = vmatpush.bf16.msra.mxu0 %v1039
    %1052 = vmatpush.bf16.msra.mxu0 %v1038
    %1053 = vmatmul.bf16.gmra.mxu0 %v1043
    %v1054 = vpop.f32.mrf.mxu0
    %v1055 = vadd.f32 %v1028, %v1054
    %v1056 = vpop.f32.mrf.mxu0
    %v1057 = vadd.f32 %v1028, %v1056
    %1058 = vdwg.mxu0
    %v1059 = vxor.u32 %v1055, 2147483648
    %v1060 = vxor.u32 %v1057, 2147483648
    %v1061 = vmul.f32 %v1059, 1.442695
    %v1062 = vpow.pop %v1061
    %v1063 = vmul.f32 %v1060, 1.442695
    %v1064 = vpow.pop %v1063
    %v1065 = vadd.f32 %v1062, 1.0
    %v1066 = vadd.f32 %v1064, 1.0
    %v1067 = vrcp.pop %v1065
    %v1068 = vmul.f32 %v1065, %v1067
    %v1069 = vsub.f32 1.0, %v1068
    %v1070 = vmul.f32 %v1067, %v1069
    %v1071 = vadd.f32 %v1067, %v1070
    %vm1072 = vweird.f32 %v1065
    %vm1073 = vweird.f32 %v1067
    %vm1074 = vmor %vm1072, %vm1073
    %v1075 = vsel %vm1074, %v1067, %v1071
    %v1076 = vand.u32 2147483647, %v1065
    %vm1077 = vcmp.eq.f32.partialorder %v1076, 8.507059e+37
    %v1078 = vand.u32 %v1065, 2147483648
    %v1079 = vor.u32 1.1754944e-38, %v1078
    %v1080 = vsel %vm1077, %v1079, %v1075
    %v1081 = vmul.f32 1.0, %v1080
    %v1082 = vrcp.pop %v1066
    %v1083 = vmul.f32 %v1066, %v1082
    %v1084 = vsub.f32 1.0, %v1083
    %v1085 = vmul.f32 %v1082, %v1084
    %v1086 = vadd.f32 %v1082, %v1085
    %vm1087 = vweird.f32 %v1066
    %vm1088 = vweird.f32 %v1082
    %vm1089 = vmor %vm1087, %vm1088
    %v1090 = vsel %vm1089, %v1082, %v1086
    %v1091 = vand.u32 2147483647, %v1066
    %vm1092 = vcmp.eq.f32.partialorder %v1091, 8.507059e+37
    %v1093 = vand.u32 %v1066, 2147483648
    %v1094 = vor.u32 1.1754944e-38, %v1093
    %v1095 = vsel %vm1092, %v1094, %v1090
    %v1096 = vmul.f32 1.0, %v1095
    %v1097 = vmul.f32 %v1055, %v1081
    %v1098 = vmul.f32 %v1057, %v1096
    %v1099 = vld [vmem:[#allocation18] sm:$0xf]
    %v1100 = vld [vmem:[#allocation18 + $0x4] sm:$0xf]
    %v1101 = vld [vmem:[#allocation18 + $0x8] sm:$0xf]
    %v1102 = vld [vmem:[#allocation18 + $0xc] sm:$0xf]
    %v1103 = vld [vmem:[#allocation19] sm:$0x1]
    %v1104 = vpack.c.bf16 %v1098, %v1097
    %v1106 = vperm.slane %v1103, 0
    %v1112 = vunpack.c.l.b16 %v1099
    %v1113 = vunpack.c.l.b16 %v1100
    %v1114 = vunpack.c.l.b16 %v1101
    %v1115 = vunpack.c.l.b16 %v1102
    %v1116 = vpack.c.b16 %v1113, %v1112
    %v1117 = vpack.c.b16 %v1115, %v1114
    %v1121 = vsel %vm843, %v1104, 0
    %1123 = vmatpush.bf16.msra.mxu0 0
    %1124 = vmatpush.bf16.msra.mxu0 0
    %1125 = vmatpush.bf16.msra.mxu0 0
    %1126 = vmatpush.bf16.msra.mxu0 0
    %1127 = vmatpush.bf16.msra.mxu0 0
    %1128 = vmatpush.bf16.msra.mxu0 0
    %1129 = vmatpush.bf16.msra.mxu0 %v1117
    %1130 = vmatpush.bf16.msra.mxu0 %v1116
    %1131 = vmatmul.bf16.gmra.mxu0 %v1121
    %v1132 = vpop.f32.mrf.mxu0
    %v1133 = vadd.f32 %v1106, %v1132
    %v1134 = vpop.f32.mrf.mxu0
    %v1135 = vadd.f32 %v1106, %v1134
    %1136 = vdwg.mxu0
    %v1137 = vld [vmem:[%s7] sm:$0xff]
    %v1138 = vld [vmem:[%s7 + $0x8] sm:$0xff]
    %1140 = vset.pattern.permute.xlu0 0
    %1141 = vperm.xlu0 %1140, %v1137
    %v1142 = vpop.permute.xlu0 %1141
    %1145 = vset.pattern.permute.xlu0 0
    %1146 = vperm.xlu0 %1145, %v1138
    %v1147 = vpop.permute.xlu0 %1146
    %v1149 = vmul.f32 %v1133, %v1142
    %v1150 = vmul.f32 %v1135, %v1147
    %v1151 = vld [vmem:[%s13] sm:$0x3]
    %vm1152 = vcmask 130048
    %v1154 = vsel %vm1152, %v1151, 0
    %1156 = vmatpush.msra.mxu0 0.0
    %1157 = vmatpush.msra.mxu0 0.0
    %1158 = vmatpush.msra.mxu0 0.0
    %1159 = vmatpush.msra.mxu0 0.0
    %1160 = vmatpush.msra.mxu0 0.0
    %1161 = vmatpush.msra.mxu0 0.0
    %1162 = vmatpush.msra.mxu0 0.0
    %1163 = vmatpush.msra.mxu0 0.0
    %1164 = vmatpush.msra.mxu0 0.0
    %1165 = vmatpush.msra.mxu0 0.0
    %1166 = vmatpush.msra.mxu0 0.0
    %1167 = vmatpush.msra.mxu0 0.0
    %1168 = vmatpush.msra.mxu0 0.0
    %1169 = vmatpush.msra.mxu0 0.0
    %1170 = vmatpush.msra.mxu0 %v952
    %1171 = vmatpush.msra.mxu0 %v951
    %1172 = vmatmul.f32.gmra.mxu0 %v1154
    %v1173 = vpop.f32.mrf.mxu0
    %v1174 = vadd.f32 0.0, %v1173
    %1175 = vdwg.mxu0
    %v1176 = vld [vmem:[%s15] sm:$0xf]
    %v1177 = vld [vmem:[#allocation28] sm:$0xf]
    %v1178 = vld [vmem:[#allocation28 + $0x4] sm:$0xf]
    %v1179 = vld [vmem:[#allocation28 + $0x8] sm:$0xf]
    %v1180 = vld [vmem:[#allocation28 + $0xc] sm:$0xf]
    %v1181 = vld [vmem:[#allocation28 + $0x10] sm:$0xf]
    %v1182 = vld [vmem:[#allocation28 + $0x14] sm:$0xf]
    %v1183 = vld [vmem:[#allocation28 + $0x18] sm:$0xf]
    %v1184 = vld [vmem:[#allocation28 + $0x1c] sm:$0xf]
    %v1185 = vld [vmem:[#allocation28 + $0x20] sm:$0xf]
    %v1186 = vld [vmem:[#allocation28 + $0x24] sm:$0xf]
    %v1187 = vld [vmem:[#allocation28 + $0x28] sm:$0xf]
    %v1188 = vld [vmem:[#allocation28 + $0x2c] sm:$0xf]
    %v1189 = vld [vmem:[#allocation28 + $0x30] sm:$0xf]
    %v1190 = vld [vmem:[#allocation28 + $0x34] sm:$0xf]
    %v1191 = vld [vmem:[#allocation28 + $0x38] sm:$0xf]
    %v1192 = vld [vmem:[#allocation28 + $0x3c] sm:$0xf]
    %v1193 = vld [vmem:[#allocation28 + $0x40] sm:$0xf]
    %v1194 = vld [vmem:[#allocation28 + $0x44] sm:$0xf]
    %v1195 = vld [vmem:[#allocation28 + $0x48] sm:$0xf]
    %v1196 = vld [vmem:[#allocation28 + $0x4c] sm:$0xf]
    %v1197 = vld [vmem:[#allocation28 + $0x50] sm:$0xf]
    %v1198 = vld [vmem:[#allocation28 + $0x54] sm:$0xf]
    %v1199 = vld [vmem:[#allocation28 + $0x58] sm:$0xf]
    %v1200 = vld [vmem:[#allocation28 + $0x5c] sm:$0xf]
    %v1201 = vld [vmem:[#allocation28 + $0x60] sm:$0xf]
    %v1202 = vld [vmem:[#allocation28 + $0x64] sm:$0xf]
    %v1203 = vld [vmem:[#allocation28 + $0x68] sm:$0xf]
    %v1204 = vld [vmem:[#allocation28 + $0x6c] sm:$0xf]
    %v1205 = vld [vmem:[#allocation28 + $0x70] sm:$0xf]
    %v1206 = vld [vmem:[#allocation28 + $0x74] sm:$0xf]
    %v1207 = vld [vmem:[#allocation28 + $0x78] sm:$0xf]
    %v1208 = vld [vmem:[#allocation28 + $0x7c] sm:$0xf]
    %v1209 = vld [vmem:[#allocation30] sm:$0x1]
    %1211 = vst [vmem:[#allocation1] ss:$4 sm:$0xff] %v1176
    %v1212 = vld.sshfl [vmem:[#allocation1] sm:$0xff pattern:$0x73625140]
    %v1213 = vld.sshfl [vmem:[#allocation1 + $0x8] sm:$0xff pattern:$0x73625140]
    %v1216 = vpack.c.bf16 %v1212, %v1212
    %v1217 = vpack.c.bf16 %v1213, %v1213
    %v1219 = vperm.slane %v1209, 0
    %v1253 = vunpack.c.l.b16 %v1177
    %v1254 = vunpack.c.l.b16 %v1178
    %v1255 = vunpack.c.l.b16 %v1179
    %v1256 = vunpack.c.l.b16 %v1180
    %v1257 = vunpack.c.l.b16 %v1181
    %v1258 = vunpack.c.l.b16 %v1182
    %v1259 = vunpack.c.l.b16 %v1183
    %v1260 = vunpack.c.l.b16 %v1184
    %v1261 = vunpack.c.l.b16 %v1185
    %v1262 = vunpack.c.l.b16 %v1186
    %v1263 = vunpack.c.l.b16 %v1187
    %v1264 = vunpack.c.l.b16 %v1188
    %v1265 = vunpack.c.l.b16 %v1189
    %v1266 = vunpack.c.l.b16 %v1190
    %v1267 = vunpack.c.l.b16 %v1191
    %v1268 = vunpack.c.l.b16 %v1192
    %v1269 = vunpack.c.l.b16 %v1193
    %v1270 = vunpack.c.l.b16 %v1194
    %v1271 = vunpack.c.l.b16 %v1195
    %v1272 = vunpack.c.l.b16 %v1196
    %v1273 = vunpack.c.l.b16 %v1197
    %v1274 = vunpack.c.l.b16 %v1198
    %v1275 = vunpack.c.l.b16 %v1199
    %v1276 = vunpack.c.l.b16 %v1200
    %v1277 = vunpack.c.l.b16 %v1201
    %v1278 = vunpack.c.l.b16 %v1202
    %v1279 = vunpack.c.l.b16 %v1203
    %v1280 = vunpack.c.l.b16 %v1204
    %v1281 = vunpack.c.l.b16 %v1205
    %v1282 = vunpack.c.l.b16 %v1206
    %v1283 = vunpack.c.l.b16 %v1207
    %v1284 = vunpack.c.l.b16 %v1208
    %v1285 = vpack.c.b16 %v1254, %v1253
    %v1286 = vpack.c.b16 %v1256, %v1255
    %v1287 = vpack.c.b16 %v1258, %v1257
    %v1288 = vpack.c.b16 %v1260, %v1259
    %v1289 = vpack.c.b16 %v1262, %v1261
    %v1290 = vpack.c.b16 %v1264, %v1263
    %v1291 = vpack.c.b16 %v1266, %v1265
    %v1292 = vpack.c.b16 %v1268, %v1267
    %v1293 = vpack.c.b16 %v1270, %v1269
    %v1294 = vpack.c.b16 %v1272, %v1271
    %v1295 = vpack.c.b16 %v1274, %v1273
    %v1296 = vpack.c.b16 %v1276, %v1275
    %v1297 = vpack.c.b16 %v1278, %v1277
    %v1298 = vpack.c.b16 %v1280, %v1279
    %v1299 = vpack.c.b16 %v1282, %v1281
    %v1300 = vpack.c.b16 %v1284, %v1283
    %1317 = vmatpush.bf16.msra.mxu0 %v1292
    %1318 = vmatpush.bf16.msra.mxu0 %v1291
    %1319 = vmatpush.bf16.msra.mxu0 %v1290
    %1320 = vmatpush.bf16.msra.mxu0 %v1289
    %1321 = vmatpush.bf16.msra.mxu0 %v1288
    %1322 = vmatpush.bf16.msra.mxu0 %v1287
    %1323 = vmatpush.bf16.msra.mxu0 %v1286
    %1324 = vmatpush.bf16.msra.mxu0 %v1285
    %1325 = vmatmul.bf16.gmra.mxu0 %v1216
    %v1326 = vpop.f32.mrf.mxu0
    %v1327 = vadd.f32 %v1219, %v1326
    %v1328 = vpop.f32.mrf.mxu0
    %1329 = vdwg.mxu0
    %1330 = vmatpush.bf16.msra.mxu0 %v1300
    %1331 = vmatpush.bf16.msra.mxu0 %v1299
    %1332 = vmatpush.bf16.msra.mxu0 %v1298
    %1333 = vmatpush.bf16.msra.mxu0 %v1297
    %1334 = vmatpush.bf16.msra.mxu0 %v1296
    %1335 = vmatpush.bf16.msra.mxu0 %v1295
    %1336 = vmatpush.bf16.msra.mxu0 %v1294
    %1337 = vmatpush.bf16.msra.mxu0 %v1293
    %1338 = vmatmul.bf16.gmra.mxu0 %v1217
    %v1339 = vpop.f32.mrf.mxu0
    %v1340 = vadd.f32 %v1327, %v1339
    %v1341 = vpop.f32.mrf.mxu0
    %1342 = vdwg.mxu0
    %v1343 = vxor.u32 %v1340, 2147483648
    %v1344 = vmul.f32 %v1343, 1.442695
    %v1345 = vpow.pop %v1344
    %v1346 = vadd.f32 %v1345, 1.0
    %v1347 = vrcp.pop %v1346
    %v1348 = vmul.f32 %v1346, %v1347
    %v1349 = vsub.f32 1.0, %v1348
    %v1350 = vmul.f32 %v1347, %v1349
    %v1351 = vadd.f32 %v1347, %v1350
    %vm1352 = vweird.f32 %v1346
    %vm1353 = vweird.f32 %v1347
    %vm1354 = vmor %vm1352, %vm1353
    %v1355 = vsel %vm1354, %v1347, %v1351
    %v1356 = vand.u32 2147483647, %v1346
    %vm1357 = vcmp.eq.f32.partialorder %v1356, 8.507059e+37
    %v1358 = vand.u32 %v1346, 2147483648
    %v1359 = vor.u32 1.1754944e-38, %v1358
    %v1360 = vsel %vm1357, %v1359, %v1355
    %v1361 = vmul.f32 1.0, %v1360
    %v1362 = vmul.f32 %v1340, %v1361
    %v1363 = vld [vmem:[#allocation31] sm:$0xf]
    %v1364 = vld [vmem:[#allocation31 + $0x4] sm:$0xf]
    %v1365 = vld [vmem:[#allocation31 + $0x8] sm:$0xf]
    %v1366 = vld [vmem:[#allocation31 + $0xc] sm:$0xf]
    %v1367 = vld [vmem:[#allocation33] sm:$0x1]
    %v1368 = vpack.c.bf16 %v1362, %v1362
    %v1370 = vperm.slane %v1367, 0
    %v1376 = vunpack.c.l.b16 %v1363
    %v1377 = vunpack.c.l.b16 %v1364
    %v1378 = vunpack.c.l.b16 %v1365
    %v1379 = vunpack.c.l.b16 %v1366
    %v1380 = vpack.c.b16 %v1377, %v1376
    %v1381 = vpack.c.b16 %v1379, %v1378
    %v1385 = vsel %vm843, %v1368, 0
    %1387 = vmatpush.bf16.msra.mxu0 0
    %1388 = vmatpush.bf16.msra.mxu0 0
    %1389 = vmatpush.bf16.msra.mxu0 0
    %1390 = vmatpush.bf16.msra.mxu0 0
    %1391 = vmatpush.bf16.msra.mxu0 0
    %1392 = vmatpush.bf16.msra.mxu0 0
    %1393 = vmatpush.bf16.msra.mxu0 %v1381
    %1394 = vmatpush.bf16.msra.mxu0 %v1380
    %1395 = vmatmul.bf16.gmra.mxu0 %v1385
    %v1396 = vpop.f32.mrf.mxu0
    %v1397 = vadd.f32 %v1370, %v1396
    %v1398 = vpop.f32.mrf.mxu0
    %1399 = vdwg.mxu0
    %v1400 = vld [vmem:[#allocation2] sm:$0x3]
    %v1401 = vld [vmem:[%s43] sm:$0x7]
    %v1402 = vld [vmem:[#allocation21] sm:$0x1]
    %v1403 = vpack.c.bf16 %v1400, %v1400
    %v1405 = vperm.slane %v1402, 0
    %vm1407 = vcmask 48128
    %v1409 = vsel %vm1407, %v1403, 0
    %vm1411 = vcmask 1042432
    %v1413 = vsel %vm1411, %v1401, 0
    %1415 = vmatpush.bf16.msra.mxu0 0
    %1416 = vmatpush.bf16.msra.mxu0 0
    %1417 = vmatpush.bf16.msra.mxu0 0
    %1418 = vmatpush.bf16.msra.mxu0 0
    %1419 = vmatpush.bf16.msra.mxu0 0
    %1420 = vmatpush.bf16.msra.mxu0 0
    %1421 = vmatpush.bf16.msra.mxu0 0
    %1422 = vmatpush.bf16.msra.mxu0 %v1413
    %1423 = vmatmul.bf16.gmra.mxu0 %v1409
    %v1424 = vpop.f32.mrf.mxu0
    %v1425 = vadd.f32 %v1405, %v1424
    %v1426 = vpop.f32.mrf.mxu0
    %1427 = vdwg.mxu0
    %v1428 = vxor.u32 %v1425, 2147483648
    %v1429 = vmul.f32 %v1428, 1.442695
    %v1430 = vpow.pop %v1429
    %v1431 = vadd.f32 %v1430, 1.0
    %v1432 = vrcp.pop %v1431
    %v1433 = vmul.f32 %v1431, %v1432
    %v1434 = vsub.f32 1.0, %v1433
    %v1435 = vmul.f32 %v1432, %v1434
    %v1436 = vadd.f32 %v1432, %v1435
    %vm1437 = vweird.f32 %v1431
    %vm1438 = vweird.f32 %v1432
    %vm1439 = vmor %vm1437, %vm1438
    %v1440 = vsel %vm1439, %v1432, %v1436
    %v1441 = vand.u32 2147483647, %v1431
    %vm1442 = vcmp.eq.f32.partialorder %v1441, 8.507059e+37
    %v1443 = vand.u32 %v1431, 2147483648
    %v1444 = vor.u32 1.1754944e-38, %v1443
    %v1445 = vsel %vm1442, %v1444, %v1440
    %v1446 = vmul.f32 1.0, %v1445
    %v1447 = vmul.f32 %v1425, %v1446
    %v1448 = vld [vmem:[#allocation22] sm:$0xf]
    %v1449 = vld [vmem:[#allocation22 + $0x4] sm:$0xf]
    %v1450 = vld [vmem:[#allocation22 + $0x8] sm:$0xf]
    %v1451 = vld [vmem:[#allocation22 + $0xc] sm:$0xf]
    %v1452 = vld [vmem:[#allocation24] sm:$0x1]
    %v1453 = vpack.c.bf16 %v1447, %v1447
    %v1455 = vperm.slane %v1452, 0
    %v1461 = vunpack.c.l.b16 %v1448
    %v1462 = vunpack.c.l.b16 %v1449
    %v1463 = vunpack.c.l.b16 %v1450
    %v1464 = vunpack.c.l.b16 %v1451
    %v1465 = vpack.c.b16 %v1462, %v1461
    %v1466 = vpack.c.b16 %v1464, %v1463
    %v1470 = vsel %vm843, %v1453, 0
    %1472 = vmatpush.bf16.msra.mxu0 0
    %1473 = vmatpush.bf16.msra.mxu0 0
    %1474 = vmatpush.bf16.msra.mxu0 0
    %1475 = vmatpush.bf16.msra.mxu0 0
    %1476 = vmatpush.bf16.msra.mxu0 0
    %1477 = vmatpush.bf16.msra.mxu0 0
    %1478 = vmatpush.bf16.msra.mxu0 %v1466
    %1479 = vmatpush.bf16.msra.mxu0 %v1465
    %1480 = vmatmul.bf16.gmra.mxu0 %v1470
    %v1481 = vpop.f32.mrf.mxu0
    %v1482 = vadd.f32 %v1455, %v1481
    %v1483 = vpop.f32.mrf.mxu0
    %1484 = vdwg.mxu0
    %v1485 = vxor.u32 %v1482, 2147483648
    %v1486 = vmul.f32 %v1485, 1.442695
    %v1487 = vpow.pop %v1486
    %v1488 = vadd.f32 %v1487, 1.0
    %v1489 = vrcp.pop %v1488
    %v1490 = vmul.f32 %v1488, %v1489
    %v1491 = vsub.f32 1.0, %v1490
    %v1492 = vmul.f32 %v1489, %v1491
    %v1493 = vadd.f32 %v1489, %v1492
    %vm1494 = vweird.f32 %v1488
    %vm1495 = vweird.f32 %v1489
    %vm1496 = vmor %vm1494, %vm1495
    %v1497 = vsel %vm1496, %v1489, %v1493
    %v1498 = vand.u32 2147483647, %v1488
    %vm1499 = vcmp.eq.f32.partialorder %v1498, 8.507059e+37
    %v1500 = vand.u32 %v1488, 2147483648
    %v1501 = vor.u32 1.1754944e-38, %v1500
    %v1502 = vsel %vm1499, %v1501, %v1497
    %v1503 = vmul.f32 1.0, %v1502
    %v1504 = vmul.f32 %v1482, %v1503
    %v1505 = vld [vmem:[#allocation25] sm:$0xf]
    %v1506 = vld [vmem:[#allocation25 + $0x4] sm:$0xf]
    %v1507 = vld [vmem:[#allocation25 + $0x8] sm:$0xf]
    %v1508 = vld [vmem:[#allocation25 + $0xc] sm:$0xf]
    %v1509 = vld [vmem:[#allocation27] sm:$0x1]
    %v1510 = vpack.c.bf16 %v1504, %v1504
    %v1512 = vperm.slane %v1509, 0
    %v1518 = vunpack.c.l.b16 %v1505
    %v1519 = vunpack.c.l.b16 %v1506
    %v1520 = vunpack.c.l.b16 %v1507
    %v1521 = vunpack.c.l.b16 %v1508
    %v1522 = vpack.c.b16 %v1519, %v1518
    %v1523 = vpack.c.b16 %v1521, %v1520
    %v1527 = vsel %vm843, %v1510, 0
    %1529 = vmatpush.bf16.msra.mxu0 0
    %1530 = vmatpush.bf16.msra.mxu0 0
    %1531 = vmatpush.bf16.msra.mxu0 0
    %1532 = vmatpush.bf16.msra.mxu0 0
    %1533 = vmatpush.bf16.msra.mxu0 0
    %1534 = vmatpush.bf16.msra.mxu0 0
    %1535 = vmatpush.bf16.msra.mxu0 %v1523
    %1536 = vmatpush.bf16.msra.mxu0 %v1522
    %1537 = vmatmul.bf16.gmra.mxu0 %v1527
    %v1538 = vpop.f32.mrf.mxu0
    %v1539 = vadd.f32 %v1512, %v1538
    %v1540 = vpop.f32.mrf.mxu0
    %1541 = vdwg.mxu0
    %1543 = vrot.lane.b32.xlu0 %v1539, 32
    %v1544 = vpop.permute.xlu0 %1543
    %1547 = vrot.lane.b32.xlu0 %v1397, 64
    %v1548 = vpop.permute.xlu0 %1547
    %v1550 = vsel %vm843, %v1174, %v1544
    %vm1551 = vcmask 523264
    %v1552 = vsel %vm1551, %v1550, %v1548
    %v1553 = vxor.u32 %v1552, 2147483648
    %v1554 = vmul.f32 %v1553, 1.442695
    %v1555 = vpow.pop %v1554
    %v1556 = vadd.f32 %v1555, 1.0
    %v1557 = vrcp.pop %v1556
    %v1558 = vmul.f32 %v1556, %v1557
    %v1559 = vsub.f32 1.0, %v1558
    %v1560 = vmul.f32 %v1557, %v1559
    %v1561 = vadd.f32 %v1557, %v1560
    %vm1562 = vweird.f32 %v1556
    %vm1563 = vweird.f32 %v1557
    %vm1564 = vmor %vm1562, %vm1563
    %v1565 = vsel %vm1564, %v1557, %v1561
    %v1566 = vand.u32 2147483647, %v1556
    %vm1567 = vcmp.eq.f32.partialorder %v1566, 8.507059e+37
    %v1568 = vand.u32 %v1556, 2147483648
    %v1569 = vor.u32 1.1754944e-38, %v1568
    %v1570 = vsel %vm1567, %v1569, %v1565
    %v1571 = vmul.f32 1.0, %v1570
    %v1572 = vmul.f32 %v1552, %v1571
    %v1573 = vpack.c.bf16 %v1572, %v1572
    %v1574 = vld [vmem:[%s9] sm:$0x3]
    %v1575 = vsub.f32 1.0, %v1574
    %v1576 = vmul.f32 %v1575, -1e+09
    %v1578 = vrot.slane %v1576, 1
    %v1579 = vld [vmem:[%s11] sm:$0x3]
    %v1580 = vsub.f32 1.0, %v1579
    %v1581 = vmul.f32 %v1580, -1e+09
    %v1583 = vrot.slane %v1581, 1
    %v1584 = vld [vmem:[#allocation34] sm:$0x1]
    %v1585 = vld [vmem:[#allocation36] sm:$0x1]
    %v1586 = vld [vmem:[#allocation37] sm:$0x1]
    %v1587 = vld [vmem:[#allocation39] sm:$0xff]
    %v1588 = vld [vmem:[#allocation39 + $0x8] sm:$0xff]
    %v1589 = vld [vmem:[#allocation39 + $0x10] sm:$0xff]
    %v1590 = vld [vmem:[#allocation39 + $0x18] sm:$0xff]
    %v1591 = vld [vmem:[#allocation39 + $0x20] sm:$0xff]
    %v1592 = vld [vmem:[#allocation39 + $0x28] sm:$0xff]
    %v1593 = vld [vmem:[#allocation39 + $0x30] sm:$0xff]
    %v1594 = vld [vmem:[#allocation39 + $0x38] sm:$0xff]
    %v1595 = vld [vmem:[#allocation39 + $0x40] sm:$0xff]
    %v1596 = vld [vmem:[#allocation39 + $0x48] sm:$0xff]
    %v1597 = vld [vmem:[#allocation39 + $0x50] sm:$0xff]
    %v1598 = vld [vmem:[#allocation39 + $0x58] sm:$0xff]
    %v1599 = vld [vmem:[%s71] sm:$0x3]
    %v1600 = vld [vmem:[#allocation40] sm:$0xf]
    %v1601 = vld [vmem:[#allocation40 + $0x4] sm:$0xf]
    %v1602 = vld [vmem:[#allocation40 + $0x8] sm:$0xf]
    %v1603 = vld [vmem:[#allocation40 + $0xc] sm:$0xf]
    %v1604 = vld [vmem:[#allocation42] sm:$0x1]
    %v1605 = vld [vmem:[#allocation43] sm:$0xf]
    %v1606 = vld [vmem:[#allocation43 + $0x4] sm:$0xf]
    %v1607 = vld [vmem:[#allocation43 + $0x8] sm:$0xf]
    %v1608 = vld [vmem:[#allocation43 + $0xc] sm:$0xf]
    %v1609 = vld [vmem:[#allocation45] sm:$0x1]
    %v1610 = vld [vmem:[%s81] sm:$0xf]
    %v1611 = vld [vmem:[%s81 + $0x4] sm:$0xf]
    %v1612 = vld [vmem:[%s81 + $0x8] sm:$0xf]
    %v1613 = vld [vmem:[%s81 + $0xc] sm:$0xf]
    %v1614 = vld [vmem:[#allocation46] sm:$0x1]
    %v1615 = vld [vmem:[#allocation48] sm:$0xff]
    %v1616 = vld [vmem:[#allocation48 + $0x8] sm:$0xff]
    %v1617 = vld [vmem:[#allocation48 + $0x10] sm:$0xff]
    %v1618 = vld [vmem:[#allocation48 + $0x18] sm:$0xff]
    %v1619 = vld [vmem:[#allocation49] sm:$0xf]
    %v1620 = vld [vmem:[#allocation49 + $0x4] sm:$0xf]
    %v1621 = vld [vmem:[#allocation49 + $0x8] sm:$0xf]
    %v1622 = vld [vmem:[#allocation49 + $0xc] sm:$0xf]
    %v1623 = vld [vmem:[#allocation49 + $0x10] sm:$0xf]
    %v1624 = vld [vmem:[#allocation49 + $0x14] sm:$0xf]
    %v1625 = vld [vmem:[#allocation49 + $0x18] sm:$0xf]
    %v1626 = vld [vmem:[#allocation49 + $0x1c] sm:$0xf]
    %v1627 = vld [vmem:[#allocation49 + $0x20] sm:$0xf]
    %v1628 = vld [vmem:[#allocation49 + $0x24] sm:$0xf]
    %v1629 = vld [vmem:[#allocation49 + $0x28] sm:$0xf]
    %v1630 = vld [vmem:[#allocation49 + $0x2c] sm:$0xf]
    %v1631 = vld [vmem:[#allocation49 + $0x30] sm:$0xf]
    %v1632 = vld [vmem:[#allocation49 + $0x34] sm:$0xf]
    %v1633 = vld [vmem:[#allocation49 + $0x38] sm:$0xf]
    %v1634 = vld [vmem:[#allocation49 + $0x3c] sm:$0xf]
    %v1636 = vperm.slane %v1599, 0
    %v1637 = vperm.slane %v1599, 1
    %v1652 = vunpack.c.l.b16 %v1587
    %v1653 = vunpack.c.h.b16 %v1587
    %v1654 = vunpack.c.l.b16 %v1588
    %v1655 = vunpack.c.h.b16 %v1588
    %v1656 = vunpack.c.l.b16 %v1589
    %v1657 = vunpack.c.h.b16 %v1589
    %v1658 = vunpack.c.l.b16 %v1590
    %v1659 = vunpack.c.h.b16 %v1590
    %v1660 = vunpack.c.l.b16 %v1591
    %v1661 = vunpack.c.h.b16 %v1591
    %v1662 = vunpack.c.l.b16 %v1592
    %v1663 = vunpack.c.h.b16 %v1592
    %v1664 = vunpack.c.l.b16 %v1593
    %v1665 = vunpack.c.h.b16 %v1593
    %v1666 = vunpack.c.l.b16 %v1594
    %v1667 = vunpack.c.h.b16 %v1594
    %v1668 = vunpack.c.l.b16 %v1595
    %v1669 = vunpack.c.h.b16 %v1595
    %v1670 = vunpack.c.l.b16 %v1596
    %v1671 = vunpack.c.h.b16 %v1596
    %v1672 = vunpack.c.l.b16 %v1597
    %v1673 = vunpack.c.h.b16 %v1597
    %v1674 = vunpack.c.l.b16 %v1598
    %v1675 = vunpack.c.h.b16 %v1598
    %v1676 = vpack.c.b16 %v1654, %v1652
    %v1677 = vpack.c.b16 %v1655, %v1653
    %v1678 = vpack.c.b16 %v1658, %v1656
    %v1679 = vpack.c.b16 %v1659, %v1657
    %v1680 = vpack.c.b16 %v1662, %v1660
    %v1681 = vpack.c.b16 %v1663, %v1661
    %v1682 = vpack.c.b16 %v1666, %v1664
    %v1683 = vpack.c.b16 %v1667, %v1665
    %v1684 = vpack.c.b16 %v1670, %v1668
    %v1685 = vpack.c.b16 %v1671, %v1669
    %v1686 = vpack.c.b16 %v1674, %v1672
    %v1687 = vpack.c.b16 %v1675, %v1673
    %vm1700 = vcmask 785408
    %v1702 = vsel %vm1700, %v1573, 0
    %1704 = vmatpush.bf16.msra.mxu0 0
    %1705 = vmatpush.bf16.msra.mxu0 0
    %1706 = vmatpush.bf16.msra.mxu0 %v1686
    %1707 = vmatpush.bf16.msra.mxu0 %v1684
    %1708 = vmatpush.bf16.msra.mxu0 %v1682
    %1709 = vmatpush.bf16.msra.mxu0 %v1680
    %1710 = vmatpush.bf16.msra.mxu0 %v1678
    %1711 = vmatpush.bf16.msra.mxu0 %v1676
    %1712 = vmatmul.bf16.gmra.mxu0 %v1702
    %v1713 = vpop.f32.mrf.mxu0
    %v1714 = vadd.f32 %v1636, %v1713
    %v1715 = vpop.f32.mrf.mxu0
    %1716 = vdwg.mxu0
    %1717 = vmatpush.bf16.msra.mxu0 0
    %1718 = vmatpush.bf16.msra.mxu0 0
    %1719 = vmatpush.bf16.msra.mxu0 %v1687
    %1720 = vmatpush.bf16.msra.mxu0 %v1685
    %1721 = vmatpush.bf16.msra.mxu0 %v1683
    %1722 = vmatpush.bf16.msra.mxu0 %v1681
    %1723 = vmatpush.bf16.msra.mxu0 %v1679
    %1724 = vmatpush.bf16.msra.mxu0 %v1677
    %1725 = vmatmul.bf16.gmra.mxu0 %v1702
    %v1726 = vpop.f32.mrf.mxu0
    %v1727 = vadd.f32 %v1637, %v1726
    %v1728 = vpop.f32.mrf.mxu0
    %1729 = vdwg.mxu0
    %v1730 = vmul.f32 %v1149, %v1149
    %v1731 = vmul.f32 %v1150, %v1150
    %v1732 = vsel %vm843, %v1730, 0.0
    %1733 = vadd.xlane.f32.xlu0 %v1732
    %v1734 = vpop.xlane.xlu0 %1733
    %v1735 = vsel %vm843, %v1731, 0.0
    %1736 = vadd.xlane.f32.xlu0 %v1735
    %v1737 = vpop.xlane.xlu0 %1736
    %v1738 = vrcp.pop 32.0
    %v1739 = vmul.f32 32.0, %v1738
    %v1740 = vsub.f32 1.0, %v1739
    %v1741 = vmul.f32 %v1738, %v1740
    %v1742 = vadd.f32 %v1738, %v1741
    %vm1743 = vweird.f32 %v1738
    %v1744 = vsel %vm1743, %v1738, %v1742
    %v1745 = vmul.f32 %v1734, %v1744
    %v1746 = vmul.f32 %v1737, %v1744
    %v1747 = vadd.f32 %v1745, 1e-06
    %v1748 = vadd.f32 %v1746, 1e-06
    %v1749 = vrsqrt.pop %v1747
    %v1750 = vmul.f32 %v1749, %v1747
    %v1751 = vmul.f32 %v1750, %v1749
    %v1752 = vmul.f32 0.5, %v1751
    %v1753 = vsub.f32 1.5, %v1752
    %v1754 = vmul.f32 %v1749, %v1753
    %vm1755 = vweird.f32 %v1747
    %vm1756 = vweird.f32 %v1749
    %vm1757 = vmor %vm1755, %vm1756
    %v1758 = vsel %vm1757, %v1749, %v1754
    %v1759 = vrsqrt.pop %v1748
    %v1760 = vmul.f32 %v1759, %v1748
    %v1761 = vmul.f32 %v1760, %v1759
    %v1762 = vmul.f32 0.5, %v1761
    %v1763 = vsub.f32 1.5, %v1762
    %v1764 = vmul.f32 %v1759, %v1763
    %vm1765 = vweird.f32 %v1748
    %vm1766 = vweird.f32 %v1759
    %vm1767 = vmor %vm1765, %vm1766
    %v1768 = vsel %vm1767, %v1759, %v1764
    %v1769 = vmul.f32 %v1149, %v1758
    %v1770 = vmul.f32 %v1150, %v1768
    %v1772 = vperm.slane %v1584, 0
    %v1774 = vmul.f32 %v1769, %v1772
    %v1775 = vmul.f32 %v1770, %v1772
    %v1777 = vrot.slane %v1714, 1
    %v1779 = vadd.f32 %v1714, 1.0
    %v1780 = vadd.f32 %v1777, 1.0
    %v1783 = vperm.slane %v1779, 0
    %v1784 = vperm.slane %v1780, 0
    %1785 = vrot.lane.b32.xlu0 %v1783, 96
    %v1786 = vpop.permute.xlu0 %1785
    %1787 = vrot.lane.b32.xlu0 %v1784, 96
    %v1788 = vpop.permute.xlu0 %1787
    %v1791 = vmul.f32 %v1774, %v1786
    %v1792 = vmul.f32 %v1775, %v1788
    %v1793 = vperm.slane %v1714, 0
    %v1794 = vperm.slane %v1777, 0
    %v1797 = vadd.f32 %v1791, %v1793
    %v1798 = vadd.f32 %v1792, %v1794
    %v1799 = vpack.c.bf16 %v1798, %v1797
    %v1800 = vmul.f32 %v951, %v951
    %v1801 = vmul.f32 %v952, %v952
    %v1802 = vsel %vm843, %v1800, 0.0
    %1803 = vadd.xlane.f32.xlu0 %v1802
    %v1804 = vpop.xlane.xlu0 %1803
    %v1805 = vsel %vm843, %v1801, 0.0
    %1806 = vadd.xlane.f32.xlu0 %v1805
    %v1807 = vpop.xlane.xlu0 %1806
    %v1808 = vmul.f32 %v1804, %v1744
    %v1809 = vmul.f32 %v1807, %v1744
    %v1810 = vadd.f32 %v1808, 1e-06
    %v1811 = vadd.f32 %v1809, 1e-06
    %v1812 = vrsqrt.pop %v1810
    %v1813 = vmul.f32 %v1812, %v1810
    %v1814 = vmul.f32 %v1813, %v1812
    %v1815 = vmul.f32 0.5, %v1814
    %v1816 = vsub.f32 1.5, %v1815
    %v1817 = vmul.f32 %v1812, %v1816
    %vm1818 = vweird.f32 %v1810
    %vm1819 = vweird.f32 %v1812
    %vm1820 = vmor %vm1818, %vm1819
    %v1821 = vsel %vm1820, %v1812, %v1817
    %v1822 = vrsqrt.pop %v1811
    %v1823 = vmul.f32 %v1822, %v1811
    %v1824 = vmul.f32 %v1823, %v1822
    %v1825 = vmul.f32 0.5, %v1824
    %v1826 = vsub.f32 1.5, %v1825
    %v1827 = vmul.f32 %v1822, %v1826
    %vm1828 = vweird.f32 %v1811
    %vm1829 = vweird.f32 %v1822
    %vm1830 = vmor %vm1828, %vm1829
    %v1831 = vsel %vm1830, %v1822, %v1827
    %v1832 = vmul.f32 %v951, %v1821
    %v1833 = vmul.f32 %v952, %v1831
    %v1835 = vperm.slane %v1585, 0
    %v1837 = vmul.f32 %v1832, %v1835
    %v1838 = vmul.f32 %v1833, %v1835
    %v1839 = vpack.c.bf16 %v1838, %v1837
    %v1841 = vperm.slane %v1604, 0
    %v1847 = vunpack.c.l.b16 %v1600
    %v1848 = vunpack.c.l.b16 %v1601
    %v1849 = vunpack.c.l.b16 %v1602
    %v1850 = vunpack.c.l.b16 %v1603
    %v1851 = vpack.c.b16 %v1848, %v1847
    %v1852 = vpack.c.b16 %v1850, %v1849
    %v1856 = vsel %vm843, %v1799, 0
    %1858 = vmatpush.bf16.msra.mxu0 0
    %1859 = vmatpush.bf16.msra.mxu0 0
    %1860 = vmatpush.bf16.msra.mxu0 0
    %1861 = vmatpush.bf16.msra.mxu0 0
    %1862 = vmatpush.bf16.msra.mxu0 0
    %1863 = vmatpush.bf16.msra.mxu0 0
    %1864 = vmatpush.bf16.msra.mxu0 %v1852
    %1865 = vmatpush.bf16.msra.mxu0 %v1851
    %1866 = vmatmul.bf16.gmra.mxu0 %v1856
    %v1867 = vpop.f32.mrf.mxu0
    %v1868 = vadd.f32 %v1841, %v1867
    %v1869 = vpop.f32.mrf.mxu0
    %v1870 = vadd.f32 %v1841, %v1869
    %1871 = vdwg.mxu0
    %v1873 = vperm.slane %v1609, 0
    %v1879 = vunpack.c.l.b16 %v1605
    %v1880 = vunpack.c.l.b16 %v1606
    %v1881 = vunpack.c.l.b16 %v1607
    %v1882 = vunpack.c.l.b16 %v1608
    %v1883 = vpack.c.b16 %v1880, %v1879
    %v1884 = vpack.c.b16 %v1882, %v1881
    %v1888 = vsel %vm843, %v1839, 0
    %1890 = vmatpush.bf16.msra.mxu0 0
    %1891 = vmatpush.bf16.msra.mxu0 0
    %1892 = vmatpush.bf16.msra.mxu0 0
    %1893 = vmatpush.bf16.msra.mxu0 0
    %1894 = vmatpush.bf16.msra.mxu0 0
    %1895 = vmatpush.bf16.msra.mxu0 0
    %1896 = vmatpush.bf16.msra.mxu0 %v1884
    %1897 = vmatpush.bf16.msra.mxu0 %v1883
    %1898 = vmatmul.bf16.gmra.mxu0 %v1888
    %v1899 = vpop.f32.mrf.mxu0
    %v1900 = vadd.f32 %v1873, %v1899
    %v1901 = vpop.f32.mrf.mxu0
    %v1902 = vadd.f32 %v1873, %v1901
    %1903 = vdwg.mxu0
    %v1904 = vpack.c.bf16 %v1868, %v1868
    %v1905 = vpack.c.bf16 %v1870, %v1870
    %v1906 = vpack.c.bf16 %v1900, %v1900
    %v1907 = vpack.c.bf16 %v1902, %v1902
    %v1908 = vperm.slane %v1576, 0
    %v1909 = vperm.slane %v1578, 0
    %v1913 = vsel %vm760, %v1904, 0
    %v1916 = vsel %vm760, %v1906, 0
    %1918 = vmatpush.bf16.xpose.msra.mxu0 0
    %1919 = vmatpush.bf16.xpose.msra.mxu0 0
    %1920 = vmatpush.bf16.xpose.msra.mxu0 0
    %1921 = vmatpush.bf16.xpose.msra.mxu0 0
    %1922 = vmatpush.bf16.xpose.msra.mxu0 0
    %1923 = vmatpush.bf16.xpose.msra.mxu0 0
    %1924 = vmatpush.bf16.xpose.msra.mxu0 0
    %1925 = vmatpush.bf16.xpose.msra.mxu0 %v1916
    %1926 = vmatmul.bf16.gmra.mxu0 %v1913
    %v1927 = vpop.f32.mrf.mxu0
    %v1928 = vadd.f32 %v1908, %v1927
    %v1929 = vpop.f32.mrf.mxu0
    %1930 = vdwg.mxu0
    %v1932 = vsel %vm760, %v1905, 0
    %v1935 = vsel %vm760, %v1907, 0
    %1937 = vmatpush.bf16.xpose.msra.mxu0 0
    %1938 = vmatpush.bf16.xpose.msra.mxu0 0
    %1939 = vmatpush.bf16.xpose.msra.mxu0 0
    %1940 = vmatpush.bf16.xpose.msra.mxu0 0
    %1941 = vmatpush.bf16.xpose.msra.mxu0 0
    %1942 = vmatpush.bf16.xpose.msra.mxu0 0
    %1943 = vmatpush.bf16.xpose.msra.mxu0 0
    %1944 = vmatpush.bf16.xpose.msra.mxu0 %v1935
    %1945 = vmatmul.bf16.gmra.mxu0 %v1932
    %v1946 = vpop.f32.mrf.mxu0
    %v1947 = vadd.f32 %v1909, %v1946
    %v1948 = vpop.f32.mrf.mxu0
    %1949 = vdwg.mxu0
    %v1950 = vsel %vm760, %v1928, -inf
    %1951 = vmax.xlane.f32.xlu0 %v1950
    %v1952 = vpop.xlane.xlu0 %1951
    %v1953 = vsel %vm760, %v1947, -inf
    %1954 = vmax.xlane.f32.xlu0 %v1953
    %v1955 = vpop.xlane.xlu0 %1954
    %v1956 = vsub.f32 %v1928, %v1952
    %v1957 = vsub.f32 %v1947, %v1955
    %v1958 = vmul.f32 %v1956, 1.442695
    %v1959 = vpow.pop %v1958
    %v1960 = vmul.f32 %v1957, 1.442695
    %v1961 = vpow.pop %v1960
    %v1962 = vsel %vm760, %v1959, 0.0
    %1963 = vadd.xlane.f32.xlu0 %v1962
    %v1964 = vpop.xlane.xlu0 %1963
    %v1965 = vsel %vm760, %v1961, 0.0
    %1966 = vadd.xlane.f32.xlu0 %v1965
    %v1967 = vpop.xlane.xlu0 %1966
    %v1968 = vrcp.pop %v1964
    %v1969 = vmul.f32 %v1964, %v1968
    %v1970 = vsub.f32 1.0, %v1969
    %v1971 = vmul.f32 %v1968, %v1970
    %v1972 = vadd.f32 %v1968, %v1971
    %vm1973 = vweird.f32 %v1964
    %vm1974 = vweird.f32 %v1968
    %vm1975 = vmor %vm1973, %vm1974
    %v1976 = vsel %vm1975, %v1968, %v1972
    %v1977 = vand.u32 2147483647, %v1964
    %vm1978 = vcmp.eq.f32.partialorder %v1977, 8.507059e+37
    %v1979 = vand.u32 %v1964, 2147483648
    %v1980 = vor.u32 1.1754944e-38, %v1979
    %v1981 = vsel %vm1978, %v1980, %v1976
    %v1982 = vmul.f32 %v1959, %v1981
    %v1983 = vrcp.pop %v1967
    %v1984 = vmul.f32 %v1967, %v1983
    %v1985 = vsub.f32 1.0, %v1984
    %v1986 = vmul.f32 %v1983, %v1985
    %v1987 = vadd.f32 %v1983, %v1986
    %vm1988 = vweird.f32 %v1967
    %vm1989 = vweird.f32 %v1983
    %vm1990 = vmor %vm1988, %vm1989
    %v1991 = vsel %vm1990, %v1983, %v1987
    %v1992 = vand.u32 2147483647, %v1967
    %vm1993 = vcmp.eq.f32.partialorder %v1992, 8.507059e+37
    %v1994 = vand.u32 %v1967, 2147483648
    %v1995 = vor.u32 1.1754944e-38, %v1994
    %v1996 = vsel %vm1993, %v1995, %v1991
    %v1997 = vmul.f32 %v1961, %v1996
    %v1998 = vpack.c.bf16 %v1982, %v1982
    %v1999 = vpack.c.bf16 %v1997, %v1997
    %v2001 = vunpack.c.l.b16 %v1906
    %v2002 = vpack.c.b16 %v2001, %v2001
    %2003 = vrot.lane.b32.xlu0 %v2002, 96
    %v2004 = vpop.permute.xlu0 %2003
    %v2006 = vsel %vm760, %v1998, 0
    %v2009 = vsel %vm764, %v2004, 0
    %2011 = vmatpush.bf16.msra.mxu0 0
    %2012 = vmatpush.bf16.msra.mxu0 0
    %2013 = vmatpush.bf16.msra.mxu0 0
    %2014 = vmatpush.bf16.msra.mxu0 0
    %2015 = vmatpush.bf16.msra.mxu0 0
    %2016 = vmatpush.bf16.msra.mxu0 0
    %2017 = vmatpush.bf16.msra.mxu0 0
    %2018 = vmatpush.bf16.msra.mxu0 %v2009
    %2019 = vmatmul.bf16.gmra.mxu0 %v2006
    %v2020 = vpop.f32.mrf.mxu0
    %v2021 = vadd.f32 0.0, %v2020
    %v2022 = vpop.f32.mrf.mxu0
    %2023 = vdwg.mxu0
    %v2025 = vunpack.c.l.b16 %v1907
    %v2026 = vpack.c.b16 %v2025, %v2025
    %2027 = vrot.lane.b32.xlu0 %v2026, 96
    %v2028 = vpop.permute.xlu0 %2027
    %v2030 = vsel %vm760, %v1999, 0
    %v2033 = vsel %vm764, %v2028, 0
    %2035 = vmatpush.bf16.msra.mxu0 0
    %2036 = vmatpush.bf16.msra.mxu0 0
    %2037 = vmatpush.bf16.msra.mxu0 0
    %2038 = vmatpush.bf16.msra.mxu0 0
    %2039 = vmatpush.bf16.msra.mxu0 0
    %2040 = vmatpush.bf16.msra.mxu0 0
    %2041 = vmatpush.bf16.msra.mxu0 0
    %2042 = vmatpush.bf16.msra.mxu0 %v2033
    %2043 = vmatmul.bf16.gmra.mxu0 %v2030
    %v2044 = vpop.f32.mrf.mxu0
    %v2045 = vadd.f32 0.0, %v2044
    %v2046 = vpop.f32.mrf.mxu0
    %2047 = vdwg.mxu0
    %v2049 = vunpack.c.l.b16 %v1904
    %v2050 = vpack.c.b16 %v2049, %v2049
    %2051 = vrot.lane.b32.xlu0 %v2050, 120
    %v2052 = vpop.permute.xlu0 %2051
    %2053 = vrot.lane.b32.xlu0 %v2002, 120
    %v2054 = vpop.permute.xlu0 %2053
    %v2056 = vsel %vm760, %v2052, 0
    %v2059 = vsel %vm760, %v2054, 0
    %2061 = vmatpush.bf16.xpose.msra.mxu0 0
    %2062 = vmatpush.bf16.xpose.msra.mxu0 0
    %2063 = vmatpush.bf16.xpose.msra.mxu0 0
    %2064 = vmatpush.bf16.xpose.msra.mxu0 0
    %2065 = vmatpush.bf16.xpose.msra.mxu0 0
    %2066 = vmatpush.bf16.xpose.msra.mxu0 0
    %2067 = vmatpush.bf16.xpose.msra.mxu0 0
    %2068 = vmatpush.bf16.xpose.msra.mxu0 %v2059
    %2069 = vmatmul.bf16.gmra.mxu0 %v2056
    %v2070 = vpop.f32.mrf.mxu0
    %v2071 = vadd.f32 %v1908, %v2070
    %v2072 = vpop.f32.mrf.mxu0
    %2073 = vdwg.mxu0
    %v2075 = vunpack.c.l.b16 %v1905
    %v2076 = vpack.c.b16 %v2075, %v2075
    %2077 = vrot.lane.b32.xlu0 %v2076, 120
    %v2078 = vpop.permute.xlu0 %2077
    %2079 = vrot.lane.b32.xlu0 %v2026, 120
    %v2080 = vpop.permute.xlu0 %2079
    %v2082 = vsel %vm760, %v2078, 0
    %v2085 = vsel %vm760, %v2080, 0
    %2087 = vmatpush.bf16.xpose.msra.mxu0 0
    %2088 = vmatpush.bf16.xpose.msra.mxu0 0
    %2089 = vmatpush.bf16.xpose.msra.mxu0 0
    %2090 = vmatpush.bf16.xpose.msra.mxu0 0
    %2091 = vmatpush.bf16.xpose.msra.mxu0 0
    %2092 = vmatpush.bf16.xpose.msra.mxu0 0
    %2093 = vmatpush.bf16.xpose.msra.mxu0 0
    %2094 = vmatpush.bf16.xpose.msra.mxu0 %v2085
    %2095 = vmatmul.bf16.gmra.mxu0 %v2082
    %v2096 = vpop.f32.mrf.mxu0
    %v2097 = vadd.f32 %v1909, %v2096
    %v2098 = vpop.f32.mrf.mxu0
    %2099 = vdwg.mxu0
    %v2100 = vsel %vm760, %v2071, -inf
    %2101 = vmax.xlane.f32.xlu0 %v2100
    %v2102 = vpop.xlane.xlu0 %2101
    %v2103 = vsel %vm760, %v2097, -inf
    %2104 = vmax.xlane.f32.xlu0 %v2103
    %v2105 = vpop.xlane.xlu0 %2104
    %v2106 = vsub.f32 %v2071, %v2102
    %v2107 = vsub.f32 %v2097, %v2105
    %v2108 = vmul.f32 %v2106, 1.442695
    %v2109 = vpow.pop %v2108
    %v2110 = vmul.f32 %v2107, 1.442695
    %v2111 = vpow.pop %v2110
    %v2112 = vsel %vm760, %v2109, 0.0
    %2113 = vadd.xlane.f32.xlu0 %v2112
    %v2114 = vpop.xlane.xlu0 %2113
    %v2115 = vsel %vm760, %v2111, 0.0
    %2116 = vadd.xlane.f32.xlu0 %v2115
    %v2117 = vpop.xlane.xlu0 %2116
    %v2118 = vrcp.pop %v2114
    %v2119 = vmul.f32 %v2114, %v2118
    %v2120 = vsub.f32 1.0, %v2119
    %v2121 = vmul.f32 %v2118, %v2120
    %v2122 = vadd.f32 %v2118, %v2121
    %vm2123 = vweird.f32 %v2114
    %vm2124 = vweird.f32 %v2118
    %vm2125 = vmor %vm2123, %vm2124
    %v2126 = vsel %vm2125, %v2118, %v2122
    %v2127 = vand.u32 2147483647, %v2114
    %vm2128 = vcmp.eq.f32.partialorder %v2127, 8.507059e+37
    %v2129 = vand.u32 %v2114, 2147483648
    %v2130 = vor.u32 1.1754944e-38, %v2129
    %v2131 = vsel %vm2128, %v2130, %v2126
    %v2132 = vmul.f32 %v2109, %v2131
    %v2133 = vrcp.pop %v2117
    %v2134 = vmul.f32 %v2117, %v2133
    %v2135 = vsub.f32 1.0, %v2134
    %v2136 = vmul.f32 %v2133, %v2135
    %v2137 = vadd.f32 %v2133, %v2136
    %vm2138 = vweird.f32 %v2117
    %vm2139 = vweird.f32 %v2133
    %vm2140 = vmor %vm2138, %vm2139
    %v2141 = vsel %vm2140, %v2133, %v2137
    %v2142 = vand.u32 2147483647, %v2117
    %vm2143 = vcmp.eq.f32.partialorder %v2142, 8.507059e+37
    %v2144 = vand.u32 %v2117, 2147483648
    %v2145 = vor.u32 1.1754944e-38, %v2144
    %v2146 = vsel %vm2143, %v2145, %v2141
    %v2147 = vmul.f32 %v2111, %v2146
    %v2148 = vpack.c.bf16 %v2132, %v2132
    %v2149 = vpack.c.bf16 %v2147, %v2147
    %2150 = vrot.lane.b32.xlu0 %v2002, 88
    %v2151 = vpop.permute.xlu0 %2150
    %v2153 = vsel %vm760, %v2148, 0
    %v2156 = vsel %vm764, %v2151, 0
    %2158 = vmatpush.bf16.msra.mxu0 0
    %2159 = vmatpush.bf16.msra.mxu0 0
    %2160 = vmatpush.bf16.msra.mxu0 0
    %2161 = vmatpush.bf16.msra.mxu0 0
    %2162 = vmatpush.bf16.msra.mxu0 0
    %2163 = vmatpush.bf16.msra.mxu0 0
    %2164 = vmatpush.bf16.msra.mxu0 0
    %2165 = vmatpush.bf16.msra.mxu0 %v2156
    %2166 = vmatmul.bf16.gmra.mxu0 %v2153
    %v2167 = vpop.f32.mrf.mxu0
    %v2168 = vadd.f32 0.0, %v2167
    %v2169 = vpop.f32.mrf.mxu0
    %2170 = vdwg.mxu0
    %2171 = vrot.lane.b32.xlu0 %v2026, 88
    %v2172 = vpop.permute.xlu0 %2171
    %v2174 = vsel %vm760, %v2149, 0
    %v2177 = vsel %vm764, %v2172, 0
    %2179 = vmatpush.bf16.msra.mxu0 0
    %2180 = vmatpush.bf16.msra.mxu0 0
    %2181 = vmatpush.bf16.msra.mxu0 0
    %2182 = vmatpush.bf16.msra.mxu0 0
    %2183 = vmatpush.bf16.msra.mxu0 0
    %2184 = vmatpush.bf16.msra.mxu0 0
    %2185 = vmatpush.bf16.msra.mxu0 0
    %2186 = vmatpush.bf16.msra.mxu0 %v2177
    %2187 = vmatmul.bf16.gmra.mxu0 %v2174
    %v2188 = vpop.f32.mrf.mxu0
    %v2189 = vadd.f32 0.0, %v2188
    %v2190 = vpop.f32.mrf.mxu0
    %2191 = vdwg.mxu0
    %2192 = vrot.lane.b32.xlu0 %v2050, 112
    %v2193 = vpop.permute.xlu0 %2192
    %2194 = vrot.lane.b32.xlu0 %v2002, 112
    %v2195 = vpop.permute.xlu0 %2194
    %v2197 = vsel %vm760, %v2193, 0
    %v2200 = vsel %vm760, %v2195, 0
    %2202 = vmatpush.bf16.xpose.msra.mxu0 0
    %2203 = vmatpush.bf16.xpose.msra.mxu0 0
    %2204 = vmatpush.bf16.xpose.msra.mxu0 0
    %2205 = vmatpush.bf16.xpose.msra.mxu0 0
    %2206 = vmatpush.bf16.xpose.msra.mxu0 0
    %2207 = vmatpush.bf16.xpose.msra.mxu0 0
    %2208 = vmatpush.bf16.xpose.msra.mxu0 0
    %2209 = vmatpush.bf16.xpose.msra.mxu0 %v2200
    %2210 = vmatmul.bf16.gmra.mxu0 %v2197
    %v2211 = vpop.f32.mrf.mxu0
    %v2212 = vadd.f32 %v1908, %v2211
    %v2213 = vpop.f32.mrf.mxu0
    %2214 = vdwg.mxu0
    %2215 = vrot.lane.b32.xlu0 %v2076, 112
    %v2216 = vpop.permute.xlu0 %2215
    %2217 = vrot.lane.b32.xlu0 %v2026, 112
    %v2218 = vpop.permute.xlu0 %2217
    %v2220 = vsel %vm760, %v2216, 0
    %v2223 = vsel %vm760, %v2218, 0
    %2225 = vmatpush.bf16.xpose.msra.mxu0 0
    %2226 = vmatpush.bf16.xpose.msra.mxu0 0
    %2227 = vmatpush.bf16.xpose.msra.mxu0 0
    %2228 = vmatpush.bf16.xpose.msra.mxu0 0
    %2229 = vmatpush.bf16.xpose.msra.mxu0 0
    %2230 = vmatpush.bf16.xpose.msra.mxu0 0
    %2231 = vmatpush.bf16.xpose.msra.mxu0 0
    %2232 = vmatpush.bf16.xpose.msra.mxu0 %v2223
    %2233 = vmatmul.bf16.gmra.mxu0 %v2220
    %v2234 = vpop.f32.mrf.mxu0
    %v2235 = vadd.f32 %v1909, %v2234
    %v2236 = vpop.f32.mrf.mxu0
    %2237 = vdwg.mxu0
    %v2238 = vsel %vm760, %v2212, -inf
    %2239 = vmax.xlane.f32.xlu0 %v2238
    %v2240 = vpop.xlane.xlu0 %2239
    %v2241 = vsel %vm760, %v2235, -inf
    %2242 = vmax.xlane.f32.xlu0 %v2241
    %v2243 = vpop.xlane.xlu0 %2242
    %v2244 = vsub.f32 %v2212, %v2240
    %v2245 = vsub.f32 %v2235, %v2243
    %v2246 = vmul.f32 %v2244, 1.442695
    %v2247 = vpow.pop %v2246
    %v2248 = vmul.f32 %v2245, 1.442695
    %v2249 = vpow.pop %v2248
    %v2250 = vsel %vm760, %v2247, 0.0
    %2251 = vadd.xlane.f32.xlu0 %v2250
    %v2252 = vpop.xlane.xlu0 %2251
    %v2253 = vsel %vm760, %v2249, 0.0
    %2254 = vadd.xlane.f32.xlu0 %v2253
    %v2255 = vpop.xlane.xlu0 %2254
    %v2256 = vrcp.pop %v2252
    %v2257 = vmul.f32 %v2252, %v2256
    %v2258 = vsub.f32 1.0, %v2257
    %v2259 = vmul.f32 %v2256, %v2258
    %v2260 = vadd.f32 %v2256, %v2259
    %vm2261 = vweird.f32 %v2252
    %vm2262 = vweird.f32 %v2256
    %vm2263 = vmor %vm2261, %vm2262
    %v2264 = vsel %vm2263, %v2256, %v2260
    %v2265 = vand.u32 2147483647, %v2252
    %vm2266 = vcmp.eq.f32.partialorder %v2265, 8.507059e+37
    %v2267 = vand.u32 %v2252, 2147483648
    %v2268 = vor.u32 1.1754944e-38, %v2267
    %v2269 = vsel %vm2266, %v2268, %v2264
    %v2270 = vmul.f32 %v2247, %v2269
    %v2271 = vrcp.pop %v2255
    %v2272 = vmul.f32 %v2255, %v2271
    %v2273 = vsub.f32 1.0, %v2272
    %v2274 = vmul.f32 %v2271, %v2273
    %v2275 = vadd.f32 %v2271, %v2274
    %vm2276 = vweird.f32 %v2255
    %vm2277 = vweird.f32 %v2271
    %vm2278 = vmor %vm2276, %vm2277
    %v2279 = vsel %vm2278, %v2271, %v2275
    %v2280 = vand.u32 2147483647, %v2255
    %vm2281 = vcmp.eq.f32.partialorder %v2280, 8.507059e+37
    %v2282 = vand.u32 %v2255, 2147483648
    %v2283 = vor.u32 1.1754944e-38, %v2282
    %v2284 = vsel %vm2281, %v2283, %v2279
    %v2285 = vmul.f32 %v2249, %v2284
    %v2286 = vpack.c.bf16 %v2270, %v2270
    %v2287 = vpack.c.bf16 %v2285, %v2285
    %2288 = vrot.lane.b32.xlu0 %v2002, 80
    %v2289 = vpop.permute.xlu0 %2288
    %v2291 = vsel %vm760, %v2286, 0
    %v2294 = vsel %vm764, %v2289, 0
    %2296 = vmatpush.bf16.msra.mxu0 0
    %2297 = vmatpush.bf16.msra.mxu0 0
    %2298 = vmatpush.bf16.msra.mxu0 0
    %2299 = vmatpush.bf16.msra.mxu0 0
    %2300 = vmatpush.bf16.msra.mxu0 0
    %2301 = vmatpush.bf16.msra.mxu0 0
    %2302 = vmatpush.bf16.msra.mxu0 0
    %2303 = vmatpush.bf16.msra.mxu0 %v2294
    %2304 = vmatmul.bf16.gmra.mxu0 %v2291
    %v2305 = vpop.f32.mrf.mxu0
    %v2306 = vadd.f32 0.0, %v2305
    %v2307 = vpop.f32.mrf.mxu0
    %2308 = vdwg.mxu0
    %2309 = vrot.lane.b32.xlu0 %v2026, 80
    %v2310 = vpop.permute.xlu0 %2309
    %v2312 = vsel %vm760, %v2287, 0
    %v2315 = vsel %vm764, %v2310, 0
    %2317 = vmatpush.bf16.msra.mxu0 0
    %2318 = vmatpush.bf16.msra.mxu0 0
    %2319 = vmatpush.bf16.msra.mxu0 0
    %2320 = vmatpush.bf16.msra.mxu0 0
    %2321 = vmatpush.bf16.msra.mxu0 0
    %2322 = vmatpush.bf16.msra.mxu0 0
    %2323 = vmatpush.bf16.msra.mxu0 0
    %2324 = vmatpush.bf16.msra.mxu0 %v2315
    %2325 = vmatmul.bf16.gmra.mxu0 %v2312
    %v2326 = vpop.f32.mrf.mxu0
    %v2327 = vadd.f32 0.0, %v2326
    %v2328 = vpop.f32.mrf.mxu0
    %2329 = vdwg.mxu0
    %2330 = vrot.lane.b32.xlu0 %v2050, 104
    %v2331 = vpop.permute.xlu0 %2330
    %2332 = vrot.lane.b32.xlu0 %v2002, 104
    %v2333 = vpop.permute.xlu0 %2332
    %v2335 = vsel %vm760, %v2331, 0
    %v2338 = vsel %vm760, %v2333, 0
    %2340 = vmatpush.bf16.xpose.msra.mxu0 0
    %2341 = vmatpush.bf16.xpose.msra.mxu0 0
    %2342 = vmatpush.bf16.xpose.msra.mxu0 0
    %2343 = vmatpush.bf16.xpose.msra.mxu0 0
    %2344 = vmatpush.bf16.xpose.msra.mxu0 0
    %2345 = vmatpush.bf16.xpose.msra.mxu0 0
    %2346 = vmatpush.bf16.xpose.msra.mxu0 0
    %2347 = vmatpush.bf16.xpose.msra.mxu0 %v2338
    %2348 = vmatmul.bf16.gmra.mxu0 %v2335
    %v2349 = vpop.f32.mrf.mxu0
    %v2350 = vadd.f32 %v1908, %v2349
    %v2351 = vpop.f32.mrf.mxu0
    %2352 = vdwg.mxu0
    %2353 = vrot.lane.b32.xlu0 %v2076, 104
    %v2354 = vpop.permute.xlu0 %2353
    %2355 = vrot.lane.b32.xlu0 %v2026, 104
    %v2356 = vpop.permute.xlu0 %2355
    %v2358 = vsel %vm760, %v2354, 0
    %v2361 = vsel %vm760, %v2356, 0
    %2363 = vmatpush.bf16.xpose.msra.mxu0 0
    %2364 = vmatpush.bf16.xpose.msra.mxu0 0
    %2365 = vmatpush.bf16.xpose.msra.mxu0 0
    %2366 = vmatpush.bf16.xpose.msra.mxu0 0
    %2367 = vmatpush.bf16.xpose.msra.mxu0 0
    %2368 = vmatpush.bf16.xpose.msra.mxu0 0
    %2369 = vmatpush.bf16.xpose.msra.mxu0 0
    %2370 = vmatpush.bf16.xpose.msra.mxu0 %v2361
    %2371 = vmatmul.bf16.gmra.mxu0 %v2358
    %v2372 = vpop.f32.mrf.mxu0
    %v2373 = vadd.f32 %v1909, %v2372
    %v2374 = vpop.f32.mrf.mxu0
    %2375 = vdwg.mxu0
    %v2376 = vsel %vm760, %v2350, -inf
    %2377 = vmax.xlane.f32.xlu0 %v2376
    %v2378 = vpop.xlane.xlu0 %2377
    %v2379 = vsel %vm760, %v2373, -inf
    %2380 = vmax.xlane.f32.xlu0 %v2379
    %v2381 = vpop.xlane.xlu0 %2380
    %v2382 = vsub.f32 %v2350, %v2378
    %v2383 = vsub.f32 %v2373, %v2381
    %v2384 = vmul.f32 %v2382, 1.442695
    %v2385 = vpow.pop %v2384
    %v2386 = vmul.f32 %v2383, 1.442695
    %v2387 = vpow.pop %v2386
    %v2388 = vsel %vm760, %v2385, 0.0
    %2389 = vadd.xlane.f32.xlu0 %v2388
    %v2390 = vpop.xlane.xlu0 %2389
    %v2391 = vsel %vm760, %v2387, 0.0
    %2392 = vadd.xlane.f32.xlu0 %v2391
    %v2393 = vpop.xlane.xlu0 %2392
    %v2394 = vrcp.pop %v2390
    %v2395 = vmul.f32 %v2390, %v2394
    %v2396 = vsub.f32 1.0, %v2395
    %v2397 = vmul.f32 %v2394, %v2396
    %v2398 = vadd.f32 %v2394, %v2397
    %vm2399 = vweird.f32 %v2390
    %vm2400 = vweird.f32 %v2394
    %vm2401 = vmor %vm2399, %vm2400
    %v2402 = vsel %vm2401, %v2394, %v2398
    %v2403 = vand.u32 2147483647, %v2390
    %vm2404 = vcmp.eq.f32.partialorder %v2403, 8.507059e+37
    %v2405 = vand.u32 %v2390, 2147483648
    %v2406 = vor.u32 1.1754944e-38, %v2405
    %v2407 = vsel %vm2404, %v2406, %v2402
    %v2408 = vmul.f32 %v2385, %v2407
    %v2409 = vrcp.pop %v2393
    %v2410 = vmul.f32 %v2393, %v2409
    %v2411 = vsub.f32 1.0, %v2410
    %v2412 = vmul.f32 %v2409, %v2411
    %v2413 = vadd.f32 %v2409, %v2412
    %vm2414 = vweird.f32 %v2393
    %vm2415 = vweird.f32 %v2409
    %vm2416 = vmor %vm2414, %vm2415
    %v2417 = vsel %vm2416, %v2409, %v2413
    %v2418 = vand.u32 2147483647, %v2393
    %vm2419 = vcmp.eq.f32.partialorder %v2418, 8.507059e+37
    %v2420 = vand.u32 %v2393, 2147483648
    %v2421 = vor.u32 1.1754944e-38, %v2420
    %v2422 = vsel %vm2419, %v2421, %v2417
    %v2423 = vmul.f32 %v2387, %v2422
    %v2424 = vpack.c.bf16 %v2408, %v2408
    %v2425 = vpack.c.bf16 %v2423, %v2423
    %2426 = vrot.lane.b32.xlu0 %v2002, 72
    %v2427 = vpop.permute.xlu0 %2426
    %v2429 = vsel %vm760, %v2424, 0
    %v2432 = vsel %vm764, %v2427, 0
    %2434 = vmatpush.bf16.msra.mxu0 0
    %2435 = vmatpush.bf16.msra.mxu0 0
    %2436 = vmatpush.bf16.msra.mxu0 0
    %2437 = vmatpush.bf16.msra.mxu0 0
    %2438 = vmatpush.bf16.msra.mxu0 0
    %2439 = vmatpush.bf16.msra.mxu0 0
    %2440 = vmatpush.bf16.msra.mxu0 0
    %2441 = vmatpush.bf16.msra.mxu0 %v2432
    %2442 = vmatmul.bf16.gmra.mxu0 %v2429
    %v2443 = vpop.f32.mrf.mxu0
    %v2444 = vadd.f32 0.0, %v2443
    %v2445 = vpop.f32.mrf.mxu0
    %2446 = vdwg.mxu0
    %2447 = vrot.lane.b32.xlu0 %v2026, 72
    %v2448 = vpop.permute.xlu0 %2447
    %v2450 = vsel %vm760, %v2425, 0
    %v2453 = vsel %vm764, %v2448, 0
    %2455 = vmatpush.bf16.msra.mxu0 0
    %2456 = vmatpush.bf16.msra.mxu0 0
    %2457 = vmatpush.bf16.msra.mxu0 0
    %2458 = vmatpush.bf16.msra.mxu0 0
    %2459 = vmatpush.bf16.msra.mxu0 0
    %2460 = vmatpush.bf16.msra.mxu0 0
    %2461 = vmatpush.bf16.msra.mxu0 0
    %2462 = vmatpush.bf16.msra.mxu0 %v2453
    %2463 = vmatmul.bf16.gmra.mxu0 %v2450
    %v2464 = vpop.f32.mrf.mxu0
    %v2465 = vadd.f32 0.0, %v2464
    %v2466 = vpop.f32.mrf.mxu0
    %2467 = vdwg.mxu0
    %2470 = vrot.lane.b32.xlu0 %v2168, 8
    %v2471 = vpop.permute.xlu0 %2470
    %2472 = vrot.lane.b32.xlu0 %v2189, 8
    %v2473 = vpop.permute.xlu0 %2472
    %2478 = vrot.lane.b32.xlu0 %v2306, 16
    %v2479 = vpop.permute.xlu0 %2478
    %2480 = vrot.lane.b32.xlu0 %v2327, 16
    %v2481 = vpop.permute.xlu0 %2480
    %2486 = vrot.lane.b32.xlu0 %v2444, 24
    %v2487 = vpop.permute.xlu0 %2486
    %2488 = vrot.lane.b32.xlu0 %v2465, 24
    %v2489 = vpop.permute.xlu0 %2488
    %v2492 = vsel %vm760, %v2021, %v2471
    %v2493 = vsel %vm760, %v2045, %v2473
    %v2494 = vsel %vm1152, %v2492, %v2479
    %v2495 = vsel %vm1152, %v2493, %v2481
    %vm2496 = vcmask 195584
    %v2497 = vsel %vm2496, %v2494, %v2487
    %v2498 = vsel %vm2496, %v2495, %v2489
    %v2499 = vpack.c.bf16 %v2498, %v2497
    %v2501 = vperm.slane %v1614, 0
    %v2507 = vunpack.c.l.b16 %v1610
    %v2508 = vunpack.c.l.b16 %v1611
    %v2509 = vunpack.c.l.b16 %v1612
    %v2510 = vunpack.c.l.b16 %v1613
    %v2511 = vpack.c.b16 %v2508, %v2507
    %v2512 = vpack.c.b16 %v2510, %v2509
    %v2516 = vsel %vm843, %v2499, 0
    %2518 = vmatpush.bf16.msra.mxu0 0
    %2519 = vmatpush.bf16.msra.mxu0 0
    %2520 = vmatpush.bf16.msra.mxu0 0
    %2521 = vmatpush.bf16.msra.mxu0 0
    %2522 = vmatpush.bf16.msra.mxu0 0
    %2523 = vmatpush.bf16.msra.mxu0 0
    %2524 = vmatpush.bf16.msra.mxu0 %v2512
    %2525 = vmatpush.bf16.msra.mxu0 %v2511
    %2526 = vmatmul.bf16.gmra.mxu0 %v2516
    %v2527 = vpop.f32.mrf.mxu0
    %v2528 = vadd.f32 %v2501, %v2527
    %v2529 = vpop.f32.mrf.mxu0
    %v2530 = vadd.f32 %v2501, %v2529
    %2531 = vdwg.mxu0
    %2534 = vrot.lane.b32.xlu0 %v2528, 64
    %v2535 = vpop.permute.xlu0 %2534
    %2536 = vrot.lane.b32.xlu0 %v2530, 64
    %v2537 = vpop.permute.xlu0 %2536
    %v2540 = vmul.f32 %v1793, %v2535
    %v2541 = vmul.f32 %v1794, %v2537
    %2544 = vrot.lane.b32.xlu0 %v2540, 64
    %v2545 = vpop.permute.xlu0 %2544
    %2546 = vrot.lane.b32.xlu0 %v2541, 64
    %v2547 = vpop.permute.xlu0 %2546
    %v2550 = vadd.f32 %v1149, %v2545
    %v2551 = vadd.f32 %v1150, %v2547
    %v2552 = vmul.f32 %v2550, %v2550
    %v2553 = vmul.f32 %v2551, %v2551
    %v2554 = vsel %vm843, %v2552, 0.0
    %2555 = vadd.xlane.f32.xlu0 %v2554
    %v2556 = vpop.xlane.xlu0 %2555
    %v2557 = vsel %vm843, %v2553, 0.0
    %2558 = vadd.xlane.f32.xlu0 %v2557
    %v2559 = vpop.xlane.xlu0 %2558
    %v2560 = vmul.f32 %v2556, %v1744
    %v2561 = vmul.f32 %v2559, %v1744
    %v2562 = vadd.f32 %v2560, 1e-06
    %v2563 = vadd.f32 %v2561, 1e-06
    %v2564 = vrsqrt.pop %v2562
    %v2565 = vmul.f32 %v2564, %v2562
    %v2566 = vmul.f32 %v2565, %v2564
    %v2567 = vmul.f32 0.5, %v2566
    %v2568 = vsub.f32 1.5, %v2567
    %v2569 = vmul.f32 %v2564, %v2568
    %vm2570 = vweird.f32 %v2562
    %vm2571 = vweird.f32 %v2564
    %vm2572 = vmor %vm2570, %vm2571
    %v2573 = vsel %vm2572, %v2564, %v2569
    %v2574 = vrsqrt.pop %v2563
    %v2575 = vmul.f32 %v2574, %v2563
    %v2576 = vmul.f32 %v2575, %v2574
    %v2577 = vmul.f32 0.5, %v2576
    %v2578 = vsub.f32 1.5, %v2577
    %v2579 = vmul.f32 %v2574, %v2578
    %vm2580 = vweird.f32 %v2563
    %vm2581 = vweird.f32 %v2574
    %vm2582 = vmor %vm2580, %vm2581
    %v2583 = vsel %vm2582, %v2574, %v2579
    %v2584 = vmul.f32 %v2550, %v2573
    %v2585 = vmul.f32 %v2551, %v2583
    %v2587 = vperm.slane %v1586, 0
    %v2589 = vmul.f32 %v2584, %v2587
    %v2590 = vmul.f32 %v2585, %v2587
    %v2592 = vrot.slane %v1727, 1
    %v2594 = vadd.f32 %v1727, 1.0
    %v2595 = vadd.f32 %v2592, 1.0
    %v2598 = vperm.slane %v2594, 0
    %v2599 = vperm.slane %v2595, 0
    %v2602 = vmul.f32 %v2589, %v2598
    %v2603 = vmul.f32 %v2590, %v2599
    %2604 = vrot.lane.b32.xlu0 %v1793, 32
    %v2605 = vpop.permute.xlu0 %2604
    %2606 = vrot.lane.b32.xlu0 %v1794, 32
    %v2607 = vpop.permute.xlu0 %2606
    %v2610 = vadd.f32 %v2602, %v2605
    %v2611 = vadd.f32 %v2603, %v2607
    %v2612 = vpack.c.bf16 %v2611, %v2610
    %v2617 = vunpack.c.l.b16 %v1615
    %v2618 = vunpack.c.h.b16 %v1615
    %v2619 = vunpack.c.l.b16 %v1616
    %v2620 = vunpack.c.h.b16 %v1616
    %v2621 = vunpack.c.l.b16 %v1617
    %v2622 = vunpack.c.h.b16 %v1617
    %v2623 = vunpack.c.l.b16 %v1618
    %v2624 = vunpack.c.h.b16 %v1618
    %v2625 = vpack.c.b16 %v2619, %v2617
    %v2626 = vpack.c.b16 %v2620, %v2618
    %v2627 = vpack.c.b16 %v2623, %v2621
    %v2628 = vpack.c.b16 %v2624, %v2622
    %v2634 = vsel %vm843, %v2612, 0
    %2636 = vmatpush.bf16.msra.mxu0 0
    %2637 = vmatpush.bf16.msra.mxu0 0
    %2638 = vmatpush.bf16.msra.mxu0 0
    %2639 = vmatpush.bf16.msra.mxu0 0
    %2640 = vmatpush.bf16.msra.mxu0 0
    %2641 = vmatpush.bf16.msra.mxu0 0
    %2642 = vmatpush.bf16.msra.mxu0 %v2627
    %2643 = vmatpush.bf16.msra.mxu0 %v2625
    %2644 = vmatmul.bf16.gmra.mxu0 %v2634
    %v2645 = vpop.f32.mrf.mxu0
    %v2646 = vadd.f32 0.0, %v2645
    %v2647 = vpop.f32.mrf.mxu0
    %v2648 = vadd.f32 0.0, %v2647
    %2649 = vdwg.mxu0
    %2650 = vmatpush.bf16.msra.mxu0 0
    %2651 = vmatpush.bf16.msra.mxu0 0
    %2652 = vmatpush.bf16.msra.mxu0 0
    %2653 = vmatpush.bf16.msra.mxu0 0
    %2654 = vmatpush.bf16.msra.mxu0 0
    %2655 = vmatpush.bf16.msra.mxu0 0
    %2656 = vmatpush.bf16.msra.mxu0 %v2628
    %2657 = vmatpush.bf16.msra.mxu0 %v2626
    %2658 = vmatmul.bf16.gmra.mxu0 %v2634
    %v2659 = vpop.f32.mrf.mxu0
    %v2660 = vadd.f32 0.0, %v2659
    %v2661 = vpop.f32.mrf.mxu0
    %v2662 = vadd.f32 0.0, %v2661
    %2663 = vdwg.mxu0
    %v2664 = vxor.u32 %v2646, 2147483648
    %v2665 = vxor.u32 %v2648, 2147483648
    %v2666 = vmul.f32 %v2664, 1.442695
    %v2667 = vpow.pop %v2666
    %v2668 = vmul.f32 %v2665, 1.442695
    %v2669 = vpow.pop %v2668
    %v2670 = vadd.f32 %v2667, 1.0
    %v2671 = vadd.f32 %v2669, 1.0
    %v2672 = vrcp.pop %v2670
    %v2673 = vmul.f32 %v2670, %v2672
    %v2674 = vsub.f32 1.0, %v2673
    %v2675 = vmul.f32 %v2672, %v2674
    %v2676 = vadd.f32 %v2672, %v2675
    %vm2677 = vweird.f32 %v2670
    %vm2678 = vweird.f32 %v2672
    %vm2679 = vmor %vm2677, %vm2678
    %v2680 = vsel %vm2679, %v2672, %v2676
    %v2681 = vand.u32 2147483647, %v2670
    %vm2682 = vcmp.eq.f32.partialorder %v2681, 8.507059e+37
    %v2683 = vand.u32 %v2670, 2147483648
    %v2684 = vor.u32 1.1754944e-38, %v2683
    %v2685 = vsel %vm2682, %v2684, %v2680
    %v2686 = vmul.f32 1.0, %v2685
    %v2687 = vrcp.pop %v2671
    %v2688 = vmul.f32 %v2671, %v2687
    %v2689 = vsub.f32 1.0, %v2688
    %v2690 = vmul.f32 %v2687, %v2689
    %v2691 = vadd.f32 %v2687, %v2690
    %vm2692 = vweird.f32 %v2671
    %vm2693 = vweird.f32 %v2687
    %vm2694 = vmor %vm2692, %vm2693
    %v2695 = vsel %vm2694, %v2687, %v2691
    %v2696 = vand.u32 2147483647, %v2671
    %vm2697 = vcmp.eq.f32.partialorder %v2696, 8.507059e+37
    %v2698 = vand.u32 %v2671, 2147483648
    %v2699 = vor.u32 1.1754944e-38, %v2698
    %v2700 = vsel %vm2697, %v2699, %v2695
    %v2701 = vmul.f32 1.0, %v2700
    %v2702 = vmul.f32 %v2646, %v2686
    %v2703 = vmul.f32 %v2648, %v2701
    %v2704 = vmul.f32 %v2702, %v2660
    %v2705 = vmul.f32 %v2703, %v2662
    %v2706 = vpack.c.bf16 %v2705, %v2704
    %v2723 = vunpack.c.l.b16 %v1619
    %v2724 = vunpack.c.l.b16 %v1620
    %v2725 = vunpack.c.l.b16 %v1621
    %v2726 = vunpack.c.l.b16 %v1622
    %v2727 = vunpack.c.l.b16 %v1623
    %v2728 = vunpack.c.l.b16 %v1624
    %v2729 = vunpack.c.l.b16 %v1625
    %v2730 = vunpack.c.l.b16 %v1626
    %v2731 = vunpack.c.l.b16 %v1627
    %v2732 = vunpack.c.l.b16 %v1628
    %v2733 = vunpack.c.l.b16 %v1629
    %v2734 = vunpack.c.l.b16 %v1630
    %v2735 = vunpack.c.l.b16 %v1631
    %v2736 = vunpack.c.l.b16 %v1632
    %v2737 = vunpack.c.l.b16 %v1633
    %v2738 = vunpack.c.l.b16 %v1634
    %v2739 = vpack.c.b16 %v2724, %v2723
    %v2740 = vpack.c.b16 %v2726, %v2725
    %v2741 = vpack.c.b16 %v2728, %v2727
    %v2742 = vpack.c.b16 %v2730, %v2729
    %v2743 = vpack.c.b16 %v2732, %v2731
    %v2744 = vpack.c.b16 %v2734, %v2733
    %v2745 = vpack.c.b16 %v2736, %v2735
    %v2746 = vpack.c.b16 %v2738, %v2737
    %2755 = vmatpush.bf16.msra.mxu0 %v2746
    %2756 = vmatpush.bf16.msra.mxu0 %v2745
    %2757 = vmatpush.bf16.msra.mxu0 %v2744
    %2758 = vmatpush.bf16.msra.mxu0 %v2743
    %2759 = vmatpush.bf16.msra.mxu0 %v2742
    %2760 = vmatpush.bf16.msra.mxu0 %v2741
    %2761 = vmatpush.bf16.msra.mxu0 %v2740
    %2762 = vmatpush.bf16.msra.mxu0 %v2739
    %2763 = vmatmul.bf16.gmra.mxu0 %v2706
    %v2764 = vpop.f32.mrf.mxu0
    %v2765 = vadd.f32 0.0, %v2764
    %v2766 = vpop.f32.mrf.mxu0
    %v2767 = vadd.f32 0.0, %v2766
    %2768 = vdwg.mxu0
    %v2769 = vperm.slane %v1727, 0
    %v2770 = vperm.slane %v2592, 0
    %2775 = vrot.lane.b32.xlu0 %v2765, 32
    %v2776 = vpop.permute.xlu0 %2775
    %2777 = vrot.lane.b32.xlu0 %v2767, 32
    %v2778 = vpop.permute.xlu0 %2777
    %v2781 = vmul.f32 %v2769, %v2776
    %v2782 = vmul.f32 %v2770, %v2778
    %2785 = vrot.lane.b32.xlu0 %v2781, 96
    %v2786 = vpop.permute.xlu0 %2785
    %2787 = vrot.lane.b32.xlu0 %v2782, 96
    %v2788 = vpop.permute.xlu0 %2787
    %v2791 = vadd.f32 %v2550, %v2786
    %v2792 = vadd.f32 %v2551, %v2788
    %s2793 = scalar_lea.vmem [#allocation34], 1
    %v2794 = vld [vmem:[%s2793] sm:$0x1]
    %s2795 = scalar_lea.vmem [#allocation36], 1
    %v2796 = vld [vmem:[%s2795] sm:$0x1]
    %s2797 = scalar_lea.vmem [#allocation37], 1
    %v2798 = vld [vmem:[%s2797] sm:$0x1]
    %s2799 = scalar_lea.vmem [#allocation39], 96
    %v2800 = vld [vmem:[%s2799] sm:$0xff]
    %v2801 = vld [vmem:[%s2799 + $0x8] sm:$0xff]
    %v2802 = vld [vmem:[%s2799 + $0x10] sm:$0xff]
    %v2803 = vld [vmem:[%s2799 + $0x18] sm:$0xff]
    %v2804 = vld [vmem:[%s2799 + $0x20] sm:$0xff]
    %v2805 = vld [vmem:[%s2799 + $0x28] sm:$0xff]
    %v2806 = vld [vmem:[%s2799 + $0x30] sm:$0xff]
    %v2807 = vld [vmem:[%s2799 + $0x38] sm:$0xff]
    %v2808 = vld [vmem:[%s2799 + $0x40] sm:$0xff]
    %v2809 = vld [vmem:[%s2799 + $0x48] sm:$0xff]
    %v2810 = vld [vmem:[%s2799 + $0x50] sm:$0xff]
    %v2811 = vld [vmem:[%s2799 + $0x58] sm:$0xff]
    %s2812 = scalar_lea.vmem %s71, 2
    %v2813 = vld [vmem:[%s2812] sm:$0x3]
    %s2814 = scalar_lea.vmem [#allocation40], 16
    %v2815 = vld [vmem:[%s2814] sm:$0xf]
    %v2816 = vld [vmem:[%s2814 + $0x4] sm:$0xf]
    %v2817 = vld [vmem:[%s2814 + $0x8] sm:$0xf]
    %v2818 = vld [vmem:[%s2814 + $0xc] sm:$0xf]
    %s2819 = scalar_lea.vmem [#allocation42], 1
    %v2820 = vld [vmem:[%s2819] sm:$0x1]
    %s2821 = scalar_lea.vmem [#allocation43], 16
    %v2822 = vld [vmem:[%s2821] sm:$0xf]
    %v2823 = vld [vmem:[%s2821 + $0x4] sm:$0xf]
    %v2824 = vld [vmem:[%s2821 + $0x8] sm:$0xf]
    %v2825 = vld [vmem:[%s2821 + $0xc] sm:$0xf]
    %s2826 = scalar_lea.vmem [#allocation45], 1
    %v2827 = vld [vmem:[%s2826] sm:$0x1]
    %s2828 = scalar_lea.vmem %s81, 16
    %v2829 = vld [vmem:[%s2828] sm:$0xf]
    %v2830 = vld [vmem:[%s2828 + $0x4] sm:$0xf]
    %v2831 = vld [vmem:[%s2828 + $0x8] sm:$0xf]
    %v2832 = vld [vmem:[%s2828 + $0xc] sm:$0xf]
    %s2833 = scalar_lea.vmem [#allocation46], 1
    %v2834 = vld [vmem:[%s2833] sm:$0x1]
    %s2835 = scalar_lea.vmem [#allocation48], 32
    %v2836 = vld [vmem:[%s2835] sm:$0xff]
    %v2837 = vld [vmem:[%s2835 + $0x8] sm:$0xff]
    %v2838 = vld [vmem:[%s2835 + $0x10] sm:$0xff]
    %v2839 = vld [vmem:[%s2835 + $0x18] sm:$0xff]
    %s2840 = scalar_lea.vmem [#allocation49], 64
    %v2841 = vld [vmem:[%s2840] sm:$0xf]
    %v2842 = vld [vmem:[%s2840 + $0x4] sm:$0xf]
    %v2843 = vld [vmem:[%s2840 + $0x8] sm:$0xf]
    %v2844 = vld [vmem:[%s2840 + $0xc] sm:$0xf]
    %v2845 = vld [vmem:[%s2840 + $0x10] sm:$0xf]
    %v2846 = vld [vmem:[%s2840 + $0x14] sm:$0xf]
    %v2847 = vld [vmem:[%s2840 + $0x18] sm:$0xf]
    %v2848 = vld [vmem:[%s2840 + $0x1c] sm:$0xf]
    %v2849 = vld [vmem:[%s2840 + $0x20] sm:$0xf]
    %v2850 = vld [vmem:[%s2840 + $0x24] sm:$0xf]
    %v2851 = vld [vmem:[%s2840 + $0x28] sm:$0xf]
    %v2852 = vld [vmem:[%s2840 + $0x2c] sm:$0xf]
    %v2853 = vld [vmem:[%s2840 + $0x30] sm:$0xf]
    %v2854 = vld [vmem:[%s2840 + $0x34] sm:$0xf]
    %v2855 = vld [vmem:[%s2840 + $0x38] sm:$0xf]
    %v2856 = vld [vmem:[%s2840 + $0x3c] sm:$0xf]
    %v2858 = vperm.slane %v2813, 0
    %v2859 = vperm.slane %v2813, 1
    %v2874 = vunpack.c.l.b16 %v2800
    %v2875 = vunpack.c.h.b16 %v2800
    %v2876 = vunpack.c.l.b16 %v2801
    %v2877 = vunpack.c.h.b16 %v2801
    %v2878 = vunpack.c.l.b16 %v2802
    %v2879 = vunpack.c.h.b16 %v2802
    %v2880 = vunpack.c.l.b16 %v2803
    %v2881 = vunpack.c.h.b16 %v2803
    %v2882 = vunpack.c.l.b16 %v2804
    %v2883 = vunpack.c.h.b16 %v2804
    %v2884 = vunpack.c.l.b16 %v2805
    %v2885 = vunpack.c.h.b16 %v2805
    %v2886 = vunpack.c.l.b16 %v2806
    %v2887 = vunpack.c.h.b16 %v2806
    %v2888 = vunpack.c.l.b16 %v2807
    %v2889 = vunpack.c.h.b16 %v2807
    %v2890 = vunpack.c.l.b16 %v2808
    %v2891 = vunpack.c.h.b16 %v2808
    %v2892 = vunpack.c.l.b16 %v2809
    %v2893 = vunpack.c.h.b16 %v2809
    %v2894 = vunpack.c.l.b16 %v2810
    %v2895 = vunpack.c.h.b16 %v2810
    %v2896 = vunpack.c.l.b16 %v2811
    %v2897 = vunpack.c.h.b16 %v2811
    %v2898 = vpack.c.b16 %v2876, %v2874
    %v2899 = vpack.c.b16 %v2877, %v2875
    %v2900 = vpack.c.b16 %v2880, %v2878
    %v2901 = vpack.c.b16 %v2881, %v2879
    %v2902 = vpack.c.b16 %v2884, %v2882
    %v2903 = vpack.c.b16 %v2885, %v2883
    %v2904 = vpack.c.b16 %v2888, %v2886
    %v2905 = vpack.c.b16 %v2889, %v2887
    %v2906 = vpack.c.b16 %v2892, %v2890
    %v2907 = vpack.c.b16 %v2893, %v2891
    %v2908 = vpack.c.b16 %v2896, %v2894
    %v2909 = vpack.c.b16 %v2897, %v2895
    %2922 = vmatpush.bf16.msra.mxu0 0
    %2923 = vmatpush.bf16.msra.mxu0 0
    %2924 = vmatpush.bf16.msra.mxu0 %v2908
    %2925 = vmatpush.bf16.msra.mxu0 %v2906
    %2926 = vmatpush.bf16.msra.mxu0 %v2904
    %2927 = vmatpush.bf16.msra.mxu0 %v2902
    %2928 = vmatpush.bf16.msra.mxu0 %v2900
    %2929 = vmatpush.bf16.msra.mxu0 %v2898
    %2930 = vmatmul.bf16.gmra.mxu0 %v1702
    %v2931 = vpop.f32.mrf.mxu0
    %v2932 = vadd.f32 %v2858, %v2931
    %v2933 = vpop.f32.mrf.mxu0
    %2934 = vdwg.mxu0
    %2935 = vmatpush.bf16.msra.mxu0 0
    %2936 = vmatpush.bf16.msra.mxu0 0
    %2937 = vmatpush.bf16.msra.mxu0 %v2909
    %2938 = vmatpush.bf16.msra.mxu0 %v2907
    %2939 = vmatpush.bf16.msra.mxu0 %v2905
    %2940 = vmatpush.bf16.msra.mxu0 %v2903
    %2941 = vmatpush.bf16.msra.mxu0 %v2901
    %2942 = vmatpush.bf16.msra.mxu0 %v2899
    %2943 = vmatmul.bf16.gmra.mxu0 %v1702
    %v2944 = vpop.f32.mrf.mxu0
    %v2945 = vadd.f32 %v2859, %v2944
    %v2946 = vpop.f32.mrf.mxu0
    %2947 = vdwg.mxu0
    %v2949 = vperm.slane %v2794, 0
    %v2951 = vmul.f32 %v1832, %v2949
    %v2952 = vmul.f32 %v1833, %v2949
    %v2954 = vrot.slane %v2932, 1
    %v2956 = vadd.f32 %v2932, 1.0
    %v2957 = vadd.f32 %v2954, 1.0
    %v2960 = vperm.slane %v2956, 0
    %v2961 = vperm.slane %v2957, 0
    %2962 = vrot.lane.b32.xlu0 %v2960, 96
    %v2963 = vpop.permute.xlu0 %2962
    %2964 = vrot.lane.b32.xlu0 %v2961, 96
    %v2965 = vpop.permute.xlu0 %2964
    %v2968 = vmul.f32 %v2951, %v2963
    %v2969 = vmul.f32 %v2952, %v2965
    %v2970 = vperm.slane %v2932, 0
    %v2971 = vperm.slane %v2954, 0
    %v2974 = vadd.f32 %v2968, %v2970
    %v2975 = vadd.f32 %v2969, %v2971
    %v2976 = vpack.c.bf16 %v2975, %v2974
    %v2977 = vmul.f32 %v2791, %v2791
    %v2978 = vmul.f32 %v2792, %v2792
    %v2979 = vsel %vm843, %v2977, 0.0
    %2980 = vadd.xlane.f32.xlu0 %v2979
    %v2981 = vpop.xlane.xlu0 %2980
    %v2982 = vsel %vm843, %v2978, 0.0
    %2983 = vadd.xlane.f32.xlu0 %v2982
    %v2984 = vpop.xlane.xlu0 %2983
    %v2985 = vmul.f32 %v2981, %v1744
    %v2986 = vmul.f32 %v2984, %v1744
    %v2987 = vadd.f32 %v2985, 1e-06
    %v2988 = vadd.f32 %v2986, 1e-06
    %v2989 = vrsqrt.pop %v2987
    %v2990 = vmul.f32 %v2989, %v2987
    %v2991 = vmul.f32 %v2990, %v2989
    %v2992 = vmul.f32 0.5, %v2991
    %v2993 = vsub.f32 1.5, %v2992
    %v2994 = vmul.f32 %v2989, %v2993
    %vm2995 = vweird.f32 %v2987
    %vm2996 = vweird.f32 %v2989
    %vm2997 = vmor %vm2995, %vm2996
    %v2998 = vsel %vm2997, %v2989, %v2994
    %v2999 = vrsqrt.pop %v2988
    %v3000 = vmul.f32 %v2999, %v2988
    %v3001 = vmul.f32 %v3000, %v2999
    %v3002 = vmul.f32 0.5, %v3001
    %v3003 = vsub.f32 1.5, %v3002
    %v3004 = vmul.f32 %v2999, %v3003
    %vm3005 = vweird.f32 %v2988
    %vm3006 = vweird.f32 %v2999
    %vm3007 = vmor %vm3005, %vm3006
    %v3008 = vsel %vm3007, %v2999, %v3004
    %v3009 = vmul.f32 %v2791, %v2998
    %v3010 = vmul.f32 %v2792, %v3008
    %v3012 = vperm.slane %v2796, 0
    %v3014 = vmul.f32 %v3009, %v3012
    %v3015 = vmul.f32 %v3010, %v3012
    %v3016 = vpack.c.bf16 %v3015, %v3014
    %v3018 = vperm.slane %v2820, 0
    %v3024 = vunpack.c.l.b16 %v2815
    %v3025 = vunpack.c.l.b16 %v2816
    %v3026 = vunpack.c.l.b16 %v2817
    %v3027 = vunpack.c.l.b16 %v2818
    %v3028 = vpack.c.b16 %v3025, %v3024
    %v3029 = vpack.c.b16 %v3027, %v3026
    %v3033 = vsel %vm843, %v2976, 0
    %3035 = vmatpush.bf16.msra.mxu0 0
    %3036 = vmatpush.bf16.msra.mxu0 0
    %3037 = vmatpush.bf16.msra.mxu0 0
    %3038 = vmatpush.bf16.msra.mxu0 0
    %3039 = vmatpush.bf16.msra.mxu0 0
    %3040 = vmatpush.bf16.msra.mxu0 0
    %3041 = vmatpush.bf16.msra.mxu0 %v3029
    %3042 = vmatpush.bf16.msra.mxu0 %v3028
    %3043 = vmatmul.bf16.gmra.mxu0 %v3033
    %v3044 = vpop.f32.mrf.mxu0
    %v3045 = vadd.f32 %v3018, %v3044
    %v3046 = vpop.f32.mrf.mxu0
    %v3047 = vadd.f32 %v3018, %v3046
    %3048 = vdwg.mxu0
    %v3050 = vperm.slane %v2827, 0
    %v3056 = vunpack.c.l.b16 %v2822
    %v3057 = vunpack.c.l.b16 %v2823
    %v3058 = vunpack.c.l.b16 %v2824
    %v3059 = vunpack.c.l.b16 %v2825
    %v3060 = vpack.c.b16 %v3057, %v3056
    %v3061 = vpack.c.b16 %v3059, %v3058
    %v3065 = vsel %vm843, %v3016, 0
    %3067 = vmatpush.bf16.msra.mxu0 0
    %3068 = vmatpush.bf16.msra.mxu0 0
    %3069 = vmatpush.bf16.msra.mxu0 0
    %3070 = vmatpush.bf16.msra.mxu0 0
    %3071 = vmatpush.bf16.msra.mxu0 0
    %3072 = vmatpush.bf16.msra.mxu0 0
    %3073 = vmatpush.bf16.msra.mxu0 %v3061
    %3074 = vmatpush.bf16.msra.mxu0 %v3060
    %3075 = vmatmul.bf16.gmra.mxu0 %v3065
    %v3076 = vpop.f32.mrf.mxu0
    %v3077 = vadd.f32 %v3050, %v3076
    %v3078 = vpop.f32.mrf.mxu0
    %v3079 = vadd.f32 %v3050, %v3078
    %3080 = vdwg.mxu0
    %v3081 = vpack.c.bf16 %v3045, %v3045
    %v3082 = vpack.c.bf16 %v3047, %v3047
    %v3083 = vpack.c.bf16 %v3077, %v3077
    %v3084 = vpack.c.bf16 %v3079, %v3079
    %v3085 = vperm.slane %v1581, 0
    %v3086 = vperm.slane %v1583, 0
    %v3090 = vsel %vm760, %v3081, 0
    %v3093 = vsel %vm760, %v3083, 0
    %3095 = vmatpush.bf16.xpose.msra.mxu0 0
    %3096 = vmatpush.bf16.xpose.msra.mxu0 0
    %3097 = vmatpush.bf16.xpose.msra.mxu0 0
    %3098 = vmatpush.bf16.xpose.msra.mxu0 0
    %3099 = vmatpush.bf16.xpose.msra.mxu0 0
    %3100 = vmatpush.bf16.xpose.msra.mxu0 0
    %3101 = vmatpush.bf16.xpose.msra.mxu0 0
    %3102 = vmatpush.bf16.xpose.msra.mxu0 %v3093
    %3103 = vmatmul.bf16.gmra.mxu0 %v3090
    %v3104 = vpop.f32.mrf.mxu0
    %v3105 = vadd.f32 %v3085, %v3104
    %v3106 = vpop.f32.mrf.mxu0
    %3107 = vdwg.mxu0
    %v3109 = vsel %vm760, %v3082, 0
    %v3112 = vsel %vm760, %v3084, 0
    %3114 = vmatpush.bf16.xpose.msra.mxu0 0
    %3115 = vmatpush.bf16.xpose.msra.mxu0 0
    %3116 = vmatpush.bf16.xpose.msra.mxu0 0
    %3117 = vmatpush.bf16.xpose.msra.mxu0 0
    %3118 = vmatpush.bf16.xpose.msra.mxu0 0
    %3119 = vmatpush.bf16.xpose.msra.mxu0 0
    %3120 = vmatpush.bf16.xpose.msra.mxu0 0
    %3121 = vmatpush.bf16.xpose.msra.mxu0 %v3112
    %3122 = vmatmul.bf16.gmra.mxu0 %v3109
    %v3123 = vpop.f32.mrf.mxu0
    %v3124 = vadd.f32 %v3086, %v3123
    %v3125 = vpop.f32.mrf.mxu0
    %3126 = vdwg.mxu0
    %v3127 = vsel %vm760, %v3105, -inf
    %3128 = vmax.xlane.f32.xlu0 %v3127
    %v3129 = vpop.xlane.xlu0 %3128
    %v3130 = vsel %vm760, %v3124, -inf
    %3131 = vmax.xlane.f32.xlu0 %v3130
    %v3132 = vpop.xlane.xlu0 %3131
    %v3133 = vsub.f32 %v3105, %v3129
    %v3134 = vsub.f32 %v3124, %v3132
    %v3135 = vmul.f32 %v3133, 1.442695
    %v3136 = vpow.pop %v3135
    %v3137 = vmul.f32 %v3134, 1.442695
    %v3138 = vpow.pop %v3137
    %v3139 = vsel %vm760, %v3136, 0.0
    %3140 = vadd.xlane.f32.xlu0 %v3139
    %v3141 = vpop.xlane.xlu0 %3140
    %v3142 = vsel %vm760, %v3138, 0.0
    %3143 = vadd.xlane.f32.xlu0 %v3142
    %v3144 = vpop.xlane.xlu0 %3143
    %v3145 = vrcp.pop %v3141
    %v3146 = vmul.f32 %v3141, %v3145
    %v3147 = vsub.f32 1.0, %v3146
    %v3148 = vmul.f32 %v3145, %v3147
    %v3149 = vadd.f32 %v3145, %v3148
    %vm3150 = vweird.f32 %v3141
    %vm3151 = vweird.f32 %v3145
    %vm3152 = vmor %vm3150, %vm3151
    %v3153 = vsel %vm3152, %v3145, %v3149
    %v3154 = vand.u32 2147483647, %v3141
    %vm3155 = vcmp.eq.f32.partialorder %v3154, 8.507059e+37
    %v3156 = vand.u32 %v3141, 2147483648
    %v3157 = vor.u32 1.1754944e-38, %v3156
    %v3158 = vsel %vm3155, %v3157, %v3153
    %v3159 = vmul.f32 %v3136, %v3158
    %v3160 = vrcp.pop %v3144
    %v3161 = vmul.f32 %v3144, %v3160
    %v3162 = vsub.f32 1.0, %v3161
    %v3163 = vmul.f32 %v3160, %v3162
    %v3164 = vadd.f32 %v3160, %v3163
    %vm3165 = vweird.f32 %v3144
    %vm3166 = vweird.f32 %v3160
    %vm3167 = vmor %vm3165, %vm3166
    %v3168 = vsel %vm3167, %v3160, %v3164
    %v3169 = vand.u32 2147483647, %v3144
    %vm3170 = vcmp.eq.f32.partialorder %v3169, 8.507059e+37
    %v3171 = vand.u32 %v3144, 2147483648
    %v3172 = vor.u32 1.1754944e-38, %v3171
    %v3173 = vsel %vm3170, %v3172, %v3168
    %v3174 = vmul.f32 %v3138, %v3173
    %v3175 = vpack.c.bf16 %v3159, %v3159
    %v3176 = vpack.c.bf16 %v3174, %v3174
    %v3178 = vunpack.c.l.b16 %v3083
    %v3179 = vpack.c.b16 %v3178, %v3178
    %3180 = vrot.lane.b32.xlu0 %v3179, 96
    %v3181 = vpop.permute.xlu0 %3180
    %v3183 = vsel %vm760, %v3175, 0
    %v3186 = vsel %vm764, %v3181, 0
    %3188 = vmatpush.bf16.msra.mxu0 0
    %3189 = vmatpush.bf16.msra.mxu0 0
    %3190 = vmatpush.bf16.msra.mxu0 0
    %3191 = vmatpush.bf16.msra.mxu0 0
    %3192 = vmatpush.bf16.msra.mxu0 0
    %3193 = vmatpush.bf16.msra.mxu0 0
    %3194 = vmatpush.bf16.msra.mxu0 0
    %3195 = vmatpush.bf16.msra.mxu0 %v3186
    %3196 = vmatmul.bf16.gmra.mxu0 %v3183
    %v3197 = vpop.f32.mrf.mxu0
    %v3198 = vadd.f32 0.0, %v3197
    %v3199 = vpop.f32.mrf.mxu0
    %3200 = vdwg.mxu0
    %v3202 = vunpack.c.l.b16 %v3084
    %v3203 = vpack.c.b16 %v3202, %v3202
    %3204 = vrot.lane.b32.xlu0 %v3203, 96
    %v3205 = vpop.permute.xlu0 %3204
    %v3207 = vsel %vm760, %v3176, 0
    %v3210 = vsel %vm764, %v3205, 0
    %3212 = vmatpush.bf16.msra.mxu0 0
    %3213 = vmatpush.bf16.msra.mxu0 0
    %3214 = vmatpush.bf16.msra.mxu0 0
    %3215 = vmatpush.bf16.msra.mxu0 0
    %3216 = vmatpush.bf16.msra.mxu0 0
    %3217 = vmatpush.bf16.msra.mxu0 0
    %3218 = vmatpush.bf16.msra.mxu0 0
    %3219 = vmatpush.bf16.msra.mxu0 %v3210
    %3220 = vmatmul.bf16.gmra.mxu0 %v3207
    %v3221 = vpop.f32.mrf.mxu0
    %v3222 = vadd.f32 0.0, %v3221
    %v3223 = vpop.f32.mrf.mxu0
    %3224 = vdwg.mxu0
    %v3226 = vunpack.c.l.b16 %v3081
    %v3227 = vpack.c.b16 %v3226, %v3226
    %3228 = vrot.lane.b32.xlu0 %v3227, 120
    %v3229 = vpop.permute.xlu0 %3228
    %3230 = vrot.lane.b32.xlu0 %v3179, 120
    %v3231 = vpop.permute.xlu0 %3230
    %v3233 = vsel %vm760, %v3229, 0
    %v3236 = vsel %vm760, %v3231, 0
    %3238 = vmatpush.bf16.xpose.msra.mxu0 0
    %3239 = vmatpush.bf16.xpose.msra.mxu0 0
    %3240 = vmatpush.bf16.xpose.msra.mxu0 0
    %3241 = vmatpush.bf16.xpose.msra.mxu0 0
    %3242 = vmatpush.bf16.xpose.msra.mxu0 0
    %3243 = vmatpush.bf16.xpose.msra.mxu0 0
    %3244 = vmatpush.bf16.xpose.msra.mxu0 0
    %3245 = vmatpush.bf16.xpose.msra.mxu0 %v3236
    %3246 = vmatmul.bf16.gmra.mxu0 %v3233
    %v3247 = vpop.f32.mrf.mxu0
    %v3248 = vadd.f32 %v3085, %v3247
    %v3249 = vpop.f32.mrf.mxu0
    %3250 = vdwg.mxu0
    %v3252 = vunpack.c.l.b16 %v3082
    %v3253 = vpack.c.b16 %v3252, %v3252
    %3254 = vrot.lane.b32.xlu0 %v3253, 120
    %v3255 = vpop.permute.xlu0 %3254
    %3256 = vrot.lane.b32.xlu0 %v3203, 120
    %v3257 = vpop.permute.xlu0 %3256
    %v3259 = vsel %vm760, %v3255, 0
    %v3262 = vsel %vm760, %v3257, 0
    %3264 = vmatpush.bf16.xpose.msra.mxu0 0
    %3265 = vmatpush.bf16.xpose.msra.mxu0 0
    %3266 = vmatpush.bf16.xpose.msra.mxu0 0
    %3267 = vmatpush.bf16.xpose.msra.mxu0 0
    %3268 = vmatpush.bf16.xpose.msra.mxu0 0
    %3269 = vmatpush.bf16.xpose.msra.mxu0 0
    %3270 = vmatpush.bf16.xpose.msra.mxu0 0
    %3271 = vmatpush.bf16.xpose.msra.mxu0 %v3262
    %3272 = vmatmul.bf16.gmra.mxu0 %v3259
    %v3273 = vpop.f32.mrf.mxu0
    %v3274 = vadd.f32 %v3086, %v3273
    %v3275 = vpop.f32.mrf.mxu0
    %3276 = vdwg.mxu0
    %v3277 = vsel %vm760, %v3248, -inf
    %3278 = vmax.xlane.f32.xlu0 %v3277
    %v3279 = vpop.xlane.xlu0 %3278
    %v3280 = vsel %vm760, %v3274, -inf
    %3281 = vmax.xlane.f32.xlu0 %v3280
    %v3282 = vpop.xlane.xlu0 %3281
    %v3283 = vsub.f32 %v3248, %v3279
    %v3284 = vsub.f32 %v3274, %v3282
    %v3285 = vmul.f32 %v3283, 1.442695
    %v3286 = vpow.pop %v3285
    %v3287 = vmul.f32 %v3284, 1.442695
    %v3288 = vpow.pop %v3287
    %v3289 = vsel %vm760, %v3286, 0.0
    %3290 = vadd.xlane.f32.xlu0 %v3289
    %v3291 = vpop.xlane.xlu0 %3290
    %v3292 = vsel %vm760, %v3288, 0.0
    %3293 = vadd.xlane.f32.xlu0 %v3292
    %v3294 = vpop.xlane.xlu0 %3293
    %v3295 = vrcp.pop %v3291
    %v3296 = vmul.f32 %v3291, %v3295
    %v3297 = vsub.f32 1.0, %v3296
    %v3298 = vmul.f32 %v3295, %v3297
    %v3299 = vadd.f32 %v3295, %v3298
    %vm3300 = vweird.f32 %v3291
    %vm3301 = vweird.f32 %v3295
    %vm3302 = vmor %vm3300, %vm3301
    %v3303 = vsel %vm3302, %v3295, %v3299
    %v3304 = vand.u32 2147483647, %v3291
    %vm3305 = vcmp.eq.f32.partialorder %v3304, 8.507059e+37
    %v3306 = vand.u32 %v3291, 2147483648
    %v3307 = vor.u32 1.1754944e-38, %v3306
    %v3308 = vsel %vm3305, %v3307, %v3303
    %v3309 = vmul.f32 %v3286, %v3308
    %v3310 = vrcp.pop %v3294
    %v3311 = vmul.f32 %v3294, %v3310
    %v3312 = vsub.f32 1.0, %v3311
    %v3313 = vmul.f32 %v3310, %v3312
    %v3314 = vadd.f32 %v3310, %v3313
    %vm3315 = vweird.f32 %v3294
    %vm3316 = vweird.f32 %v3310
    %vm3317 = vmor %vm3315, %vm3316
    %v3318 = vsel %vm3317, %v3310, %v3314
    %v3319 = vand.u32 2147483647, %v3294
    %vm3320 = vcmp.eq.f32.partialorder %v3319, 8.507059e+37
    %v3321 = vand.u32 %v3294, 2147483648
    %v3322 = vor.u32 1.1754944e-38, %v3321
    %v3323 = vsel %vm3320, %v3322, %v3318
    %v3324 = vmul.f32 %v3288, %v3323
    %v3325 = vpack.c.bf16 %v3309, %v3309
    %v3326 = vpack.c.bf16 %v3324, %v3324
    %3327 = vrot.lane.b32.xlu0 %v3179, 88
    %v3328 = vpop.permute.xlu0 %3327
    %v3330 = vsel %vm760, %v3325, 0
    %v3333 = vsel %vm764, %v3328, 0
    %3335 = vmatpush.bf16.msra.mxu0 0
    %3336 = vmatpush.bf16.msra.mxu0 0
    %3337 = vmatpush.bf16.msra.mxu0 0
    %3338 = vmatpush.bf16.msra.mxu0 0
    %3339 = vmatpush.bf16.msra.mxu0 0
    %3340 = vmatpush.bf16.msra.mxu0 0
    %3341 = vmatpush.bf16.msra.mxu0 0
    %3342 = vmatpush.bf16.msra.mxu0 %v3333
    %3343 = vmatmul.bf16.gmra.mxu0 %v3330
    %v3344 = vpop.f32.mrf.mxu0
    %v3345 = vadd.f32 0.0, %v3344
    %v3346 = vpop.f32.mrf.mxu0
    %3347 = vdwg.mxu0
    %3348 = vrot.lane.b32.xlu0 %v3203, 88
    %v3349 = vpop.permute.xlu0 %3348
    %v3351 = vsel %vm760, %v3326, 0
    %v3354 = vsel %vm764, %v3349, 0
    %3356 = vmatpush.bf16.msra.mxu0 0
    %3357 = vmatpush.bf16.msra.mxu0 0
    %3358 = vmatpush.bf16.msra.mxu0 0
    %3359 = vmatpush.bf16.msra.mxu0 0
    %3360 = vmatpush.bf16.msra.mxu0 0
    %3361 = vmatpush.bf16.msra.mxu0 0
    %3362 = vmatpush.bf16.msra.mxu0 0
    %3363 = vmatpush.bf16.msra.mxu0 %v3354
    %3364 = vmatmul.bf16.gmra.mxu0 %v3351
    %v3365 = vpop.f32.mrf.mxu0
    %v3366 = vadd.f32 0.0, %v3365
    %v3367 = vpop.f32.mrf.mxu0
    %3368 = vdwg.mxu0
    %3369 = vrot.lane.b32.xlu0 %v3227, 112
    %v3370 = vpop.permute.xlu0 %3369
    %3371 = vrot.lane.b32.xlu0 %v3179, 112
    %v3372 = vpop.permute.xlu0 %3371
    %v3374 = vsel %vm760, %v3370, 0
    %v3377 = vsel %vm760, %v3372, 0
    %3379 = vmatpush.bf16.xpose.msra.mxu0 0
    %3380 = vmatpush.bf16.xpose.msra.mxu0 0
    %3381 = vmatpush.bf16.xpose.msra.mxu0 0
    %3382 = vmatpush.bf16.xpose.msra.mxu0 0
    %3383 = vmatpush.bf16.xpose.msra.mxu0 0
    %3384 = vmatpush.bf16.xpose.msra.mxu0 0
    %3385 = vmatpush.bf16.xpose.msra.mxu0 0
    %3386 = vmatpush.bf16.xpose.msra.mxu0 %v3377
    %3387 = vmatmul.bf16.gmra.mxu0 %v3374
    %v3388 = vpop.f32.mrf.mxu0
    %v3389 = vadd.f32 %v3085, %v3388
    %v3390 = vpop.f32.mrf.mxu0
    %3391 = vdwg.mxu0
    %3392 = vrot.lane.b32.xlu0 %v3253, 112
    %v3393 = vpop.permute.xlu0 %3392
    %3394 = vrot.lane.b32.xlu0 %v3203, 112
    %v3395 = vpop.permute.xlu0 %3394
    %v3397 = vsel %vm760, %v3393, 0
    %v3400 = vsel %vm760, %v3395, 0
    %3402 = vmatpush.bf16.xpose.msra.mxu0 0
    %3403 = vmatpush.bf16.xpose.msra.mxu0 0
    %3404 = vmatpush.bf16.xpose.msra.mxu0 0
    %3405 = vmatpush.bf16.xpose.msra.mxu0 0
    %3406 = vmatpush.bf16.xpose.msra.mxu0 0
    %3407 = vmatpush.bf16.xpose.msra.mxu0 0
    %3408 = vmatpush.bf16.xpose.msra.mxu0 0
    %3409 = vmatpush.bf16.xpose.msra.mxu0 %v3400
    %3410 = vmatmul.bf16.gmra.mxu0 %v3397
    %v3411 = vpop.f32.mrf.mxu0
    %v3412 = vadd.f32 %v3086, %v3411
    %v3413 = vpop.f32.mrf.mxu0
    %3414 = vdwg.mxu0
    %v3415 = vsel %vm760, %v3389, -inf
    %3416 = vmax.xlane.f32.xlu0 %v3415
    %v3417 = vpop.xlane.xlu0 %3416
    %v3418 = vsel %vm760, %v3412, -inf
    %3419 = vmax.xlane.f32.xlu0 %v3418
    %v3420 = vpop.xlane.xlu0 %3419
    %v3421 = vsub.f32 %v3389, %v3417
    %v3422 = vsub.f32 %v3412, %v3420
    %v3423 = vmul.f32 %v3421, 1.442695
    %v3424 = vpow.pop %v3423
    %v3425 = vmul.f32 %v3422, 1.442695
    %v3426 = vpow.pop %v3425
    %v3427 = vsel %vm760, %v3424, 0.0
    %3428 = vadd.xlane.f32.xlu0 %v3427
    %v3429 = vpop.xlane.xlu0 %3428
    %v3430 = vsel %vm760, %v3426, 0.0
    %3431 = vadd.xlane.f32.xlu0 %v3430
    %v3432 = vpop.xlane.xlu0 %3431
    %v3433 = vrcp.pop %v3429
    %v3434 = vmul.f32 %v3429, %v3433
    %v3435 = vsub.f32 1.0, %v3434
    %v3436 = vmul.f32 %v3433, %v3435
    %v3437 = vadd.f32 %v3433, %v3436
    %vm3438 = vweird.f32 %v3429
    %vm3439 = vweird.f32 %v3433
    %vm3440 = vmor %vm3438, %vm3439
    %v3441 = vsel %vm3440, %v3433, %v3437
    %v3442 = vand.u32 2147483647, %v3429
    %vm3443 = vcmp.eq.f32.partialorder %v3442, 8.507059e+37
    %v3444 = vand.u32 %v3429, 2147483648
    %v3445 = vor.u32 1.1754944e-38, %v3444
    %v3446 = vsel %vm3443, %v3445, %v3441
    %v3447 = vmul.f32 %v3424, %v3446
    %v3448 = vrcp.pop %v3432
    %v3449 = vmul.f32 %v3432, %v3448
    %v3450 = vsub.f32 1.0, %v3449
    %v3451 = vmul.f32 %v3448, %v3450
    %v3452 = vadd.f32 %v3448, %v3451
    %vm3453 = vweird.f32 %v3432
    %vm3454 = vweird.f32 %v3448
    %vm3455 = vmor %vm3453, %vm3454
    %v3456 = vsel %vm3455, %v3448, %v3452
    %v3457 = vand.u32 2147483647, %v3432
    %vm3458 = vcmp.eq.f32.partialorder %v3457, 8.507059e+37
    %v3459 = vand.u32 %v3432, 2147483648
    %v3460 = vor.u32 1.1754944e-38, %v3459
    %v3461 = vsel %vm3458, %v3460, %v3456
    %v3462 = vmul.f32 %v3426, %v3461
    %v3463 = vpack.c.bf16 %v3447, %v3447
    %v3464 = vpack.c.bf16 %v3462, %v3462
    %3465 = vrot.lane.b32.xlu0 %v3179, 80
    %v3466 = vpop.permute.xlu0 %3465
    %v3468 = vsel %vm760, %v3463, 0
    %v3471 = vsel %vm764, %v3466, 0
    %3473 = vmatpush.bf16.msra.mxu0 0
    %3474 = vmatpush.bf16.msra.mxu0 0
    %3475 = vmatpush.bf16.msra.mxu0 0
    %3476 = vmatpush.bf16.msra.mxu0 0
    %3477 = vmatpush.bf16.msra.mxu0 0
    %3478 = vmatpush.bf16.msra.mxu0 0
    %3479 = vmatpush.bf16.msra.mxu0 0
    %3480 = vmatpush.bf16.msra.mxu0 %v3471
    %3481 = vmatmul.bf16.gmra.mxu0 %v3468
    %v3482 = vpop.f32.mrf.mxu0
    %v3483 = vadd.f32 0.0, %v3482
    %v3484 = vpop.f32.mrf.mxu0
    %3485 = vdwg.mxu0
    %3486 = vrot.lane.b32.xlu0 %v3203, 80
    %v3487 = vpop.permute.xlu0 %3486
    %v3489 = vsel %vm760, %v3464, 0
    %v3492 = vsel %vm764, %v3487, 0
    %3494 = vmatpush.bf16.msra.mxu0 0
    %3495 = vmatpush.bf16.msra.mxu0 0
    %3496 = vmatpush.bf16.msra.mxu0 0
    %3497 = vmatpush.bf16.msra.mxu0 0
    %3498 = vmatpush.bf16.msra.mxu0 0
    %3499 = vmatpush.bf16.msra.mxu0 0
    %3500 = vmatpush.bf16.msra.mxu0 0
    %3501 = vmatpush.bf16.msra.mxu0 %v3492
    %3502 = vmatmul.bf16.gmra.mxu0 %v3489
    %v3503 = vpop.f32.mrf.mxu0
    %v3504 = vadd.f32 0.0, %v3503
    %v3505 = vpop.f32.mrf.mxu0
    %3506 = vdwg.mxu0
    %3507 = vrot.lane.b32.xlu0 %v3227, 104
    %v3508 = vpop.permute.xlu0 %3507
    %3509 = vrot.lane.b32.xlu0 %v3179, 104
    %v3510 = vpop.permute.xlu0 %3509
    %v3512 = vsel %vm760, %v3508, 0
    %v3515 = vsel %vm760, %v3510, 0
    %3517 = vmatpush.bf16.xpose.msra.mxu0 0
    %3518 = vmatpush.bf16.xpose.msra.mxu0 0
    %3519 = vmatpush.bf16.xpose.msra.mxu0 0
    %3520 = vmatpush.bf16.xpose.msra.mxu0 0
    %3521 = vmatpush.bf16.xpose.msra.mxu0 0
    %3522 = vmatpush.bf16.xpose.msra.mxu0 0
    %3523 = vmatpush.bf16.xpose.msra.mxu0 0
    %3524 = vmatpush.bf16.xpose.msra.mxu0 %v3515
    %3525 = vmatmul.bf16.gmra.mxu0 %v3512
    %v3526 = vpop.f32.mrf.mxu0
    %v3527 = vadd.f32 %v3085, %v3526
    %v3528 = vpop.f32.mrf.mxu0
    %3529 = vdwg.mxu0
    %3530 = vrot.lane.b32.xlu0 %v3253, 104
    %v3531 = vpop.permute.xlu0 %3530
    %3532 = vrot.lane.b32.xlu0 %v3203, 104
    %v3533 = vpop.permute.xlu0 %3532
    %v3535 = vsel %vm760, %v3531, 0
    %v3538 = vsel %vm760, %v3533, 0
    %3540 = vmatpush.bf16.xpose.msra.mxu0 0
    %3541 = vmatpush.bf16.xpose.msra.mxu0 0
    %3542 = vmatpush.bf16.xpose.msra.mxu0 0
    %3543 = vmatpush.bf16.xpose.msra.mxu0 0
    %3544 = vmatpush.bf16.xpose.msra.mxu0 0
    %3545 = vmatpush.bf16.xpose.msra.mxu0 0
    %3546 = vmatpush.bf16.xpose.msra.mxu0 0
    %3547 = vmatpush.bf16.xpose.msra.mxu0 %v3538
    %3548 = vmatmul.bf16.gmra.mxu0 %v3535
    %v3549 = vpop.f32.mrf.mxu0
    %v3550 = vadd.f32 %v3086, %v3549
    %v3551 = vpop.f32.mrf.mxu0
    %3552 = vdwg.mxu0
    %v3553 = vsel %vm760, %v3527, -inf
    %3554 = vmax.xlane.f32.xlu0 %v3553
    %v3555 = vpop.xlane.xlu0 %3554
    %v3556 = vsel %vm760, %v3550, -inf
    %3557 = vmax.xlane.f32.xlu0 %v3556
    %v3558 = vpop.xlane.xlu0 %3557
    %v3559 = vsub.f32 %v3527, %v3555
    %v3560 = vsub.f32 %v3550, %v3558
    %v3561 = vmul.f32 %v3559, 1.442695
    %v3562 = vpow.pop %v3561
    %v3563 = vmul.f32 %v3560, 1.442695
    %v3564 = vpow.pop %v3563
    %v3565 = vsel %vm760, %v3562, 0.0
    %3566 = vadd.xlane.f32.xlu0 %v3565
    %v3567 = vpop.xlane.xlu0 %3566
    %v3568 = vsel %vm760, %v3564, 0.0
    %3569 = vadd.xlane.f32.xlu0 %v3568
    %v3570 = vpop.xlane.xlu0 %3569
    %v3571 = vrcp.pop %v3567
    %v3572 = vmul.f32 %v3567, %v3571
    %v3573 = vsub.f32 1.0, %v3572
    %v3574 = vmul.f32 %v3571, %v3573
    %v3575 = vadd.f32 %v3571, %v3574
    %vm3576 = vweird.f32 %v3567
    %vm3577 = vweird.f32 %v3571
    %vm3578 = vmor %vm3576, %vm3577
    %v3579 = vsel %vm3578, %v3571, %v3575
    %v3580 = vand.u32 2147483647, %v3567
    %vm3581 = vcmp.eq.f32.partialorder %v3580, 8.507059e+37
    %v3582 = vand.u32 %v3567, 2147483648
    %v3583 = vor.u32 1.1754944e-38, %v3582
    %v3584 = vsel %vm3581, %v3583, %v3579
    %v3585 = vmul.f32 %v3562, %v3584
    %v3586 = vrcp.pop %v3570
    %v3587 = vmul.f32 %v3570, %v3586
    %v3588 = vsub.f32 1.0, %v3587
    %v3589 = vmul.f32 %v3586, %v3588
    %v3590 = vadd.f32 %v3586, %v3589
    %vm3591 = vweird.f32 %v3570
    %vm3592 = vweird.f32 %v3586
    %vm3593 = vmor %vm3591, %vm3592
    %v3594 = vsel %vm3593, %v3586, %v3590
    %v3595 = vand.u32 2147483647, %v3570
    %vm3596 = vcmp.eq.f32.partialorder %v3595, 8.507059e+37
    %v3597 = vand.u32 %v3570, 2147483648
    %v3598 = vor.u32 1.1754944e-38, %v3597
    %v3599 = vsel %vm3596, %v3598, %v3594
    %v3600 = vmul.f32 %v3564, %v3599
    %v3601 = vpack.c.bf16 %v3585, %v3585
    %v3602 = vpack.c.bf16 %v3600, %v3600
    %3603 = vrot.lane.b32.xlu0 %v3179, 72
    %v3604 = vpop.permute.xlu0 %3603
    %v3606 = vsel %vm760, %v3601, 0
    %v3609 = vsel %vm764, %v3604, 0
    %3611 = vmatpush.bf16.msra.mxu0 0
    %3612 = vmatpush.bf16.msra.mxu0 0
    %3613 = vmatpush.bf16.msra.mxu0 0
    %3614 = vmatpush.bf16.msra.mxu0 0
    %3615 = vmatpush.bf16.msra.mxu0 0
    %3616 = vmatpush.bf16.msra.mxu0 0
    %3617 = vmatpush.bf16.msra.mxu0 0
    %3618 = vmatpush.bf16.msra.mxu0 %v3609
    %3619 = vmatmul.bf16.gmra.mxu0 %v3606
    %v3620 = vpop.f32.mrf.mxu0
    %v3621 = vadd.f32 0.0, %v3620
    %v3622 = vpop.f32.mrf.mxu0
    %3623 = vdwg.mxu0
    %3624 = vrot.lane.b32.xlu0 %v3203, 72
    %v3625 = vpop.permute.xlu0 %3624
    %v3627 = vsel %vm760, %v3602, 0
    %v3630 = vsel %vm764, %v3625, 0
    %3632 = vmatpush.bf16.msra.mxu0 0
    %3633 = vmatpush.bf16.msra.mxu0 0
    %3634 = vmatpush.bf16.msra.mxu0 0
    %3635 = vmatpush.bf16.msra.mxu0 0
    %3636 = vmatpush.bf16.msra.mxu0 0
    %3637 = vmatpush.bf16.msra.mxu0 0
    %3638 = vmatpush.bf16.msra.mxu0 0
    %3639 = vmatpush.bf16.msra.mxu0 %v3630
    %3640 = vmatmul.bf16.gmra.mxu0 %v3627
    %v3641 = vpop.f32.mrf.mxu0
    %v3642 = vadd.f32 0.0, %v3641
    %v3643 = vpop.f32.mrf.mxu0
    %3644 = vdwg.mxu0
    %3647 = vrot.lane.b32.xlu0 %v3345, 8
    %v3648 = vpop.permute.xlu0 %3647
    %3649 = vrot.lane.b32.xlu0 %v3366, 8
    %v3650 = vpop.permute.xlu0 %3649
    %3655 = vrot.lane.b32.xlu0 %v3483, 16
    %v3656 = vpop.permute.xlu0 %3655
    %3657 = vrot.lane.b32.xlu0 %v3504, 16
    %v3658 = vpop.permute.xlu0 %3657
    %3663 = vrot.lane.b32.xlu0 %v3621, 24
    %v3664 = vpop.permute.xlu0 %3663
    %3665 = vrot.lane.b32.xlu0 %v3642, 24
    %v3666 = vpop.permute.xlu0 %3665
    %v3669 = vsel %vm760, %v3198, %v3648
    %v3670 = vsel %vm760, %v3222, %v3650
    %v3671 = vsel %vm1152, %v3669, %v3656
    %v3672 = vsel %vm1152, %v3670, %v3658
    %v3673 = vsel %vm2496, %v3671, %v3664
    %v3674 = vsel %vm2496, %v3672, %v3666
    %v3675 = vpack.c.bf16 %v3674, %v3673
    %v3677 = vperm.slane %v2834, 0
    %v3683 = vunpack.c.l.b16 %v2829
    %v3684 = vunpack.c.l.b16 %v2830
    %v3685 = vunpack.c.l.b16 %v2831
    %v3686 = vunpack.c.l.b16 %v2832
    %v3687 = vpack.c.b16 %v3684, %v3683
    %v3688 = vpack.c.b16 %v3686, %v3685
    %v3692 = vsel %vm843, %v3675, 0
    %3694 = vmatpush.bf16.msra.mxu0 0
    %3695 = vmatpush.bf16.msra.mxu0 0
    %3696 = vmatpush.bf16.msra.mxu0 0
    %3697 = vmatpush.bf16.msra.mxu0 0
    %3698 = vmatpush.bf16.msra.mxu0 0
    %3699 = vmatpush.bf16.msra.mxu0 0
    %3700 = vmatpush.bf16.msra.mxu0 %v3688
    %3701 = vmatpush.bf16.msra.mxu0 %v3687
    %3702 = vmatmul.bf16.gmra.mxu0 %v3692
    %v3703 = vpop.f32.mrf.mxu0
    %v3704 = vadd.f32 %v3677, %v3703
    %v3705 = vpop.f32.mrf.mxu0
    %v3706 = vadd.f32 %v3677, %v3705
    %3707 = vdwg.mxu0
    %3710 = vrot.lane.b32.xlu0 %v3704, 64
    %v3711 = vpop.permute.xlu0 %3710
    %3712 = vrot.lane.b32.xlu0 %v3706, 64
    %v3713 = vpop.permute.xlu0 %3712
    %v3716 = vmul.f32 %v2970, %v3711
    %v3717 = vmul.f32 %v2971, %v3713
    %3720 = vrot.lane.b32.xlu0 %v3716, 64
    %v3721 = vpop.permute.xlu0 %3720
    %3722 = vrot.lane.b32.xlu0 %v3717, 64
    %v3723 = vpop.permute.xlu0 %3722
    %v3726 = vadd.f32 %v951, %v3721
    %v3727 = vadd.f32 %v952, %v3723
    %v3728 = vmul.f32 %v3726, %v3726
    %v3729 = vmul.f32 %v3727, %v3727
    %v3730 = vsel %vm843, %v3728, 0.0
    %3731 = vadd.xlane.f32.xlu0 %v3730
    %v3732 = vpop.xlane.xlu0 %3731
    %v3733 = vsel %vm843, %v3729, 0.0
    %3734 = vadd.xlane.f32.xlu0 %v3733
    %v3735 = vpop.xlane.xlu0 %3734
    %v3736 = vmul.f32 %v3732, %v1744
    %v3737 = vmul.f32 %v3735, %v1744
    %v3738 = vadd.f32 %v3736, 1e-06
    %v3739 = vadd.f32 %v3737, 1e-06
    %v3740 = vrsqrt.pop %v3738
    %v3741 = vmul.f32 %v3740, %v3738
    %v3742 = vmul.f32 %v3741, %v3740
    %v3743 = vmul.f32 0.5, %v3742
    %v3744 = vsub.f32 1.5, %v3743
    %v3745 = vmul.f32 %v3740, %v3744
    %vm3746 = vweird.f32 %v3738
    %vm3747 = vweird.f32 %v3740
    %vm3748 = vmor %vm3746, %vm3747
    %v3749 = vsel %vm3748, %v3740, %v3745
    %v3750 = vrsqrt.pop %v3739
    %v3751 = vmul.f32 %v3750, %v3739
    %v3752 = vmul.f32 %v3751, %v3750
    %v3753 = vmul.f32 0.5, %v3752
    %v3754 = vsub.f32 1.5, %v3753
    %v3755 = vmul.f32 %v3750, %v3754
    %vm3756 = vweird.f32 %v3739
    %vm3757 = vweird.f32 %v3750
    %vm3758 = vmor %vm3756, %vm3757
    %v3759 = vsel %vm3758, %v3750, %v3755
    %v3760 = vmul.f32 %v3726, %v3749
    %v3761 = vmul.f32 %v3727, %v3759
    %v3763 = vperm.slane %v2798, 0
    %v3765 = vmul.f32 %v3760, %v3763
    %v3766 = vmul.f32 %v3761, %v3763
    %v3768 = vrot.slane %v2945, 1
    %v3770 = vadd.f32 %v2945, 1.0
    %v3771 = vadd.f32 %v3768, 1.0
    %v3774 = vperm.slane %v3770, 0
    %v3775 = vperm.slane %v3771, 0
    %v3778 = vmul.f32 %v3765, %v3774
    %v3779 = vmul.f32 %v3766, %v3775
    %3780 = vrot.lane.b32.xlu0 %v2970, 32
    %v3781 = vpop.permute.xlu0 %3780
    %3782 = vrot.lane.b32.xlu0 %v2971, 32
    %v3783 = vpop.permute.xlu0 %3782
    %v3786 = vadd.f32 %v3778, %v3781
    %v3787 = vadd.f32 %v3779, %v3783
    %v3788 = vpack.c.bf16 %v3787, %v3786
    %v3793 = vunpack.c.l.b16 %v2836
    %v3794 = vunpack.c.h.b16 %v2836
    %v3795 = vunpack.c.l.b16 %v2837
    %v3796 = vunpack.c.h.b16 %v2837
    %v3797 = vunpack.c.l.b16 %v2838
    %v3798 = vunpack.c.h.b16 %v2838
    %v3799 = vunpack.c.l.b16 %v2839
    %v3800 = vunpack.c.h.b16 %v2839
    %v3801 = vpack.c.b16 %v3795, %v3793
    %v3802 = vpack.c.b16 %v3796, %v3794
    %v3803 = vpack.c.b16 %v3799, %v3797
    %v3804 = vpack.c.b16 %v3800, %v3798
    %v3810 = vsel %vm843, %v3788, 0
    %3812 = vmatpush.bf16.msra.mxu0 0
    %3813 = vmatpush.bf16.msra.mxu0 0
    %3814 = vmatpush.bf16.msra.mxu0 0
    %3815 = vmatpush.bf16.msra.mxu0 0
    %3816 = vmatpush.bf16.msra.mxu0 0
    %3817 = vmatpush.bf16.msra.mxu0 0
    %3818 = vmatpush.bf16.msra.mxu0 %v3803
    %3819 = vmatpush.bf16.msra.mxu0 %v3801
    %3820 = vmatmul.bf16.gmra.mxu0 %v3810
    %v3821 = vpop.f32.mrf.mxu0
    %v3822 = vadd.f32 0.0, %v3821
    %v3823 = vpop.f32.mrf.mxu0
    %v3824 = vadd.f32 0.0, %v3823
    %3825 = vdwg.mxu0
    %3826 = vmatpush.bf16.msra.mxu0 0
    %3827 = vmatpush.bf16.msra.mxu0 0
    %3828 = vmatpush.bf16.msra.mxu0 0
    %3829 = vmatpush.bf16.msra.mxu0 0
    %3830 = vmatpush.bf16.msra.mxu0 0
    %3831 = vmatpush.bf16.msra.mxu0 0
    %3832 = vmatpush.bf16.msra.mxu0 %v3804
    %3833 = vmatpush.bf16.msra.mxu0 %v3802
    %3834 = vmatmul.bf16.gmra.mxu0 %v3810
    %v3835 = vpop.f32.mrf.mxu0
    %v3836 = vadd.f32 0.0, %v3835
    %v3837 = vpop.f32.mrf.mxu0
    %v3838 = vadd.f32 0.0, %v3837
    %3839 = vdwg.mxu0
    %v3840 = vxor.u32 %v3822, 2147483648
    %v3841 = vxor.u32 %v3824, 2147483648
    %v3842 = vmul.f32 %v3840, 1.442695
    %v3843 = vpow.pop %v3842
    %v3844 = vmul.f32 %v3841, 1.442695
    %v3845 = vpow.pop %v3844
    %v3846 = vadd.f32 %v3843, 1.0
    %v3847 = vadd.f32 %v3845, 1.0
    %v3848 = vrcp.pop %v3846
    %v3849 = vmul.f32 %v3846, %v3848
    %v3850 = vsub.f32 1.0, %v3849
    %v3851 = vmul.f32 %v3848, %v3850
    %v3852 = vadd.f32 %v3848, %v3851
    %vm3853 = vweird.f32 %v3846
    %vm3854 = vweird.f32 %v3848
    %vm3855 = vmor %vm3853, %vm3854
    %v3856 = vsel %vm3855, %v3848, %v3852
    %v3857 = vand.u32 2147483647, %v3846
    %vm3858 = vcmp.eq.f32.partialorder %v3857, 8.507059e+37
    %v3859 = vand.u32 %v3846, 2147483648
    %v3860 = vor.u32 1.1754944e-38, %v3859
    %v3861 = vsel %vm3858, %v3860, %v3856
    %v3862 = vmul.f32 1.0, %v3861
    %v3863 = vrcp.pop %v3847
    %v3864 = vmul.f32 %v3847, %v3863
    %v3865 = vsub.f32 1.0, %v3864
    %v3866 = vmul.f32 %v3863, %v3865
    %v3867 = vadd.f32 %v3863, %v3866
    %vm3868 = vweird.f32 %v3847
    %vm3869 = vweird.f32 %v3863
    %vm3870 = vmor %vm3868, %vm3869
    %v3871 = vsel %vm3870, %v3863, %v3867
    %v3872 = vand.u32 2147483647, %v3847
    %vm3873 = vcmp.eq.f32.partialorder %v3872, 8.507059e+37
    %v3874 = vand.u32 %v3847, 2147483648
    %v3875 = vor.u32 1.1754944e-38, %v3874
    %v3876 = vsel %vm3873, %v3875, %v3871
    %v3877 = vmul.f32 1.0, %v3876
    %v3878 = vmul.f32 %v3822, %v3862
    %v3879 = vmul.f32 %v3824, %v3877
    %v3880 = vmul.f32 %v3878, %v3836
    %v3881 = vmul.f32 %v3879, %v3838
    %v3882 = vpack.c.bf16 %v3881, %v3880
    %v3899 = vunpack.c.l.b16 %v2841
    %v3900 = vunpack.c.l.b16 %v2842
    %v3901 = vunpack.c.l.b16 %v2843
    %v3902 = vunpack.c.l.b16 %v2844
    %v3903 = vunpack.c.l.b16 %v2845
    %v3904 = vunpack.c.l.b16 %v2846
    %v3905 = vunpack.c.l.b16 %v2847
    %v3906 = vunpack.c.l.b16 %v2848
    %v3907 = vunpack.c.l.b16 %v2849
    %v3908 = vunpack.c.l.b16 %v2850
    %v3909 = vunpack.c.l.b16 %v2851
    %v3910 = vunpack.c.l.b16 %v2852
    %v3911 = vunpack.c.l.b16 %v2853
    %v3912 = vunpack.c.l.b16 %v2854
    %v3913 = vunpack.c.l.b16 %v2855
    %v3914 = vunpack.c.l.b16 %v2856
    %v3915 = vpack.c.b16 %v3900, %v3899
    %v3916 = vpack.c.b16 %v3902, %v3901
    %v3917 = vpack.c.b16 %v3904, %v3903
    %v3918 = vpack.c.b16 %v3906, %v3905
    %v3919 = vpack.c.b16 %v3908, %v3907
    %v3920 = vpack.c.b16 %v3910, %v3909
    %v3921 = vpack.c.b16 %v3912, %v3911
    %v3922 = vpack.c.b16 %v3914, %v3913
    %3931 = vmatpush.bf16.msra.mxu0 %v3922
    %3932 = vmatpush.bf16.msra.mxu0 %v3921
    %3933 = vmatpush.bf16.msra.mxu0 %v3920
    %3934 = vmatpush.bf16.msra.mxu0 %v3919
    %3935 = vmatpush.bf16.msra.mxu0 %v3918
    %3936 = vmatpush.bf16.msra.mxu0 %v3917
    %3937 = vmatpush.bf16.msra.mxu0 %v3916
    %3938 = vmatpush.bf16.msra.mxu0 %v3915
    %3939 = vmatmul.bf16.gmra.mxu0 %v3882
    %v3940 = vpop.f32.mrf.mxu0
    %v3941 = vadd.f32 0.0, %v3940
    %v3942 = vpop.f32.mrf.mxu0
    %v3943 = vadd.f32 0.0, %v3942
    %3944 = vdwg.mxu0
    %v3945 = vperm.slane %v2945, 0
    %v3946 = vperm.slane %v3768, 0
    %3951 = vrot.lane.b32.xlu0 %v3941, 32
    %v3952 = vpop.permute.xlu0 %3951
    %3953 = vrot.lane.b32.xlu0 %v3943, 32
    %v3954 = vpop.permute.xlu0 %3953
    %v3957 = vmul.f32 %v3945, %v3952
    %v3958 = vmul.f32 %v3946, %v3954
    %3961 = vrot.lane.b32.xlu0 %v3957, 96
    %v3962 = vpop.permute.xlu0 %3961
    %3963 = vrot.lane.b32.xlu0 %v3958, 96
    %v3964 = vpop.permute.xlu0 %3963
    %v3967 = vadd.f32 %v3726, %v3962
    %v3968 = vadd.f32 %v3727, %v3964
    %s3969 = scalar_lea.vmem [#allocation34], 2
    %v3970 = vld [vmem:[%s3969] sm:$0x1]
    %s3971 = scalar_lea.vmem [#allocation36], 2
    %v3972 = vld [vmem:[%s3971] sm:$0x1]
    %s3973 = scalar_lea.vmem [#allocation37], 2
    %v3974 = vld [vmem:[%s3973] sm:$0x1]
    %s3975 = scalar_lea.vmem [#allocation39], 192
    %v3976 = vld [vmem:[%s3975] sm:$0xff]
    %v3977 = vld [vmem:[%s3975 + $0x8] sm:$0xff]
    %v3978 = vld [vmem:[%s3975 + $0x10] sm:$0xff]
    %v3979 = vld [vmem:[%s3975 + $0x18] sm:$0xff]
    %v3980 = vld [vmem:[%s3975 + $0x20] sm:$0xff]
    %v3981 = vld [vmem:[%s3975 + $0x28] sm:$0xff]
    %v3982 = vld [vmem:[%s3975 + $0x30] sm:$0xff]
    %v3983 = vld [vmem:[%s3975 + $0x38] sm:$0xff]
    %v3984 = vld [vmem:[%s3975 + $0x40] sm:$0xff]
    %v3985 = vld [vmem:[%s3975 + $0x48] sm:$0xff]
    %v3986 = vld [vmem:[%s3975 + $0x50] sm:$0xff]
    %v3987 = vld [vmem:[%s3975 + $0x58] sm:$0xff]
    %s3988 = scalar_lea.vmem %s71, 4
    %v3989 = vld [vmem:[%s3988] sm:$0x3]
    %s3990 = scalar_lea.vmem [#allocation40], 32
    %v3991 = vld [vmem:[%s3990] sm:$0xf]
    %v3992 = vld [vmem:[%s3990 + $0x4] sm:$0xf]
    %v3993 = vld [vmem:[%s3990 + $0x8] sm:$0xf]
    %v3994 = vld [vmem:[%s3990 + $0xc] sm:$0xf]
    %s3995 = scalar_lea.vmem [#allocation42], 2
    %v3996 = vld [vmem:[%s3995] sm:$0x1]
    %s3997 = scalar_lea.vmem [#allocation43], 32
    %v3998 = vld [vmem:[%s3997] sm:$0xf]
    %v3999 = vld [vmem:[%s3997 + $0x4] sm:$0xf]
    %v4000 = vld [vmem:[%s3997 + $0x8] sm:$0xf]
    %v4001 = vld [vmem:[%s3997 + $0xc] sm:$0xf]
    %s4002 = scalar_lea.vmem [#allocation45], 2
    %v4003 = vld [vmem:[%s4002] sm:$0x1]
    %s4004 = scalar_lea.vmem %s81, 32
    %v4005 = vld [vmem:[%s4004] sm:$0xf]
    %v4006 = vld [vmem:[%s4004 + $0x4] sm:$0xf]
    %v4007 = vld [vmem:[%s4004 + $0x8] sm:$0xf]
    %v4008 = vld [vmem:[%s4004 + $0xc] sm:$0xf]
    %s4009 = scalar_lea.vmem [#allocation46], 2
    %v4010 = vld [vmem:[%s4009] sm:$0x1]
    %s4011 = scalar_lea.vmem [#allocation48], 64
    %v4012 = vld [vmem:[%s4011] sm:$0xff]
    %v4013 = vld [vmem:[%s4011 + $0x8] sm:$0xff]
    %v4014 = vld [vmem:[%s4011 + $0x10] sm:$0xff]
    %v4015 = vld [vmem:[%s4011 + $0x18] sm:$0xff]
    %s4016 = scalar_lea.vmem [#allocation49], 128
    %v4017 = vld [vmem:[%s4016] sm:$0xf]
    %v4018 = vld [vmem:[%s4016 + $0x4] sm:$0xf]
    %v4019 = vld [vmem:[%s4016 + $0x8] sm:$0xf]
    %v4020 = vld [vmem:[%s4016 + $0xc] sm:$0xf]
    %v4021 = vld [vmem:[%s4016 + $0x10] sm:$0xf]
    %v4022 = vld [vmem:[%s4016 + $0x14] sm:$0xf]
    %v4023 = vld [vmem:[%s4016 + $0x18] sm:$0xf]
    %v4024 = vld [vmem:[%s4016 + $0x1c] sm:$0xf]
    %v4025 = vld [vmem:[%s4016 + $0x20] sm:$0xf]
    %v4026 = vld [vmem:[%s4016 + $0x24] sm:$0xf]
    %v4027 = vld [vmem:[%s4016 + $0x28] sm:$0xf]
    %v4028 = vld [vmem:[%s4016 + $0x2c] sm:$0xf]
    %v4029 = vld [vmem:[%s4016 + $0x30] sm:$0xf]
    %v4030 = vld [vmem:[%s4016 + $0x34] sm:$0xf]
    %v4031 = vld [vmem:[%s4016 + $0x38] sm:$0xf]
    %v4032 = vld [vmem:[%s4016 + $0x3c] sm:$0xf]
    %v4034 = vperm.slane %v3989, 0
    %v4035 = vperm.slane %v3989, 1
    %v4050 = vunpack.c.l.b16 %v3976
    %v4051 = vunpack.c.h.b16 %v3976
    %v4052 = vunpack.c.l.b16 %v3977
    %v4053 = vunpack.c.h.b16 %v3977
    %v4054 = vunpack.c.l.b16 %v3978
    %v4055 = vunpack.c.h.b16 %v3978
    %v4056 = vunpack.c.l.b16 %v3979
    %v4057 = vunpack.c.h.b16 %v3979
    %v4058 = vunpack.c.l.b16 %v3980
    %v4059 = vunpack.c.h.b16 %v3980
    %v4060 = vunpack.c.l.b16 %v3981
    %v4061 = vunpack.c.h.b16 %v3981
    %v4062 = vunpack.c.l.b16 %v3982
    %v4063 = vunpack.c.h.b16 %v3982
    %v4064 = vunpack.c.l.b16 %v3983
    %v4065 = vunpack.c.h.b16 %v3983
    %v4066 = vunpack.c.l.b16 %v3984
    %v4067 = vunpack.c.h.b16 %v3984
    %v4068 = vunpack.c.l.b16 %v3985
    %v4069 = vunpack.c.h.b16 %v3985
    %v4070 = vunpack.c.l.b16 %v3986
    %v4071 = vunpack.c.h.b16 %v3986
    %v4072 = vunpack.c.l.b16 %v3987
    %v4073 = vunpack.c.h.b16 %v3987
    %v4074 = vpack.c.b16 %v4052, %v4050
    %v4075 = vpack.c.b16 %v4053, %v4051
    %v4076 = vpack.c.b16 %v4056, %v4054
    %v4077 = vpack.c.b16 %v4057, %v4055
    %v4078 = vpack.c.b16 %v4060, %v4058
    %v4079 = vpack.c.b16 %v4061, %v4059
    %v4080 = vpack.c.b16 %v4064, %v4062
    %v4081 = vpack.c.b16 %v4065, %v4063
    %v4082 = vpack.c.b16 %v4068, %v4066
    %v4083 = vpack.c.b16 %v4069, %v4067
    %v4084 = vpack.c.b16 %v4072, %v4070
    %v4085 = vpack.c.b16 %v4073, %v4071
    %4098 = vmatpush.bf16.msra.mxu0 0
    %4099 = vmatpush.bf16.msra.mxu0 0
    %4100 = vmatpush.bf16.msra.mxu0 %v4084
    %4101 = vmatpush.bf16.msra.mxu0 %v4082
    %4102 = vmatpush.bf16.msra.mxu0 %v4080
    %4103 = vmatpush.bf16.msra.mxu0 %v4078
    %4104 = vmatpush.bf16.msra.mxu0 %v4076
    %4105 = vmatpush.bf16.msra.mxu0 %v4074
    %4106 = vmatmul.bf16.gmra.mxu0 %v1702
    %v4107 = vpop.f32.mrf.mxu0
    %v4108 = vadd.f32 %v4034, %v4107
    %v4109 = vpop.f32.mrf.mxu0
    %4110 = vdwg.mxu0
    %4111 = vmatpush.bf16.msra.mxu0 0
    %4112 = vmatpush.bf16.msra.mxu0 0
    %4113 = vmatpush.bf16.msra.mxu0 %v4085
    %4114 = vmatpush.bf16.msra.mxu0 %v4083
    %4115 = vmatpush.bf16.msra.mxu0 %v4081
    %4116 = vmatpush.bf16.msra.mxu0 %v4079
    %4117 = vmatpush.bf16.msra.mxu0 %v4077
    %4118 = vmatpush.bf16.msra.mxu0 %v4075
    %4119 = vmatmul.bf16.gmra.mxu0 %v1702
    %v4120 = vpop.f32.mrf.mxu0
    %v4121 = vadd.f32 %v4035, %v4120
    %v4122 = vpop.f32.mrf.mxu0
    %4123 = vdwg.mxu0
    %v4125 = vperm.slane %v3970, 0
    %v4127 = vmul.f32 %v3009, %v4125
    %v4128 = vmul.f32 %v3010, %v4125
    %v4130 = vrot.slane %v4108, 1
    %v4132 = vadd.f32 %v4108, 1.0
    %v4133 = vadd.f32 %v4130, 1.0
    %v4136 = vperm.slane %v4132, 0
    %v4137 = vperm.slane %v4133, 0
    %4138 = vrot.lane.b32.xlu0 %v4136, 96
    %v4139 = vpop.permute.xlu0 %4138
    %4140 = vrot.lane.b32.xlu0 %v4137, 96
    %v4141 = vpop.permute.xlu0 %4140
    %v4144 = vmul.f32 %v4127, %v4139
    %v4145 = vmul.f32 %v4128, %v4141
    %v4146 = vperm.slane %v4108, 0
    %v4147 = vperm.slane %v4130, 0
    %v4150 = vadd.f32 %v4144, %v4146
    %v4151 = vadd.f32 %v4145, %v4147
    %v4152 = vpack.c.bf16 %v4151, %v4150
    %v4153 = vmul.f32 %v3967, %v3967
    %v4154 = vmul.f32 %v3968, %v3968
    %v4155 = vsel %vm843, %v4153, 0.0
    %4156 = vadd.xlane.f32.xlu0 %v4155
    %v4157 = vpop.xlane.xlu0 %4156
    %v4158 = vsel %vm843, %v4154, 0.0
    %4159 = vadd.xlane.f32.xlu0 %v4158
    %v4160 = vpop.xlane.xlu0 %4159
    %v4161 = vmul.f32 %v4157, %v1744
    %v4162 = vmul.f32 %v4160, %v1744
    %v4163 = vadd.f32 %v4161, 1e-06
    %v4164 = vadd.f32 %v4162, 1e-06
    %v4165 = vrsqrt.pop %v4163
    %v4166 = vmul.f32 %v4165, %v4163
    %v4167 = vmul.f32 %v4166, %v4165
    %v4168 = vmul.f32 0.5, %v4167
    %v4169 = vsub.f32 1.5, %v4168
    %v4170 = vmul.f32 %v4165, %v4169
    %vm4171 = vweird.f32 %v4163
    %vm4172 = vweird.f32 %v4165
    %vm4173 = vmor %vm4171, %vm4172
    %v4174 = vsel %vm4173, %v4165, %v4170
    %v4175 = vrsqrt.pop %v4164
    %v4176 = vmul.f32 %v4175, %v4164
    %v4177 = vmul.f32 %v4176, %v4175
    %v4178 = vmul.f32 0.5, %v4177
    %v4179 = vsub.f32 1.5, %v4178
    %v4180 = vmul.f32 %v4175, %v4179
    %vm4181 = vweird.f32 %v4164
    %vm4182 = vweird.f32 %v4175
    %vm4183 = vmor %vm4181, %vm4182
    %v4184 = vsel %vm4183, %v4175, %v4180
    %v4185 = vmul.f32 %v3967, %v4174
    %v4186 = vmul.f32 %v3968, %v4184
    %v4188 = vperm.slane %v3972, 0
    %v4190 = vmul.f32 %v4185, %v4188
    %v4191 = vmul.f32 %v4186, %v4188
    %v4192 = vpack.c.bf16 %v4191, %v4190
    %v4194 = vperm.slane %v3996, 0
    %v4200 = vunpack.c.l.b16 %v3991
    %v4201 = vunpack.c.l.b16 %v3992
    %v4202 = vunpack.c.l.b16 %v3993
    %v4203 = vunpack.c.l.b16 %v3994
    %v4204 = vpack.c.b16 %v4201, %v4200
    %v4205 = vpack.c.b16 %v4203, %v4202
    %v4209 = vsel %vm843, %v4152, 0
    %4211 = vmatpush.bf16.msra.mxu0 0
    %4212 = vmatpush.bf16.msra.mxu0 0
    %4213 = vmatpush.bf16.msra.mxu0 0
    %4214 = vmatpush.bf16.msra.mxu0 0
    %4215 = vmatpush.bf16.msra.mxu0 0
    %4216 = vmatpush.bf16.msra.mxu0 0
    %4217 = vmatpush.bf16.msra.mxu0 %v4205
    %4218 = vmatpush.bf16.msra.mxu0 %v4204
    %4219 = vmatmul.bf16.gmra.mxu0 %v4209
    %v4220 = vpop.f32.mrf.mxu0
    %v4221 = vadd.f32 %v4194, %v4220
    %v4222 = vpop.f32.mrf.mxu0
    %v4223 = vadd.f32 %v4194, %v4222
    %4224 = vdwg.mxu0
    %v4226 = vperm.slane %v4003, 0
    %v4232 = vunpack.c.l.b16 %v3998
    %v4233 = vunpack.c.l.b16 %v3999
    %v4234 = vunpack.c.l.b16 %v4000
    %v4235 = vunpack.c.l.b16 %v4001
    %v4236 = vpack.c.b16 %v4233, %v4232
    %v4237 = vpack.c.b16 %v4235, %v4234
    %v4241 = vsel %vm843, %v4192, 0
    %4243 = vmatpush.bf16.msra.mxu0 0
    %4244 = vmatpush.bf16.msra.mxu0 0
    %4245 = vmatpush.bf16.msra.mxu0 0
    %4246 = vmatpush.bf16.msra.mxu0 0
    %4247 = vmatpush.bf16.msra.mxu0 0
    %4248 = vmatpush.bf16.msra.mxu0 0
    %4249 = vmatpush.bf16.msra.mxu0 %v4237
    %4250 = vmatpush.bf16.msra.mxu0 %v4236
    %4251 = vmatmul.bf16.gmra.mxu0 %v4241
    %v4252 = vpop.f32.mrf.mxu0
    %v4253 = vadd.f32 %v4226, %v4252
    %v4254 = vpop.f32.mrf.mxu0
    %v4255 = vadd.f32 %v4226, %v4254
    %4256 = vdwg.mxu0
    %v4257 = vpack.c.bf16 %v4221, %v4221
    %v4258 = vpack.c.bf16 %v4223, %v4223
    %v4259 = vpack.c.bf16 %v4253, %v4253
    %v4260 = vpack.c.bf16 %v4255, %v4255
    %v4262 = vsel %vm760, %v4257, 0
    %v4265 = vsel %vm760, %v4259, 0
    %4267 = vmatpush.bf16.xpose.msra.mxu0 0
    %4268 = vmatpush.bf16.xpose.msra.mxu0 0
    %4269 = vmatpush.bf16.xpose.msra.mxu0 0
    %4270 = vmatpush.bf16.xpose.msra.mxu0 0
    %4271 = vmatpush.bf16.xpose.msra.mxu0 0
    %4272 = vmatpush.bf16.xpose.msra.mxu0 0
    %4273 = vmatpush.bf16.xpose.msra.mxu0 0
    %4274 = vmatpush.bf16.xpose.msra.mxu0 %v4265
    %4275 = vmatmul.bf16.gmra.mxu0 %v4262
    %v4276 = vpop.f32.mrf.mxu0
    %v4277 = vadd.f32 %v1908, %v4276
    %v4278 = vpop.f32.mrf.mxu0
    %4279 = vdwg.mxu0
    %v4281 = vsel %vm760, %v4258, 0
    %v4284 = vsel %vm760, %v4260, 0
    %4286 = vmatpush.bf16.xpose.msra.mxu0 0
    %4287 = vmatpush.bf16.xpose.msra.mxu0 0
    %4288 = vmatpush.bf16.xpose.msra.mxu0 0
    %4289 = vmatpush.bf16.xpose.msra.mxu0 0
    %4290 = vmatpush.bf16.xpose.msra.mxu0 0
    %4291 = vmatpush.bf16.xpose.msra.mxu0 0
    %4292 = vmatpush.bf16.xpose.msra.mxu0 0
    %4293 = vmatpush.bf16.xpose.msra.mxu0 %v4284
    %4294 = vmatmul.bf16.gmra.mxu0 %v4281
    %v4295 = vpop.f32.mrf.mxu0
    %v4296 = vadd.f32 %v1909, %v4295
    %v4297 = vpop.f32.mrf.mxu0
    %4298 = vdwg.mxu0
    %v4299 = vsel %vm760, %v4277, -inf
    %4300 = vmax.xlane.f32.xlu0 %v4299
    %v4301 = vpop.xlane.xlu0 %4300
    %v4302 = vsel %vm760, %v4296, -inf
    %4303 = vmax.xlane.f32.xlu0 %v4302
    %v4304 = vpop.xlane.xlu0 %4303
    %v4305 = vsub.f32 %v4277, %v4301
    %v4306 = vsub.f32 %v4296, %v4304
    %v4307 = vmul.f32 %v4305, 1.442695
    %v4308 = vpow.pop %v4307
    %v4309 = vmul.f32 %v4306, 1.442695
    %v4310 = vpow.pop %v4309
    %v4311 = vsel %vm760, %v4308, 0.0
    %4312 = vadd.xlane.f32.xlu0 %v4311
    %v4313 = vpop.xlane.xlu0 %4312
    %v4314 = vsel %vm760, %v4310, 0.0
    %4315 = vadd.xlane.f32.xlu0 %v4314
    %v4316 = vpop.xlane.xlu0 %4315
    %v4317 = vrcp.pop %v4313
    %v4318 = vmul.f32 %v4313, %v4317
    %v4319 = vsub.f32 1.0, %v4318
    %v4320 = vmul.f32 %v4317, %v4319
    %v4321 = vadd.f32 %v4317, %v4320
    %vm4322 = vweird.f32 %v4313
    %vm4323 = vweird.f32 %v4317
    %vm4324 = vmor %vm4322, %vm4323
    %v4325 = vsel %vm4324, %v4317, %v4321
    %v4326 = vand.u32 2147483647, %v4313
    %vm4327 = vcmp.eq.f32.partialorder %v4326, 8.507059e+37
    %v4328 = vand.u32 %v4313, 2147483648
    %v4329 = vor.u32 1.1754944e-38, %v4328
    %v4330 = vsel %vm4327, %v4329, %v4325
    %v4331 = vmul.f32 %v4308, %v4330
    %v4332 = vrcp.pop %v4316
    %v4333 = vmul.f32 %v4316, %v4332
    %v4334 = vsub.f32 1.0, %v4333
    %v4335 = vmul.f32 %v4332, %v4334
    %v4336 = vadd.f32 %v4332, %v4335
    %vm4337 = vweird.f32 %v4316
    %vm4338 = vweird.f32 %v4332
    %vm4339 = vmor %vm4337, %vm4338
    %v4340 = vsel %vm4339, %v4332, %v4336
    %v4341 = vand.u32 2147483647, %v4316
    %vm4342 = vcmp.eq.f32.partialorder %v4341, 8.507059e+37
    %v4343 = vand.u32 %v4316, 2147483648
    %v4344 = vor.u32 1.1754944e-38, %v4343
    %v4345 = vsel %vm4342, %v4344, %v4340
    %v4346 = vmul.f32 %v4310, %v4345
    %v4347 = vpack.c.bf16 %v4331, %v4331
    %v4348 = vpack.c.bf16 %v4346, %v4346
    %v4350 = vunpack.c.l.b16 %v4259
    %v4351 = vpack.c.b16 %v4350, %v4350
    %4352 = vrot.lane.b32.xlu0 %v4351, 96
    %v4353 = vpop.permute.xlu0 %4352
    %v4355 = vsel %vm760, %v4347, 0
    %v4358 = vsel %vm764, %v4353, 0
    %4360 = vmatpush.bf16.msra.mxu0 0
    %4361 = vmatpush.bf16.msra.mxu0 0
    %4362 = vmatpush.bf16.msra.mxu0 0
    %4363 = vmatpush.bf16.msra.mxu0 0
    %4364 = vmatpush.bf16.msra.mxu0 0
    %4365 = vmatpush.bf16.msra.mxu0 0
    %4366 = vmatpush.bf16.msra.mxu0 0
    %4367 = vmatpush.bf16.msra.mxu0 %v4358
    %4368 = vmatmul.bf16.gmra.mxu0 %v4355
    %v4369 = vpop.f32.mrf.mxu0
    %v4370 = vadd.f32 0.0, %v4369
    %v4371 = vpop.f32.mrf.mxu0
    %4372 = vdwg.mxu0
    %v4374 = vunpack.c.l.b16 %v4260
    %v4375 = vpack.c.b16 %v4374, %v4374
    %4376 = vrot.lane.b32.xlu0 %v4375, 96
    %v4377 = vpop.permute.xlu0 %4376
    %v4379 = vsel %vm760, %v4348, 0
    %v4382 = vsel %vm764, %v4377, 0
    %4384 = vmatpush.bf16.msra.mxu0 0
    %4385 = vmatpush.bf16.msra.mxu0 0
    %4386 = vmatpush.bf16.msra.mxu0 0
    %4387 = vmatpush.bf16.msra.mxu0 0
    %4388 = vmatpush.bf16.msra.mxu0 0
    %4389 = vmatpush.bf16.msra.mxu0 0
    %4390 = vmatpush.bf16.msra.mxu0 0
    %4391 = vmatpush.bf16.msra.mxu0 %v4382
    %4392 = vmatmul.bf16.gmra.mxu0 %v4379
    %v4393 = vpop.f32.mrf.mxu0
    %v4394 = vadd.f32 0.0, %v4393
    %v4395 = vpop.f32.mrf.mxu0
    %4396 = vdwg.mxu0
    %v4398 = vunpack.c.l.b16 %v4257
    %v4399 = vpack.c.b16 %v4398, %v4398
    %4400 = vrot.lane.b32.xlu0 %v4399, 120
    %v4401 = vpop.permute.xlu0 %4400
    %4402 = vrot.lane.b32.xlu0 %v4351, 120
    %v4403 = vpop.permute.xlu0 %4402
    %v4405 = vsel %vm760, %v4401, 0
    %v4408 = vsel %vm760, %v4403, 0
    %4410 = vmatpush.bf16.xpose.msra.mxu0 0
    %4411 = vmatpush.bf16.xpose.msra.mxu0 0
    %4412 = vmatpush.bf16.xpose.msra.mxu0 0
    %4413 = vmatpush.bf16.xpose.msra.mxu0 0
    %4414 = vmatpush.bf16.xpose.msra.mxu0 0
    %4415 = vmatpush.bf16.xpose.msra.mxu0 0
    %4416 = vmatpush.bf16.xpose.msra.mxu0 0
    %4417 = vmatpush.bf16.xpose.msra.mxu0 %v4408
    %4418 = vmatmul.bf16.gmra.mxu0 %v4405
    %v4419 = vpop.f32.mrf.mxu0
    %v4420 = vadd.f32 %v1908, %v4419
    %v4421 = vpop.f32.mrf.mxu0
    %4422 = vdwg.mxu0
    %v4424 = vunpack.c.l.b16 %v4258
    %v4425 = vpack.c.b16 %v4424, %v4424
    %4426 = vrot.lane.b32.xlu0 %v4425, 120
    %v4427 = vpop.permute.xlu0 %4426
    %4428 = vrot.lane.b32.xlu0 %v4375, 120
    %v4429 = vpop.permute.xlu0 %4428
    %v4431 = vsel %vm760, %v4427, 0
    %v4434 = vsel %vm760, %v4429, 0
    %4436 = vmatpush.bf16.xpose.msra.mxu0 0
    %4437 = vmatpush.bf16.xpose.msra.mxu0 0
    %4438 = vmatpush.bf16.xpose.msra.mxu0 0
    %4439 = vmatpush.bf16.xpose.msra.mxu0 0
    %4440 = vmatpush.bf16.xpose.msra.mxu0 0
    %4441 = vmatpush.bf16.xpose.msra.mxu0 0
    %4442 = vmatpush.bf16.xpose.msra.mxu0 0
    %4443 = vmatpush.bf16.xpose.msra.mxu0 %v4434
    %4444 = vmatmul.bf16.gmra.mxu0 %v4431
    %v4445 = vpop.f32.mrf.mxu0
    %v4446 = vadd.f32 %v1909, %v4445
    %v4447 = vpop.f32.mrf.mxu0
    %4448 = vdwg.mxu0
    %v4449 = vsel %vm760, %v4420, -inf
    %4450 = vmax.xlane.f32.xlu0 %v4449
    %v4451 = vpop.xlane.xlu0 %4450
    %v4452 = vsel %vm760, %v4446, -inf
    %4453 = vmax.xlane.f32.xlu0 %v4452
    %v4454 = vpop.xlane.xlu0 %4453
    %v4455 = vsub.f32 %v4420, %v4451
    %v4456 = vsub.f32 %v4446, %v4454
    %v4457 = vmul.f32 %v4455, 1.442695
    %v4458 = vpow.pop %v4457
    %v4459 = vmul.f32 %v4456, 1.442695
    %v4460 = vpow.pop %v4459
    %v4461 = vsel %vm760, %v4458, 0.0
    %4462 = vadd.xlane.f32.xlu0 %v4461
    %v4463 = vpop.xlane.xlu0 %4462
    %v4464 = vsel %vm760, %v4460, 0.0
    %4465 = vadd.xlane.f32.xlu0 %v4464
    %v4466 = vpop.xlane.xlu0 %4465
    %v4467 = vrcp.pop %v4463
    %v4468 = vmul.f32 %v4463, %v4467
    %v4469 = vsub.f32 1.0, %v4468
    %v4470 = vmul.f32 %v4467, %v4469
    %v4471 = vadd.f32 %v4467, %v4470
    %vm4472 = vweird.f32 %v4463
    %vm4473 = vweird.f32 %v4467
    %vm4474 = vmor %vm4472, %vm4473
    %v4475 = vsel %vm4474, %v4467, %v4471
    %v4476 = vand.u32 2147483647, %v4463
    %vm4477 = vcmp.eq.f32.partialorder %v4476, 8.507059e+37
    %v4478 = vand.u32 %v4463, 2147483648
    %v4479 = vor.u32 1.1754944e-38, %v4478
    %v4480 = vsel %vm4477, %v4479, %v4475
    %v4481 = vmul.f32 %v4458, %v4480
    %v4482 = vrcp.pop %v4466
    %v4483 = vmul.f32 %v4466, %v4482
    %v4484 = vsub.f32 1.0, %v4483
    %v4485 = vmul.f32 %v4482, %v4484
    %v4486 = vadd.f32 %v4482, %v4485
    %vm4487 = vweird.f32 %v4466
    %vm4488 = vweird.f32 %v4482
    %vm4489 = vmor %vm4487, %vm4488
    %v4490 = vsel %vm4489, %v4482, %v4486
    %v4491 = vand.u32 2147483647, %v4466
    %vm4492 = vcmp.eq.f32.partialorder %v4491, 8.507059e+37
    %v4493 = vand.u32 %v4466, 2147483648
    %v4494 = vor.u32 1.1754944e-38, %v4493
    %v4495 = vsel %vm4492, %v4494, %v4490
    %v4496 = vmul.f32 %v4460, %v4495
    %v4497 = vpack.c.bf16 %v4481, %v4481
    %v4498 = vpack.c.bf16 %v4496, %v4496
    %4499 = vrot.lane.b32.xlu0 %v4351, 88
    %v4500 = vpop.permute.xlu0 %4499
    %v4502 = vsel %vm760, %v4497, 0
    %v4505 = vsel %vm764, %v4500, 0
    %4507 = vmatpush.bf16.msra.mxu0 0
    %4508 = vmatpush.bf16.msra.mxu0 0
    %4509 = vmatpush.bf16.msra.mxu0 0
    %4510 = vmatpush.bf16.msra.mxu0 0
    %4511 = vmatpush.bf16.msra.mxu0 0
    %4512 = vmatpush.bf16.msra.mxu0 0
    %4513 = vmatpush.bf16.msra.mxu0 0
    %4514 = vmatpush.bf16.msra.mxu0 %v4505
    %4515 = vmatmul.bf16.gmra.mxu0 %v4502
    %v4516 = vpop.f32.mrf.mxu0
    %v4517 = vadd.f32 0.0, %v4516
    %v4518 = vpop.f32.mrf.mxu0
    %4519 = vdwg.mxu0
    %4520 = vrot.lane.b32.xlu0 %v4375, 88
    %v4521 = vpop.permute.xlu0 %4520
    %v4523 = vsel %vm760, %v4498, 0
    %v4526 = vsel %vm764, %v4521, 0
    %4528 = vmatpush.bf16.msra.mxu0 0
    %4529 = vmatpush.bf16.msra.mxu0 0
    %4530 = vmatpush.bf16.msra.mxu0 0
    %4531 = vmatpush.bf16.msra.mxu0 0
    %4532 = vmatpush.bf16.msra.mxu0 0
    %4533 = vmatpush.bf16.msra.mxu0 0
    %4534 = vmatpush.bf16.msra.mxu0 0
    %4535 = vmatpush.bf16.msra.mxu0 %v4526
    %4536 = vmatmul.bf16.gmra.mxu0 %v4523
    %v4537 = vpop.f32.mrf.mxu0
    %v4538 = vadd.f32 0.0, %v4537
    %v4539 = vpop.f32.mrf.mxu0
    %4540 = vdwg.mxu0
    %4541 = vrot.lane.b32.xlu0 %v4399, 112
    %v4542 = vpop.permute.xlu0 %4541
    %4543 = vrot.lane.b32.xlu0 %v4351, 112
    %v4544 = vpop.permute.xlu0 %4543
    %v4546 = vsel %vm760, %v4542, 0
    %v4549 = vsel %vm760, %v4544, 0
    %4551 = vmatpush.bf16.xpose.msra.mxu0 0
    %4552 = vmatpush.bf16.xpose.msra.mxu0 0
    %4553 = vmatpush.bf16.xpose.msra.mxu0 0
    %4554 = vmatpush.bf16.xpose.msra.mxu0 0
    %4555 = vmatpush.bf16.xpose.msra.mxu0 0
    %4556 = vmatpush.bf16.xpose.msra.mxu0 0
    %4557 = vmatpush.bf16.xpose.msra.mxu0 0
    %4558 = vmatpush.bf16.xpose.msra.mxu0 %v4549
    %4559 = vmatmul.bf16.gmra.mxu0 %v4546
    %v4560 = vpop.f32.mrf.mxu0
    %v4561 = vadd.f32 %v1908, %v4560
    %v4562 = vpop.f32.mrf.mxu0
    %4563 = vdwg.mxu0
    %4564 = vrot.lane.b32.xlu0 %v4425, 112
    %v4565 = vpop.permute.xlu0 %4564
    %4566 = vrot.lane.b32.xlu0 %v4375, 112
    %v4567 = vpop.permute.xlu0 %4566
    %v4569 = vsel %vm760, %v4565, 0
    %v4572 = vsel %vm760, %v4567, 0
    %4574 = vmatpush.bf16.xpose.msra.mxu0 0
    %4575 = vmatpush.bf16.xpose.msra.mxu0 0
    %4576 = vmatpush.bf16.xpose.msra.mxu0 0
    %4577 = vmatpush.bf16.xpose.msra.mxu0 0
    %4578 = vmatpush.bf16.xpose.msra.mxu0 0
    %4579 = vmatpush.bf16.xpose.msra.mxu0 0
    %4580 = vmatpush.bf16.xpose.msra.mxu0 0
    %4581 = vmatpush.bf16.xpose.msra.mxu0 %v4572
    %4582 = vmatmul.bf16.gmra.mxu0 %v4569
    %v4583 = vpop.f32.mrf.mxu0
    %v4584 = vadd.f32 %v1909, %v4583
    %v4585 = vpop.f32.mrf.mxu0
    %4586 = vdwg.mxu0
    %v4587 = vsel %vm760, %v4561, -inf
    %4588 = vmax.xlane.f32.xlu0 %v4587
    %v4589 = vpop.xlane.xlu0 %4588
    %v4590 = vsel %vm760, %v4584, -inf
    %4591 = vmax.xlane.f32.xlu0 %v4590
    %v4592 = vpop.xlane.xlu0 %4591
    %v4593 = vsub.f32 %v4561, %v4589
    %v4594 = vsub.f32 %v4584, %v4592
    %v4595 = vmul.f32 %v4593, 1.442695
    %v4596 = vpow.pop %v4595
    %v4597 = vmul.f32 %v4594, 1.442695
    %v4598 = vpow.pop %v4597
    %v4599 = vsel %vm760, %v4596, 0.0
    %4600 = vadd.xlane.f32.xlu0 %v4599
    %v4601 = vpop.xlane.xlu0 %4600
    %v4602 = vsel %vm760, %v4598, 0.0
    %4603 = vadd.xlane.f32.xlu0 %v4602
    %v4604 = vpop.xlane.xlu0 %4603
    %v4605 = vrcp.pop %v4601
    %v4606 = vmul.f32 %v4601, %v4605
    %v4607 = vsub.f32 1.0, %v4606
    %v4608 = vmul.f32 %v4605, %v4607
    %v4609 = vadd.f32 %v4605, %v4608
    %vm4610 = vweird.f32 %v4601
    %vm4611 = vweird.f32 %v4605
    %vm4612 = vmor %vm4610, %vm4611
    %v4613 = vsel %vm4612, %v4605, %v4609
    %v4614 = vand.u32 2147483647, %v4601
    %vm4615 = vcmp.eq.f32.partialorder %v4614, 8.507059e+37
    %v4616 = vand.u32 %v4601, 2147483648
    %v4617 = vor.u32 1.1754944e-38, %v4616
    %v4618 = vsel %vm4615, %v4617, %v4613
    %v4619 = vmul.f32 %v4596, %v4618
    %v4620 = vrcp.pop %v4604
    %v4621 = vmul.f32 %v4604, %v4620
    %v4622 = vsub.f32 1.0, %v4621
    %v4623 = vmul.f32 %v4620, %v4622
    %v4624 = vadd.f32 %v4620, %v4623
    %vm4625 = vweird.f32 %v4604
    %vm4626 = vweird.f32 %v4620
    %vm4627 = vmor %vm4625, %vm4626
    %v4628 = vsel %vm4627, %v4620, %v4624
    %v4629 = vand.u32 2147483647, %v4604
    %vm4630 = vcmp.eq.f32.partialorder %v4629, 8.507059e+37
    %v4631 = vand.u32 %v4604, 2147483648
    %v4632 = vor.u32 1.1754944e-38, %v4631
    %v4633 = vsel %vm4630, %v4632, %v4628
    %v4634 = vmul.f32 %v4598, %v4633
    %v4635 = vpack.c.bf16 %v4619, %v4619
    %v4636 = vpack.c.bf16 %v4634, %v4634
    %4637 = vrot.lane.b32.xlu0 %v4351, 80
    %v4638 = vpop.permute.xlu0 %4637
    %v4640 = vsel %vm760, %v4635, 0
    %v4643 = vsel %vm764, %v4638, 0
    %4645 = vmatpush.bf16.msra.mxu0 0
    %4646 = vmatpush.bf16.msra.mxu0 0
    %4647 = vmatpush.bf16.msra.mxu0 0
    %4648 = vmatpush.bf16.msra.mxu0 0
    %4649 = vmatpush.bf16.msra.mxu0 0
    %4650 = vmatpush.bf16.msra.mxu0 0
    %4651 = vmatpush.bf16.msra.mxu0 0
    %4652 = vmatpush.bf16.msra.mxu0 %v4643
    %4653 = vmatmul.bf16.gmra.mxu0 %v4640
    %v4654 = vpop.f32.mrf.mxu0
    %v4655 = vadd.f32 0.0, %v4654
    %v4656 = vpop.f32.mrf.mxu0
    %4657 = vdwg.mxu0
    %4658 = vrot.lane.b32.xlu0 %v4375, 80
    %v4659 = vpop.permute.xlu0 %4658
    %v4661 = vsel %vm760, %v4636, 0
    %v4664 = vsel %vm764, %v4659, 0
    %4666 = vmatpush.bf16.msra.mxu0 0
    %4667 = vmatpush.bf16.msra.mxu0 0
    %4668 = vmatpush.bf16.msra.mxu0 0
    %4669 = vmatpush.bf16.msra.mxu0 0
    %4670 = vmatpush.bf16.msra.mxu0 0
    %4671 = vmatpush.bf16.msra.mxu0 0
    %4672 = vmatpush.bf16.msra.mxu0 0
    %4673 = vmatpush.bf16.msra.mxu0 %v4664
    %4674 = vmatmul.bf16.gmra.mxu0 %v4661
    %v4675 = vpop.f32.mrf.mxu0
    %v4676 = vadd.f32 0.0, %v4675
    %v4677 = vpop.f32.mrf.mxu0
    %4678 = vdwg.mxu0
    %4679 = vrot.lane.b32.xlu0 %v4399, 104
    %v4680 = vpop.permute.xlu0 %4679
    %4681 = vrot.lane.b32.xlu0 %v4351, 104
    %v4682 = vpop.permute.xlu0 %4681
    %v4684 = vsel %vm760, %v4680, 0
    %v4687 = vsel %vm760, %v4682, 0
    %4689 = vmatpush.bf16.xpose.msra.mxu0 0
    %4690 = vmatpush.bf16.xpose.msra.mxu0 0
    %4691 = vmatpush.bf16.xpose.msra.mxu0 0
    %4692 = vmatpush.bf16.xpose.msra.mxu0 0
    %4693 = vmatpush.bf16.xpose.msra.mxu0 0
    %4694 = vmatpush.bf16.xpose.msra.mxu0 0
    %4695 = vmatpush.bf16.xpose.msra.mxu0 0
    %4696 = vmatpush.bf16.xpose.msra.mxu0 %v4687
    %4697 = vmatmul.bf16.gmra.mxu0 %v4684
    %v4698 = vpop.f32.mrf.mxu0
    %v4699 = vadd.f32 %v1908, %v4698
    %v4700 = vpop.f32.mrf.mxu0
    %4701 = vdwg.mxu0
    %4702 = vrot.lane.b32.xlu0 %v4425, 104
    %v4703 = vpop.permute.xlu0 %4702
    %4704 = vrot.lane.b32.xlu0 %v4375, 104
    %v4705 = vpop.permute.xlu0 %4704
    %v4707 = vsel %vm760, %v4703, 0
    %v4710 = vsel %vm760, %v4705, 0
    %4712 = vmatpush.bf16.xpose.msra.mxu0 0
    %4713 = vmatpush.bf16.xpose.msra.mxu0 0
    %4714 = vmatpush.bf16.xpose.msra.mxu0 0
    %4715 = vmatpush.bf16.xpose.msra.mxu0 0
    %4716 = vmatpush.bf16.xpose.msra.mxu0 0
    %4717 = vmatpush.bf16.xpose.msra.mxu0 0
    %4718 = vmatpush.bf16.xpose.msra.mxu0 0
    %4719 = vmatpush.bf16.xpose.msra.mxu0 %v4710
    %4720 = vmatmul.bf16.gmra.mxu0 %v4707
    %v4721 = vpop.f32.mrf.mxu0
    %v4722 = vadd.f32 %v1909, %v4721
    %v4723 = vpop.f32.mrf.mxu0
    %4724 = vdwg.mxu0
    %v4725 = vsel %vm760, %v4699, -inf
    %4726 = vmax.xlane.f32.xlu0 %v4725
    %v4727 = vpop.xlane.xlu0 %4726
    %v4728 = vsel %vm760, %v4722, -inf
    %4729 = vmax.xlane.f32.xlu0 %v4728
    %v4730 = vpop.xlane.xlu0 %4729
    %v4731 = vsub.f32 %v4699, %v4727
    %v4732 = vsub.f32 %v4722, %v4730
    %v4733 = vmul.f32 %v4731, 1.442695
    %v4734 = vpow.pop %v4733
    %v4735 = vmul.f32 %v4732, 1.442695
    %v4736 = vpow.pop %v4735
    %v4737 = vsel %vm760, %v4734, 0.0
    %4738 = vadd.xlane.f32.xlu0 %v4737
    %v4739 = vpop.xlane.xlu0 %4738
    %v4740 = vsel %vm760, %v4736, 0.0
    %4741 = vadd.xlane.f32.xlu0 %v4740
    %v4742 = vpop.xlane.xlu0 %4741
    %v4743 = vrcp.pop %v4739
    %v4744 = vmul.f32 %v4739, %v4743
    %v4745 = vsub.f32 1.0, %v4744
    %v4746 = vmul.f32 %v4743, %v4745
    %v4747 = vadd.f32 %v4743, %v4746
    %vm4748 = vweird.f32 %v4739
    %vm4749 = vweird.f32 %v4743
    %vm4750 = vmor %vm4748, %vm4749
    %v4751 = vsel %vm4750, %v4743, %v4747
    %v4752 = vand.u32 2147483647, %v4739
    %vm4753 = vcmp.eq.f32.partialorder %v4752, 8.507059e+37
    %v4754 = vand.u32 %v4739, 2147483648
    %v4755 = vor.u32 1.1754944e-38, %v4754
    %v4756 = vsel %vm4753, %v4755, %v4751
    %v4757 = vmul.f32 %v4734, %v4756
    %v4758 = vrcp.pop %v4742
    %v4759 = vmul.f32 %v4742, %v4758
    %v4760 = vsub.f32 1.0, %v4759
    %v4761 = vmul.f32 %v4758, %v4760
    %v4762 = vadd.f32 %v4758, %v4761
    %vm4763 = vweird.f32 %v4742
    %vm4764 = vweird.f32 %v4758
    %vm4765 = vmor %vm4763, %vm4764
    %v4766 = vsel %vm4765, %v4758, %v4762
    %v4767 = vand.u32 2147483647, %v4742
    %vm4768 = vcmp.eq.f32.partialorder %v4767, 8.507059e+37
    %v4769 = vand.u32 %v4742, 2147483648
    %v4770 = vor.u32 1.1754944e-38, %v4769
    %v4771 = vsel %vm4768, %v4770, %v4766
    %v4772 = vmul.f32 %v4736, %v4771
    %v4773 = vpack.c.bf16 %v4757, %v4757
    %v4774 = vpack.c.bf16 %v4772, %v4772
    %4775 = vrot.lane.b32.xlu0 %v4351, 72
    %v4776 = vpop.permute.xlu0 %4775
    %v4778 = vsel %vm760, %v4773, 0
    %v4781 = vsel %vm764, %v4776, 0
    %4783 = vmatpush.bf16.msra.mxu0 0
    %4784 = vmatpush.bf16.msra.mxu0 0
    %4785 = vmatpush.bf16.msra.mxu0 0
    %4786 = vmatpush.bf16.msra.mxu0 0
    %4787 = vmatpush.bf16.msra.mxu0 0
    %4788 = vmatpush.bf16.msra.mxu0 0
    %4789 = vmatpush.bf16.msra.mxu0 0
    %4790 = vmatpush.bf16.msra.mxu0 %v4781
    %4791 = vmatmul.bf16.gmra.mxu0 %v4778
    %v4792 = vpop.f32.mrf.mxu0
    %v4793 = vadd.f32 0.0, %v4792
    %v4794 = vpop.f32.mrf.mxu0
    %4795 = vdwg.mxu0
    %4796 = vrot.lane.b32.xlu0 %v4375, 72
    %v4797 = vpop.permute.xlu0 %4796
    %v4799 = vsel %vm760, %v4774, 0
    %v4802 = vsel %vm764, %v4797, 0
    %4804 = vmatpush.bf16.msra.mxu0 0
    %4805 = vmatpush.bf16.msra.mxu0 0
    %4806 = vmatpush.bf16.msra.mxu0 0
    %4807 = vmatpush.bf16.msra.mxu0 0
    %4808 = vmatpush.bf16.msra.mxu0 0
    %4809 = vmatpush.bf16.msra.mxu0 0
    %4810 = vmatpush.bf16.msra.mxu0 0
    %4811 = vmatpush.bf16.msra.mxu0 %v4802
    %4812 = vmatmul.bf16.gmra.mxu0 %v4799
    %v4813 = vpop.f32.mrf.mxu0
    %v4814 = vadd.f32 0.0, %v4813
    %v4815 = vpop.f32.mrf.mxu0
    %4816 = vdwg.mxu0
    %4819 = vrot.lane.b32.xlu0 %v4517, 8
    %v4820 = vpop.permute.xlu0 %4819
    %4821 = vrot.lane.b32.xlu0 %v4538, 8
    %v4822 = vpop.permute.xlu0 %4821
    %4827 = vrot.lane.b32.xlu0 %v4655, 16
    %v4828 = vpop.permute.xlu0 %4827
    %4829 = vrot.lane.b32.xlu0 %v4676, 16
    %v4830 = vpop.permute.xlu0 %4829
    %4835 = vrot.lane.b32.xlu0 %v4793, 24
    %v4836 = vpop.permute.xlu0 %4835
    %4837 = vrot.lane.b32.xlu0 %v4814, 24
    %v4838 = vpop.permute.xlu0 %4837
    %v4841 = vsel %vm760, %v4370, %v4820
    %v4842 = vsel %vm760, %v4394, %v4822
    %v4843 = vsel %vm1152, %v4841, %v4828
    %v4844 = vsel %vm1152, %v4842, %v4830
    %v4845 = vsel %vm2496, %v4843, %v4836
    %v4846 = vsel %vm2496, %v4844, %v4838
    %v4847 = vpack.c.bf16 %v4846, %v4845
    %v4849 = vperm.slane %v4010, 0
    %v4855 = vunpack.c.l.b16 %v4005
    %v4856 = vunpack.c.l.b16 %v4006
    %v4857 = vunpack.c.l.b16 %v4007
    %v4858 = vunpack.c.l.b16 %v4008
    %v4859 = vpack.c.b16 %v4856, %v4855
    %v4860 = vpack.c.b16 %v4858, %v4857
    %v4864 = vsel %vm843, %v4847, 0
    %4866 = vmatpush.bf16.msra.mxu0 0
    %4867 = vmatpush.bf16.msra.mxu0 0
    %4868 = vmatpush.bf16.msra.mxu0 0
    %4869 = vmatpush.bf16.msra.mxu0 0
    %4870 = vmatpush.bf16.msra.mxu0 0
    %4871 = vmatpush.bf16.msra.mxu0 0
    %4872 = vmatpush.bf16.msra.mxu0 %v4860
    %4873 = vmatpush.bf16.msra.mxu0 %v4859
    %4874 = vmatmul.bf16.gmra.mxu0 %v4864
    %v4875 = vpop.f32.mrf.mxu0
    %v4876 = vadd.f32 %v4849, %v4875
    %v4877 = vpop.f32.mrf.mxu0
    %v4878 = vadd.f32 %v4849, %v4877
    %4879 = vdwg.mxu0
    %4882 = vrot.lane.b32.xlu0 %v4876, 64
    %v4883 = vpop.permute.xlu0 %4882
    %4884 = vrot.lane.b32.xlu0 %v4878, 64
    %v4885 = vpop.permute.xlu0 %4884
    %v4888 = vmul.f32 %v4146, %v4883
    %v4889 = vmul.f32 %v4147, %v4885
    %4892 = vrot.lane.b32.xlu0 %v4888, 64
    %v4893 = vpop.permute.xlu0 %4892
    %4894 = vrot.lane.b32.xlu0 %v4889, 64
    %v4895 = vpop.permute.xlu0 %4894
    %v4898 = vadd.f32 %v2791, %v4893
    %v4899 = vadd.f32 %v2792, %v4895
    %v4900 = vmul.f32 %v4898, %v4898
    %v4901 = vmul.f32 %v4899, %v4899
    %v4902 = vsel %vm843, %v4900, 0.0
    %4903 = vadd.xlane.f32.xlu0 %v4902
    %v4904 = vpop.xlane.xlu0 %4903
    %v4905 = vsel %vm843, %v4901, 0.0
    %4906 = vadd.xlane.f32.xlu0 %v4905
    %v4907 = vpop.xlane.xlu0 %4906
    %v4908 = vmul.f32 %v4904, %v1744
    %v4909 = vmul.f32 %v4907, %v1744
    %v4910 = vadd.f32 %v4908, 1e-06
    %v4911 = vadd.f32 %v4909, 1e-06
    %v4912 = vrsqrt.pop %v4910
    %v4913 = vmul.f32 %v4912, %v4910
    %v4914 = vmul.f32 %v4913, %v4912
    %v4915 = vmul.f32 0.5, %v4914
    %v4916 = vsub.f32 1.5, %v4915
    %v4917 = vmul.f32 %v4912, %v4916
    %vm4918 = vweird.f32 %v4910
    %vm4919 = vweird.f32 %v4912
    %vm4920 = vmor %vm4918, %vm4919
    %v4921 = vsel %vm4920, %v4912, %v4917
    %v4922 = vrsqrt.pop %v4911
    %v4923 = vmul.f32 %v4922, %v4911
    %v4924 = vmul.f32 %v4923, %v4922
    %v4925 = vmul.f32 0.5, %v4924
    %v4926 = vsub.f32 1.5, %v4925
    %v4927 = vmul.f32 %v4922, %v4926
    %vm4928 = vweird.f32 %v4911
    %vm4929 = vweird.f32 %v4922
    %vm4930 = vmor %vm4928, %vm4929
    %v4931 = vsel %vm4930, %v4922, %v4927
    %v4932 = vmul.f32 %v4898, %v4921
    %v4933 = vmul.f32 %v4899, %v4931
    %v4935 = vperm.slane %v3974, 0
    %v4937 = vmul.f32 %v4932, %v4935
    %v4938 = vmul.f32 %v4933, %v4935
    %v4940 = vrot.slane %v4121, 1
    %v4942 = vadd.f32 %v4121, 1.0
    %v4943 = vadd.f32 %v4940, 1.0
    %v4946 = vperm.slane %v4942, 0
    %v4947 = vperm.slane %v4943, 0
    %v4950 = vmul.f32 %v4937, %v4946
    %v4951 = vmul.f32 %v4938, %v4947
    %4952 = vrot.lane.b32.xlu0 %v4146, 32
    %v4953 = vpop.permute.xlu0 %4952
    %4954 = vrot.lane.b32.xlu0 %v4147, 32
    %v4955 = vpop.permute.xlu0 %4954
    %v4958 = vadd.f32 %v4950, %v4953
    %v4959 = vadd.f32 %v4951, %v4955
    %v4960 = vpack.c.bf16 %v4959, %v4958
    %v4965 = vunpack.c.l.b16 %v4012
    %v4966 = vunpack.c.h.b16 %v4012
    %v4967 = vunpack.c.l.b16 %v4013
    %v4968 = vunpack.c.h.b16 %v4013
    %v4969 = vunpack.c.l.b16 %v4014
    %v4970 = vunpack.c.h.b16 %v4014
    %v4971 = vunpack.c.l.b16 %v4015
    %v4972 = vunpack.c.h.b16 %v4015
    %v4973 = vpack.c.b16 %v4967, %v4965
    %v4974 = vpack.c.b16 %v4968, %v4966
    %v4975 = vpack.c.b16 %v4971, %v4969
    %v4976 = vpack.c.b16 %v4972, %v4970
    %v4982 = vsel %vm843, %v4960, 0
    %4984 = vmatpush.bf16.msra.mxu0 0
    %4985 = vmatpush.bf16.msra.mxu0 0
    %4986 = vmatpush.bf16.msra.mxu0 0
    %4987 = vmatpush.bf16.msra.mxu0 0
    %4988 = vmatpush.bf16.msra.mxu0 0
    %4989 = vmatpush.bf16.msra.mxu0 0
    %4990 = vmatpush.bf16.msra.mxu0 %v4975
    %4991 = vmatpush.bf16.msra.mxu0 %v4973
    %4992 = vmatmul.bf16.gmra.mxu0 %v4982
    %v4993 = vpop.f32.mrf.mxu0
    %v4994 = vadd.f32 0.0, %v4993
    %v4995 = vpop.f32.mrf.mxu0
    %v4996 = vadd.f32 0.0, %v4995
    %4997 = vdwg.mxu0
    %4998 = vmatpush.bf16.msra.mxu0 0
    %4999 = vmatpush.bf16.msra.mxu0 0
    %5000 = vmatpush.bf16.msra.mxu0 0
    %5001 = vmatpush.bf16.msra.mxu0 0
    %5002 = vmatpush.bf16.msra.mxu0 0
    %5003 = vmatpush.bf16.msra.mxu0 0
    %5004 = vmatpush.bf16.msra.mxu0 %v4976
    %5005 = vmatpush.bf16.msra.mxu0 %v4974
    %5006 = vmatmul.bf16.gmra.mxu0 %v4982
    %v5007 = vpop.f32.mrf.mxu0
    %v5008 = vadd.f32 0.0, %v5007
    %v5009 = vpop.f32.mrf.mxu0
    %v5010 = vadd.f32 0.0, %v5009
    %5011 = vdwg.mxu0
    %v5012 = vxor.u32 %v4994, 2147483648
    %v5013 = vxor.u32 %v4996, 2147483648
    %v5014 = vmul.f32 %v5012, 1.442695
    %v5015 = vpow.pop %v5014
    %v5016 = vmul.f32 %v5013, 1.442695
    %v5017 = vpow.pop %v5016
    %v5018 = vadd.f32 %v5015, 1.0
    %v5019 = vadd.f32 %v5017, 1.0
    %v5020 = vrcp.pop %v5018
    %v5021 = vmul.f32 %v5018, %v5020
    %v5022 = vsub.f32 1.0, %v5021
    %v5023 = vmul.f32 %v5020, %v5022
    %v5024 = vadd.f32 %v5020, %v5023
    %vm5025 = vweird.f32 %v5018
    %vm5026 = vweird.f32 %v5020
    %vm5027 = vmor %vm5025, %vm5026
    %v5028 = vsel %vm5027, %v5020, %v5024
    %v5029 = vand.u32 2147483647, %v5018
    %vm5030 = vcmp.eq.f32.partialorder %v5029, 8.507059e+37
    %v5031 = vand.u32 %v5018, 2147483648
    %v5032 = vor.u32 1.1754944e-38, %v5031
    %v5033 = vsel %vm5030, %v5032, %v5028
    %v5034 = vmul.f32 1.0, %v5033
    %v5035 = vrcp.pop %v5019
    %v5036 = vmul.f32 %v5019, %v5035
    %v5037 = vsub.f32 1.0, %v5036
    %v5038 = vmul.f32 %v5035, %v5037
    %v5039 = vadd.f32 %v5035, %v5038
    %vm5040 = vweird.f32 %v5019
    %vm5041 = vweird.f32 %v5035
    %vm5042 = vmor %vm5040, %vm5041
    %v5043 = vsel %vm5042, %v5035, %v5039
    %v5044 = vand.u32 2147483647, %v5019
    %vm5045 = vcmp.eq.f32.partialorder %v5044, 8.507059e+37
    %v5046 = vand.u32 %v5019, 2147483648
    %v5047 = vor.u32 1.1754944e-38, %v5046
    %v5048 = vsel %vm5045, %v5047, %v5043
    %v5049 = vmul.f32 1.0, %v5048
    %v5050 = vmul.f32 %v4994, %v5034
    %v5051 = vmul.f32 %v4996, %v5049
    %v5052 = vmul.f32 %v5050, %v5008
    %v5053 = vmul.f32 %v5051, %v5010
    %v5054 = vpack.c.bf16 %v5053, %v5052
    %v5071 = vunpack.c.l.b16 %v4017
    %v5072 = vunpack.c.l.b16 %v4018
    %v5073 = vunpack.c.l.b16 %v4019
    %v5074 = vunpack.c.l.b16 %v4020
    %v5075 = vunpack.c.l.b16 %v4021
    %v5076 = vunpack.c.l.b16 %v4022
    %v5077 = vunpack.c.l.b16 %v4023
    %v5078 = vunpack.c.l.b16 %v4024
    %v5079 = vunpack.c.l.b16 %v4025
    %v5080 = vunpack.c.l.b16 %v4026
    %v5081 = vunpack.c.l.b16 %v4027
    %v5082 = vunpack.c.l.b16 %v4028
    %v5083 = vunpack.c.l.b16 %v4029
    %v5084 = vunpack.c.l.b16 %v4030
    %v5085 = vunpack.c.l.b16 %v4031
    %v5086 = vunpack.c.l.b16 %v4032
    %v5087 = vpack.c.b16 %v5072, %v5071
    %v5088 = vpack.c.b16 %v5074, %v5073
    %v5089 = vpack.c.b16 %v5076, %v5075
    %v5090 = vpack.c.b16 %v5078, %v5077
    %v5091 = vpack.c.b16 %v5080, %v5079
    %v5092 = vpack.c.b16 %v5082, %v5081
    %v5093 = vpack.c.b16 %v5084, %v5083
    %v5094 = vpack.c.b16 %v5086, %v5085
    %5103 = vmatpush.bf16.msra.mxu0 %v5094
    %5104 = vmatpush.bf16.msra.mxu0 %v5093
    %5105 = vmatpush.bf16.msra.mxu0 %v5092
    %5106 = vmatpush.bf16.msra.mxu0 %v5091
    %5107 = vmatpush.bf16.msra.mxu0 %v5090
    %5108 = vmatpush.bf16.msra.mxu0 %v5089
    %5109 = vmatpush.bf16.msra.mxu0 %v5088
    %5110 = vmatpush.bf16.msra.mxu0 %v5087
    %5111 = vmatmul.bf16.gmra.mxu0 %v5054
    %v5112 = vpop.f32.mrf.mxu0
    %v5113 = vadd.f32 0.0, %v5112
    %v5114 = vpop.f32.mrf.mxu0
    %v5115 = vadd.f32 0.0, %v5114
    %5116 = vdwg.mxu0
    %v5117 = vperm.slane %v4121, 0
    %v5118 = vperm.slane %v4940, 0
    %5123 = vrot.lane.b32.xlu0 %v5113, 32
    %v5124 = vpop.permute.xlu0 %5123
    %5125 = vrot.lane.b32.xlu0 %v5115, 32
    %v5126 = vpop.permute.xlu0 %5125
    %v5129 = vmul.f32 %v5117, %v5124
    %v5130 = vmul.f32 %v5118, %v5126
    %5133 = vrot.lane.b32.xlu0 %v5129, 96
    %v5134 = vpop.permute.xlu0 %5133
    %5135 = vrot.lane.b32.xlu0 %v5130, 96
    %v5136 = vpop.permute.xlu0 %5135
    %v5139 = vadd.f32 %v4898, %v5134
    %v5140 = vadd.f32 %v4899, %v5136
    %v5141 = vpack.c.bf16 %v5140, %v5139
    %v5142 = vpack.c.bf16 %v1552, %v1552
    %v5143 = vld [vmem:[#allocation51] sm:$0xf]
    %v5144 = vld [vmem:[#allocation51 + $0x4] sm:$0xf]
    %v5145 = vld [vmem:[#allocation51 + $0x8] sm:$0xf]
    %v5146 = vld [vmem:[#allocation51 + $0xc] sm:$0xf]
    %v5147 = vld [vmem:[%s93] sm:$0x1]
    %v5149 = vperm.slane %v5147, 0
    %v5155 = vunpack.c.l.b16 %v5143
    %v5156 = vunpack.c.l.b16 %v5144
    %v5157 = vunpack.c.l.b16 %v5145
    %v5158 = vunpack.c.l.b16 %v5146
    %v5159 = vpack.c.b16 %v5156, %v5155
    %v5160 = vpack.c.b16 %v5158, %v5157
    %v5164 = vsel %vm843, %v5141, 0
    %5166 = vmatpush.bf16.msra.mxu0 0
    %5167 = vmatpush.bf16.msra.mxu0 0
    %5168 = vmatpush.bf16.msra.mxu0 0
    %5169 = vmatpush.bf16.msra.mxu0 0
    %5170 = vmatpush.bf16.msra.mxu0 0
    %5171 = vmatpush.bf16.msra.mxu0 0
    %5172 = vmatpush.bf16.msra.mxu0 %v5160
    %5173 = vmatpush.bf16.msra.mxu0 %v5159
    %5174 = vmatmul.bf16.gmra.mxu0 %v5164
    %v5175 = vpop.f32.mrf.mxu0
    %v5176 = vadd.f32 %v5149, %v5175
    %v5177 = vpop.f32.mrf.mxu0
    %v5178 = vadd.f32 %v5149, %v5177
    %5179 = vdwg.mxu0
    %v5180 = vld [vmem:[%s91] sm:$0xf]
    %v5181 = vld [vmem:[%s91 + $0x4] sm:$0xf]
    %v5182 = vld [vmem:[%s91 + $0x8] sm:$0xf]
    %v5183 = vld [vmem:[%s91 + $0xc] sm:$0xf]
    %v5184 = vld [vmem:[%s91 + $0x10] sm:$0xf]
    %v5185 = vld [vmem:[%s91 + $0x14] sm:$0xf]
    %v5186 = vld [vmem:[%s91 + $0x18] sm:$0xf]
    %v5187 = vld [vmem:[%s91 + $0x1c] sm:$0xf]
    %v5188 = vld [vmem:[%s91 + $0x20] sm:$0xf]
    %v5189 = vld [vmem:[%s91 + $0x24] sm:$0xf]
    %v5190 = vld [vmem:[%s91 + $0x28] sm:$0xf]
    %v5191 = vld [vmem:[%s91 + $0x2c] sm:$0xf]
    %v5204 = vunpack.c.l.b16 %v5180
    %v5205 = vunpack.c.l.b16 %v5181
    %v5206 = vunpack.c.l.b16 %v5182
    %v5207 = vunpack.c.l.b16 %v5183
    %v5208 = vunpack.c.l.b16 %v5184
    %v5209 = vunpack.c.l.b16 %v5185
    %v5210 = vunpack.c.l.b16 %v5186
    %v5211 = vunpack.c.l.b16 %v5187
    %v5212 = vunpack.c.l.b16 %v5188
    %v5213 = vunpack.c.l.b16 %v5189
    %v5214 = vunpack.c.l.b16 %v5190
    %v5215 = vunpack.c.l.b16 %v5191
    %v5216 = vpack.c.b16 %v5205, %v5204
    %v5217 = vpack.c.b16 %v5207, %v5206
    %v5218 = vpack.c.b16 %v5209, %v5208
    %v5219 = vpack.c.b16 %v5211, %v5210
    %v5220 = vpack.c.b16 %v5213, %v5212
    %v5221 = vpack.c.b16 %v5215, %v5214
    %v5229 = vsel %vm1700, %v5142, 0
    %5231 = vmatpush.bf16.msra.mxu0 0
    %5232 = vmatpush.bf16.msra.mxu0 0
    %5233 = vmatpush.bf16.msra.mxu0 %v5221
    %5234 = vmatpush.bf16.msra.mxu0 %v5220
    %5235 = vmatpush.bf16.msra.mxu0 %v5219
    %5236 = vmatpush.bf16.msra.mxu0 %v5218
    %5237 = vmatpush.bf16.msra.mxu0 %v5217
    %5238 = vmatpush.bf16.msra.mxu0 %v5216
    %5239 = vmatmul.bf16.gmra.mxu0 %v5229
    %v5240 = vpop.f32.mrf.mxu0
    %v5241 = vadd.f32 0.0, %v5240
    %v5242 = vpop.f32.mrf.mxu0
    %5243 = vdwg.mxu0
    %v5245 = vrot.slane %v5241, 1
    %v5246 = vperm.slane %v5241, 0
    %v5247 = vperm.slane %v5245, 0
    %v5250 = vadd.f32 %v5176, %v5246
    %v5251 = vadd.f32 %v5178, %v5247
    %v5252 = vxor.u32 %v5250, 2147483648
    %v5253 = vxor.u32 %v5251, 2147483648
    %v5254 = vmul.f32 %v5252, 1.442695
    %v5255 = vpow.pop %v5254
    %v5256 = vmul.f32 %v5253, 1.442695
    %v5257 = vpow.pop %v5256
    %v5258 = vadd.f32 %v5255, 1.0
    %v5259 = vadd.f32 %v5257, 1.0
    %v5260 = vrcp.pop %v5258
    %v5261 = vmul.f32 %v5258, %v5260
    %v5262 = vsub.f32 1.0, %v5261
    %v5263 = vmul.f32 %v5260, %v5262
    %v5264 = vadd.f32 %v5260, %v5263
    %vm5265 = vweird.f32 %v5258
    %vm5266 = vweird.f32 %v5260
    %vm5267 = vmor %vm5265, %vm5266
    %v5268 = vsel %vm5267, %v5260, %v5264
    %v5269 = vand.u32 2147483647, %v5258
    %vm5270 = vcmp.eq.f32.partialorder %v5269, 8.507059e+37
    %v5271 = vand.u32 %v5258, 2147483648
    %v5272 = vor.u32 1.1754944e-38, %v5271
    %v5273 = vsel %vm5270, %v5272, %v5268
    %v5274 = vmul.f32 1.0, %v5273
    %v5275 = vrcp.pop %v5259
    %v5276 = vmul.f32 %v5259, %v5275
    %v5277 = vsub.f32 1.0, %v5276
    %v5278 = vmul.f32 %v5275, %v5277
    %v5279 = vadd.f32 %v5275, %v5278
    %vm5280 = vweird.f32 %v5259
    %vm5281 = vweird.f32 %v5275
    %vm5282 = vmor %vm5280, %vm5281
    %v5283 = vsel %vm5282, %v5275, %v5279
    %v5284 = vand.u32 2147483647, %v5259
    %vm5285 = vcmp.eq.f32.partialorder %v5284, 8.507059e+37
    %v5286 = vand.u32 %v5259, 2147483648
    %v5287 = vor.u32 1.1754944e-38, %v5286
    %v5288 = vsel %vm5285, %v5287, %v5283
    %v5289 = vmul.f32 1.0, %v5288
    %v5290 = vmul.f32 %v5250, %v5274
    %v5291 = vmul.f32 %v5251, %v5289
    %v5292 = vld [vmem:[#allocation52] sm:$0xf]
    %v5293 = vld [vmem:[#allocation52 + $0x4] sm:$0xf]
    %v5294 = vld [vmem:[#allocation52 + $0x8] sm:$0xf]
    %v5295 = vld [vmem:[#allocation52 + $0xc] sm:$0xf]
    %v5296 = vld [vmem:[%s97] sm:$0x1]
    %v5297 = vpack.c.bf16 %v5291, %v5290
    %v5299 = vperm.slane %v5296, 0
    %v5305 = vunpack.c.l.b16 %v5292
    %v5306 = vunpack.c.l.b16 %v5293
    %v5307 = vunpack.c.l.b16 %v5294
    %v5308 = vunpack.c.l.b16 %v5295
    %v5309 = vpack.c.b16 %v5306, %v5305
    %v5310 = vpack.c.b16 %v5308, %v5307
    %v5314 = vsel %vm843, %v5297, 0
    %5316 = vmatpush.bf16.msra.mxu0 0
    %5317 = vmatpush.bf16.msra.mxu0 0
    %5318 = vmatpush.bf16.msra.mxu0 0
    %5319 = vmatpush.bf16.msra.mxu0 0
    %5320 = vmatpush.bf16.msra.mxu0 0
    %5321 = vmatpush.bf16.msra.mxu0 0
    %5322 = vmatpush.bf16.msra.mxu0 %v5310
    %5323 = vmatpush.bf16.msra.mxu0 %v5309
    %5324 = vmatmul.bf16.gmra.mxu0 %v5314
    %v5325 = vpop.f32.mrf.mxu0
    %v5326 = vadd.f32 %v5299, %v5325
    %v5327 = vpop.f32.mrf.mxu0
    %v5328 = vadd.f32 %v5299, %v5327
    %5329 = vdwg.mxu0
    %v5330 = vxor.u32 %v5326, 2147483648
    %v5331 = vxor.u32 %v5328, 2147483648
    %v5332 = vmul.f32 %v5330, 1.442695
    %v5333 = vpow.pop %v5332
    %v5334 = vmul.f32 %v5331, 1.442695
    %v5335 = vpow.pop %v5334
    %v5336 = vadd.f32 %v5333, 1.0
    %v5337 = vadd.f32 %v5335, 1.0
    %v5338 = vrcp.pop %v5336
    %v5339 = vmul.f32 %v5336, %v5338
    %v5340 = vsub.f32 1.0, %v5339
    %v5341 = vmul.f32 %v5338, %v5340
    %v5342 = vadd.f32 %v5338, %v5341
    %vm5343 = vweird.f32 %v5336
    %vm5344 = vweird.f32 %v5338
    %vm5345 = vmor %vm5343, %vm5344
    %v5346 = vsel %vm5345, %v5338, %v5342
    %v5347 = vand.u32 2147483647, %v5336
    %vm5348 = vcmp.eq.f32.partialorder %v5347, 8.507059e+37
    %v5349 = vand.u32 %v5336, 2147483648
    %v5350 = vor.u32 1.1754944e-38, %v5349
    %v5351 = vsel %vm5348, %v5350, %v5346
    %v5352 = vmul.f32 1.0, %v5351
    %v5353 = vrcp.pop %v5337
    %v5354 = vmul.f32 %v5337, %v5353
    %v5355 = vsub.f32 1.0, %v5354
    %v5356 = vmul.f32 %v5353, %v5355
    %v5357 = vadd.f32 %v5353, %v5356
    %vm5358 = vweird.f32 %v5337
    %vm5359 = vweird.f32 %v5353
    %vm5360 = vmor %vm5358, %vm5359
    %v5361 = vsel %vm5360, %v5353, %v5357
    %v5362 = vand.u32 2147483647, %v5337
    %vm5363 = vcmp.eq.f32.partialorder %v5362, 8.507059e+37
    %v5364 = vand.u32 %v5337, 2147483648
    %v5365 = vor.u32 1.1754944e-38, %v5364
    %v5366 = vsel %vm5363, %v5365, %v5361
    %v5367 = vmul.f32 1.0, %v5366
    %v5368 = vmul.f32 %v5326, %v5352
    %v5369 = vmul.f32 %v5328, %v5367
    %v5370 = vld [vmem:[#allocation54] sm:$0xf]
    %v5371 = vld [vmem:[#allocation54 + $0x4] sm:$0xf]
    %v5372 = vld [vmem:[#allocation54 + $0x8] sm:$0xf]
    %v5373 = vld [vmem:[#allocation54 + $0xc] sm:$0xf]
    %v5374 = vld [vmem:[%s101] sm:$0x1]
    %v5375 = vpack.c.bf16 %v5369, %v5368
    %v5377 = vperm.slane %v5374, 0
    %v5383 = vunpack.c.l.b16 %v5370
    %v5384 = vunpack.c.l.b16 %v5371
    %v5385 = vunpack.c.l.b16 %v5372
    %v5386 = vunpack.c.l.b16 %v5373
    %v5387 = vpack.c.b16 %v5384, %v5383
    %v5388 = vpack.c.b16 %v5386, %v5385
    %v5392 = vsel %vm843, %v5375, 0
    %5394 = vmatpush.bf16.msra.mxu0 0
    %5395 = vmatpush.bf16.msra.mxu0 0
    %5396 = vmatpush.bf16.msra.mxu0 0
    %5397 = vmatpush.bf16.msra.mxu0 0
    %5398 = vmatpush.bf16.msra.mxu0 0
    %5399 = vmatpush.bf16.msra.mxu0 0
    %5400 = vmatpush.bf16.msra.mxu0 %v5388
    %5401 = vmatpush.bf16.msra.mxu0 %v5387
    %5402 = vmatmul.bf16.gmra.mxu0 %v5392
    %v5403 = vpop.f32.mrf.mxu0
    %v5404 = vadd.f32 %v5377, %v5403
    %v5405 = vpop.f32.mrf.mxu0
    %v5406 = vadd.f32 %v5377, %v5405
    %5407 = vdwg.mxu0
    %v5408 = vxor.u32 %v5404, 2147483648
    %v5409 = vxor.u32 %v5406, 2147483648
    %v5410 = vmul.f32 %v5408, 1.442695
    %v5411 = vpow.pop %v5410
    %v5412 = vmul.f32 %v5409, 1.442695
    %v5413 = vpow.pop %v5412
    %v5414 = vadd.f32 %v5411, 1.0
    %v5415 = vadd.f32 %v5413, 1.0
    %v5416 = vrcp.pop %v5414
    %v5417 = vmul.f32 %v5414, %v5416
    %v5418 = vsub.f32 1.0, %v5417
    %v5419 = vmul.f32 %v5416, %v5418
    %v5420 = vadd.f32 %v5416, %v5419
    %vm5421 = vweird.f32 %v5414
    %vm5422 = vweird.f32 %v5416
    %vm5423 = vmor %vm5421, %vm5422
    %v5424 = vsel %vm5423, %v5416, %v5420
    %v5425 = vand.u32 2147483647, %v5414
    %vm5426 = vcmp.eq.f32.partialorder %v5425, 8.507059e+37
    %v5427 = vand.u32 %v5414, 2147483648
    %v5428 = vor.u32 1.1754944e-38, %v5427
    %v5429 = vsel %vm5426, %v5428, %v5424
    %v5430 = vmul.f32 1.0, %v5429
    %v5431 = vrcp.pop %v5415
    %v5432 = vmul.f32 %v5415, %v5431
    %v5433 = vsub.f32 1.0, %v5432
    %v5434 = vmul.f32 %v5431, %v5433
    %v5435 = vadd.f32 %v5431, %v5434
    %vm5436 = vweird.f32 %v5415
    %vm5437 = vweird.f32 %v5431
    %vm5438 = vmor %vm5436, %vm5437
    %v5439 = vsel %vm5438, %v5431, %v5435
    %v5440 = vand.u32 2147483647, %v5415
    %vm5441 = vcmp.eq.f32.partialorder %v5440, 8.507059e+37
    %v5442 = vand.u32 %v5415, 2147483648
    %v5443 = vor.u32 1.1754944e-38, %v5442
    %v5444 = vsel %vm5441, %v5443, %v5439
    %v5445 = vmul.f32 1.0, %v5444
    %v5446 = vmul.f32 %v5404, %v5430
    %v5447 = vmul.f32 %v5406, %v5445
    %v5448 = vld [vmem:[#allocation55] sm:$0xf]
    %v5449 = vld [vmem:[#allocation55 + $0x4] sm:$0xf]
    %v5450 = vld [vmem:[#allocation55 + $0x8] sm:$0xf]
    %v5451 = vld [vmem:[#allocation55 + $0xc] sm:$0xf]
    %v5452 = vld [vmem:[%s105] sm:$0x1]
    %v5453 = vpack.c.bf16 %v5447, %v5446
    %v5455 = vperm.slane %v5452, 0
    %v5461 = vunpack.c.l.b16 %v5448
    %v5462 = vunpack.c.l.b16 %v5449
    %v5463 = vunpack.c.l.b16 %v5450
    %v5464 = vunpack.c.l.b16 %v5451
    %v5465 = vpack.c.b16 %v5462, %v5461
    %v5466 = vpack.c.b16 %v5464, %v5463
    %v5470 = vsel %vm843, %v5453, 0
    %5472 = vmatpush.bf16.msra.mxu0 0
    %5473 = vmatpush.bf16.msra.mxu0 0
    %5474 = vmatpush.bf16.msra.mxu0 0
    %5475 = vmatpush.bf16.msra.mxu0 0
    %5476 = vmatpush.bf16.msra.mxu0 0
    %5477 = vmatpush.bf16.msra.mxu0 0
    %5478 = vmatpush.bf16.msra.mxu0 %v5466
    %5479 = vmatpush.bf16.msra.mxu0 %v5465
    %5480 = vmatmul.bf16.gmra.mxu0 %v5470
    %v5481 = vpop.f32.mrf.mxu0
    %v5482 = vadd.f32 %v5455, %v5481
    %v5483 = vpop.f32.mrf.mxu0
    %v5484 = vadd.f32 %v5455, %v5483
    %5485 = vdwg.mxu0
    %5486 = vst [vmem:[%s107] sm:$0xff] %v5482
    %5487 = vst [vmem:[%s107 + $0x8] sm:$0xff] %v5484
    // Predicated region
    $region358: #{_lambda_.1} parent=1 // pred_check
      _
    $region359: #{_lambda_.1} parent=1 // pred_check_branch
      %5489 = sbr.rel (0) target = $region361
    $region360: #{_lambda_.1} parent=1 // pred_region
      _
    $region361: #{_lambda_.1} parent=1 // pred_fallthru
      _
    // Predicated region
    $region362: #{_lambda_.1} parent=1 // pred_check
      _
    $region363: #{_lambda_.1} parent=1 // pred_check_branch
      %5491 = sbr.rel (0) target = $region365
    $region364: #{_lambda_.1} parent=1 // pred_region
      _
    $region365: #{_lambda_.1} parent=1 // pred_fallthru
      _
    %5492 = vsyncpa [#allocation3], 1
    %5493 = vsyncpa [#allocation5], 1
    %5494 = vsyncpa [#allocation8], 1
    %5495 = vsyncpa [#allocation11], 1
    %5496 = vsyncpa [#allocation14], 1
    %5497 = vsyncpa [#allocation17], 1
    %5498 = vsyncpa [#allocation20], 1
    %5499 = vsyncpa [#allocation23], 1
    %5500 = vsyncpa [#allocation26], 1
    %5501 = vsyncpa [#allocation29], 1
    %5502 = vsyncpa [#allocation32], 1
    %5503 = vsyncpa [#allocation35], 1
    %5504 = vsyncpa [#allocation38], 1
    %5505 = vsyncpa [#allocation41], 1
    %5506 = vsyncpa [#allocation44], 1
    %5507 = vsyncpa [#allocation47], 1
    %5508 = vsyncpa [#allocation50], 1
    %5509 = vsyncpa [#allocation53], 1
    %5510 = vsyncpa [#allocation56], 1

</llo_original>
